<compile_context>
chip_gen: v7x
topology: tpu7x:2x2x1
jax: 0.10.0
libtpu: 0.0.40
codegen_flags: <defaults>
</compile_context>

<pallas_src>
import functools

import jax
import jax.numpy as jnp
from jax.experimental import pallas as pl
from jax.experimental.pallas import tpu as pltpu


def _row_tile(n):
    """Largest row tile that (a) divides n, (b) gives >=2 grid steps (dual-TC v7x),
    (c) keeps each [tm, N] f32 workspace <= ~4 MiB (v7x has 64 MiB VMEM / TC)."""
    assert n % 8 == 0, "number of points must be a multiple of 8"
    cap = max(8, n // 2) if n >= 16 else n
    cap = min(cap, 256)
    cap = min(cap, max(8, (4 << 20) // (4 * n)))
    tm = 8
    for t in range(8, cap + 1, 8):
        if n % t == 0:
            tm = t
    return tm


# --------------------- fused DilateEdgeConv kernel ---------------------------

def _dilate_conv_kernel(xr_ref, xt_ref, sq_ref, xrep_ref, se_ref, o_ref, *,
                        k, neg_mask):
    """One row-tile: pairwise scores -> packed-key iterative kNN -> one-hot gather
    -> incremental max-plus dilation, all resident in VMEM."""
    f32 = jnp.float32
    # score[i, j] = ||x_j||^2 - 2 <x_i, x_j>  (same per-row ordering as sq. distance)
    g = jnp.dot(xr_ref[...], xt_ref[...], preferred_element_type=f32)      # [tm, N]
    score = sq_ref[...] - 2.0 * g
    tm, n = score.shape
    row0 = pl.program_id(0) * tm
    ri = jax.lax.broadcasted_iota(jnp.int32, (tm, n), 0) + row0
    ci = jax.lax.broadcasted_iota(jnp.int32, (tm, n), 1)

    # Totally-ordered int32 key (sign-flip trick), column index packed in low bits:
    # primary order = truncated distance, tie-break = smaller column index.
    # Keys are unique per row -> equality with the row min is an exact one-hot.
    bits = jax.lax.bitcast_convert_type(score, jnp.int32)
    key = jnp.where(bits < 0, bits ^ 0x7FFFFFFF, bits)
    key = (key & neg_mask) | ci
    key = jnp.where(ri == ci, 0x7FFFFFFF, key)            # exclude self (INT32_MAX)

    xrep = xrep_ref[...]                                   # [N, F*C] gather target
    se = se_ref[...]                                       # [k, F*C]
    out = None
    for j in range(k):                                     # k is small; static unroll
        kmin = jnp.min(key, axis=-1, keepdims=True)        # single XLU reduce / rank
        sel = key == kmin                                  # exact one-hot selector
        onehot = sel.astype(f32)
        # gather + F-tiling in one MXU pass: [tm, N] @ [N, F*C]
        nbr = jnp.dot(onehot, xrep, preferred_element_type=f32)
        cand = nbr + se[j:j + 1, :]                        # + se[rank, f] (repeated C x)
        out = cand if j == 0 else jnp.maximum(out, cand)
        if j + 1 < k:
            key = jnp.where(sel, 0x7FFFFFFF, key)          # retire chosen neighbor
    o_ref[...] = out                                       # lane-dense [tm, F*C] store


def dilate_edge_conv(x, se, k):
    """DilateEdgeConv: dynamic kNN graph on the layer input + max-plus dilation."""
    n, cin = x.shape
    f = se.shape[1]
    fc = f * cin
    assert k < n, "k must be smaller than the number of points"
    # Tiny wrapper-side prep (kept out of the kernel hot path):
    xb = x.astype(jnp.bfloat16)                   # bf16 score operands: 1 MXU pass
    xt = xb.T                                     # [C, N] pre-transposed RHS
    sq = jnp.sum(x * x, axis=1)[None, :]          # [1, N] f32 column norms
    x_rep = jnp.tile(x, (1, f))                   # [N, F*C]: x_rep[n, f*C+c] = x[n, c]
    se_rep = jnp.repeat(se, cin, axis=1)          # [k, F*C]: se_rep[j, f*C+c] = se[j, f]
    tm = _row_tile(n)
    idx_bits = max(1, (n - 1).bit_length())       # bits needed for the column index
    kern = functools.partial(_dilate_conv_kernel, k=k, neg_mask=-(1 << idx_bits))
    cost = pl.CostEstimate(
        flops=2 * n * n * cin + 2 * k * n * n * fc,
        transcendentals=0,
        bytes_accessed=2 * (2 * n * cin) + 4 * (n + n * fc + k * fc + n * fc),
    )
    return pl.pallas_call(
        kern,
        out_shape=jax.ShapeDtypeStruct((n, fc), jnp.float32),
        grid=(n // tm,),
        in_specs=[pl.BlockSpec((tm, cin), lambda i: (i, 0)),   # row tile (bf16)
                  pl.BlockSpec((cin, n), lambda i: (0, 0)),    # x^T, resident (bf16)
                  pl.BlockSpec((1, n), lambda i: (0, 0)),      # column norms
                  pl.BlockSpec((n, fc), lambda i: (0, 0)),     # gather target (f32)
                  pl.BlockSpec((k, fc), lambda i: (0, 0))],    # structuring element
        out_specs=pl.BlockSpec((tm, fc), lambda i: (i, 0)),
        compiler_params=pltpu.CompilerParams(
            dimension_semantics=("parallel",),
            vmem_limit_bytes=32 * 1024 * 1024),
        cost_estimate=cost,
    )(xb, xt, sq, x_rep, se_rep)


# --------------------- fused MLP head kernel ---------------------------------

def _head_kernel(xin_ref, w1_ref, b1_ref, w2_ref, b2_ref, w3_ref, b3_ref,
                 w4_ref, b4_ref, o_ref):
    f32 = jnp.float32
    h = jnp.dot(xin_ref[...], w1_ref[...], preferred_element_type=f32) + b1_ref[...]
    h = jnp.maximum(h, 0.0)                                                   # lin1+ReLU
    h = jnp.maximum(jnp.dot(h, w2_ref[...], preferred_element_type=f32) + b2_ref[...], 0.0)
    h = jnp.maximum(jnp.dot(h, w3_ref[...], preferred_element_type=f32) + b3_ref[...], 0.0)
    y = jnp.dot(h, w4_ref[...], preferred_element_type=f32) + b4_ref[...]     # classifier
    m = jnp.max(y, axis=-1, keepdims=True)                                    # log_softmax
    s = y - m
    o_ref[...] = s - jnp.log(jnp.sum(jnp.exp(s), axis=-1, keepdims=True))


def fused_head(xin, params):
    n, din = xin.shape
    w1, b1 = params["lin1"]
    w2, b2 = params["mlp1"]
    w3, b3 = params["mlp2"]
    w4, b4 = params["head"]
    h1, h2, h3, nc = w1.shape[1], w2.shape[1], w3.shape[1], w4.shape[1]
    tm = _row_tile(n)
    b1r, b2r, b3r, b4r = (b.reshape(1, -1) for b in (b1, b2, b3, b4))
    ins = (xin, w1, b1r, w2, b2r, w3, b3r, w4, b4r)
    in_specs = [pl.BlockSpec((tm, din), lambda i: (i, 0))] + [
        pl.BlockSpec(a.shape, lambda i: (0, 0)) for a in ins[1:]]
    cost = pl.CostEstimate(
        flops=2 * n * (din * h1 + h1 * h2 + h2 * h3 + h3 * nc),
        transcendentals=n * (nc + 1),
        bytes_accessed=4 * (n * din + w1.size + w2.size + w3.size + w4.size
                            + h1 + h2 + h3 + nc + n * nc),
    )
    return pl.pallas_call(
        _head_kernel,
        out_shape=jax.ShapeDtypeStruct((n, nc), jnp.float32),
        grid=(n // tm,),
        in_specs=in_specs,
        out_specs=pl.BlockSpec((tm, nc), lambda i: (i, 0)),
        compiler_params=pltpu.CompilerParams(
            dimension_semantics=("parallel",),
            vmem_limit_bytes=32 * 1024 * 1024),
        cost_estimate=cost,
    )(*ins)


# ------------------------------- model ---------------------------------------

def _init_linear(key, din, dout):
    kw, kb = jax.random.split(key)
    lim = 1.0 / (din ** 0.5)                 # PyTorch nn.Linear default init
    w = jax.random.uniform(kw, (din, dout), jnp.float32, -lim, lim)
    b = jax.random.uniform(kb, (dout,), jnp.float32, -lim, lim)
    return w, b


def init_params(key, k, in_channels, nb_filters, num_classes):
    keys = jax.random.split(key, 8)
    p = {}
    p["se1"] = 0.1 * jax.random.normal(keys[0], (k, nb_filters), jnp.float32)
    p["se2"] = 0.1 * jax.random.normal(keys[1], (k, 2), jnp.float32)
    p["se3"] = 0.1 * jax.random.normal(keys[2], (k, 2), jnp.float32)
    lin_in = in_channels * nb_filters * 7
    p["lin1"] = _init_linear(keys[3], lin_in, 1024)
    p["mlp1"] = _init_linear(keys[4], 1024, 256)
    p["mlp2"] = _init_linear(keys[5], 256, 128)
    p["head"] = _init_linear(keys[6], 128, num_classes)
    return p


def forward(params, x, k):
    x = x.astype(jnp.float32)                        # single cast at model entry
    x1 = dilate_edge_conv(x, params["se1"], k)       # [N, C*F]    (= [N, 12])
    x2 = dilate_edge_conv(x1, params["se2"], k)      # [N, C*F*2]  (= [N, 24])
    x3 = dilate_edge_conv(x2, params["se3"], k)      # [N, C*F*4]  (= [N, 48])
    xin = jnp.concatenate([x1, x2, x3], axis=1)      # [N, C*F*7] lane-dense head input
    # lin1 + mlp(256,128) + classifier + log_softmax, all in one kernel
    return fused_head(xin, params)


# ------------------------------- main -----------------------------------------

if __name__ == "__main__":
    K = 8                # k nearest neighbors
    NUM_CLASSES = 10
    IN_CHANNELS = 3
    NB_FILTERS = 4       # small synthetic setting (module default is 20)
    N = 128              # points in the cloud (batch=None -> single cloud)

    root = jax.random.PRNGKey(0)
    kp, kx = jax.random.split(root)
    params = init_params(kp, K, IN_CHANNELS, NB_FILTERS, NUM_CLASSES)
    x = jax.random.normal(kx, (N, IN_CHANNELS), jnp.float32)

    fwd = jax.jit(functools.partial(forward, k=K))
    out = fwd(params, x)
    jax.block_until_ready(out)

    assert out.shape == (N, NUM_CLASSES)
    assert bool(jnp.all(jnp.isfinite(out)))
    # log_softmax rows must (approximately) sum to 1 in probability space
    assert bool(jnp.all(jnp.abs(jnp.sum(jnp.exp(out), axis=-1) - 1.0) < 1e-3))
    print("KERNEL_OK")
</pallas_src>

<mosaic_0001>
module attributes {stable_mosaic.version = 11 : i64} {
  func.func @_dilate_conv_kernel(%arg0: i32, %arg1: memref<64x24xbf16, #tpu.memory_space<vmem>>, %arg2: memref<24x128xbf16, #tpu.memory_space<vmem>>, %arg3: memref<1x128xf32, #tpu.memory_space<vmem>>, %arg4: memref<128x48xf32, #tpu.memory_space<vmem>>, %arg5: memref<8x48xf32, #tpu.memory_space<vmem>>, %arg6: memref<64x48xf32, #tpu.memory_space<vmem>>) attributes {dimension_semantics = [#tpu.dimension_semantics<parallel>], iteration_bounds = array<i64: 2>, scalar_prefetch = 0 : i64, scratch_operands = 0 : i64, tpu.core_type = #tpu.core_type<tc>, window_params = [{transform_indices = @transform_0, window_bounds = array<i64: 64, 24>}, {pipeline_mode = #tpu.pipeline_mode<synchronous>, transform_indices = @transform_1, window_bounds = array<i64: 24, 128>}, {pipeline_mode = #tpu.pipeline_mode<synchronous>, transform_indices = @transform_2, window_bounds = array<i64: 1, 128>}, {pipeline_mode = #tpu.pipeline_mode<synchronous>, transform_indices = @transform_3, window_bounds = array<i64: 128, 48>}, {pipeline_mode = #tpu.pipeline_mode<synchronous>, transform_indices = @transform_4, window_bounds = array<i64: 8, 48>}, {transform_indices = @transform_5, window_bounds = array<i64: 64, 48>}]} {
    %c0 = arith.constant 0 : index
    %c0_0 = arith.constant 0 : index
    %0 = vector.load %arg1[%c0, %c0_0] : memref<64x24xbf16, #tpu.memory_space<vmem>>, vector<64x24xbf16>
    %c0_1 = arith.constant 0 : index
    %c0_2 = arith.constant 0 : index
    %1 = vector.load %arg2[%c0_1, %c0_2] : memref<24x128xbf16, #tpu.memory_space<vmem>>, vector<24x128xbf16>
    %cst = arith.constant dense<0.000000e+00> : vector<64x128xf32>
    %2 = tpu.matmul %0, %1, %cst {dimension_numbers = #tpu.dot_dimension_numbers<[1], [0], [0], [1], [0, 0, 1, 1], [], []>} : vector<64x24xbf16>, vector<24x128xbf16>, vector<64x128xf32> -> vector<64x128xf32>
    %c0_3 = arith.constant 0 : index
    %c0_4 = arith.constant 0 : index
    %3 = vector.load %arg3[%c0_3, %c0_4] : memref<1x128xf32, #tpu.memory_space<vmem>>, vector<1x128xf32>
    %cst_5 = arith.constant 2.000000e+00 : f32
    %4 = vector.broadcast %cst_5 : f32 to vector<64x128xf32>
    %5 = arith.mulf %4, %2 : vector<64x128xf32>
    %6 = vector.broadcast %3 : vector<1x128xf32> to vector<64x128xf32>
    %7 = arith.subf %6, %5 : vector<64x128xf32>
    %c64_i32 = arith.constant 64 : i32
    %8 = arith.muli %arg0, %c64_i32 : i32
    %9 = tpu.iota {dimensions = array<i32: 0>} : vector<64x128xi32>
    %10 = vector.broadcast %8 : i32 to vector<64x128xi32>
    %11 = arith.addi %9, %10 : vector<64x128xi32>
    %12 = tpu.iota {dimensions = array<i32: 1>} : vector<64x128xi32>
    %13 = tpu.bitcast %7 : vector<64x128xf32> -> vector<64x128xi32>
    %c0_i32 = arith.constant 0 : i32
    %14 = vector.broadcast %c0_i32 : i32 to vector<64x128xi32>
    %15 = arith.cmpi slt, %13, %14 : vector<64x128xi32>
    %c2147483647_i32 = arith.constant 2147483647 : i32
    %16 = vector.broadcast %c2147483647_i32 : i32 to vector<64x128xi32>
    %17 = arith.xori %13, %16 : vector<64x128xi32>
    %18 = arith.select %15, %17, %13 : vector<64x128xi1>, vector<64x128xi32>
    %c-128_i32 = arith.constant -128 : i32
    %19 = vector.broadcast %c-128_i32 : i32 to vector<64x128xi32>
    %20 = arith.andi %18, %19 : vector<64x128xi32>
    %21 = arith.ori %20, %12 : vector<64x128xi32>
    %22 = arith.cmpi eq, %11, %12 : vector<64x128xi32>
    %c2147483647_i32_6 = arith.constant 2147483647 : i32
    %23 = vector.broadcast %c2147483647_i32_6 : i32 to vector<64x128xi32>
    %24 = arith.select %22, %23, %21 : vector<64x128xi1>, vector<64x128xi32>
    %c0_7 = arith.constant 0 : index
    %c0_8 = arith.constant 0 : index
    %25 = vector.load %arg4[%c0_7, %c0_8] : memref<128x48xf32, #tpu.memory_space<vmem>>, vector<128x48xf32>
    %c0_9 = arith.constant 0 : index
    %c0_10 = arith.constant 0 : index
    %26 = vector.load %arg5[%c0_9, %c0_10] : memref<8x48xf32, #tpu.memory_space<vmem>>, vector<8x48xf32>
    %cst_11 = arith.constant dense<2147483647> : vector<64xi32>
    %27 = vector.multi_reduction <minsi>, %24, %cst_11 [1] : vector<64x128xi32> to vector<64xi32>
    %28 = vector.shape_cast %27 : vector<64xi32> to vector<64x1xi32>
    %29 = vector.broadcast %28 : vector<64x1xi32> to vector<64x128xi32>
    %30 = arith.cmpi eq, %24, %29 : vector<64x128xi32>
    %31 = arith.extui %30 : vector<64x128xi1> to vector<64x128xi32>
    %32 = arith.sitofp %31 : vector<64x128xi32> to vector<64x128xf32>
    %cst_12 = arith.constant dense<0.000000e+00> : vector<64x48xf32>
    %33 = tpu.matmul %32, %25, %cst_12 {dimension_numbers = #tpu.dot_dimension_numbers<[1], [0], [0], [1], [0, 0, 1, 1], [], []>} : vector<64x128xf32>, vector<128x48xf32>, vector<64x48xf32> -> vector<64x48xf32>
    %34 = vector.extract_strided_slice %26 {offsets = [0, 0], sizes = [1, 48], strides = [1, 1]} : vector<8x48xf32> to vector<1x48xf32>
    %35 = vector.broadcast %34 : vector<1x48xf32> to vector<64x48xf32>
    %36 = arith.addf %33, %35 : vector<64x48xf32>
    %c2147483647_i32_13 = arith.constant 2147483647 : i32
    %37 = vector.broadcast %c2147483647_i32_13 : i32 to vector<64x128xi32>
    %38 = arith.select %30, %37, %24 : vector<64x128xi1>, vector<64x128xi32>
    %cst_14 = arith.constant dense<2147483647> : vector<64xi32>
    %39 = vector.multi_reduction <minsi>, %38, %cst_14 [1] : vector<64x128xi32> to vector<64xi32>
    %40 = vector.shape_cast %39 : vector<64xi32> to vector<64x1xi32>
    %41 = vector.broadcast %40 : vector<64x1xi32> to vector<64x128xi32>
    %42 = arith.cmpi eq, %38, %41 : vector<64x128xi32>
    %43 = arith.extui %42 : vector<64x128xi1> to vector<64x128xi32>
    %44 = arith.sitofp %43 : vector<64x128xi32> to vector<64x128xf32>
    %cst_15 = arith.constant dense<0.000000e+00> : vector<64x48xf32>
    %45 = tpu.matmul %44, %25, %cst_15 {dimension_numbers = #tpu.dot_dimension_numbers<[1], [0], [0], [1], [0, 0, 1, 1], [], []>} : vector<64x128xf32>, vector<128x48xf32>, vector<64x48xf32> -> vector<64x48xf32>
    %46 = vector.extract_strided_slice %26 {offsets = [1, 0], sizes = [1, 48], strides = [1, 1]} : vector<8x48xf32> to vector<1x48xf32>
    %47 = vector.broadcast %46 : vector<1x48xf32> to vector<64x48xf32>
    %48 = arith.addf %45, %47 : vector<64x48xf32>
    %49 = arith.maximumf %36, %48 : vector<64x48xf32>
    %c2147483647_i32_16 = arith.constant 2147483647 : i32
    %50 = vector.broadcast %c2147483647_i32_16 : i32 to vector<64x128xi32>
    %51 = arith.select %42, %50, %38 : vector<64x128xi1>, vector<64x128xi32>
    %cst_17 = arith.constant dense<2147483647> : vector<64xi32>
    %52 = vector.multi_reduction <minsi>, %51, %cst_17 [1] : vector<64x128xi32> to vector<64xi32>
    %53 = vector.shape_cast %52 : vector<64xi32> to vector<64x1xi32>
    %54 = vector.broadcast %53 : vector<64x1xi32> to vector<64x128xi32>
    %55 = arith.cmpi eq, %51, %54 : vector<64x128xi32>
    %56 = arith.extui %55 : vector<64x128xi1> to vector<64x128xi32>
    %57 = arith.sitofp %56 : vector<64x128xi32> to vector<64x128xf32>
    %cst_18 = arith.constant dense<0.000000e+00> : vector<64x48xf32>
    %58 = tpu.matmul %57, %25, %cst_18 {dimension_numbers = #tpu.dot_dimension_numbers<[1], [0], [0], [1], [0, 0, 1, 1], [], []>} : vector<64x128xf32>, vector<128x48xf32>, vector<64x48xf32> -> vector<64x48xf32>
    %59 = vector.extract_strided_slice %26 {offsets = [2, 0], sizes = [1, 48], strides = [1, 1]} : vector<8x48xf32> to vector<1x48xf32>
    %60 = vector.broadcast %59 : vector<1x48xf32> to vector<64x48xf32>
    %61 = arith.addf %58, %60 : vector<64x48xf32>
    %62 = arith.maximumf %49, %61 : vector<64x48xf32>
    %c2147483647_i32_19 = arith.constant 2147483647 : i32
    %63 = vector.broadcast %c2147483647_i32_19 : i32 to vector<64x128xi32>
    %64 = arith.select %55, %63, %51 : vector<64x128xi1>, vector<64x128xi32>
    %cst_20 = arith.constant dense<2147483647> : vector<64xi32>
    %65 = vector.multi_reduction <minsi>, %64, %cst_20 [1] : vector<64x128xi32> to vector<64xi32>
    %66 = vector.shape_cast %65 : vector<64xi32> to vector<64x1xi32>
    %67 = vector.broadcast %66 : vector<64x1xi32> to vector<64x128xi32>
    %68 = arith.cmpi eq, %64, %67 : vector<64x128xi32>
    %69 = arith.extui %68 : vector<64x128xi1> to vector<64x128xi32>
    %70 = arith.sitofp %69 : vector<64x128xi32> to vector<64x128xf32>
    %cst_21 = arith.constant dense<0.000000e+00> : vector<64x48xf32>
    %71 = tpu.matmul %70, %25, %cst_21 {dimension_numbers = #tpu.dot_dimension_numbers<[1], [0], [0], [1], [0, 0, 1, 1], [], []>} : vector<64x128xf32>, vector<128x48xf32>, vector<64x48xf32> -> vector<64x48xf32>
    %72 = vector.extract_strided_slice %26 {offsets = [3, 0], sizes = [1, 48], strides = [1, 1]} : vector<8x48xf32> to vector<1x48xf32>
    %73 = vector.broadcast %72 : vector<1x48xf32> to vector<64x48xf32>
    %74 = arith.addf %71, %73 : vector<64x48xf32>
    %75 = arith.maximumf %62, %74 : vector<64x48xf32>
    %c2147483647_i32_22 = arith.constant 2147483647 : i32
    %76 = vector.broadcast %c2147483647_i32_22 : i32 to vector<64x128xi32>
    %77 = arith.select %68, %76, %64 : vector<64x128xi1>, vector<64x128xi32>
    %cst_23 = arith.constant dense<2147483647> : vector<64xi32>
    %78 = vector.multi_reduction <minsi>, %77, %cst_23 [1] : vector<64x128xi32> to vector<64xi32>
    %79 = vector.shape_cast %78 : vector<64xi32> to vector<64x1xi32>
    %80 = vector.broadcast %79 : vector<64x1xi32> to vector<64x128xi32>
    %81 = arith.cmpi eq, %77, %80 : vector<64x128xi32>
    %82 = arith.extui %81 : vector<64x128xi1> to vector<64x128xi32>
    %83 = arith.sitofp %82 : vector<64x128xi32> to vector<64x128xf32>
    %cst_24 = arith.constant dense<0.000000e+00> : vector<64x48xf32>
    %84 = tpu.matmul %83, %25, %cst_24 {dimension_numbers = #tpu.dot_dimension_numbers<[1], [0], [0], [1], [0, 0, 1, 1], [], []>} : vector<64x128xf32>, vector<128x48xf32>, vector<64x48xf32> -> vector<64x48xf32>
    %85 = vector.extract_strided_slice %26 {offsets = [4, 0], sizes = [1, 48], strides = [1, 1]} : vector<8x48xf32> to vector<1x48xf32>
    %86 = vector.broadcast %85 : vector<1x48xf32> to vector<64x48xf32>
    %87 = arith.addf %84, %86 : vector<64x48xf32>
    %88 = arith.maximumf %75, %87 : vector<64x48xf32>
    %c2147483647_i32_25 = arith.constant 2147483647 : i32
    %89 = vector.broadcast %c2147483647_i32_25 : i32 to vector<64x128xi32>
    %90 = arith.select %81, %89, %77 : vector<64x128xi1>, vector<64x128xi32>
    %cst_26 = arith.constant dense<2147483647> : vector<64xi32>
    %91 = vector.multi_reduction <minsi>, %90, %cst_26 [1] : vector<64x128xi32> to vector<64xi32>
    %92 = vector.shape_cast %91 : vector<64xi32> to vector<64x1xi32>
    %93 = vector.broadcast %92 : vector<64x1xi32> to vector<64x128xi32>
    %94 = arith.cmpi eq, %90, %93 : vector<64x128xi32>
    %95 = arith.extui %94 : vector<64x128xi1> to vector<64x128xi32>
    %96 = arith.sitofp %95 : vector<64x128xi32> to vector<64x128xf32>
    %cst_27 = arith.constant dense<0.000000e+00> : vector<64x48xf32>
    %97 = tpu.matmul %96, %25, %cst_27 {dimension_numbers = #tpu.dot_dimension_numbers<[1], [0], [0], [1], [0, 0, 1, 1], [], []>} : vector<64x128xf32>, vector<128x48xf32>, vector<64x48xf32> -> vector<64x48xf32>
    %98 = vector.extract_strided_slice %26 {offsets = [5, 0], sizes = [1, 48], strides = [1, 1]} : vector<8x48xf32> to vector<1x48xf32>
    %99 = vector.broadcast %98 : vector<1x48xf32> to vector<64x48xf32>
    %100 = arith.addf %97, %99 : vector<64x48xf32>
    %101 = arith.maximumf %88, %100 : vector<64x48xf32>
    %c2147483647_i32_28 = arith.constant 2147483647 : i32
    %102 = vector.broadcast %c2147483647_i32_28 : i32 to vector<64x128xi32>
    %103 = arith.select %94, %102, %90 : vector<64x128xi1>, vector<64x128xi32>
    %cst_29 = arith.constant dense<2147483647> : vector<64xi32>
    %104 = vector.multi_reduction <minsi>, %103, %cst_29 [1] : vector<64x128xi32> to vector<64xi32>
    %105 = vector.shape_cast %104 : vector<64xi32> to vector<64x1xi32>
    %106 = vector.broadcast %105 : vector<64x1xi32> to vector<64x128xi32>
    %107 = arith.cmpi eq, %103, %106 : vector<64x128xi32>
    %108 = arith.extui %107 : vector<64x128xi1> to vector<64x128xi32>
    %109 = arith.sitofp %108 : vector<64x128xi32> to vector<64x128xf32>
    %cst_30 = arith.constant dense<0.000000e+00> : vector<64x48xf32>
    %110 = tpu.matmul %109, %25, %cst_30 {dimension_numbers = #tpu.dot_dimension_numbers<[1], [0], [0], [1], [0, 0, 1, 1], [], []>} : vector<64x128xf32>, vector<128x48xf32>, vector<64x48xf32> -> vector<64x48xf32>
    %111 = vector.extract_strided_slice %26 {offsets = [6, 0], sizes = [1, 48], strides = [1, 1]} : vector<8x48xf32> to vector<1x48xf32>
    %112 = vector.broadcast %111 : vector<1x48xf32> to vector<64x48xf32>
    %113 = arith.addf %110, %112 : vector<64x48xf32>
    %114 = arith.maximumf %101, %113 : vector<64x48xf32>
    %c2147483647_i32_31 = arith.constant 2147483647 : i32
    %115 = vector.broadcast %c2147483647_i32_31 : i32 to vector<64x128xi32>
    %116 = arith.select %107, %115, %103 : vector<64x128xi1>, vector<64x128xi32>
    %cst_32 = arith.constant dense<2147483647> : vector<64xi32>
    %117 = vector.multi_reduction <minsi>, %116, %cst_32 [1] : vector<64x128xi32> to vector<64xi32>
    %118 = vector.shape_cast %117 : vector<64xi32> to vector<64x1xi32>
    %119 = vector.broadcast %118 : vector<64x1xi32> to vector<64x128xi32>
    %120 = arith.cmpi eq, %116, %119 : vector<64x128xi32>
    %121 = arith.extui %120 : vector<64x128xi1> to vector<64x128xi32>
    %122 = arith.sitofp %121 : vector<64x128xi32> to vector<64x128xf32>
    %cst_33 = arith.constant dense<0.000000e+00> : vector<64x48xf32>
    %123 = tpu.matmul %122, %25, %cst_33 {dimension_numbers = #tpu.dot_dimension_numbers<[1], [0], [0], [1], [0, 0, 1, 1], [], []>} : vector<64x128xf32>, vector<128x48xf32>, vector<64x48xf32> -> vector<64x48xf32>
    %124 = vector.extract_strided_slice %26 {offsets = [7, 0], sizes = [1, 48], strides = [1, 1]} : vector<8x48xf32> to vector<1x48xf32>
    %125 = vector.broadcast %124 : vector<1x48xf32> to vector<64x48xf32>
    %126 = arith.addf %123, %125 : vector<64x48xf32>
    %127 = arith.maximumf %114, %126 : vector<64x48xf32>
    %c0_34 = arith.constant 0 : index
    %c0_35 = arith.constant 0 : index
    %128 = vector.load %arg6[%c0_34, %c0_35] : memref<64x48xf32, #tpu.memory_space<vmem>>, vector<64x48xf32>
    tpu.vector_store %arg6[%c0_34, %c0_35], %127 {strides = array<i32>} : memref<64x48xf32, #tpu.memory_space<vmem>>, vector<64x48xf32>,
    return
  }
  func.func @transform_0(%arg0: i32) -> (i32, i32) {
    %c0_i32 = arith.constant 0 : i32
    %c0_i32_0 = arith.constant 0 : i32
    return %arg0, %c0_i32 : i32, i32
  }
  func.func @transform_1(%arg0: i32) -> (i32, i32) {
    %c0_i32 = arith.constant 0 : i32
    %c0_i32_0 = arith.constant 0 : i32
    %c0_i32_1 = arith.constant 0 : i32
    return %c0_i32, %c0_i32_0 : i32, i32
  }
  func.func @transform_2(%arg0: i32) -> (i32, i32) {
    %c0_i32 = arith.constant 0 : i32
    %c0_i32_0 = arith.constant 0 : i32
    %c0_i32_1 = arith.constant 0 : i32
    return %c0_i32, %c0_i32_0 : i32, i32
  }
  func.func @transform_3(%arg0: i32) -> (i32, i32) {
    %c0_i32 = arith.constant 0 : i32
    %c0_i32_0 = arith.constant 0 : i32
    %c0_i32_1 = arith.constant 0 : i32
    return %c0_i32, %c0_i32_0 : i32, i32
  }
  func.func @transform_4(%arg0: i32) -> (i32, i32) {
    %c0_i32 = arith.constant 0 : i32
    %c0_i32_0 = arith.constant 0 : i32
    %c0_i32_1 = arith.constant 0 : i32
    return %c0_i32, %c0_i32_0 : i32, i32
  }
  func.func @transform_5(%arg0: i32) -> (i32, i32) {
    %c0_i32 = arith.constant 0 : i32
    %c0_i32_0 = arith.constant 0 : i32
    return %arg0, %c0_i32 : i32, i32
  }
}

module attributes {stable_mosaic.version = 11 : i64} {
  func.func @_dilate_conv_kernel(%arg0: i32, %arg1: memref<64x12xbf16, #tpu.memory_space<vmem>>, %arg2: memref<12x128xbf16, #tpu.memory_space<vmem>>, %arg3: memref<1x128xf32, #tpu.memory_space<vmem>>, %arg4: memref<128x24xf32, #tpu.memory_space<vmem>>, %arg5: memref<8x24xf32, #tpu.memory_space<vmem>>, %arg6: memref<64x24xf32, #tpu.memory_space<vmem>>) attributes {dimension_semantics = [#tpu.dimension_semantics<parallel>], iteration_bounds = array<i64: 2>, scalar_prefetch = 0 : i64, scratch_operands = 0 : i64, tpu.core_type = #tpu.core_type<tc>, window_params = [{transform_indices = @transform_0, window_bounds = array<i64: 64, 12>}, {pipeline_mode = #tpu.pipeline_mode<synchronous>, transform_indices = @transform_1, window_bounds = array<i64: 12, 128>}, {pipeline_mode = #tpu.pipeline_mode<synchronous>, transform_indices = @transform_2, window_bounds = array<i64: 1, 128>}, {pipeline_mode = #tpu.pipeline_mode<synchronous>, transform_indices = @transform_3, window_bounds = array<i64: 128, 24>}, {pipeline_mode = #tpu.pipeline_mode<synchronous>, transform_indices = @transform_4, window_bounds = array<i64: 8, 24>}, {transform_indices = @transform_5, window_bounds = array<i64: 64, 24>}]} {
    %c0 = arith.constant 0 : index
    %c0_0 = arith.constant 0 : index
    %0 = vector.load %arg1[%c0, %c0_0] : memref<64x12xbf16, #tpu.memory_space<vmem>>, vector<64x12xbf16>
    %c0_1 = arith.constant 0 : index
    %c0_2 = arith.constant 0 : index
    %1 = vector.load %arg2[%c0_1, %c0_2] : memref<12x128xbf16, #tpu.memory_space<vmem>>, vector<12x128xbf16>
    %cst = arith.constant dense<0.000000e+00> : vector<64x128xf32>
    %2 = tpu.matmul %0, %1, %cst {dimension_numbers = #tpu.dot_dimension_numbers<[1], [0], [0], [1], [0, 0, 1, 1], [], []>} : vector<64x12xbf16>, vector<12x128xbf16>, vector<64x128xf32> -> vector<64x128xf32>
    %c0_3 = arith.constant 0 : index
    %c0_4 = arith.constant 0 : index
    %3 = vector.load %arg3[%c0_3, %c0_4] : memref<1x128xf32, #tpu.memory_space<vmem>>, vector<1x128xf32>
    %cst_5 = arith.constant 2.000000e+00 : f32
    %4 = vector.broadcast %cst_5 : f32 to vector<64x128xf32>
    %5 = arith.mulf %4, %2 : vector<64x128xf32>
    %6 = vector.broadcast %3 : vector<1x128xf32> to vector<64x128xf32>
    %7 = arith.subf %6, %5 : vector<64x128xf32>
    %c64_i32 = arith.constant 64 : i32
    %8 = arith.muli %arg0, %c64_i32 : i32
    %9 = tpu.iota {dimensions = array<i32: 0>} : vector<64x128xi32>
    %10 = vector.broadcast %8 : i32 to vector<64x128xi32>
    %11 = arith.addi %9, %10 : vector<64x128xi32>
    %12 = tpu.iota {dimensions = array<i32: 1>} : vector<64x128xi32>
    %13 = tpu.bitcast %7 : vector<64x128xf32> -> vector<64x128xi32>
    %c0_i32 = arith.constant 0 : i32
    %14 = vector.broadcast %c0_i32 : i32 to vector<64x128xi32>
    %15 = arith.cmpi slt, %13, %14 : vector<64x128xi32>
    %c2147483647_i32 = arith.constant 2147483647 : i32
    %16 = vector.broadcast %c2147483647_i32 : i32 to vector<64x128xi32>
    %17 = arith.xori %13, %16 : vector<64x128xi32>
    %18 = arith.select %15, %17, %13 : vector<64x128xi1>, vector<64x128xi32>
    %c-128_i32 = arith.constant -128 : i32
    %19 = vector.broadcast %c-128_i32 : i32 to vector<64x128xi32>
    %20 = arith.andi %18, %19 : vector<64x128xi32>
    %21 = arith.ori %20, %12 : vector<64x128xi32>
    %22 = arith.cmpi eq, %11, %12 : vector<64x128xi32>
    %c2147483647_i32_6 = arith.constant 2147483647 : i32
    %23 = vector.broadcast %c2147483647_i32_6 : i32 to vector<64x128xi32>
    %24 = arith.select %22, %23, %21 : vector<64x128xi1>, vector<64x128xi32>
    %c0_7 = arith.constant 0 : index
    %c0_8 = arith.constant 0 : index
    %25 = vector.load %arg4[%c0_7, %c0_8] : memref<128x24xf32, #tpu.memory_space<vmem>>, vector<128x24xf32>
    %c0_9 = arith.constant 0 : index
    %c0_10 = arith.constant 0 : index
    %26 = vector.load %arg5[%c0_9, %c0_10] : memref<8x24xf32, #tpu.memory_space<vmem>>, vector<8x24xf32>
    %cst_11 = arith.constant dense<2147483647> : vector<64xi32>
    %27 = vector.multi_reduction <minsi>, %24, %cst_11 [1] : vector<64x128xi32> to vector<64xi32>
    %28 = vector.shape_cast %27 : vector<64xi32> to vector<64x1xi32>
    %29 = vector.broadcast %28 : vector<64x1xi32> to vector<64x128xi32>
    %30 = arith.cmpi eq, %24, %29 : vector<64x128xi32>
    %31 = arith.extui %30 : vector<64x128xi1> to vector<64x128xi32>
    %32 = arith.sitofp %31 : vector<64x128xi32> to vector<64x128xf32>
    %cst_12 = arith.constant dense<0.000000e+00> : vector<64x24xf32>
    %33 = tpu.matmul %32, %25, %cst_12 {dimension_numbers = #tpu.dot_dimension_numbers<[1], [0], [0], [1], [0, 0, 1, 1], [], []>} : vector<64x128xf32>, vector<128x24xf32>, vector<64x24xf32> -> vector<64x24xf32>
    %34 = vector.extract_strided_slice %26 {offsets = [0, 0], sizes = [1, 24], strides = [1, 1]} : vector<8x24xf32> to vector<1x24xf32>
    %35 = vector.broadcast %34 : vector<1x24xf32> to vector<64x24xf32>
    %36 = arith.addf %33, %35 : vector<64x24xf32>
    %c2147483647_i32_13 = arith.constant 2147483647 : i32
    %37 = vector.broadcast %c2147483647_i32_13 : i32 to vector<64x128xi32>
    %38 = arith.select %30, %37, %24 : vector<64x128xi1>, vector<64x128xi32>
    %cst_14 = arith.constant dense<2147483647> : vector<64xi32>
    %39 = vector.multi_reduction <minsi>, %38, %cst_14 [1] : vector<64x128xi32> to vector<64xi32>
    %40 = vector.shape_cast %39 : vector<64xi32> to vector<64x1xi32>
    %41 = vector.broadcast %40 : vector<64x1xi32> to vector<64x128xi32>
    %42 = arith.cmpi eq, %38, %41 : vector<64x128xi32>
    %43 = arith.extui %42 : vector<64x128xi1> to vector<64x128xi32>
    %44 = arith.sitofp %43 : vector<64x128xi32> to vector<64x128xf32>
    %cst_15 = arith.constant dense<0.000000e+00> : vector<64x24xf32>
    %45 = tpu.matmul %44, %25, %cst_15 {dimension_numbers = #tpu.dot_dimension_numbers<[1], [0], [0], [1], [0, 0, 1, 1], [], []>} : vector<64x128xf32>, vector<128x24xf32>, vector<64x24xf32> -> vector<64x24xf32>
    %46 = vector.extract_strided_slice %26 {offsets = [1, 0], sizes = [1, 24], strides = [1, 1]} : vector<8x24xf32> to vector<1x24xf32>
    %47 = vector.broadcast %46 : vector<1x24xf32> to vector<64x24xf32>
    %48 = arith.addf %45, %47 : vector<64x24xf32>
    %49 = arith.maximumf %36, %48 : vector<64x24xf32>
    %c2147483647_i32_16 = arith.constant 2147483647 : i32
    %50 = vector.broadcast %c2147483647_i32_16 : i32 to vector<64x128xi32>
    %51 = arith.select %42, %50, %38 : vector<64x128xi1>, vector<64x128xi32>
    %cst_17 = arith.constant dense<2147483647> : vector<64xi32>
    %52 = vector.multi_reduction <minsi>, %51, %cst_17 [1] : vector<64x128xi32> to vector<64xi32>
    %53 = vector.shape_cast %52 : vector<64xi32> to vector<64x1xi32>
    %54 = vector.broadcast %53 : vector<64x1xi32> to vector<64x128xi32>
    %55 = arith.cmpi eq, %51, %54 : vector<64x128xi32>
    %56 = arith.extui %55 : vector<64x128xi1> to vector<64x128xi32>
    %57 = arith.sitofp %56 : vector<64x128xi32> to vector<64x128xf32>
    %cst_18 = arith.constant dense<0.000000e+00> : vector<64x24xf32>
    %58 = tpu.matmul %57, %25, %cst_18 {dimension_numbers = #tpu.dot_dimension_numbers<[1], [0], [0], [1], [0, 0, 1, 1], [], []>} : vector<64x128xf32>, vector<128x24xf32>, vector<64x24xf32> -> vector<64x24xf32>
    %59 = vector.extract_strided_slice %26 {offsets = [2, 0], sizes = [1, 24], strides = [1, 1]} : vector<8x24xf32> to vector<1x24xf32>
    %60 = vector.broadcast %59 : vector<1x24xf32> to vector<64x24xf32>
    %61 = arith.addf %58, %60 : vector<64x24xf32>
    %62 = arith.maximumf %49, %61 : vector<64x24xf32>
    %c2147483647_i32_19 = arith.constant 2147483647 : i32
    %63 = vector.broadcast %c2147483647_i32_19 : i32 to vector<64x128xi32>
    %64 = arith.select %55, %63, %51 : vector<64x128xi1>, vector<64x128xi32>
    %cst_20 = arith.constant dense<2147483647> : vector<64xi32>
    %65 = vector.multi_reduction <minsi>, %64, %cst_20 [1] : vector<64x128xi32> to vector<64xi32>
    %66 = vector.shape_cast %65 : vector<64xi32> to vector<64x1xi32>
    %67 = vector.broadcast %66 : vector<64x1xi32> to vector<64x128xi32>
    %68 = arith.cmpi eq, %64, %67 : vector<64x128xi32>
    %69 = arith.extui %68 : vector<64x128xi1> to vector<64x128xi32>
    %70 = arith.sitofp %69 : vector<64x128xi32> to vector<64x128xf32>
    %cst_21 = arith.constant dense<0.000000e+00> : vector<64x24xf32>
    %71 = tpu.matmul %70, %25, %cst_21 {dimension_numbers = #tpu.dot_dimension_numbers<[1], [0], [0], [1], [0, 0, 1, 1], [], []>} : vector<64x128xf32>, vector<128x24xf32>, vector<64x24xf32> -> vector<64x24xf32>
    %72 = vector.extract_strided_slice %26 {offsets = [3, 0], sizes = [1, 24], strides = [1, 1]} : vector<8x24xf32> to vector<1x24xf32>
    %73 = vector.broadcast %72 : vector<1x24xf32> to vector<64x24xf32>
    %74 = arith.addf %71, %73 : vector<64x24xf32>
    %75 = arith.maximumf %62, %74 : vector<64x24xf32>
    %c2147483647_i32_22 = arith.constant 2147483647 : i32
    %76 = vector.broadcast %c2147483647_i32_22 : i32 to vector<64x128xi32>
    %77 = arith.select %68, %76, %64 : vector<64x128xi1>, vector<64x128xi32>
    %cst_23 = arith.constant dense<2147483647> : vector<64xi32>
    %78 = vector.multi_reduction <minsi>, %77, %cst_23 [1] : vector<64x128xi32> to vector<64xi32>
    %79 = vector.shape_cast %78 : vector<64xi32> to vector<64x1xi32>
    %80 = vector.broadcast %79 : vector<64x1xi32> to vector<64x128xi32>
    %81 = arith.cmpi eq, %77, %80 : vector<64x128xi32>
    %82 = arith.extui %81 : vector<64x128xi1> to vector<64x128xi32>
    %83 = arith.sitofp %82 : vector<64x128xi32> to vector<64x128xf32>
    %cst_24 = arith.constant dense<0.000000e+00> : vector<64x24xf32>
    %84 = tpu.matmul %83, %25, %cst_24 {dimension_numbers = #tpu.dot_dimension_numbers<[1], [0], [0], [1], [0, 0, 1, 1], [], []>} : vector<64x128xf32>, vector<128x24xf32>, vector<64x24xf32> -> vector<64x24xf32>
    %85 = vector.extract_strided_slice %26 {offsets = [4, 0], sizes = [1, 24], strides = [1, 1]} : vector<8x24xf32> to vector<1x24xf32>
    %86 = vector.broadcast %85 : vector<1x24xf32> to vector<64x24xf32>
    %87 = arith.addf %84, %86 : vector<64x24xf32>
    %88 = arith.maximumf %75, %87 : vector<64x24xf32>
    %c2147483647_i32_25 = arith.constant 2147483647 : i32
    %89 = vector.broadcast %c2147483647_i32_25 : i32 to vector<64x128xi32>
    %90 = arith.select %81, %89, %77 : vector<64x128xi1>, vector<64x128xi32>
    %cst_26 = arith.constant dense<2147483647> : vector<64xi32>
    %91 = vector.multi_reduction <minsi>, %90, %cst_26 [1] : vector<64x128xi32> to vector<64xi32>
    %92 = vector.shape_cast %91 : vector<64xi32> to vector<64x1xi32>
    %93 = vector.broadcast %92 : vector<64x1xi32> to vector<64x128xi32>
    %94 = arith.cmpi eq, %90, %93 : vector<64x128xi32>
    %95 = arith.extui %94 : vector<64x128xi1> to vector<64x128xi32>
    %96 = arith.sitofp %95 : vector<64x128xi32> to vector<64x128xf32>
    %cst_27 = arith.constant dense<0.000000e+00> : vector<64x24xf32>
    %97 = tpu.matmul %96, %25, %cst_27 {dimension_numbers = #tpu.dot_dimension_numbers<[1], [0], [0], [1], [0, 0, 1, 1], [], []>} : vector<64x128xf32>, vector<128x24xf32>, vector<64x24xf32> -> vector<64x24xf32>
    %98 = vector.extract_strided_slice %26 {offsets = [5, 0], sizes = [1, 24], strides = [1, 1]} : vector<8x24xf32> to vector<1x24xf32>
    %99 = vector.broadcast %98 : vector<1x24xf32> to vector<64x24xf32>
    %100 = arith.addf %97, %99 : vector<64x24xf32>
    %101 = arith.maximumf %88, %100 : vector<64x24xf32>
    %c2147483647_i32_28 = arith.constant 2147483647 : i32
    %102 = vector.broadcast %c2147483647_i32_28 : i32 to vector<64x128xi32>
    %103 = arith.select %94, %102, %90 : vector<64x128xi1>, vector<64x128xi32>
    %cst_29 = arith.constant dense<2147483647> : vector<64xi32>
    %104 = vector.multi_reduction <minsi>, %103, %cst_29 [1] : vector<64x128xi32> to vector<64xi32>
    %105 = vector.shape_cast %104 : vector<64xi32> to vector<64x1xi32>
    %106 = vector.broadcast %105 : vector<64x1xi32> to vector<64x128xi32>
    %107 = arith.cmpi eq, %103, %106 : vector<64x128xi32>
    %108 = arith.extui %107 : vector<64x128xi1> to vector<64x128xi32>
    %109 = arith.sitofp %108 : vector<64x128xi32> to vector<64x128xf32>
    %cst_30 = arith.constant dense<0.000000e+00> : vector<64x24xf32>
    %110 = tpu.matmul %109, %25, %cst_30 {dimension_numbers = #tpu.dot_dimension_numbers<[1], [0], [0], [1], [0, 0, 1, 1], [], []>} : vector<64x128xf32>, vector<128x24xf32>, vector<64x24xf32> -> vector<64x24xf32>
    %111 = vector.extract_strided_slice %26 {offsets = [6, 0], sizes = [1, 24], strides = [1, 1]} : vector<8x24xf32> to vector<1x24xf32>
    %112 = vector.broadcast %111 : vector<1x24xf32> to vector<64x24xf32>
    %113 = arith.addf %110, %112 : vector<64x24xf32>
    %114 = arith.maximumf %101, %113 : vector<64x24xf32>
    %c2147483647_i32_31 = arith.constant 2147483647 : i32
    %115 = vector.broadcast %c2147483647_i32_31 : i32 to vector<64x128xi32>
    %116 = arith.select %107, %115, %103 : vector<64x128xi1>, vector<64x128xi32>
    %cst_32 = arith.constant dense<2147483647> : vector<64xi32>
    %117 = vector.multi_reduction <minsi>, %116, %cst_32 [1] : vector<64x128xi32> to vector<64xi32>
    %118 = vector.shape_cast %117 : vector<64xi32> to vector<64x1xi32>
    %119 = vector.broadcast %118 : vector<64x1xi32> to vector<64x128xi32>
    %120 = arith.cmpi eq, %116, %119 : vector<64x128xi32>
    %121 = arith.extui %120 : vector<64x128xi1> to vector<64x128xi32>
    %122 = arith.sitofp %121 : vector<64x128xi32> to vector<64x128xf32>
    %cst_33 = arith.constant dense<0.000000e+00> : vector<64x24xf32>
    %123 = tpu.matmul %122, %25, %cst_33 {dimension_numbers = #tpu.dot_dimension_numbers<[1], [0], [0], [1], [0, 0, 1, 1], [], []>} : vector<64x128xf32>, vector<128x24xf32>, vector<64x24xf32> -> vector<64x24xf32>
    %124 = vector.extract_strided_slice %26 {offsets = [7, 0], sizes = [1, 24], strides = [1, 1]} : vector<8x24xf32> to vector<1x24xf32>
    %125 = vector.broadcast %124 : vector<1x24xf32> to vector<64x24xf32>
    %126 = arith.addf %123, %125 : vector<64x24xf32>
    %127 = arith.maximumf %114, %126 : vector<64x24xf32>
    %c0_34 = arith.constant 0 : index
    %c0_35 = arith.constant 0 : index
    %128 = vector.load %arg6[%c0_34, %c0_35] : memref<64x24xf32, #tpu.memory_space<vmem>>, vector<64x24xf32>
    tpu.vector_store %arg6[%c0_34, %c0_35], %127 {strides = array<i32>} : memref<64x24xf32, #tpu.memory_space<vmem>>, vector<64x24xf32>,
    return
  }
  func.func @transform_0(%arg0: i32) -> (i32, i32) {
    %c0_i32 = arith.constant 0 : i32
    %c0_i32_0 = arith.constant 0 : i32
    return %arg0, %c0_i32 : i32, i32
  }
  func.func @transform_1(%arg0: i32) -> (i32, i32) {
    %c0_i32 = arith.constant 0 : i32
    %c0_i32_0 = arith.constant 0 : i32
    %c0_i32_1 = arith.constant 0 : i32
    return %c0_i32, %c0_i32_0 : i32, i32
  }
  func.func @transform_2(%arg0: i32) -> (i32, i32) {
    %c0_i32 = arith.constant 0 : i32
    %c0_i32_0 = arith.constant 0 : i32
    %c0_i32_1 = arith.constant 0 : i32
    return %c0_i32, %c0_i32_0 : i32, i32
  }
  func.func @transform_3(%arg0: i32) -> (i32, i32) {
    %c0_i32 = arith.constant 0 : i32
    %c0_i32_0 = arith.constant 0 : i32
    %c0_i32_1 = arith.constant 0 : i32
    return %c0_i32, %c0_i32_0 : i32, i32
  }
  func.func @transform_4(%arg0: i32) -> (i32, i32) {
    %c0_i32 = arith.constant 0 : i32
    %c0_i32_0 = arith.constant 0 : i32
    %c0_i32_1 = arith.constant 0 : i32
    return %c0_i32, %c0_i32_0 : i32, i32
  }
  func.func @transform_5(%arg0: i32) -> (i32, i32) {
    %c0_i32 = arith.constant 0 : i32
    %c0_i32_0 = arith.constant 0 : i32
    return %arg0, %c0_i32 : i32, i32
  }
}

module attributes {stable_mosaic.version = 11 : i64} {
  func.func @_dilate_conv_kernel(%arg0: i32, %arg1: memref<64x3xbf16, #tpu.memory_space<vmem>>, %arg2: memref<3x128xbf16, #tpu.memory_space<vmem>>, %arg3: memref<1x128xf32, #tpu.memory_space<vmem>>, %arg4: memref<128x12xf32, #tpu.memory_space<vmem>>, %arg5: memref<8x12xf32, #tpu.memory_space<vmem>>, %arg6: memref<64x12xf32, #tpu.memory_space<vmem>>) attributes {dimension_semantics = [#tpu.dimension_semantics<parallel>], iteration_bounds = array<i64: 2>, scalar_prefetch = 0 : i64, scratch_operands = 0 : i64, tpu.core_type = #tpu.core_type<tc>, window_params = [{transform_indices = @transform_0, window_bounds = array<i64: 64, 3>}, {pipeline_mode = #tpu.pipeline_mode<synchronous>, transform_indices = @transform_1, window_bounds = array<i64: 3, 128>}, {pipeline_mode = #tpu.pipeline_mode<synchronous>, transform_indices = @transform_2, window_bounds = array<i64: 1, 128>}, {pipeline_mode = #tpu.pipeline_mode<synchronous>, transform_indices = @transform_3, window_bounds = array<i64: 128, 12>}, {pipeline_mode = #tpu.pipeline_mode<synchronous>, transform_indices = @transform_4, window_bounds = array<i64: 8, 12>}, {transform_indices = @transform_5, window_bounds = array<i64: 64, 12>}]} {
    %c0 = arith.constant 0 : index
    %c0_0 = arith.constant 0 : index
    %0 = vector.load %arg1[%c0, %c0_0] : memref<64x3xbf16, #tpu.memory_space<vmem>>, vector<64x3xbf16>
    %c0_1 = arith.constant 0 : index
    %c0_2 = arith.constant 0 : index
    %1 = vector.load %arg2[%c0_1, %c0_2] : memref<3x128xbf16, #tpu.memory_space<vmem>>, vector<3x128xbf16>
    %cst = arith.constant dense<0.000000e+00> : vector<64x128xf32>
    %2 = tpu.matmul %0, %1, %cst {dimension_numbers = #tpu.dot_dimension_numbers<[1], [0], [0], [1], [0, 0, 1, 1], [], []>} : vector<64x3xbf16>, vector<3x128xbf16>, vector<64x128xf32> -> vector<64x128xf32>
    %c0_3 = arith.constant 0 : index
    %c0_4 = arith.constant 0 : index
    %3 = vector.load %arg3[%c0_3, %c0_4] : memref<1x128xf32, #tpu.memory_space<vmem>>, vector<1x128xf32>
    %cst_5 = arith.constant 2.000000e+00 : f32
    %4 = vector.broadcast %cst_5 : f32 to vector<64x128xf32>
    %5 = arith.mulf %4, %2 : vector<64x128xf32>
    %6 = vector.broadcast %3 : vector<1x128xf32> to vector<64x128xf32>
    %7 = arith.subf %6, %5 : vector<64x128xf32>
    %c64_i32 = arith.constant 64 : i32
    %8 = arith.muli %arg0, %c64_i32 : i32
    %9 = tpu.iota {dimensions = array<i32: 0>} : vector<64x128xi32>
    %10 = vector.broadcast %8 : i32 to vector<64x128xi32>
    %11 = arith.addi %9, %10 : vector<64x128xi32>
    %12 = tpu.iota {dimensions = array<i32: 1>} : vector<64x128xi32>
    %13 = tpu.bitcast %7 : vector<64x128xf32> -> vector<64x128xi32>
    %c0_i32 = arith.constant 0 : i32
    %14 = vector.broadcast %c0_i32 : i32 to vector<64x128xi32>
    %15 = arith.cmpi slt, %13, %14 : vector<64x128xi32>
    %c2147483647_i32 = arith.constant 2147483647 : i32
    %16 = vector.broadcast %c2147483647_i32 : i32 to vector<64x128xi32>
    %17 = arith.xori %13, %16 : vector<64x128xi32>
    %18 = arith.select %15, %17, %13 : vector<64x128xi1>, vector<64x128xi32>
    %c-128_i32 = arith.constant -128 : i32
    %19 = vector.broadcast %c-128_i32 : i32 to vector<64x128xi32>
    %20 = arith.andi %18, %19 : vector<64x128xi32>
    %21 = arith.ori %20, %12 : vector<64x128xi32>
    %22 = arith.cmpi eq, %11, %12 : vector<64x128xi32>
    %c2147483647_i32_6 = arith.constant 2147483647 : i32
    %23 = vector.broadcast %c2147483647_i32_6 : i32 to vector<64x128xi32>
    %24 = arith.select %22, %23, %21 : vector<64x128xi1>, vector<64x128xi32>
    %c0_7 = arith.constant 0 : index
    %c0_8 = arith.constant 0 : index
    %25 = vector.load %arg4[%c0_7, %c0_8] : memref<128x12xf32, #tpu.memory_space<vmem>>, vector<128x12xf32>
    %c0_9 = arith.constant 0 : index
    %c0_10 = arith.constant 0 : index
    %26 = vector.load %arg5[%c0_9, %c0_10] : memref<8x12xf32, #tpu.memory_space<vmem>>, vector<8x12xf32>
    %cst_11 = arith.constant dense<2147483647> : vector<64xi32>
    %27 = vector.multi_reduction <minsi>, %24, %cst_11 [1] : vector<64x128xi32> to vector<64xi32>
    %28 = vector.shape_cast %27 : vector<64xi32> to vector<64x1xi32>
    %29 = vector.broadcast %28 : vector<64x1xi32> to vector<64x128xi32>
    %30 = arith.cmpi eq, %24, %29 : vector<64x128xi32>
    %31 = arith.extui %30 : vector<64x128xi1> to vector<64x128xi32>
    %32 = arith.sitofp %31 : vector<64x128xi32> to vector<64x128xf32>
    %cst_12 = arith.constant dense<0.000000e+00> : vector<64x12xf32>
    %33 = tpu.matmul %32, %25, %cst_12 {dimension_numbers = #tpu.dot_dimension_numbers<[1], [0], [0], [1], [0, 0, 1, 1], [], []>} : vector<64x128xf32>, vector<128x12xf32>, vector<64x12xf32> -> vector<64x12xf32>
    %34 = vector.extract_strided_slice %26 {offsets = [0, 0], sizes = [1, 12], strides = [1, 1]} : vector<8x12xf32> to vector<1x12xf32>
    %35 = vector.broadcast %34 : vector<1x12xf32> to vector<64x12xf32>
    %36 = arith.addf %33, %35 : vector<64x12xf32>
    %c2147483647_i32_13 = arith.constant 2147483647 : i32
    %37 = vector.broadcast %c2147483647_i32_13 : i32 to vector<64x128xi32>
    %38 = arith.select %30, %37, %24 : vector<64x128xi1>, vector<64x128xi32>
    %cst_14 = arith.constant dense<2147483647> : vector<64xi32>
    %39 = vector.multi_reduction <minsi>, %38, %cst_14 [1] : vector<64x128xi32> to vector<64xi32>
    %40 = vector.shape_cast %39 : vector<64xi32> to vector<64x1xi32>
    %41 = vector.broadcast %40 : vector<64x1xi32> to vector<64x128xi32>
    %42 = arith.cmpi eq, %38, %41 : vector<64x128xi32>
    %43 = arith.extui %42 : vector<64x128xi1> to vector<64x128xi32>
    %44 = arith.sitofp %43 : vector<64x128xi32> to vector<64x128xf32>
    %cst_15 = arith.constant dense<0.000000e+00> : vector<64x12xf32>
    %45 = tpu.matmul %44, %25, %cst_15 {dimension_numbers = #tpu.dot_dimension_numbers<[1], [0], [0], [1], [0, 0, 1, 1], [], []>} : vector<64x128xf32>, vector<128x12xf32>, vector<64x12xf32> -> vector<64x12xf32>
    %46 = vector.extract_strided_slice %26 {offsets = [1, 0], sizes = [1, 12], strides = [1, 1]} : vector<8x12xf32> to vector<1x12xf32>
    %47 = vector.broadcast %46 : vector<1x12xf32> to vector<64x12xf32>
    %48 = arith.addf %45, %47 : vector<64x12xf32>
    %49 = arith.maximumf %36, %48 : vector<64x12xf32>
    %c2147483647_i32_16 = arith.constant 2147483647 : i32
    %50 = vector.broadcast %c2147483647_i32_16 : i32 to vector<64x128xi32>
    %51 = arith.select %42, %50, %38 : vector<64x128xi1>, vector<64x128xi32>
    %cst_17 = arith.constant dense<2147483647> : vector<64xi32>
    %52 = vector.multi_reduction <minsi>, %51, %cst_17 [1] : vector<64x128xi32> to vector<64xi32>
    %53 = vector.shape_cast %52 : vector<64xi32> to vector<64x1xi32>
    %54 = vector.broadcast %53 : vector<64x1xi32> to vector<64x128xi32>
    %55 = arith.cmpi eq, %51, %54 : vector<64x128xi32>
    %56 = arith.extui %55 : vector<64x128xi1> to vector<64x128xi32>
    %57 = arith.sitofp %56 : vector<64x128xi32> to vector<64x128xf32>
    %cst_18 = arith.constant dense<0.000000e+00> : vector<64x12xf32>
    %58 = tpu.matmul %57, %25, %cst_18 {dimension_numbers = #tpu.dot_dimension_numbers<[1], [0], [0], [1], [0, 0, 1, 1], [], []>} : vector<64x128xf32>, vector<128x12xf32>, vector<64x12xf32> -> vector<64x12xf32>
    %59 = vector.extract_strided_slice %26 {offsets = [2, 0], sizes = [1, 12], strides = [1, 1]} : vector<8x12xf32> to vector<1x12xf32>
    %60 = vector.broadcast %59 : vector<1x12xf32> to vector<64x12xf32>
    %61 = arith.addf %58, %60 : vector<64x12xf32>
    %62 = arith.maximumf %49, %61 : vector<64x12xf32>
    %c2147483647_i32_19 = arith.constant 2147483647 : i32
    %63 = vector.broadcast %c2147483647_i32_19 : i32 to vector<64x128xi32>
    %64 = arith.select %55, %63, %51 : vector<64x128xi1>, vector<64x128xi32>
    %cst_20 = arith.constant dense<2147483647> : vector<64xi32>
    %65 = vector.multi_reduction <minsi>, %64, %cst_20 [1] : vector<64x128xi32> to vector<64xi32>
    %66 = vector.shape_cast %65 : vector<64xi32> to vector<64x1xi32>
    %67 = vector.broadcast %66 : vector<64x1xi32> to vector<64x128xi32>
    %68 = arith.cmpi eq, %64, %67 : vector<64x128xi32>
    %69 = arith.extui %68 : vector<64x128xi1> to vector<64x128xi32>
    %70 = arith.sitofp %69 : vector<64x128xi32> to vector<64x128xf32>
    %cst_21 = arith.constant dense<0.000000e+00> : vector<64x12xf32>
    %71 = tpu.matmul %70, %25, %cst_21 {dimension_numbers = #tpu.dot_dimension_numbers<[1], [0], [0], [1], [0, 0, 1, 1], [], []>} : vector<64x128xf32>, vector<128x12xf32>, vector<64x12xf32> -> vector<64x12xf32>
    %72 = vector.extract_strided_slice %26 {offsets = [3, 0], sizes = [1, 12], strides = [1, 1]} : vector<8x12xf32> to vector<1x12xf32>
    %73 = vector.broadcast %72 : vector<1x12xf32> to vector<64x12xf32>
    %74 = arith.addf %71, %73 : vector<64x12xf32>
    %75 = arith.maximumf %62, %74 : vector<64x12xf32>
    %c2147483647_i32_22 = arith.constant 2147483647 : i32
    %76 = vector.broadcast %c2147483647_i32_22 : i32 to vector<64x128xi32>
    %77 = arith.select %68, %76, %64 : vector<64x128xi1>, vector<64x128xi32>
    %cst_23 = arith.constant dense<2147483647> : vector<64xi32>
    %78 = vector.multi_reduction <minsi>, %77, %cst_23 [1] : vector<64x128xi32> to vector<64xi32>
    %79 = vector.shape_cast %78 : vector<64xi32> to vector<64x1xi32>
    %80 = vector.broadcast %79 : vector<64x1xi32> to vector<64x128xi32>
    %81 = arith.cmpi eq, %77, %80 : vector<64x128xi32>
    %82 = arith.extui %81 : vector<64x128xi1> to vector<64x128xi32>
    %83 = arith.sitofp %82 : vector<64x128xi32> to vector<64x128xf32>
    %cst_24 = arith.constant dense<0.000000e+00> : vector<64x12xf32>
    %84 = tpu.matmul %83, %25, %cst_24 {dimension_numbers = #tpu.dot_dimension_numbers<[1], [0], [0], [1], [0, 0, 1, 1], [], []>} : vector<64x128xf32>, vector<128x12xf32>, vector<64x12xf32> -> vector<64x12xf32>
    %85 = vector.extract_strided_slice %26 {offsets = [4, 0], sizes = [1, 12], strides = [1, 1]} : vector<8x12xf32> to vector<1x12xf32>
    %86 = vector.broadcast %85 : vector<1x12xf32> to vector<64x12xf32>
    %87 = arith.addf %84, %86 : vector<64x12xf32>
    %88 = arith.maximumf %75, %87 : vector<64x12xf32>
    %c2147483647_i32_25 = arith.constant 2147483647 : i32
    %89 = vector.broadcast %c2147483647_i32_25 : i32 to vector<64x128xi32>
    %90 = arith.select %81, %89, %77 : vector<64x128xi1>, vector<64x128xi32>
    %cst_26 = arith.constant dense<2147483647> : vector<64xi32>
    %91 = vector.multi_reduction <minsi>, %90, %cst_26 [1] : vector<64x128xi32> to vector<64xi32>
    %92 = vector.shape_cast %91 : vector<64xi32> to vector<64x1xi32>
    %93 = vector.broadcast %92 : vector<64x1xi32> to vector<64x128xi32>
    %94 = arith.cmpi eq, %90, %93 : vector<64x128xi32>
    %95 = arith.extui %94 : vector<64x128xi1> to vector<64x128xi32>
    %96 = arith.sitofp %95 : vector<64x128xi32> to vector<64x128xf32>
    %cst_27 = arith.constant dense<0.000000e+00> : vector<64x12xf32>
    %97 = tpu.matmul %96, %25, %cst_27 {dimension_numbers = #tpu.dot_dimension_numbers<[1], [0], [0], [1], [0, 0, 1, 1], [], []>} : vector<64x128xf32>, vector<128x12xf32>, vector<64x12xf32> -> vector<64x12xf32>
    %98 = vector.extract_strided_slice %26 {offsets = [5, 0], sizes = [1, 12], strides = [1, 1]} : vector<8x12xf32> to vector<1x12xf32>
    %99 = vector.broadcast %98 : vector<1x12xf32> to vector<64x12xf32>
    %100 = arith.addf %97, %99 : vector<64x12xf32>
    %101 = arith.maximumf %88, %100 : vector<64x12xf32>
    %c2147483647_i32_28 = arith.constant 2147483647 : i32
    %102 = vector.broadcast %c2147483647_i32_28 : i32 to vector<64x128xi32>
    %103 = arith.select %94, %102, %90 : vector<64x128xi1>, vector<64x128xi32>
    %cst_29 = arith.constant dense<2147483647> : vector<64xi32>
    %104 = vector.multi_reduction <minsi>, %103, %cst_29 [1] : vector<64x128xi32> to vector<64xi32>
    %105 = vector.shape_cast %104 : vector<64xi32> to vector<64x1xi32>
    %106 = vector.broadcast %105 : vector<64x1xi32> to vector<64x128xi32>
    %107 = arith.cmpi eq, %103, %106 : vector<64x128xi32>
    %108 = arith.extui %107 : vector<64x128xi1> to vector<64x128xi32>
    %109 = arith.sitofp %108 : vector<64x128xi32> to vector<64x128xf32>
    %cst_30 = arith.constant dense<0.000000e+00> : vector<64x12xf32>
    %110 = tpu.matmul %109, %25, %cst_30 {dimension_numbers = #tpu.dot_dimension_numbers<[1], [0], [0], [1], [0, 0, 1, 1], [], []>} : vector<64x128xf32>, vector<128x12xf32>, vector<64x12xf32> -> vector<64x12xf32>
    %111 = vector.extract_strided_slice %26 {offsets = [6, 0], sizes = [1, 12], strides = [1, 1]} : vector<8x12xf32> to vector<1x12xf32>
    %112 = vector.broadcast %111 : vector<1x12xf32> to vector<64x12xf32>
    %113 = arith.addf %110, %112 : vector<64x12xf32>
    %114 = arith.maximumf %101, %113 : vector<64x12xf32>
    %c2147483647_i32_31 = arith.constant 2147483647 : i32
    %115 = vector.broadcast %c2147483647_i32_31 : i32 to vector<64x128xi32>
    %116 = arith.select %107, %115, %103 : vector<64x128xi1>, vector<64x128xi32>
    %cst_32 = arith.constant dense<2147483647> : vector<64xi32>
    %117 = vector.multi_reduction <minsi>, %116, %cst_32 [1] : vector<64x128xi32> to vector<64xi32>
    %118 = vector.shape_cast %117 : vector<64xi32> to vector<64x1xi32>
    %119 = vector.broadcast %118 : vector<64x1xi32> to vector<64x128xi32>
    %120 = arith.cmpi eq, %116, %119 : vector<64x128xi32>
    %121 = arith.extui %120 : vector<64x128xi1> to vector<64x128xi32>
    %122 = arith.sitofp %121 : vector<64x128xi32> to vector<64x128xf32>
    %cst_33 = arith.constant dense<0.000000e+00> : vector<64x12xf32>
    %123 = tpu.matmul %122, %25, %cst_33 {dimension_numbers = #tpu.dot_dimension_numbers<[1], [0], [0], [1], [0, 0, 1, 1], [], []>} : vector<64x128xf32>, vector<128x12xf32>, vector<64x12xf32> -> vector<64x12xf32>
    %124 = vector.extract_strided_slice %26 {offsets = [7, 0], sizes = [1, 12], strides = [1, 1]} : vector<8x12xf32> to vector<1x12xf32>
    %125 = vector.broadcast %124 : vector<1x12xf32> to vector<64x12xf32>
    %126 = arith.addf %123, %125 : vector<64x12xf32>
    %127 = arith.maximumf %114, %126 : vector<64x12xf32>
    %c0_34 = arith.constant 0 : index
    %c0_35 = arith.constant 0 : index
    %128 = vector.load %arg6[%c0_34, %c0_35] : memref<64x12xf32, #tpu.memory_space<vmem>>, vector<64x12xf32>
    tpu.vector_store %arg6[%c0_34, %c0_35], %127 {strides = array<i32>} : memref<64x12xf32, #tpu.memory_space<vmem>>, vector<64x12xf32>,
    return
  }
  func.func @transform_0(%arg0: i32) -> (i32, i32) {
    %c0_i32 = arith.constant 0 : i32
    %c0_i32_0 = arith.constant 0 : i32
    return %arg0, %c0_i32 : i32, i32
  }
  func.func @transform_1(%arg0: i32) -> (i32, i32) {
    %c0_i32 = arith.constant 0 : i32
    %c0_i32_0 = arith.constant 0 : i32
    %c0_i32_1 = arith.constant 0 : i32
    return %c0_i32, %c0_i32_0 : i32, i32
  }
  func.func @transform_2(%arg0: i32) -> (i32, i32) {
    %c0_i32 = arith.constant 0 : i32
    %c0_i32_0 = arith.constant 0 : i32
    %c0_i32_1 = arith.constant 0 : i32
    return %c0_i32, %c0_i32_0 : i32, i32
  }
  func.func @transform_3(%arg0: i32) -> (i32, i32) {
    %c0_i32 = arith.constant 0 : i32
    %c0_i32_0 = arith.constant 0 : i32
    %c0_i32_1 = arith.constant 0 : i32
    return %c0_i32, %c0_i32_0 : i32, i32
  }
  func.func @transform_4(%arg0: i32) -> (i32, i32) {
    %c0_i32 = arith.constant 0 : i32
    %c0_i32_0 = arith.constant 0 : i32
    %c0_i32_1 = arith.constant 0 : i32
    return %c0_i32, %c0_i32_0 : i32, i32
  }
  func.func @transform_5(%arg0: i32) -> (i32, i32) {
    %c0_i32 = arith.constant 0 : i32
    %c0_i32_0 = arith.constant 0 : i32
    return %arg0, %c0_i32 : i32, i32
  }
}

module attributes {stable_mosaic.version = 11 : i64} {
  func.func @_head_kernel(%arg0: i32, %arg1: memref<64x84xf32, #tpu.memory_space<vmem>>, %arg2: memref<84x1024xf32, #tpu.memory_space<vmem>>, %arg3: memref<1x1024xf32, #tpu.memory_space<vmem>>, %arg4: memref<1024x256xf32, #tpu.memory_space<vmem>>, %arg5: memref<1x256xf32, #tpu.memory_space<vmem>>, %arg6: memref<256x128xf32, #tpu.memory_space<vmem>>, %arg7: memref<1x128xf32, #tpu.memory_space<vmem>>, %arg8: memref<128x10xf32, #tpu.memory_space<vmem>>, %arg9: memref<1x10xf32, #tpu.memory_space<vmem>>, %arg10: memref<64x10xf32, #tpu.memory_space<vmem>>) attributes {dimension_semantics = [#tpu.dimension_semantics<parallel>], iteration_bounds = array<i64: 2>, scalar_prefetch = 0 : i64, scratch_operands = 0 : i64, tpu.core_type = #tpu.core_type<tc>, window_params = [{transform_indices = @transform_0, window_bounds = array<i64: 64, 84>}, {pipeline_mode = #tpu.pipeline_mode<synchronous>, transform_indices = @transform_1, window_bounds = array<i64: 84, 1024>}, {pipeline_mode = #tpu.pipeline_mode<synchronous>, transform_indices = @transform_2, window_bounds = array<i64: 1, 1024>}, {pipeline_mode = #tpu.pipeline_mode<synchronous>, transform_indices = @transform_3, window_bounds = array<i64: 1024, 256>}, {pipeline_mode = #tpu.pipeline_mode<synchronous>, transform_indices = @transform_4, window_bounds = array<i64: 1, 256>}, {pipeline_mode = #tpu.pipeline_mode<synchronous>, transform_indices = @transform_5, window_bounds = array<i64: 256, 128>}, {pipeline_mode = #tpu.pipeline_mode<synchronous>, transform_indices = @transform_6, window_bounds = array<i64: 1, 128>}, {pipeline_mode = #tpu.pipeline_mode<synchronous>, transform_indices = @transform_7, window_bounds = array<i64: 128, 10>}, {pipeline_mode = #tpu.pipeline_mode<synchronous>, transform_indices = @transform_8, window_bounds = array<i64: 1, 10>}, {transform_indices = @transform_9, window_bounds = array<i64: 64, 10>}]} {
    %c0 = arith.constant 0 : index
    %c0_0 = arith.constant 0 : index
    %0 = vector.load %arg1[%c0, %c0_0] : memref<64x84xf32, #tpu.memory_space<vmem>>, vector<64x84xf32>
    %c0_1 = arith.constant 0 : index
    %c0_2 = arith.constant 0 : index
    %1 = vector.load %arg2[%c0_1, %c0_2] : memref<84x1024xf32, #tpu.memory_space<vmem>>, vector<84x1024xf32>
    %cst = arith.constant dense<0.000000e+00> : vector<64x1024xf32>
    %2 = tpu.matmul %0, %1, %cst {dimension_numbers = #tpu.dot_dimension_numbers<[1], [0], [0], [1], [0, 0, 1, 1], [], []>} : vector<64x84xf32>, vector<84x1024xf32>, vector<64x1024xf32> -> vector<64x1024xf32>
    %c0_3 = arith.constant 0 : index
    %c0_4 = arith.constant 0 : index
    %3 = vector.load %arg3[%c0_3, %c0_4] : memref<1x1024xf32, #tpu.memory_space<vmem>>, vector<1x1024xf32>
    %4 = vector.broadcast %3 : vector<1x1024xf32> to vector<64x1024xf32>
    %5 = arith.addf %2, %4 : vector<64x1024xf32>
    %cst_5 = arith.constant 0.000000e+00 : f32
    %6 = vector.broadcast %cst_5 : f32 to vector<64x1024xf32>
    %7 = arith.maximumf %5, %6 : vector<64x1024xf32>
    %c0_6 = arith.constant 0 : index
    %c0_7 = arith.constant 0 : index
    %8 = vector.load %arg4[%c0_6, %c0_7] : memref<1024x256xf32, #tpu.memory_space<vmem>>, vector<1024x256xf32>
    %cst_8 = arith.constant dense<0.000000e+00> : vector<64x256xf32>
    %9 = tpu.matmul %7, %8, %cst_8 {dimension_numbers = #tpu.dot_dimension_numbers<[1], [0], [0], [1], [0, 0, 1, 1], [], []>} : vector<64x1024xf32>, vector<1024x256xf32>, vector<64x256xf32> -> vector<64x256xf32>
    %c0_9 = arith.constant 0 : index
    %c0_10 = arith.constant 0 : index
    %10 = vector.load %arg5[%c0_9, %c0_10] : memref<1x256xf32, #tpu.memory_space<vmem>>, vector<1x256xf32>
    %11 = vector.broadcast %10 : vector<1x256xf32> to vector<64x256xf32>
    %12 = arith.addf %9, %11 : vector<64x256xf32>
    %cst_11 = arith.constant 0.000000e+00 : f32
    %13 = vector.broadcast %cst_11 : f32 to vector<64x256xf32>
    %14 = arith.maximumf %12, %13 : vector<64x256xf32>
    %c0_12 = arith.constant 0 : index
    %c0_13 = arith.constant 0 : index
    %15 = vector.load %arg6[%c0_12, %c0_13] : memref<256x128xf32, #tpu.memory_space<vmem>>, vector<256x128xf32>
    %cst_14 = arith.constant dense<0.000000e+00> : vector<64x128xf32>
    %16 = tpu.matmul %14, %15, %cst_14 {dimension_numbers = #tpu.dot_dimension_numbers<[1], [0], [0], [1], [0, 0, 1, 1], [], []>} : vector<64x256xf32>, vector<256x128xf32>, vector<64x128xf32> -> vector<64x128xf32>
    %c0_15 = arith.constant 0 : index
    %c0_16 = arith.constant 0 : index
    %17 = vector.load %arg7[%c0_15, %c0_16] : memref<1x128xf32, #tpu.memory_space<vmem>>, vector<1x128xf32>
    %18 = vector.broadcast %17 : vector<1x128xf32> to vector<64x128xf32>
    %19 = arith.addf %16, %18 : vector<64x128xf32>
    %cst_17 = arith.constant 0.000000e+00 : f32
    %20 = vector.broadcast %cst_17 : f32 to vector<64x128xf32>
    %21 = arith.maximumf %19, %20 : vector<64x128xf32>
    %c0_18 = arith.constant 0 : index
    %c0_19 = arith.constant 0 : index
    %22 = vector.load %arg8[%c0_18, %c0_19] : memref<128x10xf32, #tpu.memory_space<vmem>>, vector<128x10xf32>
    %cst_20 = arith.constant dense<0.000000e+00> : vector<64x10xf32>
    %23 = tpu.matmul %21, %22, %cst_20 {dimension_numbers = #tpu.dot_dimension_numbers<[1], [0], [0], [1], [0, 0, 1, 1], [], []>} : vector<64x128xf32>, vector<128x10xf32>, vector<64x10xf32> -> vector<64x10xf32>
    %c0_21 = arith.constant 0 : index
    %c0_22 = arith.constant 0 : index
    %24 = vector.load %arg9[%c0_21, %c0_22] : memref<1x10xf32, #tpu.memory_space<vmem>>, vector<1x10xf32>
    %25 = vector.broadcast %24 : vector<1x10xf32> to vector<64x10xf32>
    %26 = arith.addf %23, %25 : vector<64x10xf32>
    %cst_23 = arith.constant dense<0xFF800000> : vector<64xf32>
    %27 = vector.multi_reduction <maximumf>, %26, %cst_23 [1] : vector<64x10xf32> to vector<64xf32>
    %28 = vector.shape_cast %27 : vector<64xf32> to vector<64x1xf32>
    %29 = vector.broadcast %28 : vector<64x1xf32> to vector<64x10xf32>
    %30 = arith.subf %26, %29 : vector<64x10xf32>
    %31 = math.exp %30 : vector<64x10xf32>
    %cst_24 = arith.constant dense<0.000000e+00> : vector<64xf32>
    %32 = vector.multi_reduction <add>, %31, %cst_24 [1] : vector<64x10xf32> to vector<64xf32>
    %33 = vector.shape_cast %32 : vector<64xf32> to vector<64x1xf32>
    %34 = math.log %33 : vector<64x1xf32>
    %35 = vector.broadcast %34 : vector<64x1xf32> to vector<64x10xf32>
    %36 = arith.subf %30, %35 : vector<64x10xf32>
    %c0_25 = arith.constant 0 : index
    %c0_26 = arith.constant 0 : index
    %37 = vector.load %arg10[%c0_25, %c0_26] : memref<64x10xf32, #tpu.memory_space<vmem>>, vector<64x10xf32>
    tpu.vector_store %arg10[%c0_25, %c0_26], %36 {strides = array<i32>} : memref<64x10xf32, #tpu.memory_space<vmem>>, vector<64x10xf32>,
    return
  }
  func.func @transform_0(%arg0: i32) -> (i32, i32) {
    %c0_i32 = arith.constant 0 : i32
    %c0_i32_0 = arith.constant 0 : i32
    return %arg0, %c0_i32 : i32, i32
  }
  func.func @transform_1(%arg0: i32) -> (i32, i32) {
    %c0_i32 = arith.constant 0 : i32
    %c0_i32_0 = arith.constant 0 : i32
    %c0_i32_1 = arith.constant 0 : i32
    return %c0_i32, %c0_i32_0 : i32, i32
  }
  func.func @transform_2(%arg0: i32) -> (i32, i32) {
    %c0_i32 = arith.constant 0 : i32
    %c0_i32_0 = arith.constant 0 : i32
    %c0_i32_1 = arith.constant 0 : i32
    return %c0_i32, %c0_i32_0 : i32, i32
  }
  func.func @transform_3(%arg0: i32) -> (i32, i32) {
    %c0_i32 = arith.constant 0 : i32
    %c0_i32_0 = arith.constant 0 : i32
    %c0_i32_1 = arith.constant 0 : i32
    return %c0_i32, %c0_i32_0 : i32, i32
  }
  func.func @transform_4(%arg0: i32) -> (i32, i32) {
    %c0_i32 = arith.constant 0 : i32
    %c0_i32_0 = arith.constant 0 : i32
    %c0_i32_1 = arith.constant 0 : i32
    return %c0_i32, %c0_i32_0 : i32, i32
  }
  func.func @transform_5(%arg0: i32) -> (i32, i32) {
    %c0_i32 = arith.constant 0 : i32
    %c0_i32_0 = arith.constant 0 : i32
    %c0_i32_1 = arith.constant 0 : i32
    return %c0_i32, %c0_i32_0 : i32, i32
  }
  func.func @transform_6(%arg0: i32) -> (i32, i32) {
    %c0_i32 = arith.constant 0 : i32
    %c0_i32_0 = arith.constant 0 : i32
    %c0_i32_1 = arith.constant 0 : i32
    return %c0_i32, %c0_i32_0 : i32, i32
  }
  func.func @transform_7(%arg0: i32) -> (i32, i32) {
    %c0_i32 = arith.constant 0 : i32
    %c0_i32_0 = arith.constant 0 : i32
    %c0_i32_1 = arith.constant 0 : i32
    return %c0_i32, %c0_i32_0 : i32, i32
  }
  func.func @transform_8(%arg0: i32) -> (i32, i32) {
    %c0_i32 = arith.constant 0 : i32
    %c0_i32_0 = arith.constant 0 : i32
    %c0_i32_1 = arith.constant 0 : i32
    return %c0_i32, %c0_i32_0 : i32, i32
  }
  func.func @transform_9(%arg0: i32) -> (i32, i32) {
    %c0_i32 = arith.constant 0 : i32
    %c0_i32_0 = arith.constant 0 : i32
    return %arg0, %c0_i32 : i32, i32
  }
}

</mosaic_0001>

<llo_original>
// kernel: tile.19
$region0: #{tile.19}
  %s0 = inlined_call_operand.vmem [shape: f32[128,4,3], index: 0, kind: input, shape index: {}]
  %s1 = inlined_call_operand.vmem [shape: f32[128,12], index: 1, kind: output, shape index: {}]
  $region1: #{tile.19} parent=0
    #allocation0 [shape = 'u8[16384]{0}', space=vmem, size = 0x4000, scoped, tag = 'scoped mem for input reshape']
    %s3 = sshllo.u32 0, 4
    %s4 = smul.addr 4, 3
    %s5 = scalar_lea.vmem %s0, %s4
    %v6 = vld [vmem:[%s5] sm:%s3]
    %s7 = scalar_lea.vmem [#allocation0], 24
    %8 = vst [vmem:[%s7] sm:%s3] %v6
    %s9 = smul.addr 4, 2
    %s10 = scalar_lea.vmem %s0, %s9
    %v11 = vld [vmem:[%s10] sm:%s3]
    %s12 = scalar_lea.vmem [#allocation0], 16
    %13 = vst [vmem:[%s12] sm:%s3] %v11
    %s14 = scalar_lea.vmem %s0, 4
    %v15 = vld [vmem:[%s14] sm:%s3]
    %s16 = scalar_lea.vmem [#allocation0], 8
    %17 = vst [vmem:[%s16] sm:%s3] %v15
    %v18 = vld [vmem:[%s0] sm:%s3]
    %19 = vst [vmem:[#allocation0] sm:%s3] %v18
    %v20 = vld [vmem:[#allocation0] sm:$0x7]
    %21 = vst [vmem:[%s1] sm:$0x7] %v20
    %s22 = scalar_lea.vmem [#allocation0], 8
    %v23 = vld [vmem:[%s22] sm:$0x7]
    %s24 = scalar_lea.vmem %s1, 3
    %25 = vst [vmem:[%s24] sm:$0x7] %v23
    %s26 = scalar_lea.vmem [#allocation0], 16
    %v27 = vld [vmem:[%s26] sm:$0x7]
    %s28 = scalar_lea.vmem %s1, 6
    %29 = vst [vmem:[%s28] sm:$0x7] %v27
    %s30 = scalar_lea.vmem [#allocation0], 24
    %v31 = vld [vmem:[%s30] sm:$0x7]
    %s32 = scalar_lea.vmem %s1, 9
    %33 = vst [vmem:[%s32] sm:$0x7] %v31

// kernel: tile.24
$region0: #{tile.24}
  %s0 = inlined_call_operand.vmem [shape: f32[128,2,12], index: 0, kind: input, shape index: {}]
  %s1 = inlined_call_operand.vmem [shape: f32[128,24], index: 1, kind: output, shape index: {}]
  %v2 = vld [vmem:[%s0] sm:$0xff]
  %3 = vst [vmem:[%s1] sm:$0xff] %v2
  %s4 = scalar_lea.vmem %s0, 8
  %v5 = vld [vmem:[%s4] sm:$0xf]
  %s6 = scalar_lea.vmem %s1, 8
  %7 = vst [vmem:[%s6] sm:$0xf] %v5
  %s8 = scalar_lea.vmem %s0, 16
  %v9 = vld [vmem:[%s8] sm:$0xff]
  %s10 = scalar_lea.vmem %s1, 12
  %11 = vst [vmem:[%s10] sm:$0xff] %v9
  %s12 = scalar_lea.vmem %s0, 24
  %v13 = vld [vmem:[%s12] sm:$0xf]
  %s14 = scalar_lea.vmem %s1, 20
  %15 = vst [vmem:[%s14] sm:$0xf] %v13

// kernel: forward.6
$region0: #{forward.6}
  #allocation0 [shape = 'u32[]', space=smem, size = 0x4, offset = 0x4, fixed_abs, tag = 'smem constant byte address 0x4 - core index']
  #allocation1 [shape = 'u32[144,128]{1,0:T(1,128)}', space=vmem, size = 0x12000, scoped, tag = 'internal scratch']
  %s0 = inlined_call_operand.vmem [shape: bf16[128,24], index: 0, kind: input, shape index: {}]
  %s1 = inlined_call_operand.vmem [shape: bf16[24,128], index: 1, kind: input, shape index: {}]
  %s2 = inlined_call_operand.vmem [shape: f32[1,128], index: 2, kind: input, shape index: {}]
  %s3 = inlined_call_operand.vmem [shape: f32[128,48], index: 3, kind: input, shape index: {}]
  %s4 = inlined_call_operand.vmem [shape: f32[8,48], index: 4, kind: input, shape index: {}]
  %s5 = inlined_call_operand.vmem [shape: f32[128,48], index: 5, kind: output, shape index: {}]
  %s6 = sld [smem:[#allocation0]]
  $region53: #{forward.6} parent=0
    _
  %s8 = ssub.s32 1, %s6
  %s9 = scalar_select 0, %s8, %s6
  loop: start=0, step=1, limit=4
  $region2: #{forward.6} parent=0 // loop_pre_header
    _
  $region3: #{forward.6} parent=0 // loop_header
    %s11 = sphi 0, %s15
    %p12 = scmp.ge.s32.totalorder %s11, 4
    %s21 = sphi 0, %s23
    %s24 = sphi 0, %s21
    %s25 = sphi 0, %s24
    %s41 = sphi 0, %s25
    %s45 = sphi 0, %s45
    %s47 = sphi 0, %s45
    %s48 = sphi 0, %s47
    %s62 = sphi 0, %s48
    %s66 = sphi 0, %s66
    %s68 = sphi 0, %s66
    %s69 = sphi 0, %s68
    %s83 = sphi 0, %s69
    %s87 = sphi 0, %s87
    %s89 = sphi 0, %s87
    %s90 = sphi 0, %s89
    %s104 = sphi 0, %s90
    %s108 = sphi 0, %s108
    %s110 = sphi 0, %s108
    %s111 = sphi 0, %s110
    %s125 = sphi 0, %s111
    %s131 = sphi 0, %s133
    %s134 = sphi 0, %s131
    %s135 = sphi 0, %s134
    %s151 = sphi 0, %s135
  $region4: #{forward.6} parent=0 // loop_header_branch
    %14 = sbr.rel (%p12) target = $region8
  $region5: #{forward.6} parent=0 // loop_body
    %s16 = ssub.s32 %s11, 1
    %s17 = ssub.s32 %s11, 2
    %s18 = sadd.s32 %s11, 1
    %s19 = ssub.s32 %s11, %s18
    %p20 = scmp.eq.s32.totalorder %s19, 0
    %s22 = sadd.s32 %s21, 1
    %s23 = scalar_select %p20, %s21, %s22
    %p26 = pneg %p20
    %p27 = scmp.eq.s32.totalorder %s11, 1
    %p28 = por %p26, %p27
    %p29 = scmp.ne.s32.totalorder %s21, %s24
    %p30 = scmp.eq.s32.totalorder %s11, 0
    %p31 = por %p29, %p30
    %p32 = scmp.ne.s32.totalorder %s21, %s24
    %p33 = scmp.eq.s32.totalorder %s16, 1
    %p34 = por %p32, %p33
    %p35 = scmp.ne.s32.totalorder %s24, %s25
    %p36 = scmp.eq.s32.totalorder %s16, 0
    %p37 = por %p35, %p36
    %p38 = scmp.ne.s32.totalorder %s24, %s25
    %p39 = scmp.eq.s32.totalorder %s17, 1
    %p40 = por %p38, %p39
    %p42 = scmp.ne.s32.totalorder %s25, %s41
    %p43 = scmp.eq.s32.totalorder %s17, 0
    %p44 = por %p42, %p43
    %s46 = sadd.s32 %s45, 1
    %p49 = scmp.eq.s32.totalorder %s11, 1
    %p50 = scmp.ne.s32.totalorder %s45, %s47
    %p51 = scmp.eq.s32.totalorder %s11, 0
    %p52 = por %p50, %p51
    %p53 = scmp.ne.s32.totalorder %s45, %s47
    %p54 = scmp.eq.s32.totalorder %s16, 1
    %p55 = por %p53, %p54
    %p56 = scmp.ne.s32.totalorder %s47, %s48
    %p57 = scmp.eq.s32.totalorder %s16, 0
    %p58 = por %p56, %p57
    %p59 = scmp.ne.s32.totalorder %s47, %s48
    %p60 = scmp.eq.s32.totalorder %s17, 1
    %p61 = por %p59, %p60
    %p63 = scmp.ne.s32.totalorder %s48, %s62
    %p64 = scmp.eq.s32.totalorder %s17, 0
    %p65 = por %p63, %p64
    %s67 = sadd.s32 %s66, 1
    %p70 = scmp.eq.s32.totalorder %s11, 1
    %p71 = scmp.ne.s32.totalorder %s66, %s68
    %p72 = scmp.eq.s32.totalorder %s11, 0
    %p73 = por %p71, %p72
    %p74 = scmp.ne.s32.totalorder %s66, %s68
    %p75 = scmp.eq.s32.totalorder %s16, 1
    %p76 = por %p74, %p75
    %p77 = scmp.ne.s32.totalorder %s68, %s69
    %p78 = scmp.eq.s32.totalorder %s16, 0
    %p79 = por %p77, %p78
    %p80 = scmp.ne.s32.totalorder %s68, %s69
    %p81 = scmp.eq.s32.totalorder %s17, 1
    %p82 = por %p80, %p81
    %p84 = scmp.ne.s32.totalorder %s69, %s83
    %p85 = scmp.eq.s32.totalorder %s17, 0
    %p86 = por %p84, %p85
    %s88 = sadd.s32 %s87, 1
    %p91 = scmp.eq.s32.totalorder %s11, 1
    %p92 = scmp.ne.s32.totalorder %s87, %s89
    %p93 = scmp.eq.s32.totalorder %s11, 0
    %p94 = por %p92, %p93
    %p95 = scmp.ne.s32.totalorder %s87, %s89
    %p96 = scmp.eq.s32.totalorder %s16, 1
    %p97 = por %p95, %p96
    %p98 = scmp.ne.s32.totalorder %s89, %s90
    %p99 = scmp.eq.s32.totalorder %s16, 0
    %p100 = por %p98, %p99
    %p101 = scmp.ne.s32.totalorder %s89, %s90
    %p102 = scmp.eq.s32.totalorder %s17, 1
    %p103 = por %p101, %p102
    %p105 = scmp.ne.s32.totalorder %s90, %s104
    %p106 = scmp.eq.s32.totalorder %s17, 0
    %p107 = por %p105, %p106
    %s109 = sadd.s32 %s108, 1
    %p112 = scmp.eq.s32.totalorder %s11, 1
    %p113 = scmp.ne.s32.totalorder %s108, %s110
    %p114 = scmp.eq.s32.totalorder %s11, 0
    %p115 = por %p113, %p114
    %p116 = scmp.ne.s32.totalorder %s108, %s110
    %p117 = scmp.eq.s32.totalorder %s16, 1
    %p118 = por %p116, %p117
    %p119 = scmp.ne.s32.totalorder %s110, %s111
    %p120 = scmp.eq.s32.totalorder %s16, 0
    %p121 = por %p119, %p120
    %p122 = scmp.ne.s32.totalorder %s110, %s111
    %p123 = scmp.eq.s32.totalorder %s17, 1
    %p124 = por %p122, %p123
    %p126 = scmp.ne.s32.totalorder %s111, %s125
    %p127 = scmp.eq.s32.totalorder %s17, 0
    %p128 = por %p126, %p127
    %s129 = ssub.s32 %s11, %s18
    %p130 = scmp.eq.s32.totalorder %s129, 0
    %s132 = sadd.s32 %s131, 1
    %s133 = scalar_select %p130, %s131, %s132
    %p136 = pneg %p130
    %p137 = scmp.eq.s32.totalorder %s11, 1
    %p138 = por %p136, %p137
    %p139 = scmp.ne.s32.totalorder %s131, %s134
    %p140 = scmp.eq.s32.totalorder %s11, 0
    %p141 = por %p139, %p140
    %p142 = scmp.ne.s32.totalorder %s131, %s134
    %p143 = scmp.eq.s32.totalorder %s16, 1
    %p144 = por %p142, %p143
    %p145 = scmp.ne.s32.totalorder %s134, %s135
    %p146 = scmp.eq.s32.totalorder %s16, 0
    %p147 = por %p145, %p146
    %p148 = scmp.ne.s32.totalorder %s134, %s135
    %p149 = scmp.eq.s32.totalorder %s17, 1
    %p150 = por %p148, %p149
    %p152 = scmp.ne.s32.totalorder %s135, %s151
    %p153 = scmp.eq.s32.totalorder %s17, 0
    %p154 = por %p152, %p153
    %p155 = scmp.le.s32.totalorder 1, %s11
    %p156 = scmp.lt.s32.totalorder %s11, 3
    %p157 = pnand %p155, %p156
    %p158 = pneg %p157
    // Predicated region
    $region9: #{forward.6} parent=5 // pred_check
      _
    $region10: #{forward.6} parent=5 // pred_check_branch
      %160 = sbr.rel (%p157) target = $region12
    $region11: #{forward.6} parent=5 // pred_region
      %s161 = ssub.s32 %s11, 1
      // Predicated region
      $region13: #{forward.6} parent=11 // pred_check
        %p162 = pneg %p58
      $region14: #{forward.6} parent=11 // pred_check_branch
        %164 = sbr.rel (%p162) target = $region16
      $region15: #{forward.6} parent=11 // pred_region
        _
      $region16: #{forward.6} parent=11 // pred_fallthru
        _
      // Predicated region
      $region17: #{forward.6} parent=11 // pred_check
        %p165 = pneg %p79
      $region18: #{forward.6} parent=11 // pred_check_branch
        %167 = sbr.rel (%p165) target = $region20
      $region19: #{forward.6} parent=11 // pred_region
        _
      $region20: #{forward.6} parent=11 // pred_fallthru
        _
      // Predicated region
      $region21: #{forward.6} parent=11 // pred_check
        %p168 = pneg %p100
      $region22: #{forward.6} parent=11 // pred_check_branch
        %170 = sbr.rel (%p168) target = $region24
      $region23: #{forward.6} parent=11 // pred_region
        _
      $region24: #{forward.6} parent=11 // pred_fallthru
        _
      // Predicated region
      $region25: #{forward.6} parent=11 // pred_check
        %p171 = pneg %p121
      $region26: #{forward.6} parent=11 // pred_check_branch
        %173 = sbr.rel (%p171) target = $region28
      $region27: #{forward.6} parent=11 // pred_region
        _
      $region28: #{forward.6} parent=11 // pred_fallthru
        _
    $region12: #{forward.6} parent=5 // pred_fallthru
      _
    %p174 = scmp.lt.s32.totalorder %s11, 2
    // Predicated region
    $region29: #{forward.6} parent=5 // pred_check
      %p175 = pneg %p174
    $region30: #{forward.6} parent=5 // pred_check_branch
      %177 = sbr.rel (%p175) target = $region32
    $region31: #{forward.6} parent=5 // pred_region
      // Predicated region
      $region33: #{forward.6} parent=31 // pred_check
        %p178 = pneg %p31
      $region34: #{forward.6} parent=31 // pred_check_branch
        %180 = sbr.rel (%p178) target = $region36
      $region35: #{forward.6} parent=31 // pred_region
        %s181 = smul.u32 8, %s11
        %p182 = scmp.lt.s32.totalorder %s181, 15
        %s183 = scalar_select %p182, %s181, 15
        %s184 = smul.addr %s183, 4
        %s185 = scalar_lea.vmem %s0, %s184
        %s186 = smul.u32 8, %s11
      $region36: #{forward.6} parent=31 // pred_fallthru
        _
    $region32: #{forward.6} parent=5 // pred_fallthru
      _
    %p187 = scmp.le.s32.totalorder 1, %s11
    %p188 = scmp.lt.s32.totalorder %s11, 3
    %p189 = pnand %p187, %p188
    %p190 = pneg %p189
    // Predicated region
    $region37: #{forward.6} parent=5 // pred_check
      _
    $region38: #{forward.6} parent=5 // pred_check_branch
      %192 = sbr.rel (%p189) target = $region40
    $region39: #{forward.6} parent=5 // pred_region
      %s193 = ssub.s32 %s11, 1
      %s194 = smul.u32 8, %s16
      %p195 = scmp.lt.s32.totalorder %s194, 15
      %s196 = scalar_select %p195, %s194, 15
      %s197 = smul.addr %s196, 4
      %s198 = scalar_lea.vmem %s0, %s197
      %p199 = pneg %p37
      %p200 = pneg %p34
      %p201 = pneg %p58
      %p202 = pneg %p55
      %p203 = pneg %p79
      %p204 = pneg %p76
      %p205 = pneg %p100
      %p206 = pneg %p97
      %p207 = pneg %p121
      %p208 = pneg %p118
      %p209 = pneg %p147
      %p210 = pneg %p144
      %s211 = smul.u32 8, %s16
      %p212 = scmp.lt.s32.totalorder %s211, 15
      %s213 = scalar_select %p212, %s211, 15
      %s214 = smul.addr %s213, 8
      %s215 = scalar_lea.vmem %s5, %s214
      %s216 = smul.u32 8, %s16
      %p217 = scmp.lt.s32.totalorder %s216, 15
      %s218 = scalar_select %p217, %s216, 15
      %s219 = smul.addr %s218, 4
      %s220 = scalar_lea.vmem %s0, %s219
      %s221 = smul.u32 8, %s16
      %s222 = smul.u32 8, %s16
      %p223 = scmp.lt.s32.totalorder %s222, 15
      %s224 = scalar_select %p223, %s222, 15
      %s225 = smul.addr %s224, 8
      %s226 = scalar_lea.vmem %s5, %s225
      %s227 = smul.u32 8, %s16
      %v229 = vld [vmem:[%s220] sm:$0xf]
      %v230 = vld [vmem:[%s220 + $0x4] sm:$0xf]
      %v231 = vld [vmem:[%s220 + $0x8] sm:$0xf]
      %v232 = vld [vmem:[%s220 + $0xc] sm:$0xf]
      %v233 = vld [vmem:[%s220 + $0x10] sm:$0xf]
      %v234 = vld [vmem:[%s220 + $0x14] sm:$0xf]
      %v235 = vld [vmem:[%s220 + $0x18] sm:$0xf]
      %v236 = vld [vmem:[%s220 + $0x1c] sm:$0xf]
      %v237 = vld [vmem:[%s1] sm:$0xf]
      %v238 = vld [vmem:[%s1 + $0x4] sm:$0xf]
      %v239 = vld [vmem:[%s1 + $0x8] sm:$0xf]
      %v248 = vunpack.c.l.b16 %v229
      %v249 = vunpack.c.l.b16 %v230
      %v250 = vunpack.c.l.b16 %v231
      %v251 = vunpack.c.l.b16 %v232
      %v252 = vunpack.c.l.b16 %v233
      %v253 = vunpack.c.l.b16 %v234
      %v254 = vunpack.c.l.b16 %v235
      %v255 = vunpack.c.l.b16 %v236
      %v256 = vpack.c.b16 %v249, %v248
      %v257 = vpack.c.b16 %v251, %v250
      %v258 = vpack.c.b16 %v253, %v252
      %v259 = vpack.c.b16 %v255, %v254
      %v263 = vunpack.c.l.b16 %v237
      %v264 = vunpack.c.l.b16 %v238
      %v265 = vunpack.c.l.b16 %v239
      %v266 = vpack.c.b16 %v264, %v263
      %v267 = vpack.c.b16 %v265, %v265
      %vm269 = vcmask 195584
      %v271 = vsel %vm269, %v256, 0
      %v274 = vsel %vm269, %v257, 0
      %v277 = vsel %vm269, %v258, 0
      %v280 = vsel %vm269, %v259, 0
      %vm282 = vcmask 1043456
      %v284 = vsel %vm282, %v267, 0
      %286 = vmatprep.subr.bf16.mxu0 0
      %287 = vmatpush1.bf16.msra.mxu0 %v266
      %288 = vmatprep.subr.bf16.mxu0 0
      %289 = vmatpush1.bf16.msra.mxu0 %v284
      %290 = vmatprep.subr.bf16.mxu0 0
      %291 = vmatpush1.bf16.msra.mxu0 0
      %292 = vmatprep.subr.bf16.mxu0 0
      %293 = vmatpush1.bf16.msra.mxu0 0
      %294 = vmatprep.subr.bf16.mxu0 0
      %295 = vmatpush1.bf16.msra.mxu0 0
      %296 = vmatprep.subr.bf16.mxu0 0
      %297 = vmatpush1.bf16.msra.mxu0 0
      %298 = vmatprep.subr.bf16.mxu0 0
      %299 = vmatpush1.bf16.msra.mxu0 0
      %300 = vmatprep.subr.bf16.mxu0 0
      %301 = vmatpush1.bf16.msra.mxu0 0
      %302 = vmatprep.subr.bf16.mxu0 0
      %303 = vmatpush1.bf16.msra.mxu0 0
      %304 = vmatprep.subr.bf16.mxu0 0
      %305 = vmatpush1.bf16.msra.mxu0 0
      %306 = vmatprep.subr.bf16.mxu0 0
      %307 = vmatpush1.bf16.msra.mxu0 0
      %308 = vmatprep.subr.bf16.mxu0 0
      %309 = vmatpush1.bf16.msra.mxu0 0
      %310 = vmatprep.subr.bf16.mxu0 0
      %311 = vmatpush1.bf16.msra.mxu0 0
      %312 = vmatprep.subr.bf16.mxu0 0
      %313 = vmatpush1.bf16.msra.mxu0 0
      %314 = vmatprep.subr.bf16.mxu0 0
      %315 = vmatpush1.bf16.msra.mxu0 0
      %316 = vmatprep.subr.bf16.mxu0 0
      %317 = vmatpush1.bf16.msra.mxu0 0
      %318 = vmatprep.mubr.bf16.mxu0 0
      %319 = vmatmul.mubr.bf16.gmra.mrb[0].mxu0 %v271
      %v320 = vpop.f32.mrb[0].mxu0
      %v321 = vadd.f32 0.0, %v320
      %v322 = vpop.f32.mrb[0].mxu0
      %v323 = vpop.f32.mrb[0].mxu0
      %v324 = vadd.f32 0.0, %v323
      %v325 = vpop.f32.mrb[0].mxu0
      %326 = vmatprep.mubr.bf16.mxu0 0
      %327 = vmatmul.mubr.bf16.gmra.mrb[0].mxu0 %v274
      %v328 = vpop.f32.mrb[0].mxu0
      %v329 = vadd.f32 0.0, %v328
      %v330 = vpop.f32.mrb[0].mxu0
      %v331 = vpop.f32.mrb[0].mxu0
      %v332 = vadd.f32 0.0, %v331
      %v333 = vpop.f32.mrb[0].mxu0
      %334 = vmatprep.mubr.bf16.mxu0 0
      %335 = vmatmul.mubr.bf16.gmra.mrb[0].mxu0 %v277
      %v336 = vpop.f32.mrb[0].mxu0
      %v337 = vadd.f32 0.0, %v336
      %v338 = vpop.f32.mrb[0].mxu0
      %v339 = vpop.f32.mrb[0].mxu0
      %v340 = vadd.f32 0.0, %v339
      %v341 = vpop.f32.mrb[0].mxu0
      %342 = vmatprep.mubr.bf16.mxu0 0
      %343 = vmatmul.mubr.bf16.gmra.mrb[0].mxu0 %v280
      %v344 = vpop.f32.mrb[0].mxu0
      %v345 = vadd.f32 0.0, %v344
      %v346 = vpop.f32.mrb[0].mxu0
      %v347 = vpop.f32.mrb[0].mxu0
      %v348 = vadd.f32 0.0, %v347
      %v349 = vpop.f32.mrb[0].mxu0
      %350 = vdwg.mxu0
      %v351 = vld [vmem:[%s2] sm:$0x1]
      %v352 = vmul.f32 %v321, 2.0
      %v353 = vmul.f32 %v324, 2.0
      %v354 = vmul.f32 %v329, 2.0
      %v355 = vmul.f32 %v332, 2.0
      %v356 = vmul.f32 %v337, 2.0
      %v357 = vmul.f32 %v340, 2.0
      %v358 = vmul.f32 %v345, 2.0
      %v359 = vmul.f32 %v348, 2.0
      %v361 = vlaneseq
      %v362 = vshrl.u32 %v361, 7
      %v363 = vsub.s32 0, %v362
      %v364 = vrot.slane %v351, %v363
      %v366 = vsub.f32 %v364, %v352
      %v367 = vsub.f32 %v364, %v353
      %v368 = vsub.f32 %v364, %v354
      %v369 = vsub.f32 %v364, %v355
      %v370 = vsub.f32 %v364, %v356
      %v371 = vsub.f32 %v364, %v357
      %v372 = vsub.f32 %v364, %v358
      %v373 = vsub.f32 %v364, %v359
      %s374 = smul.u32 %s16, 64
      %v375 = vlaneseq
      %v376 = vshrl.u32 %v375, 7
      %v377 = vadd.s32 %v376, 8
      %v378 = vadd.s32 %v376, 16
      %v379 = vadd.s32 %v376, 24
      %v380 = vadd.s32 %v376, 32
      %v381 = vadd.s32 %v376, 40
      %v382 = vadd.s32 %v376, 48
      %v383 = vadd.s32 %v376, 56
      %v384 = vstv %s374
      %v385 = vadd.s32 %v376, %v384
      %v386 = vadd.s32 %v377, %v384
      %v387 = vadd.s32 %v378, %v384
      %v388 = vadd.s32 %v379, %v384
      %v389 = vadd.s32 %v380, %v384
      %v390 = vadd.s32 %v381, %v384
      %v391 = vadd.s32 %v382, %v384
      %v392 = vadd.s32 %v383, %v384
      %v393 = vlaneseq
      %v394 = vand.u32 %v393, 127
      %vm403 = vcmp.lt.s32.totalorder %v366, 0
      %vm404 = vcmp.lt.s32.totalorder %v367, 0
      %vm405 = vcmp.lt.s32.totalorder %v368, 0
      %vm406 = vcmp.lt.s32.totalorder %v369, 0
      %vm407 = vcmp.lt.s32.totalorder %v370, 0
      %vm408 = vcmp.lt.s32.totalorder %v371, 0
      %vm409 = vcmp.lt.s32.totalorder %v372, 0
      %vm410 = vcmp.lt.s32.totalorder %v373, 0
      %v411 = vxor.u32 %v366, 2147483647
      %v412 = vxor.u32 %v367, 2147483647
      %v413 = vxor.u32 %v368, 2147483647
      %v414 = vxor.u32 %v369, 2147483647
      %v415 = vxor.u32 %v370, 2147483647
      %v416 = vxor.u32 %v371, 2147483647
      %v417 = vxor.u32 %v372, 2147483647
      %v418 = vxor.u32 %v373, 2147483647
      %v419 = vsel %vm403, %v411, %v366
      %v420 = vsel %vm404, %v412, %v367
      %v421 = vsel %vm405, %v413, %v368
      %v422 = vsel %vm406, %v414, %v369
      %v423 = vsel %vm407, %v415, %v370
      %v424 = vsel %vm408, %v416, %v371
      %v425 = vsel %vm409, %v417, %v372
      %v426 = vsel %vm410, %v418, %v373
      %v427 = vand.u32 %v419, 4294967168
      %v428 = vand.u32 %v420, 4294967168
      %v429 = vand.u32 %v421, 4294967168
      %v430 = vand.u32 %v422, 4294967168
      %v431 = vand.u32 %v423, 4294967168
      %v432 = vand.u32 %v424, 4294967168
      %v433 = vand.u32 %v425, 4294967168
      %v434 = vand.u32 %v426, 4294967168
      %v435 = vor.u32 %v427, %v394
      %v436 = vor.u32 %v428, %v394
      %v437 = vor.u32 %v429, %v394
      %v438 = vor.u32 %v430, %v394
      %v439 = vor.u32 %v431, %v394
      %v440 = vor.u32 %v432, %v394
      %v441 = vor.u32 %v433, %v394
      %v442 = vor.u32 %v434, %v394
      %vm443 = vcmp.eq.s32.totalorder %v385, %v394
      %vm444 = vcmp.eq.s32.totalorder %v386, %v394
      %vm445 = vcmp.eq.s32.totalorder %v387, %v394
      %vm446 = vcmp.eq.s32.totalorder %v388, %v394
      %vm447 = vcmp.eq.s32.totalorder %v389, %v394
      %vm448 = vcmp.eq.s32.totalorder %v390, %v394
      %vm449 = vcmp.eq.s32.totalorder %v391, %v394
      %vm450 = vcmp.eq.s32.totalorder %v392, %v394
      %v451 = vsel %vm443, 2147483647, %v435
      %v452 = vsel %vm444, 2147483647, %v436
      %v453 = vsel %vm445, 2147483647, %v437
      %v454 = vsel %vm446, 2147483647, %v438
      %v455 = vsel %vm447, 2147483647, %v439
      %v456 = vsel %vm448, 2147483647, %v440
      %v457 = vsel %vm449, 2147483647, %v441
      %v458 = vsel %vm450, 2147483647, %v442
      %v459 = vld [vmem:[%s3] sm:$0xff]
      %v460 = vld [vmem:[%s3 + $0x8] sm:$0xff]
      %v461 = vld [vmem:[%s3 + $0x10] sm:$0xff]
      %v462 = vld [vmem:[%s3 + $0x18] sm:$0xff]
      %v463 = vld [vmem:[%s3 + $0x20] sm:$0xff]
      %v464 = vld [vmem:[%s3 + $0x28] sm:$0xff]
      %v465 = vld [vmem:[%s3 + $0x30] sm:$0xff]
      %v466 = vld [vmem:[%s3 + $0x38] sm:$0xff]
      %v467 = vld [vmem:[%s3 + $0x40] sm:$0xff]
      %v468 = vld [vmem:[%s3 + $0x48] sm:$0xff]
      %v469 = vld [vmem:[%s3 + $0x50] sm:$0xff]
      %v470 = vld [vmem:[%s3 + $0x58] sm:$0xff]
      %v471 = vld [vmem:[%s3 + $0x60] sm:$0xff]
      %v472 = vld [vmem:[%s3 + $0x68] sm:$0xff]
      %v473 = vld [vmem:[%s3 + $0x70] sm:$0xff]
      %v474 = vld [vmem:[%s3 + $0x78] sm:$0xff]
      %v475 = vld [vmem:[%s4] sm:$0xff]
      %v476 = vand.u32 %v451, 65535
      %v477 = vshra.s32 %v451, 16
      %v478 = vcvt.s32.f32 %v476
      %v479 = vcvt.s32.f32 %v477
      %480 = vmin.xlane.f32.xlu0 %v479
      %v481 = vpop.xlane.xlu0 %480
      %vm482 = vcmp.eq.f32.partialorder %v479, %v481
      %v483 = vsel %vm482, %v478, inf
      %484 = vmin.xlane.f32.xlu0 %v483
      %v485 = vpop.xlane.xlu0 %484
      %v486 = vcvt.f32.s32 %v485
      %v487 = vcvt.f32.s32 %v481
      %v488 = vshll.u32 %v487, 16
      %v489 = vadd.s32 %v488, %v486
      %v490 = vand.u32 %v452, 65535
      %v491 = vshra.s32 %v452, 16
      %v492 = vcvt.s32.f32 %v490
      %v493 = vcvt.s32.f32 %v491
      %494 = vmin.xlane.f32.xlu0 %v493
      %v495 = vpop.xlane.xlu0 %494
      %vm496 = vcmp.eq.f32.partialorder %v493, %v495
      %v497 = vsel %vm496, %v492, inf
      %498 = vmin.xlane.f32.xlu0 %v497
      %v499 = vpop.xlane.xlu0 %498
      %v500 = vcvt.f32.s32 %v499
      %v501 = vcvt.f32.s32 %v495
      %v502 = vshll.u32 %v501, 16
      %v503 = vadd.s32 %v502, %v500
      %v504 = vand.u32 %v453, 65535
      %v505 = vshra.s32 %v453, 16
      %v506 = vcvt.s32.f32 %v504
      %v507 = vcvt.s32.f32 %v505
      %508 = vmin.xlane.f32.xlu0 %v507
      %v509 = vpop.xlane.xlu0 %508
      %vm510 = vcmp.eq.f32.partialorder %v507, %v509
      %v511 = vsel %vm510, %v506, inf
      %512 = vmin.xlane.f32.xlu0 %v511
      %v513 = vpop.xlane.xlu0 %512
      %v514 = vcvt.f32.s32 %v513
      %v515 = vcvt.f32.s32 %v509
      %v516 = vshll.u32 %v515, 16
      %v517 = vadd.s32 %v516, %v514
      %v518 = vand.u32 %v454, 65535
      %v519 = vshra.s32 %v454, 16
      %v520 = vcvt.s32.f32 %v518
      %v521 = vcvt.s32.f32 %v519
      %522 = vmin.xlane.f32.xlu0 %v521
      %v523 = vpop.xlane.xlu0 %522
      %vm524 = vcmp.eq.f32.partialorder %v521, %v523
      %v525 = vsel %vm524, %v520, inf
      %526 = vmin.xlane.f32.xlu0 %v525
      %v527 = vpop.xlane.xlu0 %526
      %v528 = vcvt.f32.s32 %v527
      %v529 = vcvt.f32.s32 %v523
      %v530 = vshll.u32 %v529, 16
      %v531 = vadd.s32 %v530, %v528
      %v532 = vand.u32 %v455, 65535
      %v533 = vshra.s32 %v455, 16
      %v534 = vcvt.s32.f32 %v532
      %v535 = vcvt.s32.f32 %v533
      %536 = vmin.xlane.f32.xlu0 %v535
      %v537 = vpop.xlane.xlu0 %536
      %vm538 = vcmp.eq.f32.partialorder %v535, %v537
      %v539 = vsel %vm538, %v534, inf
      %540 = vmin.xlane.f32.xlu0 %v539
      %v541 = vpop.xlane.xlu0 %540
      %v542 = vcvt.f32.s32 %v541
      %v543 = vcvt.f32.s32 %v537
      %v544 = vshll.u32 %v543, 16
      %v545 = vadd.s32 %v544, %v542
      %v546 = vand.u32 %v456, 65535
      %v547 = vshra.s32 %v456, 16
      %v548 = vcvt.s32.f32 %v546
      %v549 = vcvt.s32.f32 %v547
      %550 = vmin.xlane.f32.xlu0 %v549
      %v551 = vpop.xlane.xlu0 %550
      %vm552 = vcmp.eq.f32.partialorder %v549, %v551
      %v553 = vsel %vm552, %v548, inf
      %554 = vmin.xlane.f32.xlu0 %v553
      %v555 = vpop.xlane.xlu0 %554
      %v556 = vcvt.f32.s32 %v555
      %v557 = vcvt.f32.s32 %v551
      %v558 = vshll.u32 %v557, 16
      %v559 = vadd.s32 %v558, %v556
      %v560 = vand.u32 %v457, 65535
      %v561 = vshra.s32 %v457, 16
      %v562 = vcvt.s32.f32 %v560
      %v563 = vcvt.s32.f32 %v561
      %564 = vmin.xlane.f32.xlu0 %v563
      %v565 = vpop.xlane.xlu0 %564
      %vm566 = vcmp.eq.f32.partialorder %v563, %v565
      %v567 = vsel %vm566, %v562, inf
      %568 = vmin.xlane.f32.xlu0 %v567
      %v569 = vpop.xlane.xlu0 %568
      %v570 = vcvt.f32.s32 %v569
      %v571 = vcvt.f32.s32 %v565
      %v572 = vshll.u32 %v571, 16
      %v573 = vadd.s32 %v572, %v570
      %v574 = vand.u32 %v458, 65535
      %v575 = vshra.s32 %v458, 16
      %v576 = vcvt.s32.f32 %v574
      %v577 = vcvt.s32.f32 %v575
      %578 = vmin.xlane.f32.xlu0 %v577
      %v579 = vpop.xlane.xlu0 %578
      %vm580 = vcmp.eq.f32.partialorder %v577, %v579
      %v581 = vsel %vm580, %v576, inf
      %582 = vmin.xlane.f32.xlu0 %v581
      %v583 = vpop.xlane.xlu0 %582
      %v584 = vcvt.f32.s32 %v583
      %v585 = vcvt.f32.s32 %v579
      %v586 = vshll.u32 %v585, 16
      %v587 = vadd.s32 %v586, %v584
      %vm588 = vcmp.eq.s32.totalorder %v451, %v489
      %vm589 = vcmp.eq.s32.totalorder %v452, %v503
      %vm590 = vcmp.eq.s32.totalorder %v453, %v517
      %vm591 = vcmp.eq.s32.totalorder %v454, %v531
      %vm592 = vcmp.eq.s32.totalorder %v455, %v545
      %vm593 = vcmp.eq.s32.totalorder %v456, %v559
      %vm594 = vcmp.eq.s32.totalorder %v457, %v573
      %vm595 = vcmp.eq.s32.totalorder %v458, %v587
      %v596 = vsel %vm588, 1, 0
      %v597 = vsel %vm589, 1, 0
      %v598 = vsel %vm590, 1, 0
      %v599 = vsel %vm591, 1, 0
      %v600 = vsel %vm592, 1, 0
      %v601 = vsel %vm593, 1, 0
      %v602 = vsel %vm594, 1, 0
      %v603 = vsel %vm595, 1, 0
      %v604 = vcvt.s32.f32 %v596
      %v605 = vcvt.s32.f32 %v597
      %v606 = vcvt.s32.f32 %v598
      %v607 = vcvt.s32.f32 %v599
      %v608 = vcvt.s32.f32 %v600
      %v609 = vcvt.s32.f32 %v601
      %v610 = vcvt.s32.f32 %v602
      %v611 = vcvt.s32.f32 %v603
      %v612 = vlaneseq
      %v613 = vshrl.u32 %v612, 7
      %v614 = vsub.s32 0, %v613
      %v615 = vrot.slane %v475, %v614
      %616 = vmatprep.subr.mxu0 0.0
      %617 = vmatpush1.msra.mxu0 %v459
      %618 = vmatprep.subr.mxu0 0.0
      %619 = vmatpush1.msra.mxu0 %v460
      %620 = vmatprep.subr.mxu0 0.0
      %621 = vmatpush1.msra.mxu0 %v461
      %622 = vmatprep.subr.mxu0 0.0
      %623 = vmatpush1.msra.mxu0 %v462
      %624 = vmatprep.subr.mxu0 0.0
      %625 = vmatpush1.msra.mxu0 %v463
      %626 = vmatprep.subr.mxu0 0.0
      %627 = vmatpush1.msra.mxu0 %v464
      %628 = vmatprep.subr.mxu0 0.0
      %629 = vmatpush1.msra.mxu0 %v465
      %630 = vmatprep.subr.mxu0 0.0
      %631 = vmatpush1.msra.mxu0 %v466
      %632 = vmatprep.subr.mxu0 0.0
      %633 = vmatpush1.msra.mxu0 %v467
      %634 = vmatprep.subr.mxu0 0.0
      %635 = vmatpush1.msra.mxu0 %v468
      %636 = vmatprep.subr.mxu0 0.0
      %637 = vmatpush1.msra.mxu0 %v469
      %638 = vmatprep.subr.mxu0 0.0
      %639 = vmatpush1.msra.mxu0 %v470
      %640 = vmatprep.subr.mxu0 0.0
      %641 = vmatpush1.msra.mxu0 %v471
      %642 = vmatprep.subr.mxu0 0.0
      %643 = vmatpush1.msra.mxu0 %v472
      %644 = vmatprep.subr.mxu0 0.0
      %645 = vmatpush1.msra.mxu0 %v473
      %646 = vmatprep.subr.mxu0 0.0
      %647 = vmatpush1.msra.mxu0 %v474
      %648 = vmatprep.subr.mxu0 0.0
      %649 = vmatpush1.msra.mxu0 0.0
      %650 = vmatprep.subr.mxu0 0.0
      %651 = vmatpush1.msra.mxu0 0.0
      %652 = vmatprep.subr.mxu0 0.0
      %653 = vmatpush1.msra.mxu0 0.0
      %654 = vmatprep.subr.mxu0 0.0
      %655 = vmatpush1.msra.mxu0 0.0
      %656 = vmatprep.subr.mxu0 0.0
      %657 = vmatpush1.msra.mxu0 0.0
      %658 = vmatprep.subr.mxu0 0.0
      %659 = vmatpush1.msra.mxu0 0.0
      %660 = vmatprep.subr.mxu0 0.0
      %661 = vmatpush1.msra.mxu0 0.0
      %662 = vmatprep.subr.mxu0 0.0
      %663 = vmatpush1.msra.mxu0 0.0
      %664 = vmatprep.subr.mxu0 0.0
      %665 = vmatpush1.msra.mxu0 0.0
      %666 = vmatprep.subr.mxu0 0.0
      %667 = vmatpush1.msra.mxu0 0.0
      %668 = vmatprep.subr.mxu0 0.0
      %669 = vmatpush1.msra.mxu0 0.0
      %670 = vmatprep.subr.mxu0 0.0
      %671 = vmatpush1.msra.mxu0 0.0
      %672 = vmatprep.subr.mxu0 0.0
      %673 = vmatpush1.msra.mxu0 0.0
      %674 = vmatprep.subr.mxu0 0.0
      %675 = vmatpush1.msra.mxu0 0.0
      %676 = vmatprep.subr.mxu0 0.0
      %677 = vmatpush1.msra.mxu0 0.0
      %678 = vmatprep.subr.mxu0 0.0
      %679 = vmatpush1.msra.mxu0 0.0
      %680 = vmatprep.mubr.f32.mxu0 0.0
      %681 = vmatmul.mubr.f32.gmra.mrb[0].mxu0 %v604
      %v682 = vpop.f32.mrb[0].mxu0
      %v683 = vadd.f32 %v615, %v682
      %v684 = vpop.f32.mrb[0].mxu0
      %685 = vmatprep.mubr.f32.mxu0 0.0
      %686 = vmatmul.mubr.f32.gmra.mrb[0].mxu0 %v605
      %v687 = vpop.f32.mrb[0].mxu0
      %v688 = vadd.f32 %v615, %v687
      %v689 = vpop.f32.mrb[0].mxu0
      %690 = vmatprep.mubr.f32.mxu0 0.0
      %691 = vmatmul.mubr.f32.gmra.mrb[0].mxu0 %v606
      %v692 = vpop.f32.mrb[0].mxu0
      %v693 = vadd.f32 %v615, %v692
      %v694 = vpop.f32.mrb[0].mxu0
      %695 = vmatprep.mubr.f32.mxu0 0.0
      %696 = vmatmul.mubr.f32.gmra.mrb[0].mxu0 %v607
      %v697 = vpop.f32.mrb[0].mxu0
      %v698 = vadd.f32 %v615, %v697
      %v699 = vpop.f32.mrb[0].mxu0
      %700 = vmatprep.mubr.f32.mxu0 0.0
      %701 = vmatmul.mubr.f32.gmra.mrb[0].mxu0 %v608
      %v702 = vpop.f32.mrb[0].mxu0
      %v703 = vadd.f32 %v615, %v702
      %v704 = vpop.f32.mrb[0].mxu0
      %705 = vmatprep.mubr.f32.mxu0 0.0
      %706 = vmatmul.mubr.f32.gmra.mrb[0].mxu0 %v609
      %v707 = vpop.f32.mrb[0].mxu0
      %v708 = vadd.f32 %v615, %v707
      %v709 = vpop.f32.mrb[0].mxu0
      %710 = vmatprep.mubr.f32.mxu0 0.0
      %711 = vmatmul.mubr.f32.gmra.mrb[0].mxu0 %v610
      %v712 = vpop.f32.mrb[0].mxu0
      %v713 = vadd.f32 %v615, %v712
      %v714 = vpop.f32.mrb[0].mxu0
      %715 = vmatprep.mubr.f32.mxu0 0.0
      %716 = vmatmul.mubr.f32.gmra.mrb[0].mxu0 %v611
      %v717 = vpop.f32.mrb[0].mxu0
      %v718 = vadd.f32 %v615, %v717
      %v719 = vpop.f32.mrb[0].mxu0
      %720 = vdwg.mxu0
      %v721 = vsel %vm588, 2147483647, %v451
      %v722 = vsel %vm589, 2147483647, %v452
      %v723 = vsel %vm590, 2147483647, %v453
      %v724 = vsel %vm591, 2147483647, %v454
      %v725 = vsel %vm592, 2147483647, %v455
      %v726 = vsel %vm593, 2147483647, %v456
      %v727 = vsel %vm594, 2147483647, %v457
      %v728 = vsel %vm595, 2147483647, %v458
      %v729 = vand.u32 %v721, 65535
      %v730 = vshra.s32 %v721, 16
      %v731 = vcvt.s32.f32 %v729
      %v732 = vcvt.s32.f32 %v730
      %733 = vmin.xlane.f32.xlu0 %v732
      %v734 = vpop.xlane.xlu0 %733
      %vm735 = vcmp.eq.f32.partialorder %v732, %v734
      %v736 = vsel %vm735, %v731, inf
      %737 = vmin.xlane.f32.xlu0 %v736
      %v738 = vpop.xlane.xlu0 %737
      %v739 = vcvt.f32.s32 %v738
      %v740 = vcvt.f32.s32 %v734
      %v741 = vshll.u32 %v740, 16
      %v742 = vadd.s32 %v741, %v739
      %v743 = vand.u32 %v722, 65535
      %v744 = vshra.s32 %v722, 16
      %v745 = vcvt.s32.f32 %v743
      %v746 = vcvt.s32.f32 %v744
      %747 = vmin.xlane.f32.xlu0 %v746
      %v748 = vpop.xlane.xlu0 %747
      %vm749 = vcmp.eq.f32.partialorder %v746, %v748
      %v750 = vsel %vm749, %v745, inf
      %751 = vmin.xlane.f32.xlu0 %v750
      %v752 = vpop.xlane.xlu0 %751
      %v753 = vcvt.f32.s32 %v752
      %v754 = vcvt.f32.s32 %v748
      %v755 = vshll.u32 %v754, 16
      %v756 = vadd.s32 %v755, %v753
      %v757 = vand.u32 %v723, 65535
      %v758 = vshra.s32 %v723, 16
      %v759 = vcvt.s32.f32 %v757
      %v760 = vcvt.s32.f32 %v758
      %761 = vmin.xlane.f32.xlu0 %v760
      %v762 = vpop.xlane.xlu0 %761
      %vm763 = vcmp.eq.f32.partialorder %v760, %v762
      %v764 = vsel %vm763, %v759, inf
      %765 = vmin.xlane.f32.xlu0 %v764
      %v766 = vpop.xlane.xlu0 %765
      %v767 = vcvt.f32.s32 %v766
      %v768 = vcvt.f32.s32 %v762
      %v769 = vshll.u32 %v768, 16
      %v770 = vadd.s32 %v769, %v767
      %v771 = vand.u32 %v724, 65535
      %v772 = vshra.s32 %v724, 16
      %v773 = vcvt.s32.f32 %v771
      %v774 = vcvt.s32.f32 %v772
      %775 = vmin.xlane.f32.xlu0 %v774
      %v776 = vpop.xlane.xlu0 %775
      %vm777 = vcmp.eq.f32.partialorder %v774, %v776
      %v778 = vsel %vm777, %v773, inf
      %779 = vmin.xlane.f32.xlu0 %v778
      %v780 = vpop.xlane.xlu0 %779
      %v781 = vcvt.f32.s32 %v780
      %v782 = vcvt.f32.s32 %v776
      %v783 = vshll.u32 %v782, 16
      %v784 = vadd.s32 %v783, %v781
      %v785 = vand.u32 %v725, 65535
      %v786 = vshra.s32 %v725, 16
      %v787 = vcvt.s32.f32 %v785
      %v788 = vcvt.s32.f32 %v786
      %789 = vmin.xlane.f32.xlu0 %v788
      %v790 = vpop.xlane.xlu0 %789
      %vm791 = vcmp.eq.f32.partialorder %v788, %v790
      %v792 = vsel %vm791, %v787, inf
      %793 = vmin.xlane.f32.xlu0 %v792
      %v794 = vpop.xlane.xlu0 %793
      %v795 = vcvt.f32.s32 %v794
      %v796 = vcvt.f32.s32 %v790
      %v797 = vshll.u32 %v796, 16
      %v798 = vadd.s32 %v797, %v795
      %v799 = vand.u32 %v726, 65535
      %v800 = vshra.s32 %v726, 16
      %v801 = vcvt.s32.f32 %v799
      %v802 = vcvt.s32.f32 %v800
      %803 = vmin.xlane.f32.xlu0 %v802
      %v804 = vpop.xlane.xlu0 %803
      %vm805 = vcmp.eq.f32.partialorder %v802, %v804
      %v806 = vsel %vm805, %v801, inf
      %807 = vmin.xlane.f32.xlu0 %v806
      %v808 = vpop.xlane.xlu0 %807
      %v809 = vcvt.f32.s32 %v808
      %v810 = vcvt.f32.s32 %v804
      %v811 = vshll.u32 %v810, 16
      %v812 = vadd.s32 %v811, %v809
      %v813 = vand.u32 %v727, 65535
      %v814 = vshra.s32 %v727, 16
      %v815 = vcvt.s32.f32 %v813
      %v816 = vcvt.s32.f32 %v814
      %817 = vmin.xlane.f32.xlu0 %v816
      %v818 = vpop.xlane.xlu0 %817
      %vm819 = vcmp.eq.f32.partialorder %v816, %v818
      %v820 = vsel %vm819, %v815, inf
      %821 = vmin.xlane.f32.xlu0 %v820
      %v822 = vpop.xlane.xlu0 %821
      %v823 = vcvt.f32.s32 %v822
      %v824 = vcvt.f32.s32 %v818
      %v825 = vshll.u32 %v824, 16
      %v826 = vadd.s32 %v825, %v823
      %v827 = vand.u32 %v728, 65535
      %v828 = vshra.s32 %v728, 16
      %v829 = vcvt.s32.f32 %v827
      %v830 = vcvt.s32.f32 %v828
      %831 = vmin.xlane.f32.xlu0 %v830
      %v832 = vpop.xlane.xlu0 %831
      %vm833 = vcmp.eq.f32.partialorder %v830, %v832
      %v834 = vsel %vm833, %v829, inf
      %835 = vmin.xlane.f32.xlu0 %v834
      %v836 = vpop.xlane.xlu0 %835
      %v837 = vcvt.f32.s32 %v836
      %v838 = vcvt.f32.s32 %v832
      %v839 = vshll.u32 %v838, 16
      %v840 = vadd.s32 %v839, %v837
      %vm841 = vcmp.eq.s32.totalorder %v721, %v742
      %vm842 = vcmp.eq.s32.totalorder %v722, %v756
      %vm843 = vcmp.eq.s32.totalorder %v723, %v770
      %vm844 = vcmp.eq.s32.totalorder %v724, %v784
      %vm845 = vcmp.eq.s32.totalorder %v725, %v798
      %vm846 = vcmp.eq.s32.totalorder %v726, %v812
      %vm847 = vcmp.eq.s32.totalorder %v727, %v826
      %vm848 = vcmp.eq.s32.totalorder %v728, %v840
      %v849 = vsel %vm841, 1, 0
      %v850 = vsel %vm842, 1, 0
      %v851 = vsel %vm843, 1, 0
      %v852 = vsel %vm844, 1, 0
      %v853 = vsel %vm845, 1, 0
      %v854 = vsel %vm846, 1, 0
      %v855 = vsel %vm847, 1, 0
      %v856 = vsel %vm848, 1, 0
      %v857 = vcvt.s32.f32 %v849
      %v858 = vcvt.s32.f32 %v850
      %v859 = vcvt.s32.f32 %v851
      %v860 = vcvt.s32.f32 %v852
      %v861 = vcvt.s32.f32 %v853
      %v862 = vcvt.s32.f32 %v854
      %v863 = vcvt.s32.f32 %v855
      %v864 = vcvt.s32.f32 %v856
      %v865 = vlaneseq
      %v866 = vshrl.u32 %v865, 7
      %v867 = vsub.s32 1, %v866
      %v868 = vrot.slane %v475, %v867
      %869 = vmatprep.subr.mxu0 0.0
      %870 = vmatpush1.msra.mxu0 %v459
      %871 = vmatprep.subr.mxu0 0.0
      %872 = vmatpush1.msra.mxu0 %v460
      %873 = vmatprep.subr.mxu0 0.0
      %874 = vmatpush1.msra.mxu0 %v461
      %875 = vmatprep.subr.mxu0 0.0
      %876 = vmatpush1.msra.mxu0 %v462
      %877 = vmatprep.subr.mxu0 0.0
      %878 = vmatpush1.msra.mxu0 %v463
      %879 = vmatprep.subr.mxu0 0.0
      %880 = vmatpush1.msra.mxu0 %v464
      %881 = vmatprep.subr.mxu0 0.0
      %882 = vmatpush1.msra.mxu0 %v465
      %883 = vmatprep.subr.mxu0 0.0
      %884 = vmatpush1.msra.mxu0 %v466
      %885 = vmatprep.subr.mxu0 0.0
      %886 = vmatpush1.msra.mxu0 %v467
      %887 = vmatprep.subr.mxu0 0.0
      %888 = vmatpush1.msra.mxu0 %v468
      %889 = vmatprep.subr.mxu0 0.0
      %890 = vmatpush1.msra.mxu0 %v469
      %891 = vmatprep.subr.mxu0 0.0
      %892 = vmatpush1.msra.mxu0 %v470
      %893 = vmatprep.subr.mxu0 0.0
      %894 = vmatpush1.msra.mxu0 %v471
      %895 = vmatprep.subr.mxu0 0.0
      %896 = vmatpush1.msra.mxu0 %v472
      %897 = vmatprep.subr.mxu0 0.0
      %898 = vmatpush1.msra.mxu0 %v473
      %899 = vmatprep.subr.mxu0 0.0
      %900 = vmatpush1.msra.mxu0 %v474
      %901 = vmatprep.subr.mxu0 0.0
      %902 = vmatpush1.msra.mxu0 0.0
      %903 = vmatprep.subr.mxu0 0.0
      %904 = vmatpush1.msra.mxu0 0.0
      %905 = vmatprep.subr.mxu0 0.0
      %906 = vmatpush1.msra.mxu0 0.0
      %907 = vmatprep.subr.mxu0 0.0
      %908 = vmatpush1.msra.mxu0 0.0
      %909 = vmatprep.subr.mxu0 0.0
      %910 = vmatpush1.msra.mxu0 0.0
      %911 = vmatprep.subr.mxu0 0.0
      %912 = vmatpush1.msra.mxu0 0.0
      %913 = vmatprep.subr.mxu0 0.0
      %914 = vmatpush1.msra.mxu0 0.0
      %915 = vmatprep.subr.mxu0 0.0
      %916 = vmatpush1.msra.mxu0 0.0
      %917 = vmatprep.subr.mxu0 0.0
      %918 = vmatpush1.msra.mxu0 0.0
      %919 = vmatprep.subr.mxu0 0.0
      %920 = vmatpush1.msra.mxu0 0.0
      %921 = vmatprep.subr.mxu0 0.0
      %922 = vmatpush1.msra.mxu0 0.0
      %923 = vmatprep.subr.mxu0 0.0
      %924 = vmatpush1.msra.mxu0 0.0
      %925 = vmatprep.subr.mxu0 0.0
      %926 = vmatpush1.msra.mxu0 0.0
      %927 = vmatprep.subr.mxu0 0.0
      %928 = vmatpush1.msra.mxu0 0.0
      %929 = vmatprep.subr.mxu0 0.0
      %930 = vmatpush1.msra.mxu0 0.0
      %931 = vmatprep.subr.mxu0 0.0
      %932 = vmatpush1.msra.mxu0 0.0
      %933 = vmatprep.mubr.f32.mxu0 0.0
      %934 = vmatmul.mubr.f32.gmra.mrb[0].mxu0 %v857
      %v935 = vpop.f32.mrb[0].mxu0
      %v936 = vadd.f32 %v868, %v935
      %v937 = vpop.f32.mrb[0].mxu0
      %938 = vmatprep.mubr.f32.mxu0 0.0
      %939 = vmatmul.mubr.f32.gmra.mrb[0].mxu0 %v858
      %v940 = vpop.f32.mrb[0].mxu0
      %v941 = vadd.f32 %v868, %v940
      %v942 = vpop.f32.mrb[0].mxu0
      %943 = vmatprep.mubr.f32.mxu0 0.0
      %944 = vmatmul.mubr.f32.gmra.mrb[0].mxu0 %v859
      %v945 = vpop.f32.mrb[0].mxu0
      %v946 = vadd.f32 %v868, %v945
      %v947 = vpop.f32.mrb[0].mxu0
      %948 = vmatprep.mubr.f32.mxu0 0.0
      %949 = vmatmul.mubr.f32.gmra.mrb[0].mxu0 %v860
      %v950 = vpop.f32.mrb[0].mxu0
      %v951 = vadd.f32 %v868, %v950
      %v952 = vpop.f32.mrb[0].mxu0
      %953 = vmatprep.mubr.f32.mxu0 0.0
      %954 = vmatmul.mubr.f32.gmra.mrb[0].mxu0 %v861
      %v955 = vpop.f32.mrb[0].mxu0
      %v956 = vadd.f32 %v868, %v955
      %v957 = vpop.f32.mrb[0].mxu0
      %958 = vmatprep.mubr.f32.mxu0 0.0
      %959 = vmatmul.mubr.f32.gmra.mrb[0].mxu0 %v862
      %v960 = vpop.f32.mrb[0].mxu0
      %v961 = vadd.f32 %v868, %v960
      %v962 = vpop.f32.mrb[0].mxu0
      %963 = vmatprep.mubr.f32.mxu0 0.0
      %964 = vmatmul.mubr.f32.gmra.mrb[0].mxu0 %v863
      %v965 = vpop.f32.mrb[0].mxu0
      %v966 = vadd.f32 %v868, %v965
      %v967 = vpop.f32.mrb[0].mxu0
      %968 = vmatprep.mubr.f32.mxu0 0.0
      %969 = vmatmul.mubr.f32.gmra.mrb[0].mxu0 %v864
      %v970 = vpop.f32.mrb[0].mxu0
      %v971 = vadd.f32 %v868, %v970
      %v972 = vpop.f32.mrb[0].mxu0
      %973 = vdwg.mxu0
      %v974 = vmax.f32 %v683, %v936
      %v975 = vmax.f32 %v688, %v941
      %v976 = vmax.f32 %v693, %v946
      %v977 = vmax.f32 %v698, %v951
      %v978 = vmax.f32 %v703, %v956
      %v979 = vmax.f32 %v708, %v961
      %v980 = vmax.f32 %v713, %v966
      %v981 = vmax.f32 %v718, %v971
      %v982 = vsel %vm841, 2147483647, %v721
      %v983 = vsel %vm842, 2147483647, %v722
      %v984 = vsel %vm843, 2147483647, %v723
      %v985 = vsel %vm844, 2147483647, %v724
      %v986 = vsel %vm845, 2147483647, %v725
      %v987 = vsel %vm846, 2147483647, %v726
      %v988 = vsel %vm847, 2147483647, %v727
      %v989 = vsel %vm848, 2147483647, %v728
      %v990 = vand.u32 %v982, 65535
      %v991 = vshra.s32 %v982, 16
      %v992 = vcvt.s32.f32 %v990
      %v993 = vcvt.s32.f32 %v991
      %994 = vmin.xlane.f32.xlu0 %v993
      %v995 = vpop.xlane.xlu0 %994
      %vm996 = vcmp.eq.f32.partialorder %v993, %v995
      %v997 = vsel %vm996, %v992, inf
      %998 = vmin.xlane.f32.xlu0 %v997
      %v999 = vpop.xlane.xlu0 %998
      %v1000 = vcvt.f32.s32 %v999
      %v1001 = vcvt.f32.s32 %v995
      %v1002 = vshll.u32 %v1001, 16
      %v1003 = vadd.s32 %v1002, %v1000
      %v1004 = vand.u32 %v983, 65535
      %v1005 = vshra.s32 %v983, 16
      %v1006 = vcvt.s32.f32 %v1004
      %v1007 = vcvt.s32.f32 %v1005
      %1008 = vmin.xlane.f32.xlu0 %v1007
      %v1009 = vpop.xlane.xlu0 %1008
      %vm1010 = vcmp.eq.f32.partialorder %v1007, %v1009
      %v1011 = vsel %vm1010, %v1006, inf
      %1012 = vmin.xlane.f32.xlu0 %v1011
      %v1013 = vpop.xlane.xlu0 %1012
      %v1014 = vcvt.f32.s32 %v1013
      %v1015 = vcvt.f32.s32 %v1009
      %v1016 = vshll.u32 %v1015, 16
      %v1017 = vadd.s32 %v1016, %v1014
      %v1018 = vand.u32 %v984, 65535
      %v1019 = vshra.s32 %v984, 16
      %v1020 = vcvt.s32.f32 %v1018
      %v1021 = vcvt.s32.f32 %v1019
      %1022 = vmin.xlane.f32.xlu0 %v1021
      %v1023 = vpop.xlane.xlu0 %1022
      %vm1024 = vcmp.eq.f32.partialorder %v1021, %v1023
      %v1025 = vsel %vm1024, %v1020, inf
      %1026 = vmin.xlane.f32.xlu0 %v1025
      %v1027 = vpop.xlane.xlu0 %1026
      %v1028 = vcvt.f32.s32 %v1027
      %v1029 = vcvt.f32.s32 %v1023
      %v1030 = vshll.u32 %v1029, 16
      %v1031 = vadd.s32 %v1030, %v1028
      %v1032 = vand.u32 %v985, 65535
      %v1033 = vshra.s32 %v985, 16
      %v1034 = vcvt.s32.f32 %v1032
      %v1035 = vcvt.s32.f32 %v1033
      %1036 = vmin.xlane.f32.xlu0 %v1035
      %v1037 = vpop.xlane.xlu0 %1036
      %vm1038 = vcmp.eq.f32.partialorder %v1035, %v1037
      %v1039 = vsel %vm1038, %v1034, inf
      %1040 = vmin.xlane.f32.xlu0 %v1039
      %v1041 = vpop.xlane.xlu0 %1040
      %v1042 = vcvt.f32.s32 %v1041
      %v1043 = vcvt.f32.s32 %v1037
      %v1044 = vshll.u32 %v1043, 16
      %v1045 = vadd.s32 %v1044, %v1042
      %v1046 = vand.u32 %v986, 65535
      %v1047 = vshra.s32 %v986, 16
      %v1048 = vcvt.s32.f32 %v1046
      %v1049 = vcvt.s32.f32 %v1047
      %1050 = vmin.xlane.f32.xlu0 %v1049
      %v1051 = vpop.xlane.xlu0 %1050
      %vm1052 = vcmp.eq.f32.partialorder %v1049, %v1051
      %v1053 = vsel %vm1052, %v1048, inf
      %1054 = vmin.xlane.f32.xlu0 %v1053
      %v1055 = vpop.xlane.xlu0 %1054
      %v1056 = vcvt.f32.s32 %v1055
      %v1057 = vcvt.f32.s32 %v1051
      %v1058 = vshll.u32 %v1057, 16
      %v1059 = vadd.s32 %v1058, %v1056
      %v1060 = vand.u32 %v987, 65535
      %v1061 = vshra.s32 %v987, 16
      %v1062 = vcvt.s32.f32 %v1060
      %v1063 = vcvt.s32.f32 %v1061
      %1064 = vmin.xlane.f32.xlu0 %v1063
      %v1065 = vpop.xlane.xlu0 %1064
      %vm1066 = vcmp.eq.f32.partialorder %v1063, %v1065
      %v1067 = vsel %vm1066, %v1062, inf
      %1068 = vmin.xlane.f32.xlu0 %v1067
      %v1069 = vpop.xlane.xlu0 %1068
      %v1070 = vcvt.f32.s32 %v1069
      %v1071 = vcvt.f32.s32 %v1065
      %v1072 = vshll.u32 %v1071, 16
      %v1073 = vadd.s32 %v1072, %v1070
      %v1074 = vand.u32 %v988, 65535
      %v1075 = vshra.s32 %v988, 16
      %v1076 = vcvt.s32.f32 %v1074
      %v1077 = vcvt.s32.f32 %v1075
      %1078 = vmin.xlane.f32.xlu0 %v1077
      %v1079 = vpop.xlane.xlu0 %1078
      %vm1080 = vcmp.eq.f32.partialorder %v1077, %v1079
      %v1081 = vsel %vm1080, %v1076, inf
      %1082 = vmin.xlane.f32.xlu0 %v1081
      %v1083 = vpop.xlane.xlu0 %1082
      %v1084 = vcvt.f32.s32 %v1083
      %v1085 = vcvt.f32.s32 %v1079
      %v1086 = vshll.u32 %v1085, 16
      %v1087 = vadd.s32 %v1086, %v1084
      %v1088 = vand.u32 %v989, 65535
      %v1089 = vshra.s32 %v989, 16
      %v1090 = vcvt.s32.f32 %v1088
      %v1091 = vcvt.s32.f32 %v1089
      %1092 = vmin.xlane.f32.xlu0 %v1091
      %v1093 = vpop.xlane.xlu0 %1092
      %vm1094 = vcmp.eq.f32.partialorder %v1091, %v1093
      %v1095 = vsel %vm1094, %v1090, inf
      %1096 = vmin.xlane.f32.xlu0 %v1095
      %v1097 = vpop.xlane.xlu0 %1096
      %v1098 = vcvt.f32.s32 %v1097
      %v1099 = vcvt.f32.s32 %v1093
      %v1100 = vshll.u32 %v1099, 16
      %v1101 = vadd.s32 %v1100, %v1098
      %vm1102 = vcmp.eq.s32.totalorder %v982, %v1003
      %vm1103 = vcmp.eq.s32.totalorder %v983, %v1017
      %vm1104 = vcmp.eq.s32.totalorder %v984, %v1031
      %vm1105 = vcmp.eq.s32.totalorder %v985, %v1045
      %vm1106 = vcmp.eq.s32.totalorder %v986, %v1059
      %vm1107 = vcmp.eq.s32.totalorder %v987, %v1073
      %vm1108 = vcmp.eq.s32.totalorder %v988, %v1087
      %vm1109 = vcmp.eq.s32.totalorder %v989, %v1101
      %v1110 = vsel %vm1102, 1, 0
      %v1111 = vsel %vm1103, 1, 0
      %v1112 = vsel %vm1104, 1, 0
      %v1113 = vsel %vm1105, 1, 0
      %v1114 = vsel %vm1106, 1, 0
      %v1115 = vsel %vm1107, 1, 0
      %v1116 = vsel %vm1108, 1, 0
      %v1117 = vsel %vm1109, 1, 0
      %v1118 = vcvt.s32.f32 %v1110
      %v1119 = vcvt.s32.f32 %v1111
      %v1120 = vcvt.s32.f32 %v1112
      %v1121 = vcvt.s32.f32 %v1113
      %v1122 = vcvt.s32.f32 %v1114
      %v1123 = vcvt.s32.f32 %v1115
      %v1124 = vcvt.s32.f32 %v1116
      %v1125 = vcvt.s32.f32 %v1117
      %v1126 = vlaneseq
      %v1127 = vshrl.u32 %v1126, 7
      %v1128 = vsub.s32 2, %v1127
      %v1129 = vrot.slane %v475, %v1128
      %1130 = vmatprep.subr.mxu0 0.0
      %1131 = vmatpush1.msra.mxu0 %v459
      %1132 = vmatprep.subr.mxu0 0.0
      %1133 = vmatpush1.msra.mxu0 %v460
      %1134 = vmatprep.subr.mxu0 0.0
      %1135 = vmatpush1.msra.mxu0 %v461
      %1136 = vmatprep.subr.mxu0 0.0
      %1137 = vmatpush1.msra.mxu0 %v462
      %1138 = vmatprep.subr.mxu0 0.0
      %1139 = vmatpush1.msra.mxu0 %v463
      %1140 = vmatprep.subr.mxu0 0.0
      %1141 = vmatpush1.msra.mxu0 %v464
      %1142 = vmatprep.subr.mxu0 0.0
      %1143 = vmatpush1.msra.mxu0 %v465
      %1144 = vmatprep.subr.mxu0 0.0
      %1145 = vmatpush1.msra.mxu0 %v466
      %1146 = vmatprep.subr.mxu0 0.0
      %1147 = vmatpush1.msra.mxu0 %v467
      %1148 = vmatprep.subr.mxu0 0.0
      %1149 = vmatpush1.msra.mxu0 %v468
      %1150 = vmatprep.subr.mxu0 0.0
      %1151 = vmatpush1.msra.mxu0 %v469
      %1152 = vmatprep.subr.mxu0 0.0
      %1153 = vmatpush1.msra.mxu0 %v470
      %1154 = vmatprep.subr.mxu0 0.0
      %1155 = vmatpush1.msra.mxu0 %v471
      %1156 = vmatprep.subr.mxu0 0.0
      %1157 = vmatpush1.msra.mxu0 %v472
      %1158 = vmatprep.subr.mxu0 0.0
      %1159 = vmatpush1.msra.mxu0 %v473
      %1160 = vmatprep.subr.mxu0 0.0
      %1161 = vmatpush1.msra.mxu0 %v474
      %1162 = vmatprep.subr.mxu0 0.0
      %1163 = vmatpush1.msra.mxu0 0.0
      %1164 = vmatprep.subr.mxu0 0.0
      %1165 = vmatpush1.msra.mxu0 0.0
      %1166 = vmatprep.subr.mxu0 0.0
      %1167 = vmatpush1.msra.mxu0 0.0
      %1168 = vmatprep.subr.mxu0 0.0
      %1169 = vmatpush1.msra.mxu0 0.0
      %1170 = vmatprep.subr.mxu0 0.0
      %1171 = vmatpush1.msra.mxu0 0.0
      %1172 = vmatprep.subr.mxu0 0.0
      %1173 = vmatpush1.msra.mxu0 0.0
      %1174 = vmatprep.subr.mxu0 0.0
      %1175 = vmatpush1.msra.mxu0 0.0
      %1176 = vmatprep.subr.mxu0 0.0
      %1177 = vmatpush1.msra.mxu0 0.0
      %1178 = vmatprep.subr.mxu0 0.0
      %1179 = vmatpush1.msra.mxu0 0.0
      %1180 = vmatprep.subr.mxu0 0.0
      %1181 = vmatpush1.msra.mxu0 0.0
      %1182 = vmatprep.subr.mxu0 0.0
      %1183 = vmatpush1.msra.mxu0 0.0
      %1184 = vmatprep.subr.mxu0 0.0
      %1185 = vmatpush1.msra.mxu0 0.0
      %1186 = vmatprep.subr.mxu0 0.0
      %1187 = vmatpush1.msra.mxu0 0.0
      %1188 = vmatprep.subr.mxu0 0.0
      %1189 = vmatpush1.msra.mxu0 0.0
      %1190 = vmatprep.subr.mxu0 0.0
      %1191 = vmatpush1.msra.mxu0 0.0
      %1192 = vmatprep.subr.mxu0 0.0
      %1193 = vmatpush1.msra.mxu0 0.0
      %1194 = vmatprep.mubr.f32.mxu0 0.0
      %1195 = vmatmul.mubr.f32.gmra.mrb[0].mxu0 %v1118
      %v1196 = vpop.f32.mrb[0].mxu0
      %v1197 = vadd.f32 %v1129, %v1196
      %v1198 = vpop.f32.mrb[0].mxu0
      %1199 = vmatprep.mubr.f32.mxu0 0.0
      %1200 = vmatmul.mubr.f32.gmra.mrb[0].mxu0 %v1119
      %v1201 = vpop.f32.mrb[0].mxu0
      %v1202 = vadd.f32 %v1129, %v1201
      %v1203 = vpop.f32.mrb[0].mxu0
      %1204 = vmatprep.mubr.f32.mxu0 0.0
      %1205 = vmatmul.mubr.f32.gmra.mrb[0].mxu0 %v1120
      %v1206 = vpop.f32.mrb[0].mxu0
      %v1207 = vadd.f32 %v1129, %v1206
      %v1208 = vpop.f32.mrb[0].mxu0
      %1209 = vmatprep.mubr.f32.mxu0 0.0
      %1210 = vmatmul.mubr.f32.gmra.mrb[0].mxu0 %v1121
      %v1211 = vpop.f32.mrb[0].mxu0
      %v1212 = vadd.f32 %v1129, %v1211
      %v1213 = vpop.f32.mrb[0].mxu0
      %1214 = vmatprep.mubr.f32.mxu0 0.0
      %1215 = vmatmul.mubr.f32.gmra.mrb[0].mxu0 %v1122
      %v1216 = vpop.f32.mrb[0].mxu0
      %v1217 = vadd.f32 %v1129, %v1216
      %v1218 = vpop.f32.mrb[0].mxu0
      %1219 = vmatprep.mubr.f32.mxu0 0.0
      %1220 = vmatmul.mubr.f32.gmra.mrb[0].mxu0 %v1123
      %v1221 = vpop.f32.mrb[0].mxu0
      %v1222 = vadd.f32 %v1129, %v1221
      %v1223 = vpop.f32.mrb[0].mxu0
      %1224 = vmatprep.mubr.f32.mxu0 0.0
      %1225 = vmatmul.mubr.f32.gmra.mrb[0].mxu0 %v1124
      %v1226 = vpop.f32.mrb[0].mxu0
      %v1227 = vadd.f32 %v1129, %v1226
      %v1228 = vpop.f32.mrb[0].mxu0
      %1229 = vmatprep.mubr.f32.mxu0 0.0
      %1230 = vmatmul.mubr.f32.gmra.mrb[0].mxu0 %v1125
      %v1231 = vpop.f32.mrb[0].mxu0
      %v1232 = vadd.f32 %v1129, %v1231
      %v1233 = vpop.f32.mrb[0].mxu0
      %1234 = vdwg.mxu0
      %v1235 = vmax.f32 %v974, %v1197
      %v1236 = vmax.f32 %v975, %v1202
      %v1237 = vmax.f32 %v976, %v1207
      %v1238 = vmax.f32 %v977, %v1212
      %v1239 = vmax.f32 %v978, %v1217
      %v1240 = vmax.f32 %v979, %v1222
      %v1241 = vmax.f32 %v980, %v1227
      %v1242 = vmax.f32 %v981, %v1232
      %v1243 = vsel %vm1102, 2147483647, %v982
      %v1244 = vsel %vm1103, 2147483647, %v983
      %v1245 = vsel %vm1104, 2147483647, %v984
      %v1246 = vsel %vm1105, 2147483647, %v985
      %v1247 = vsel %vm1106, 2147483647, %v986
      %v1248 = vsel %vm1107, 2147483647, %v987
      %v1249 = vsel %vm1108, 2147483647, %v988
      %v1250 = vsel %vm1109, 2147483647, %v989
      %v1251 = vand.u32 %v1243, 65535
      %v1252 = vshra.s32 %v1243, 16
      %v1253 = vcvt.s32.f32 %v1251
      %v1254 = vcvt.s32.f32 %v1252
      %1255 = vmin.xlane.f32.xlu0 %v1254
      %v1256 = vpop.xlane.xlu0 %1255
      %vm1257 = vcmp.eq.f32.partialorder %v1254, %v1256
      %v1258 = vsel %vm1257, %v1253, inf
      %1259 = vmin.xlane.f32.xlu0 %v1258
      %v1260 = vpop.xlane.xlu0 %1259
      %v1261 = vcvt.f32.s32 %v1260
      %v1262 = vcvt.f32.s32 %v1256
      %v1263 = vshll.u32 %v1262, 16
      %v1264 = vadd.s32 %v1263, %v1261
      %v1265 = vand.u32 %v1244, 65535
      %v1266 = vshra.s32 %v1244, 16
      %v1267 = vcvt.s32.f32 %v1265
      %v1268 = vcvt.s32.f32 %v1266
      %1269 = vmin.xlane.f32.xlu0 %v1268
      %v1270 = vpop.xlane.xlu0 %1269
      %vm1271 = vcmp.eq.f32.partialorder %v1268, %v1270
      %v1272 = vsel %vm1271, %v1267, inf
      %1273 = vmin.xlane.f32.xlu0 %v1272
      %v1274 = vpop.xlane.xlu0 %1273
      %v1275 = vcvt.f32.s32 %v1274
      %v1276 = vcvt.f32.s32 %v1270
      %v1277 = vshll.u32 %v1276, 16
      %v1278 = vadd.s32 %v1277, %v1275
      %v1279 = vand.u32 %v1245, 65535
      %v1280 = vshra.s32 %v1245, 16
      %v1281 = vcvt.s32.f32 %v1279
      %v1282 = vcvt.s32.f32 %v1280
      %1283 = vmin.xlane.f32.xlu0 %v1282
      %v1284 = vpop.xlane.xlu0 %1283
      %vm1285 = vcmp.eq.f32.partialorder %v1282, %v1284
      %v1286 = vsel %vm1285, %v1281, inf
      %1287 = vmin.xlane.f32.xlu0 %v1286
      %v1288 = vpop.xlane.xlu0 %1287
      %v1289 = vcvt.f32.s32 %v1288
      %v1290 = vcvt.f32.s32 %v1284
      %v1291 = vshll.u32 %v1290, 16
      %v1292 = vadd.s32 %v1291, %v1289
      %v1293 = vand.u32 %v1246, 65535
      %v1294 = vshra.s32 %v1246, 16
      %v1295 = vcvt.s32.f32 %v1293
      %v1296 = vcvt.s32.f32 %v1294
      %1297 = vmin.xlane.f32.xlu0 %v1296
      %v1298 = vpop.xlane.xlu0 %1297
      %vm1299 = vcmp.eq.f32.partialorder %v1296, %v1298
      %v1300 = vsel %vm1299, %v1295, inf
      %1301 = vmin.xlane.f32.xlu0 %v1300
      %v1302 = vpop.xlane.xlu0 %1301
      %v1303 = vcvt.f32.s32 %v1302
      %v1304 = vcvt.f32.s32 %v1298
      %v1305 = vshll.u32 %v1304, 16
      %v1306 = vadd.s32 %v1305, %v1303
      %v1307 = vand.u32 %v1247, 65535
      %v1308 = vshra.s32 %v1247, 16
      %v1309 = vcvt.s32.f32 %v1307
      %v1310 = vcvt.s32.f32 %v1308
      %1311 = vmin.xlane.f32.xlu0 %v1310
      %v1312 = vpop.xlane.xlu0 %1311
      %vm1313 = vcmp.eq.f32.partialorder %v1310, %v1312
      %v1314 = vsel %vm1313, %v1309, inf
      %1315 = vmin.xlane.f32.xlu0 %v1314
      %v1316 = vpop.xlane.xlu0 %1315
      %v1317 = vcvt.f32.s32 %v1316
      %v1318 = vcvt.f32.s32 %v1312
      %v1319 = vshll.u32 %v1318, 16
      %v1320 = vadd.s32 %v1319, %v1317
      %v1321 = vand.u32 %v1248, 65535
      %v1322 = vshra.s32 %v1248, 16
      %v1323 = vcvt.s32.f32 %v1321
      %v1324 = vcvt.s32.f32 %v1322
      %1325 = vmin.xlane.f32.xlu0 %v1324
      %v1326 = vpop.xlane.xlu0 %1325
      %vm1327 = vcmp.eq.f32.partialorder %v1324, %v1326
      %v1328 = vsel %vm1327, %v1323, inf
      %1329 = vmin.xlane.f32.xlu0 %v1328
      %v1330 = vpop.xlane.xlu0 %1329
      %v1331 = vcvt.f32.s32 %v1330
      %v1332 = vcvt.f32.s32 %v1326
      %v1333 = vshll.u32 %v1332, 16
      %v1334 = vadd.s32 %v1333, %v1331
      %v1335 = vand.u32 %v1249, 65535
      %v1336 = vshra.s32 %v1249, 16
      %v1337 = vcvt.s32.f32 %v1335
      %v1338 = vcvt.s32.f32 %v1336
      %1339 = vmin.xlane.f32.xlu0 %v1338
      %v1340 = vpop.xlane.xlu0 %1339
      %vm1341 = vcmp.eq.f32.partialorder %v1338, %v1340
      %v1342 = vsel %vm1341, %v1337, inf
      %1343 = vmin.xlane.f32.xlu0 %v1342
      %v1344 = vpop.xlane.xlu0 %1343
      %v1345 = vcvt.f32.s32 %v1344
      %v1346 = vcvt.f32.s32 %v1340
      %v1347 = vshll.u32 %v1346, 16
      %v1348 = vadd.s32 %v1347, %v1345
      %v1349 = vand.u32 %v1250, 65535
      %v1350 = vshra.s32 %v1250, 16
      %v1351 = vcvt.s32.f32 %v1349
      %v1352 = vcvt.s32.f32 %v1350
      %1353 = vmin.xlane.f32.xlu0 %v1352
      %v1354 = vpop.xlane.xlu0 %1353
      %vm1355 = vcmp.eq.f32.partialorder %v1352, %v1354
      %v1356 = vsel %vm1355, %v1351, inf
      %1357 = vmin.xlane.f32.xlu0 %v1356
      %v1358 = vpop.xlane.xlu0 %1357
      %v1359 = vcvt.f32.s32 %v1358
      %v1360 = vcvt.f32.s32 %v1354
      %v1361 = vshll.u32 %v1360, 16
      %v1362 = vadd.s32 %v1361, %v1359
      %vm1363 = vcmp.eq.s32.totalorder %v1243, %v1264
      %vm1364 = vcmp.eq.s32.totalorder %v1244, %v1278
      %vm1365 = vcmp.eq.s32.totalorder %v1245, %v1292
      %vm1366 = vcmp.eq.s32.totalorder %v1246, %v1306
      %vm1367 = vcmp.eq.s32.totalorder %v1247, %v1320
      %vm1368 = vcmp.eq.s32.totalorder %v1248, %v1334
      %vm1369 = vcmp.eq.s32.totalorder %v1249, %v1348
      %vm1370 = vcmp.eq.s32.totalorder %v1250, %v1362
      %v1371 = vsel %vm1363, 1, 0
      %v1372 = vsel %vm1364, 1, 0
      %v1373 = vsel %vm1365, 1, 0
      %v1374 = vsel %vm1366, 1, 0
      %v1375 = vsel %vm1367, 1, 0
      %v1376 = vsel %vm1368, 1, 0
      %v1377 = vsel %vm1369, 1, 0
      %v1378 = vsel %vm1370, 1, 0
      %v1379 = vcvt.s32.f32 %v1371
      %v1380 = vcvt.s32.f32 %v1372
      %v1381 = vcvt.s32.f32 %v1373
      %v1382 = vcvt.s32.f32 %v1374
      %v1383 = vcvt.s32.f32 %v1375
      %v1384 = vcvt.s32.f32 %v1376
      %v1385 = vcvt.s32.f32 %v1377
      %v1386 = vcvt.s32.f32 %v1378
      %v1387 = vlaneseq
      %v1388 = vshrl.u32 %v1387, 7
      %v1389 = vsub.s32 3, %v1388
      %v1390 = vrot.slane %v475, %v1389
      %1391 = vmatprep.subr.mxu0 0.0
      %1392 = vmatpush1.msra.mxu0 %v459
      %1393 = vmatprep.subr.mxu0 0.0
      %1394 = vmatpush1.msra.mxu0 %v460
      %1395 = vmatprep.subr.mxu0 0.0
      %1396 = vmatpush1.msra.mxu0 %v461
      %1397 = vmatprep.subr.mxu0 0.0
      %1398 = vmatpush1.msra.mxu0 %v462
      %1399 = vmatprep.subr.mxu0 0.0
      %1400 = vmatpush1.msra.mxu0 %v463
      %1401 = vmatprep.subr.mxu0 0.0
      %1402 = vmatpush1.msra.mxu0 %v464
      %1403 = vmatprep.subr.mxu0 0.0
      %1404 = vmatpush1.msra.mxu0 %v465
      %1405 = vmatprep.subr.mxu0 0.0
      %1406 = vmatpush1.msra.mxu0 %v466
      %1407 = vmatprep.subr.mxu0 0.0
      %1408 = vmatpush1.msra.mxu0 %v467
      %1409 = vmatprep.subr.mxu0 0.0
      %1410 = vmatpush1.msra.mxu0 %v468
      %1411 = vmatprep.subr.mxu0 0.0
      %1412 = vmatpush1.msra.mxu0 %v469
      %1413 = vmatprep.subr.mxu0 0.0
      %1414 = vmatpush1.msra.mxu0 %v470
      %1415 = vmatprep.subr.mxu0 0.0
      %1416 = vmatpush1.msra.mxu0 %v471
      %1417 = vmatprep.subr.mxu0 0.0
      %1418 = vmatpush1.msra.mxu0 %v472
      %1419 = vmatprep.subr.mxu0 0.0
      %1420 = vmatpush1.msra.mxu0 %v473
      %1421 = vmatprep.subr.mxu0 0.0
      %1422 = vmatpush1.msra.mxu0 %v474
      %1423 = vmatprep.subr.mxu0 0.0
      %1424 = vmatpush1.msra.mxu0 0.0
      %1425 = vmatprep.subr.mxu0 0.0
      %1426 = vmatpush1.msra.mxu0 0.0
      %1427 = vmatprep.subr.mxu0 0.0
      %1428 = vmatpush1.msra.mxu0 0.0
      %1429 = vmatprep.subr.mxu0 0.0
      %1430 = vmatpush1.msra.mxu0 0.0
      %1431 = vmatprep.subr.mxu0 0.0
      %1432 = vmatpush1.msra.mxu0 0.0
      %1433 = vmatprep.subr.mxu0 0.0
      %1434 = vmatpush1.msra.mxu0 0.0
      %1435 = vmatprep.subr.mxu0 0.0
      %1436 = vmatpush1.msra.mxu0 0.0
      %1437 = vmatprep.subr.mxu0 0.0
      %1438 = vmatpush1.msra.mxu0 0.0
      %1439 = vmatprep.subr.mxu0 0.0
      %1440 = vmatpush1.msra.mxu0 0.0
      %1441 = vmatprep.subr.mxu0 0.0
      %1442 = vmatpush1.msra.mxu0 0.0
      %1443 = vmatprep.subr.mxu0 0.0
      %1444 = vmatpush1.msra.mxu0 0.0
      %1445 = vmatprep.subr.mxu0 0.0
      %1446 = vmatpush1.msra.mxu0 0.0
      %1447 = vmatprep.subr.mxu0 0.0
      %1448 = vmatpush1.msra.mxu0 0.0
      %1449 = vmatprep.subr.mxu0 0.0
      %1450 = vmatpush1.msra.mxu0 0.0
      %1451 = vmatprep.subr.mxu0 0.0
      %1452 = vmatpush1.msra.mxu0 0.0
      %1453 = vmatprep.subr.mxu0 0.0
      %1454 = vmatpush1.msra.mxu0 0.0
      %1455 = vmatprep.mubr.f32.mxu0 0.0
      %1456 = vmatmul.mubr.f32.gmra.mrb[0].mxu0 %v1379
      %v1457 = vpop.f32.mrb[0].mxu0
      %v1458 = vadd.f32 %v1390, %v1457
      %v1459 = vpop.f32.mrb[0].mxu0
      %1460 = vmatprep.mubr.f32.mxu0 0.0
      %1461 = vmatmul.mubr.f32.gmra.mrb[0].mxu0 %v1380
      %v1462 = vpop.f32.mrb[0].mxu0
      %v1463 = vadd.f32 %v1390, %v1462
      %v1464 = vpop.f32.mrb[0].mxu0
      %1465 = vmatprep.mubr.f32.mxu0 0.0
      %1466 = vmatmul.mubr.f32.gmra.mrb[0].mxu0 %v1381
      %v1467 = vpop.f32.mrb[0].mxu0
      %v1468 = vadd.f32 %v1390, %v1467
      %v1469 = vpop.f32.mrb[0].mxu0
      %1470 = vmatprep.mubr.f32.mxu0 0.0
      %1471 = vmatmul.mubr.f32.gmra.mrb[0].mxu0 %v1382
      %v1472 = vpop.f32.mrb[0].mxu0
      %v1473 = vadd.f32 %v1390, %v1472
      %v1474 = vpop.f32.mrb[0].mxu0
      %1475 = vmatprep.mubr.f32.mxu0 0.0
      %1476 = vmatmul.mubr.f32.gmra.mrb[0].mxu0 %v1383
      %v1477 = vpop.f32.mrb[0].mxu0
      %v1478 = vadd.f32 %v1390, %v1477
      %v1479 = vpop.f32.mrb[0].mxu0
      %1480 = vmatprep.mubr.f32.mxu0 0.0
      %1481 = vmatmul.mubr.f32.gmra.mrb[0].mxu0 %v1384
      %v1482 = vpop.f32.mrb[0].mxu0
      %v1483 = vadd.f32 %v1390, %v1482
      %v1484 = vpop.f32.mrb[0].mxu0
      %1485 = vmatprep.mubr.f32.mxu0 0.0
      %1486 = vmatmul.mubr.f32.gmra.mrb[0].mxu0 %v1385
      %v1487 = vpop.f32.mrb[0].mxu0
      %v1488 = vadd.f32 %v1390, %v1487
      %v1489 = vpop.f32.mrb[0].mxu0
      %1490 = vmatprep.mubr.f32.mxu0 0.0
      %1491 = vmatmul.mubr.f32.gmra.mrb[0].mxu0 %v1386
      %v1492 = vpop.f32.mrb[0].mxu0
      %v1493 = vadd.f32 %v1390, %v1492
      %v1494 = vpop.f32.mrb[0].mxu0
      %1495 = vdwg.mxu0
      %v1496 = vmax.f32 %v1235, %v1458
      %v1497 = vmax.f32 %v1236, %v1463
      %v1498 = vmax.f32 %v1237, %v1468
      %v1499 = vmax.f32 %v1238, %v1473
      %v1500 = vmax.f32 %v1239, %v1478
      %v1501 = vmax.f32 %v1240, %v1483
      %v1502 = vmax.f32 %v1241, %v1488
      %v1503 = vmax.f32 %v1242, %v1493
      %v1504 = vsel %vm1363, 2147483647, %v1243
      %v1505 = vsel %vm1364, 2147483647, %v1244
      %v1506 = vsel %vm1365, 2147483647, %v1245
      %v1507 = vsel %vm1366, 2147483647, %v1246
      %v1508 = vsel %vm1367, 2147483647, %v1247
      %v1509 = vsel %vm1368, 2147483647, %v1248
      %v1510 = vsel %vm1369, 2147483647, %v1249
      %v1511 = vsel %vm1370, 2147483647, %v1250
      %v1512 = vand.u32 %v1504, 65535
      %v1513 = vshra.s32 %v1504, 16
      %v1514 = vcvt.s32.f32 %v1512
      %v1515 = vcvt.s32.f32 %v1513
      %1516 = vmin.xlane.f32.xlu0 %v1515
      %v1517 = vpop.xlane.xlu0 %1516
      %vm1518 = vcmp.eq.f32.partialorder %v1515, %v1517
      %v1519 = vsel %vm1518, %v1514, inf
      %1520 = vmin.xlane.f32.xlu0 %v1519
      %v1521 = vpop.xlane.xlu0 %1520
      %v1522 = vcvt.f32.s32 %v1521
      %v1523 = vcvt.f32.s32 %v1517
      %v1524 = vshll.u32 %v1523, 16
      %v1525 = vadd.s32 %v1524, %v1522
      %v1526 = vand.u32 %v1505, 65535
      %v1527 = vshra.s32 %v1505, 16
      %v1528 = vcvt.s32.f32 %v1526
      %v1529 = vcvt.s32.f32 %v1527
      %1530 = vmin.xlane.f32.xlu0 %v1529
      %v1531 = vpop.xlane.xlu0 %1530
      %vm1532 = vcmp.eq.f32.partialorder %v1529, %v1531
      %v1533 = vsel %vm1532, %v1528, inf
      %1534 = vmin.xlane.f32.xlu0 %v1533
      %v1535 = vpop.xlane.xlu0 %1534
      %v1536 = vcvt.f32.s32 %v1535
      %v1537 = vcvt.f32.s32 %v1531
      %v1538 = vshll.u32 %v1537, 16
      %v1539 = vadd.s32 %v1538, %v1536
      %v1540 = vand.u32 %v1506, 65535
      %v1541 = vshra.s32 %v1506, 16
      %v1542 = vcvt.s32.f32 %v1540
      %v1543 = vcvt.s32.f32 %v1541
      %1544 = vmin.xlane.f32.xlu0 %v1543
      %v1545 = vpop.xlane.xlu0 %1544
      %vm1546 = vcmp.eq.f32.partialorder %v1543, %v1545
      %v1547 = vsel %vm1546, %v1542, inf
      %1548 = vmin.xlane.f32.xlu0 %v1547
      %v1549 = vpop.xlane.xlu0 %1548
      %v1550 = vcvt.f32.s32 %v1549
      %v1551 = vcvt.f32.s32 %v1545
      %v1552 = vshll.u32 %v1551, 16
      %v1553 = vadd.s32 %v1552, %v1550
      %v1554 = vand.u32 %v1507, 65535
      %v1555 = vshra.s32 %v1507, 16
      %v1556 = vcvt.s32.f32 %v1554
      %v1557 = vcvt.s32.f32 %v1555
      %1558 = vmin.xlane.f32.xlu0 %v1557
      %v1559 = vpop.xlane.xlu0 %1558
      %vm1560 = vcmp.eq.f32.partialorder %v1557, %v1559
      %v1561 = vsel %vm1560, %v1556, inf
      %1562 = vmin.xlane.f32.xlu0 %v1561
      %v1563 = vpop.xlane.xlu0 %1562
      %v1564 = vcvt.f32.s32 %v1563
      %v1565 = vcvt.f32.s32 %v1559
      %v1566 = vshll.u32 %v1565, 16
      %v1567 = vadd.s32 %v1566, %v1564
      %v1568 = vand.u32 %v1508, 65535
      %v1569 = vshra.s32 %v1508, 16
      %v1570 = vcvt.s32.f32 %v1568
      %v1571 = vcvt.s32.f32 %v1569
      %1572 = vmin.xlane.f32.xlu0 %v1571
      %v1573 = vpop.xlane.xlu0 %1572
      %vm1574 = vcmp.eq.f32.partialorder %v1571, %v1573
      %v1575 = vsel %vm1574, %v1570, inf
      %1576 = vmin.xlane.f32.xlu0 %v1575
      %v1577 = vpop.xlane.xlu0 %1576
      %v1578 = vcvt.f32.s32 %v1577
      %v1579 = vcvt.f32.s32 %v1573
      %v1580 = vshll.u32 %v1579, 16
      %v1581 = vadd.s32 %v1580, %v1578
      %v1582 = vand.u32 %v1509, 65535
      %v1583 = vshra.s32 %v1509, 16
      %v1584 = vcvt.s32.f32 %v1582
      %v1585 = vcvt.s32.f32 %v1583
      %1586 = vmin.xlane.f32.xlu0 %v1585
      %v1587 = vpop.xlane.xlu0 %1586
      %vm1588 = vcmp.eq.f32.partialorder %v1585, %v1587
      %v1589 = vsel %vm1588, %v1584, inf
      %1590 = vmin.xlane.f32.xlu0 %v1589
      %v1591 = vpop.xlane.xlu0 %1590
      %v1592 = vcvt.f32.s32 %v1591
      %v1593 = vcvt.f32.s32 %v1587
      %v1594 = vshll.u32 %v1593, 16
      %v1595 = vadd.s32 %v1594, %v1592
      %v1596 = vand.u32 %v1510, 65535
      %v1597 = vshra.s32 %v1510, 16
      %v1598 = vcvt.s32.f32 %v1596
      %v1599 = vcvt.s32.f32 %v1597
      %1600 = vmin.xlane.f32.xlu0 %v1599
      %v1601 = vpop.xlane.xlu0 %1600
      %vm1602 = vcmp.eq.f32.partialorder %v1599, %v1601
      %v1603 = vsel %vm1602, %v1598, inf
      %1604 = vmin.xlane.f32.xlu0 %v1603
      %v1605 = vpop.xlane.xlu0 %1604
      %v1606 = vcvt.f32.s32 %v1605
      %v1607 = vcvt.f32.s32 %v1601
      %v1608 = vshll.u32 %v1607, 16
      %v1609 = vadd.s32 %v1608, %v1606
      %v1610 = vand.u32 %v1511, 65535
      %v1611 = vshra.s32 %v1511, 16
      %v1612 = vcvt.s32.f32 %v1610
      %v1613 = vcvt.s32.f32 %v1611
      %1614 = vmin.xlane.f32.xlu0 %v1613
      %v1615 = vpop.xlane.xlu0 %1614
      %vm1616 = vcmp.eq.f32.partialorder %v1613, %v1615
      %v1617 = vsel %vm1616, %v1612, inf
      %1618 = vmin.xlane.f32.xlu0 %v1617
      %v1619 = vpop.xlane.xlu0 %1618
      %v1620 = vcvt.f32.s32 %v1619
      %v1621 = vcvt.f32.s32 %v1615
      %v1622 = vshll.u32 %v1621, 16
      %v1623 = vadd.s32 %v1622, %v1620
      %vm1624 = vcmp.eq.s32.totalorder %v1504, %v1525
      %vm1625 = vcmp.eq.s32.totalorder %v1505, %v1539
      %vm1626 = vcmp.eq.s32.totalorder %v1506, %v1553
      %vm1627 = vcmp.eq.s32.totalorder %v1507, %v1567
      %vm1628 = vcmp.eq.s32.totalorder %v1508, %v1581
      %vm1629 = vcmp.eq.s32.totalorder %v1509, %v1595
      %vm1630 = vcmp.eq.s32.totalorder %v1510, %v1609
      %vm1631 = vcmp.eq.s32.totalorder %v1511, %v1623
      %v1632 = vsel %vm1624, 1, 0
      %v1633 = vsel %vm1625, 1, 0
      %v1634 = vsel %vm1626, 1, 0
      %v1635 = vsel %vm1627, 1, 0
      %v1636 = vsel %vm1628, 1, 0
      %v1637 = vsel %vm1629, 1, 0
      %v1638 = vsel %vm1630, 1, 0
      %v1639 = vsel %vm1631, 1, 0
      %v1640 = vcvt.s32.f32 %v1632
      %v1641 = vcvt.s32.f32 %v1633
      %v1642 = vcvt.s32.f32 %v1634
      %v1643 = vcvt.s32.f32 %v1635
      %v1644 = vcvt.s32.f32 %v1636
      %v1645 = vcvt.s32.f32 %v1637
      %v1646 = vcvt.s32.f32 %v1638
      %v1647 = vcvt.s32.f32 %v1639
      %v1648 = vlaneseq
      %v1649 = vshrl.u32 %v1648, 7
      %v1650 = vsub.s32 4, %v1649
      %v1651 = vrot.slane %v475, %v1650
      %1652 = vmatprep.subr.mxu0 0.0
      %1653 = vmatpush1.msra.mxu0 %v459
      %1654 = vmatprep.subr.mxu0 0.0
      %1655 = vmatpush1.msra.mxu0 %v460
      %1656 = vmatprep.subr.mxu0 0.0
      %1657 = vmatpush1.msra.mxu0 %v461
      %1658 = vmatprep.subr.mxu0 0.0
      %1659 = vmatpush1.msra.mxu0 %v462
      %1660 = vmatprep.subr.mxu0 0.0
      %1661 = vmatpush1.msra.mxu0 %v463
      %1662 = vmatprep.subr.mxu0 0.0
      %1663 = vmatpush1.msra.mxu0 %v464
      %1664 = vmatprep.subr.mxu0 0.0
      %1665 = vmatpush1.msra.mxu0 %v465
      %1666 = vmatprep.subr.mxu0 0.0
      %1667 = vmatpush1.msra.mxu0 %v466
      %1668 = vmatprep.subr.mxu0 0.0
      %1669 = vmatpush1.msra.mxu0 %v467
      %1670 = vmatprep.subr.mxu0 0.0
      %1671 = vmatpush1.msra.mxu0 %v468
      %1672 = vmatprep.subr.mxu0 0.0
      %1673 = vmatpush1.msra.mxu0 %v469
      %1674 = vmatprep.subr.mxu0 0.0
      %1675 = vmatpush1.msra.mxu0 %v470
      %1676 = vmatprep.subr.mxu0 0.0
      %1677 = vmatpush1.msra.mxu0 %v471
      %1678 = vmatprep.subr.mxu0 0.0
      %1679 = vmatpush1.msra.mxu0 %v472
      %1680 = vmatprep.subr.mxu0 0.0
      %1681 = vmatpush1.msra.mxu0 %v473
      %1682 = vmatprep.subr.mxu0 0.0
      %1683 = vmatpush1.msra.mxu0 %v474
      %1684 = vmatprep.subr.mxu0 0.0
      %1685 = vmatpush1.msra.mxu0 0.0
      %1686 = vmatprep.subr.mxu0 0.0
      %1687 = vmatpush1.msra.mxu0 0.0
      %1688 = vmatprep.subr.mxu0 0.0
      %1689 = vmatpush1.msra.mxu0 0.0
      %1690 = vmatprep.subr.mxu0 0.0
      %1691 = vmatpush1.msra.mxu0 0.0
      %1692 = vmatprep.subr.mxu0 0.0
      %1693 = vmatpush1.msra.mxu0 0.0
      %1694 = vmatprep.subr.mxu0 0.0
      %1695 = vmatpush1.msra.mxu0 0.0
      %1696 = vmatprep.subr.mxu0 0.0
      %1697 = vmatpush1.msra.mxu0 0.0
      %1698 = vmatprep.subr.mxu0 0.0
      %1699 = vmatpush1.msra.mxu0 0.0
      %1700 = vmatprep.subr.mxu0 0.0
      %1701 = vmatpush1.msra.mxu0 0.0
      %1702 = vmatprep.subr.mxu0 0.0
      %1703 = vmatpush1.msra.mxu0 0.0
      %1704 = vmatprep.subr.mxu0 0.0
      %1705 = vmatpush1.msra.mxu0 0.0
      %1706 = vmatprep.subr.mxu0 0.0
      %1707 = vmatpush1.msra.mxu0 0.0
      %1708 = vmatprep.subr.mxu0 0.0
      %1709 = vmatpush1.msra.mxu0 0.0
      %1710 = vmatprep.subr.mxu0 0.0
      %1711 = vmatpush1.msra.mxu0 0.0
      %1712 = vmatprep.subr.mxu0 0.0
      %1713 = vmatpush1.msra.mxu0 0.0
      %1714 = vmatprep.subr.mxu0 0.0
      %1715 = vmatpush1.msra.mxu0 0.0
      %1716 = vmatprep.mubr.f32.mxu0 0.0
      %1717 = vmatmul.mubr.f32.gmra.mrb[0].mxu0 %v1640
      %v1718 = vpop.f32.mrb[0].mxu0
      %v1719 = vadd.f32 %v1651, %v1718
      %v1720 = vpop.f32.mrb[0].mxu0
      %1721 = vmatprep.mubr.f32.mxu0 0.0
      %1722 = vmatmul.mubr.f32.gmra.mrb[0].mxu0 %v1641
      %v1723 = vpop.f32.mrb[0].mxu0
      %v1724 = vadd.f32 %v1651, %v1723
      %v1725 = vpop.f32.mrb[0].mxu0
      %1726 = vmatprep.mubr.f32.mxu0 0.0
      %1727 = vmatmul.mubr.f32.gmra.mrb[0].mxu0 %v1642
      %v1728 = vpop.f32.mrb[0].mxu0
      %v1729 = vadd.f32 %v1651, %v1728
      %v1730 = vpop.f32.mrb[0].mxu0
      %1731 = vmatprep.mubr.f32.mxu0 0.0
      %1732 = vmatmul.mubr.f32.gmra.mrb[0].mxu0 %v1643
      %v1733 = vpop.f32.mrb[0].mxu0
      %v1734 = vadd.f32 %v1651, %v1733
      %v1735 = vpop.f32.mrb[0].mxu0
      %1736 = vmatprep.mubr.f32.mxu0 0.0
      %1737 = vmatmul.mubr.f32.gmra.mrb[0].mxu0 %v1644
      %v1738 = vpop.f32.mrb[0].mxu0
      %v1739 = vadd.f32 %v1651, %v1738
      %v1740 = vpop.f32.mrb[0].mxu0
      %1741 = vmatprep.mubr.f32.mxu0 0.0
      %1742 = vmatmul.mubr.f32.gmra.mrb[0].mxu0 %v1645
      %v1743 = vpop.f32.mrb[0].mxu0
      %v1744 = vadd.f32 %v1651, %v1743
      %v1745 = vpop.f32.mrb[0].mxu0
      %1746 = vmatprep.mubr.f32.mxu0 0.0
      %1747 = vmatmul.mubr.f32.gmra.mrb[0].mxu0 %v1646
      %v1748 = vpop.f32.mrb[0].mxu0
      %v1749 = vadd.f32 %v1651, %v1748
      %v1750 = vpop.f32.mrb[0].mxu0
      %1751 = vmatprep.mubr.f32.mxu0 0.0
      %1752 = vmatmul.mubr.f32.gmra.mrb[0].mxu0 %v1647
      %v1753 = vpop.f32.mrb[0].mxu0
      %v1754 = vadd.f32 %v1651, %v1753
      %v1755 = vpop.f32.mrb[0].mxu0
      %1756 = vdwg.mxu0
      %v1757 = vmax.f32 %v1496, %v1719
      %v1758 = vmax.f32 %v1497, %v1724
      %v1759 = vmax.f32 %v1498, %v1729
      %v1760 = vmax.f32 %v1499, %v1734
      %v1761 = vmax.f32 %v1500, %v1739
      %v1762 = vmax.f32 %v1501, %v1744
      %v1763 = vmax.f32 %v1502, %v1749
      %v1764 = vmax.f32 %v1503, %v1754
      %v1765 = vsel %vm1624, 2147483647, %v1504
      %v1766 = vsel %vm1625, 2147483647, %v1505
      %v1767 = vsel %vm1626, 2147483647, %v1506
      %v1768 = vsel %vm1627, 2147483647, %v1507
      %v1769 = vsel %vm1628, 2147483647, %v1508
      %v1770 = vsel %vm1629, 2147483647, %v1509
      %v1771 = vsel %vm1630, 2147483647, %v1510
      %v1772 = vsel %vm1631, 2147483647, %v1511
      %v1773 = vand.u32 %v1765, 65535
      %v1774 = vshra.s32 %v1765, 16
      %v1775 = vcvt.s32.f32 %v1773
      %v1776 = vcvt.s32.f32 %v1774
      %1777 = vmin.xlane.f32.xlu0 %v1776
      %v1778 = vpop.xlane.xlu0 %1777
      %vm1779 = vcmp.eq.f32.partialorder %v1776, %v1778
      %v1780 = vsel %vm1779, %v1775, inf
      %1781 = vmin.xlane.f32.xlu0 %v1780
      %v1782 = vpop.xlane.xlu0 %1781
      %v1783 = vcvt.f32.s32 %v1782
      %v1784 = vcvt.f32.s32 %v1778
      %v1785 = vshll.u32 %v1784, 16
      %v1786 = vadd.s32 %v1785, %v1783
      %v1787 = vand.u32 %v1766, 65535
      %v1788 = vshra.s32 %v1766, 16
      %v1789 = vcvt.s32.f32 %v1787
      %v1790 = vcvt.s32.f32 %v1788
      %1791 = vmin.xlane.f32.xlu0 %v1790
      %v1792 = vpop.xlane.xlu0 %1791
      %vm1793 = vcmp.eq.f32.partialorder %v1790, %v1792
      %v1794 = vsel %vm1793, %v1789, inf
      %1795 = vmin.xlane.f32.xlu0 %v1794
      %v1796 = vpop.xlane.xlu0 %1795
      %v1797 = vcvt.f32.s32 %v1796
      %v1798 = vcvt.f32.s32 %v1792
      %v1799 = vshll.u32 %v1798, 16
      %v1800 = vadd.s32 %v1799, %v1797
      %v1801 = vand.u32 %v1767, 65535
      %v1802 = vshra.s32 %v1767, 16
      %v1803 = vcvt.s32.f32 %v1801
      %v1804 = vcvt.s32.f32 %v1802
      %1805 = vmin.xlane.f32.xlu0 %v1804
      %v1806 = vpop.xlane.xlu0 %1805
      %vm1807 = vcmp.eq.f32.partialorder %v1804, %v1806
      %v1808 = vsel %vm1807, %v1803, inf
      %1809 = vmin.xlane.f32.xlu0 %v1808
      %v1810 = vpop.xlane.xlu0 %1809
      %v1811 = vcvt.f32.s32 %v1810
      %v1812 = vcvt.f32.s32 %v1806
      %v1813 = vshll.u32 %v1812, 16
      %v1814 = vadd.s32 %v1813, %v1811
      %v1815 = vand.u32 %v1768, 65535
      %v1816 = vshra.s32 %v1768, 16
      %v1817 = vcvt.s32.f32 %v1815
      %v1818 = vcvt.s32.f32 %v1816
      %1819 = vmin.xlane.f32.xlu0 %v1818
      %v1820 = vpop.xlane.xlu0 %1819
      %vm1821 = vcmp.eq.f32.partialorder %v1818, %v1820
      %v1822 = vsel %vm1821, %v1817, inf
      %1823 = vmin.xlane.f32.xlu0 %v1822
      %v1824 = vpop.xlane.xlu0 %1823
      %v1825 = vcvt.f32.s32 %v1824
      %v1826 = vcvt.f32.s32 %v1820
      %v1827 = vshll.u32 %v1826, 16
      %v1828 = vadd.s32 %v1827, %v1825
      %v1829 = vand.u32 %v1769, 65535
      %v1830 = vshra.s32 %v1769, 16
      %v1831 = vcvt.s32.f32 %v1829
      %v1832 = vcvt.s32.f32 %v1830
      %1833 = vmin.xlane.f32.xlu0 %v1832
      %v1834 = vpop.xlane.xlu0 %1833
      %vm1835 = vcmp.eq.f32.partialorder %v1832, %v1834
      %v1836 = vsel %vm1835, %v1831, inf
      %1837 = vmin.xlane.f32.xlu0 %v1836
      %v1838 = vpop.xlane.xlu0 %1837
      %v1839 = vcvt.f32.s32 %v1838
      %v1840 = vcvt.f32.s32 %v1834
      %v1841 = vshll.u32 %v1840, 16
      %v1842 = vadd.s32 %v1841, %v1839
      %v1843 = vand.u32 %v1770, 65535
      %v1844 = vshra.s32 %v1770, 16
      %v1845 = vcvt.s32.f32 %v1843
      %v1846 = vcvt.s32.f32 %v1844
      %1847 = vmin.xlane.f32.xlu0 %v1846
      %v1848 = vpop.xlane.xlu0 %1847
      %vm1849 = vcmp.eq.f32.partialorder %v1846, %v1848
      %v1850 = vsel %vm1849, %v1845, inf
      %1851 = vmin.xlane.f32.xlu0 %v1850
      %v1852 = vpop.xlane.xlu0 %1851
      %v1853 = vcvt.f32.s32 %v1852
      %v1854 = vcvt.f32.s32 %v1848
      %v1855 = vshll.u32 %v1854, 16
      %v1856 = vadd.s32 %v1855, %v1853
      %v1857 = vand.u32 %v1771, 65535
      %v1858 = vshra.s32 %v1771, 16
      %v1859 = vcvt.s32.f32 %v1857
      %v1860 = vcvt.s32.f32 %v1858
      %1861 = vmin.xlane.f32.xlu0 %v1860
      %v1862 = vpop.xlane.xlu0 %1861
      %vm1863 = vcmp.eq.f32.partialorder %v1860, %v1862
      %v1864 = vsel %vm1863, %v1859, inf
      %1865 = vmin.xlane.f32.xlu0 %v1864
      %v1866 = vpop.xlane.xlu0 %1865
      %v1867 = vcvt.f32.s32 %v1866
      %v1868 = vcvt.f32.s32 %v1862
      %v1869 = vshll.u32 %v1868, 16
      %v1870 = vadd.s32 %v1869, %v1867
      %v1871 = vand.u32 %v1772, 65535
      %v1872 = vshra.s32 %v1772, 16
      %v1873 = vcvt.s32.f32 %v1871
      %v1874 = vcvt.s32.f32 %v1872
      %1875 = vmin.xlane.f32.xlu0 %v1874
      %v1876 = vpop.xlane.xlu0 %1875
      %vm1877 = vcmp.eq.f32.partialorder %v1874, %v1876
      %v1878 = vsel %vm1877, %v1873, inf
      %1879 = vmin.xlane.f32.xlu0 %v1878
      %v1880 = vpop.xlane.xlu0 %1879
      %v1881 = vcvt.f32.s32 %v1880
      %v1882 = vcvt.f32.s32 %v1876
      %v1883 = vshll.u32 %v1882, 16
      %v1884 = vadd.s32 %v1883, %v1881
      %vm1885 = vcmp.eq.s32.totalorder %v1765, %v1786
      %vm1886 = vcmp.eq.s32.totalorder %v1766, %v1800
      %vm1887 = vcmp.eq.s32.totalorder %v1767, %v1814
      %vm1888 = vcmp.eq.s32.totalorder %v1768, %v1828
      %vm1889 = vcmp.eq.s32.totalorder %v1769, %v1842
      %vm1890 = vcmp.eq.s32.totalorder %v1770, %v1856
      %vm1891 = vcmp.eq.s32.totalorder %v1771, %v1870
      %vm1892 = vcmp.eq.s32.totalorder %v1772, %v1884
      %v1893 = vsel %vm1885, 1, 0
      %v1894 = vsel %vm1886, 1, 0
      %v1895 = vsel %vm1887, 1, 0
      %v1896 = vsel %vm1888, 1, 0
      %v1897 = vsel %vm1889, 1, 0
      %v1898 = vsel %vm1890, 1, 0
      %v1899 = vsel %vm1891, 1, 0
      %v1900 = vsel %vm1892, 1, 0
      %v1901 = vcvt.s32.f32 %v1893
      %v1902 = vcvt.s32.f32 %v1894
      %v1903 = vcvt.s32.f32 %v1895
      %v1904 = vcvt.s32.f32 %v1896
      %v1905 = vcvt.s32.f32 %v1897
      %v1906 = vcvt.s32.f32 %v1898
      %v1907 = vcvt.s32.f32 %v1899
      %v1908 = vcvt.s32.f32 %v1900
      %v1909 = vlaneseq
      %v1910 = vshrl.u32 %v1909, 7
      %v1911 = vsub.s32 5, %v1910
      %v1912 = vrot.slane %v475, %v1911
      %1913 = vmatprep.subr.mxu0 0.0
      %1914 = vmatpush1.msra.mxu0 %v459
      %1915 = vmatprep.subr.mxu0 0.0
      %1916 = vmatpush1.msra.mxu0 %v460
      %1917 = vmatprep.subr.mxu0 0.0
      %1918 = vmatpush1.msra.mxu0 %v461
      %1919 = vmatprep.subr.mxu0 0.0
      %1920 = vmatpush1.msra.mxu0 %v462
      %1921 = vmatprep.subr.mxu0 0.0
      %1922 = vmatpush1.msra.mxu0 %v463
      %1923 = vmatprep.subr.mxu0 0.0
      %1924 = vmatpush1.msra.mxu0 %v464
      %1925 = vmatprep.subr.mxu0 0.0
      %1926 = vmatpush1.msra.mxu0 %v465
      %1927 = vmatprep.subr.mxu0 0.0
      %1928 = vmatpush1.msra.mxu0 %v466
      %1929 = vmatprep.subr.mxu0 0.0
      %1930 = vmatpush1.msra.mxu0 %v467
      %1931 = vmatprep.subr.mxu0 0.0
      %1932 = vmatpush1.msra.mxu0 %v468
      %1933 = vmatprep.subr.mxu0 0.0
      %1934 = vmatpush1.msra.mxu0 %v469
      %1935 = vmatprep.subr.mxu0 0.0
      %1936 = vmatpush1.msra.mxu0 %v470
      %1937 = vmatprep.subr.mxu0 0.0
      %1938 = vmatpush1.msra.mxu0 %v471
      %1939 = vmatprep.subr.mxu0 0.0
      %1940 = vmatpush1.msra.mxu0 %v472
      %1941 = vmatprep.subr.mxu0 0.0
      %1942 = vmatpush1.msra.mxu0 %v473
      %1943 = vmatprep.subr.mxu0 0.0
      %1944 = vmatpush1.msra.mxu0 %v474
      %1945 = vmatprep.subr.mxu0 0.0
      %1946 = vmatpush1.msra.mxu0 0.0
      %1947 = vmatprep.subr.mxu0 0.0
      %1948 = vmatpush1.msra.mxu0 0.0
      %1949 = vmatprep.subr.mxu0 0.0
      %1950 = vmatpush1.msra.mxu0 0.0
      %1951 = vmatprep.subr.mxu0 0.0
      %1952 = vmatpush1.msra.mxu0 0.0
      %1953 = vmatprep.subr.mxu0 0.0
      %1954 = vmatpush1.msra.mxu0 0.0
      %1955 = vmatprep.subr.mxu0 0.0
      %1956 = vmatpush1.msra.mxu0 0.0
      %1957 = vmatprep.subr.mxu0 0.0
      %1958 = vmatpush1.msra.mxu0 0.0
      %1959 = vmatprep.subr.mxu0 0.0
      %1960 = vmatpush1.msra.mxu0 0.0
      %1961 = vmatprep.subr.mxu0 0.0
      %1962 = vmatpush1.msra.mxu0 0.0
      %1963 = vmatprep.subr.mxu0 0.0
      %1964 = vmatpush1.msra.mxu0 0.0
      %1965 = vmatprep.subr.mxu0 0.0
      %1966 = vmatpush1.msra.mxu0 0.0
      %1967 = vmatprep.subr.mxu0 0.0
      %1968 = vmatpush1.msra.mxu0 0.0
      %1969 = vmatprep.subr.mxu0 0.0
      %1970 = vmatpush1.msra.mxu0 0.0
      %1971 = vmatprep.subr.mxu0 0.0
      %1972 = vmatpush1.msra.mxu0 0.0
      %1973 = vmatprep.subr.mxu0 0.0
      %1974 = vmatpush1.msra.mxu0 0.0
      %1975 = vmatprep.subr.mxu0 0.0
      %1976 = vmatpush1.msra.mxu0 0.0
      %1977 = vmatprep.mubr.f32.mxu0 0.0
      %1978 = vmatmul.mubr.f32.gmra.mrb[0].mxu0 %v1901
      %v1979 = vpop.f32.mrb[0].mxu0
      %v1980 = vadd.f32 %v1912, %v1979
      %v1981 = vpop.f32.mrb[0].mxu0
      %1982 = vmatprep.mubr.f32.mxu0 0.0
      %1983 = vmatmul.mubr.f32.gmra.mrb[0].mxu0 %v1902
      %v1984 = vpop.f32.mrb[0].mxu0
      %v1985 = vadd.f32 %v1912, %v1984
      %v1986 = vpop.f32.mrb[0].mxu0
      %1987 = vmatprep.mubr.f32.mxu0 0.0
      %1988 = vmatmul.mubr.f32.gmra.mrb[0].mxu0 %v1903
      %v1989 = vpop.f32.mrb[0].mxu0
      %v1990 = vadd.f32 %v1912, %v1989
      %v1991 = vpop.f32.mrb[0].mxu0
      %1992 = vmatprep.mubr.f32.mxu0 0.0
      %1993 = vmatmul.mubr.f32.gmra.mrb[0].mxu0 %v1904
      %v1994 = vpop.f32.mrb[0].mxu0
      %v1995 = vadd.f32 %v1912, %v1994
      %v1996 = vpop.f32.mrb[0].mxu0
      %1997 = vmatprep.mubr.f32.mxu0 0.0
      %1998 = vmatmul.mubr.f32.gmra.mrb[0].mxu0 %v1905
      %v1999 = vpop.f32.mrb[0].mxu0
      %v2000 = vadd.f32 %v1912, %v1999
      %v2001 = vpop.f32.mrb[0].mxu0
      %2002 = vmatprep.mubr.f32.mxu0 0.0
      %2003 = vmatmul.mubr.f32.gmra.mrb[0].mxu0 %v1906
      %v2004 = vpop.f32.mrb[0].mxu0
      %v2005 = vadd.f32 %v1912, %v2004
      %v2006 = vpop.f32.mrb[0].mxu0
      %2007 = vmatprep.mubr.f32.mxu0 0.0
      %2008 = vmatmul.mubr.f32.gmra.mrb[0].mxu0 %v1907
      %v2009 = vpop.f32.mrb[0].mxu0
      %v2010 = vadd.f32 %v1912, %v2009
      %v2011 = vpop.f32.mrb[0].mxu0
      %2012 = vmatprep.mubr.f32.mxu0 0.0
      %2013 = vmatmul.mubr.f32.gmra.mrb[0].mxu0 %v1908
      %v2014 = vpop.f32.mrb[0].mxu0
      %v2015 = vadd.f32 %v1912, %v2014
      %v2016 = vpop.f32.mrb[0].mxu0
      %2017 = vdwg.mxu0
      %v2018 = vmax.f32 %v1757, %v1980
      %v2019 = vmax.f32 %v1758, %v1985
      %v2020 = vmax.f32 %v1759, %v1990
      %v2021 = vmax.f32 %v1760, %v1995
      %v2022 = vmax.f32 %v1761, %v2000
      %v2023 = vmax.f32 %v1762, %v2005
      %v2024 = vmax.f32 %v1763, %v2010
      %v2025 = vmax.f32 %v1764, %v2015
      %v2026 = vsel %vm1885, 2147483647, %v1765
      %v2027 = vsel %vm1886, 2147483647, %v1766
      %v2028 = vsel %vm1887, 2147483647, %v1767
      %v2029 = vsel %vm1888, 2147483647, %v1768
      %v2030 = vsel %vm1889, 2147483647, %v1769
      %v2031 = vsel %vm1890, 2147483647, %v1770
      %v2032 = vsel %vm1891, 2147483647, %v1771
      %v2033 = vsel %vm1892, 2147483647, %v1772
      %v2034 = vand.u32 %v2026, 65535
      %v2035 = vshra.s32 %v2026, 16
      %v2036 = vcvt.s32.f32 %v2034
      %v2037 = vcvt.s32.f32 %v2035
      %2038 = vmin.xlane.f32.xlu0 %v2037
      %v2039 = vpop.xlane.xlu0 %2038
      %vm2040 = vcmp.eq.f32.partialorder %v2037, %v2039
      %v2041 = vsel %vm2040, %v2036, inf
      %2042 = vmin.xlane.f32.xlu0 %v2041
      %v2043 = vpop.xlane.xlu0 %2042
      %v2044 = vcvt.f32.s32 %v2043
      %v2045 = vcvt.f32.s32 %v2039
      %v2046 = vshll.u32 %v2045, 16
      %v2047 = vadd.s32 %v2046, %v2044
      %v2048 = vand.u32 %v2027, 65535
      %v2049 = vshra.s32 %v2027, 16
      %v2050 = vcvt.s32.f32 %v2048
      %v2051 = vcvt.s32.f32 %v2049
      %2052 = vmin.xlane.f32.xlu0 %v2051
      %v2053 = vpop.xlane.xlu0 %2052
      %vm2054 = vcmp.eq.f32.partialorder %v2051, %v2053
      %v2055 = vsel %vm2054, %v2050, inf
      %2056 = vmin.xlane.f32.xlu0 %v2055
      %v2057 = vpop.xlane.xlu0 %2056
      %v2058 = vcvt.f32.s32 %v2057
      %v2059 = vcvt.f32.s32 %v2053
      %v2060 = vshll.u32 %v2059, 16
      %v2061 = vadd.s32 %v2060, %v2058
      %v2062 = vand.u32 %v2028, 65535
      %v2063 = vshra.s32 %v2028, 16
      %v2064 = vcvt.s32.f32 %v2062
      %v2065 = vcvt.s32.f32 %v2063
      %2066 = vmin.xlane.f32.xlu0 %v2065
      %v2067 = vpop.xlane.xlu0 %2066
      %vm2068 = vcmp.eq.f32.partialorder %v2065, %v2067
      %v2069 = vsel %vm2068, %v2064, inf
      %2070 = vmin.xlane.f32.xlu0 %v2069
      %v2071 = vpop.xlane.xlu0 %2070
      %v2072 = vcvt.f32.s32 %v2071
      %v2073 = vcvt.f32.s32 %v2067
      %v2074 = vshll.u32 %v2073, 16
      %v2075 = vadd.s32 %v2074, %v2072
      %v2076 = vand.u32 %v2029, 65535
      %v2077 = vshra.s32 %v2029, 16
      %v2078 = vcvt.s32.f32 %v2076
      %v2079 = vcvt.s32.f32 %v2077
      %2080 = vmin.xlane.f32.xlu0 %v2079
      %v2081 = vpop.xlane.xlu0 %2080
      %vm2082 = vcmp.eq.f32.partialorder %v2079, %v2081
      %v2083 = vsel %vm2082, %v2078, inf
      %2084 = vmin.xlane.f32.xlu0 %v2083
      %v2085 = vpop.xlane.xlu0 %2084
      %v2086 = vcvt.f32.s32 %v2085
      %v2087 = vcvt.f32.s32 %v2081
      %v2088 = vshll.u32 %v2087, 16
      %v2089 = vadd.s32 %v2088, %v2086
      %v2090 = vand.u32 %v2030, 65535
      %v2091 = vshra.s32 %v2030, 16
      %v2092 = vcvt.s32.f32 %v2090
      %v2093 = vcvt.s32.f32 %v2091
      %2094 = vmin.xlane.f32.xlu0 %v2093
      %v2095 = vpop.xlane.xlu0 %2094
      %vm2096 = vcmp.eq.f32.partialorder %v2093, %v2095
      %v2097 = vsel %vm2096, %v2092, inf
      %2098 = vmin.xlane.f32.xlu0 %v2097
      %v2099 = vpop.xlane.xlu0 %2098
      %v2100 = vcvt.f32.s32 %v2099
      %v2101 = vcvt.f32.s32 %v2095
      %v2102 = vshll.u32 %v2101, 16
      %v2103 = vadd.s32 %v2102, %v2100
      %v2104 = vand.u32 %v2031, 65535
      %v2105 = vshra.s32 %v2031, 16
      %v2106 = vcvt.s32.f32 %v2104
      %v2107 = vcvt.s32.f32 %v2105
      %2108 = vmin.xlane.f32.xlu0 %v2107
      %v2109 = vpop.xlane.xlu0 %2108
      %vm2110 = vcmp.eq.f32.partialorder %v2107, %v2109
      %v2111 = vsel %vm2110, %v2106, inf
      %2112 = vmin.xlane.f32.xlu0 %v2111
      %v2113 = vpop.xlane.xlu0 %2112
      %v2114 = vcvt.f32.s32 %v2113
      %v2115 = vcvt.f32.s32 %v2109
      %v2116 = vshll.u32 %v2115, 16
      %v2117 = vadd.s32 %v2116, %v2114
      %v2118 = vand.u32 %v2032, 65535
      %v2119 = vshra.s32 %v2032, 16
      %v2120 = vcvt.s32.f32 %v2118
      %v2121 = vcvt.s32.f32 %v2119
      %2122 = vmin.xlane.f32.xlu0 %v2121
      %v2123 = vpop.xlane.xlu0 %2122
      %vm2124 = vcmp.eq.f32.partialorder %v2121, %v2123
      %v2125 = vsel %vm2124, %v2120, inf
      %2126 = vmin.xlane.f32.xlu0 %v2125
      %v2127 = vpop.xlane.xlu0 %2126
      %v2128 = vcvt.f32.s32 %v2127
      %v2129 = vcvt.f32.s32 %v2123
      %v2130 = vshll.u32 %v2129, 16
      %v2131 = vadd.s32 %v2130, %v2128
      %v2132 = vand.u32 %v2033, 65535
      %v2133 = vshra.s32 %v2033, 16
      %v2134 = vcvt.s32.f32 %v2132
      %v2135 = vcvt.s32.f32 %v2133
      %2136 = vmin.xlane.f32.xlu0 %v2135
      %v2137 = vpop.xlane.xlu0 %2136
      %vm2138 = vcmp.eq.f32.partialorder %v2135, %v2137
      %v2139 = vsel %vm2138, %v2134, inf
      %2140 = vmin.xlane.f32.xlu0 %v2139
      %v2141 = vpop.xlane.xlu0 %2140
      %v2142 = vcvt.f32.s32 %v2141
      %v2143 = vcvt.f32.s32 %v2137
      %v2144 = vshll.u32 %v2143, 16
      %v2145 = vadd.s32 %v2144, %v2142
      %vm2146 = vcmp.eq.s32.totalorder %v2026, %v2047
      %vm2147 = vcmp.eq.s32.totalorder %v2027, %v2061
      %vm2148 = vcmp.eq.s32.totalorder %v2028, %v2075
      %vm2149 = vcmp.eq.s32.totalorder %v2029, %v2089
      %vm2150 = vcmp.eq.s32.totalorder %v2030, %v2103
      %vm2151 = vcmp.eq.s32.totalorder %v2031, %v2117
      %vm2152 = vcmp.eq.s32.totalorder %v2032, %v2131
      %vm2153 = vcmp.eq.s32.totalorder %v2033, %v2145
      %v2154 = vsel %vm2146, 1, 0
      %v2155 = vsel %vm2147, 1, 0
      %v2156 = vsel %vm2148, 1, 0
      %v2157 = vsel %vm2149, 1, 0
      %v2158 = vsel %vm2150, 1, 0
      %v2159 = vsel %vm2151, 1, 0
      %v2160 = vsel %vm2152, 1, 0
      %v2161 = vsel %vm2153, 1, 0
      %v2162 = vcvt.s32.f32 %v2154
      %v2163 = vcvt.s32.f32 %v2155
      %v2164 = vcvt.s32.f32 %v2156
      %v2165 = vcvt.s32.f32 %v2157
      %v2166 = vcvt.s32.f32 %v2158
      %v2167 = vcvt.s32.f32 %v2159
      %v2168 = vcvt.s32.f32 %v2160
      %v2169 = vcvt.s32.f32 %v2161
      %v2170 = vlaneseq
      %v2171 = vshrl.u32 %v2170, 7
      %v2172 = vsub.s32 6, %v2171
      %v2173 = vrot.slane %v475, %v2172
      %2174 = vmatprep.subr.mxu0 0.0
      %2175 = vmatpush1.msra.mxu0 %v459
      %2176 = vmatprep.subr.mxu0 0.0
      %2177 = vmatpush1.msra.mxu0 %v460
      %2178 = vmatprep.subr.mxu0 0.0
      %2179 = vmatpush1.msra.mxu0 %v461
      %2180 = vmatprep.subr.mxu0 0.0
      %2181 = vmatpush1.msra.mxu0 %v462
      %2182 = vmatprep.subr.mxu0 0.0
      %2183 = vmatpush1.msra.mxu0 %v463
      %2184 = vmatprep.subr.mxu0 0.0
      %2185 = vmatpush1.msra.mxu0 %v464
      %2186 = vmatprep.subr.mxu0 0.0
      %2187 = vmatpush1.msra.mxu0 %v465
      %2188 = vmatprep.subr.mxu0 0.0
      %2189 = vmatpush1.msra.mxu0 %v466
      %2190 = vmatprep.subr.mxu0 0.0
      %2191 = vmatpush1.msra.mxu0 %v467
      %2192 = vmatprep.subr.mxu0 0.0
      %2193 = vmatpush1.msra.mxu0 %v468
      %2194 = vmatprep.subr.mxu0 0.0
      %2195 = vmatpush1.msra.mxu0 %v469
      %2196 = vmatprep.subr.mxu0 0.0
      %2197 = vmatpush1.msra.mxu0 %v470
      %2198 = vmatprep.subr.mxu0 0.0
      %2199 = vmatpush1.msra.mxu0 %v471
      %2200 = vmatprep.subr.mxu0 0.0
      %2201 = vmatpush1.msra.mxu0 %v472
      %2202 = vmatprep.subr.mxu0 0.0
      %2203 = vmatpush1.msra.mxu0 %v473
      %2204 = vmatprep.subr.mxu0 0.0
      %2205 = vmatpush1.msra.mxu0 %v474
      %2206 = vmatprep.subr.mxu0 0.0
      %2207 = vmatpush1.msra.mxu0 0.0
      %2208 = vmatprep.subr.mxu0 0.0
      %2209 = vmatpush1.msra.mxu0 0.0
      %2210 = vmatprep.subr.mxu0 0.0
      %2211 = vmatpush1.msra.mxu0 0.0
      %2212 = vmatprep.subr.mxu0 0.0
      %2213 = vmatpush1.msra.mxu0 0.0
      %2214 = vmatprep.subr.mxu0 0.0
      %2215 = vmatpush1.msra.mxu0 0.0
      %2216 = vmatprep.subr.mxu0 0.0
      %2217 = vmatpush1.msra.mxu0 0.0
      %2218 = vmatprep.subr.mxu0 0.0
      %2219 = vmatpush1.msra.mxu0 0.0
      %2220 = vmatprep.subr.mxu0 0.0
      %2221 = vmatpush1.msra.mxu0 0.0
      %2222 = vmatprep.subr.mxu0 0.0
      %2223 = vmatpush1.msra.mxu0 0.0
      %2224 = vmatprep.subr.mxu0 0.0
      %2225 = vmatpush1.msra.mxu0 0.0
      %2226 = vmatprep.subr.mxu0 0.0
      %2227 = vmatpush1.msra.mxu0 0.0
      %2228 = vmatprep.subr.mxu0 0.0
      %2229 = vmatpush1.msra.mxu0 0.0
      %2230 = vmatprep.subr.mxu0 0.0
      %2231 = vmatpush1.msra.mxu0 0.0
      %2232 = vmatprep.subr.mxu0 0.0
      %2233 = vmatpush1.msra.mxu0 0.0
      %2234 = vmatprep.subr.mxu0 0.0
      %2235 = vmatpush1.msra.mxu0 0.0
      %2236 = vmatprep.subr.mxu0 0.0
      %2237 = vmatpush1.msra.mxu0 0.0
      %2238 = vmatprep.mubr.f32.mxu0 0.0
      %2239 = vmatmul.mubr.f32.gmra.mrb[0].mxu0 %v2162
      %v2240 = vpop.f32.mrb[0].mxu0
      %v2241 = vadd.f32 %v2173, %v2240
      %v2242 = vpop.f32.mrb[0].mxu0
      %2243 = vmatprep.mubr.f32.mxu0 0.0
      %2244 = vmatmul.mubr.f32.gmra.mrb[0].mxu0 %v2163
      %v2245 = vpop.f32.mrb[0].mxu0
      %v2246 = vadd.f32 %v2173, %v2245
      %v2247 = vpop.f32.mrb[0].mxu0
      %2248 = vmatprep.mubr.f32.mxu0 0.0
      %2249 = vmatmul.mubr.f32.gmra.mrb[0].mxu0 %v2164
      %v2250 = vpop.f32.mrb[0].mxu0
      %v2251 = vadd.f32 %v2173, %v2250
      %v2252 = vpop.f32.mrb[0].mxu0
      %2253 = vmatprep.mubr.f32.mxu0 0.0
      %2254 = vmatmul.mubr.f32.gmra.mrb[0].mxu0 %v2165
      %v2255 = vpop.f32.mrb[0].mxu0
      %v2256 = vadd.f32 %v2173, %v2255
      %v2257 = vpop.f32.mrb[0].mxu0
      %2258 = vmatprep.mubr.f32.mxu0 0.0
      %2259 = vmatmul.mubr.f32.gmra.mrb[0].mxu0 %v2166
      %v2260 = vpop.f32.mrb[0].mxu0
      %v2261 = vadd.f32 %v2173, %v2260
      %v2262 = vpop.f32.mrb[0].mxu0
      %2263 = vmatprep.mubr.f32.mxu0 0.0
      %2264 = vmatmul.mubr.f32.gmra.mrb[0].mxu0 %v2167
      %v2265 = vpop.f32.mrb[0].mxu0
      %v2266 = vadd.f32 %v2173, %v2265
      %v2267 = vpop.f32.mrb[0].mxu0
      %2268 = vmatprep.mubr.f32.mxu0 0.0
      %2269 = vmatmul.mubr.f32.gmra.mrb[0].mxu0 %v2168
      %v2270 = vpop.f32.mrb[0].mxu0
      %v2271 = vadd.f32 %v2173, %v2270
      %v2272 = vpop.f32.mrb[0].mxu0
      %2273 = vmatprep.mubr.f32.mxu0 0.0
      %2274 = vmatmul.mubr.f32.gmra.mrb[0].mxu0 %v2169
      %v2275 = vpop.f32.mrb[0].mxu0
      %v2276 = vadd.f32 %v2173, %v2275
      %v2277 = vpop.f32.mrb[0].mxu0
      %2278 = vdwg.mxu0
      %v2279 = vmax.f32 %v2018, %v2241
      %v2280 = vmax.f32 %v2019, %v2246
      %v2281 = vmax.f32 %v2020, %v2251
      %v2282 = vmax.f32 %v2021, %v2256
      %v2283 = vmax.f32 %v2022, %v2261
      %v2284 = vmax.f32 %v2023, %v2266
      %v2285 = vmax.f32 %v2024, %v2271
      %v2286 = vmax.f32 %v2025, %v2276
      %v2287 = vsel %vm2146, 2147483647, %v2026
      %v2288 = vsel %vm2147, 2147483647, %v2027
      %v2289 = vsel %vm2148, 2147483647, %v2028
      %v2290 = vsel %vm2149, 2147483647, %v2029
      %v2291 = vsel %vm2150, 2147483647, %v2030
      %v2292 = vsel %vm2151, 2147483647, %v2031
      %v2293 = vsel %vm2152, 2147483647, %v2032
      %v2294 = vsel %vm2153, 2147483647, %v2033
      %v2295 = vand.u32 %v2287, 65535
      %v2296 = vshra.s32 %v2287, 16
      %v2297 = vcvt.s32.f32 %v2295
      %v2298 = vcvt.s32.f32 %v2296
      %2299 = vmin.xlane.f32.xlu0 %v2298
      %v2300 = vpop.xlane.xlu0 %2299
      %vm2301 = vcmp.eq.f32.partialorder %v2298, %v2300
      %v2302 = vsel %vm2301, %v2297, inf
      %2303 = vmin.xlane.f32.xlu0 %v2302
      %v2304 = vpop.xlane.xlu0 %2303
      %v2305 = vcvt.f32.s32 %v2304
      %v2306 = vcvt.f32.s32 %v2300
      %v2307 = vshll.u32 %v2306, 16
      %v2308 = vadd.s32 %v2307, %v2305
      %v2309 = vand.u32 %v2288, 65535
      %v2310 = vshra.s32 %v2288, 16
      %v2311 = vcvt.s32.f32 %v2309
      %v2312 = vcvt.s32.f32 %v2310
      %2313 = vmin.xlane.f32.xlu0 %v2312
      %v2314 = vpop.xlane.xlu0 %2313
      %vm2315 = vcmp.eq.f32.partialorder %v2312, %v2314
      %v2316 = vsel %vm2315, %v2311, inf
      %2317 = vmin.xlane.f32.xlu0 %v2316
      %v2318 = vpop.xlane.xlu0 %2317
      %v2319 = vcvt.f32.s32 %v2318
      %v2320 = vcvt.f32.s32 %v2314
      %v2321 = vshll.u32 %v2320, 16
      %v2322 = vadd.s32 %v2321, %v2319
      %v2323 = vand.u32 %v2289, 65535
      %v2324 = vshra.s32 %v2289, 16
      %v2325 = vcvt.s32.f32 %v2323
      %v2326 = vcvt.s32.f32 %v2324
      %2327 = vmin.xlane.f32.xlu0 %v2326
      %v2328 = vpop.xlane.xlu0 %2327
      %vm2329 = vcmp.eq.f32.partialorder %v2326, %v2328
      %v2330 = vsel %vm2329, %v2325, inf
      %2331 = vmin.xlane.f32.xlu0 %v2330
      %v2332 = vpop.xlane.xlu0 %2331
      %v2333 = vcvt.f32.s32 %v2332
      %v2334 = vcvt.f32.s32 %v2328
      %v2335 = vshll.u32 %v2334, 16
      %v2336 = vadd.s32 %v2335, %v2333
      %v2337 = vand.u32 %v2290, 65535
      %v2338 = vshra.s32 %v2290, 16
      %v2339 = vcvt.s32.f32 %v2337
      %v2340 = vcvt.s32.f32 %v2338
      %2341 = vmin.xlane.f32.xlu0 %v2340
      %v2342 = vpop.xlane.xlu0 %2341
      %vm2343 = vcmp.eq.f32.partialorder %v2340, %v2342
      %v2344 = vsel %vm2343, %v2339, inf
      %2345 = vmin.xlane.f32.xlu0 %v2344
      %v2346 = vpop.xlane.xlu0 %2345
      %v2347 = vcvt.f32.s32 %v2346
      %v2348 = vcvt.f32.s32 %v2342
      %v2349 = vshll.u32 %v2348, 16
      %v2350 = vadd.s32 %v2349, %v2347
      %v2351 = vand.u32 %v2291, 65535
      %v2352 = vshra.s32 %v2291, 16
      %v2353 = vcvt.s32.f32 %v2351
      %v2354 = vcvt.s32.f32 %v2352
      %2355 = vmin.xlane.f32.xlu0 %v2354
      %v2356 = vpop.xlane.xlu0 %2355
      %vm2357 = vcmp.eq.f32.partialorder %v2354, %v2356
      %v2358 = vsel %vm2357, %v2353, inf
      %2359 = vmin.xlane.f32.xlu0 %v2358
      %v2360 = vpop.xlane.xlu0 %2359
      %v2361 = vcvt.f32.s32 %v2360
      %v2362 = vcvt.f32.s32 %v2356
      %v2363 = vshll.u32 %v2362, 16
      %v2364 = vadd.s32 %v2363, %v2361
      %v2365 = vand.u32 %v2292, 65535
      %v2366 = vshra.s32 %v2292, 16
      %v2367 = vcvt.s32.f32 %v2365
      %v2368 = vcvt.s32.f32 %v2366
      %2369 = vmin.xlane.f32.xlu0 %v2368
      %v2370 = vpop.xlane.xlu0 %2369
      %vm2371 = vcmp.eq.f32.partialorder %v2368, %v2370
      %v2372 = vsel %vm2371, %v2367, inf
      %2373 = vmin.xlane.f32.xlu0 %v2372
      %v2374 = vpop.xlane.xlu0 %2373
      %v2375 = vcvt.f32.s32 %v2374
      %v2376 = vcvt.f32.s32 %v2370
      %v2377 = vshll.u32 %v2376, 16
      %v2378 = vadd.s32 %v2377, %v2375
      %v2379 = vand.u32 %v2293, 65535
      %v2380 = vshra.s32 %v2293, 16
      %v2381 = vcvt.s32.f32 %v2379
      %v2382 = vcvt.s32.f32 %v2380
      %2383 = vmin.xlane.f32.xlu0 %v2382
      %v2384 = vpop.xlane.xlu0 %2383
      %vm2385 = vcmp.eq.f32.partialorder %v2382, %v2384
      %v2386 = vsel %vm2385, %v2381, inf
      %2387 = vmin.xlane.f32.xlu0 %v2386
      %v2388 = vpop.xlane.xlu0 %2387
      %v2389 = vcvt.f32.s32 %v2388
      %v2390 = vcvt.f32.s32 %v2384
      %v2391 = vshll.u32 %v2390, 16
      %v2392 = vadd.s32 %v2391, %v2389
      %v2393 = vand.u32 %v2294, 65535
      %v2394 = vshra.s32 %v2294, 16
      %v2395 = vcvt.s32.f32 %v2393
      %v2396 = vcvt.s32.f32 %v2394
      %2397 = vmin.xlane.f32.xlu0 %v2396
      %v2398 = vpop.xlane.xlu0 %2397
      %vm2399 = vcmp.eq.f32.partialorder %v2396, %v2398
      %v2400 = vsel %vm2399, %v2395, inf
      %2401 = vmin.xlane.f32.xlu0 %v2400
      %v2402 = vpop.xlane.xlu0 %2401
      %v2403 = vcvt.f32.s32 %v2402
      %v2404 = vcvt.f32.s32 %v2398
      %v2405 = vshll.u32 %v2404, 16
      %v2406 = vadd.s32 %v2405, %v2403
      %vm2407 = vcmp.eq.s32.totalorder %v2287, %v2308
      %vm2408 = vcmp.eq.s32.totalorder %v2288, %v2322
      %vm2409 = vcmp.eq.s32.totalorder %v2289, %v2336
      %vm2410 = vcmp.eq.s32.totalorder %v2290, %v2350
      %vm2411 = vcmp.eq.s32.totalorder %v2291, %v2364
      %vm2412 = vcmp.eq.s32.totalorder %v2292, %v2378
      %vm2413 = vcmp.eq.s32.totalorder %v2293, %v2392
      %vm2414 = vcmp.eq.s32.totalorder %v2294, %v2406
      %v2415 = vsel %vm2407, 1, 0
      %v2416 = vsel %vm2408, 1, 0
      %v2417 = vsel %vm2409, 1, 0
      %v2418 = vsel %vm2410, 1, 0
      %v2419 = vsel %vm2411, 1, 0
      %v2420 = vsel %vm2412, 1, 0
      %v2421 = vsel %vm2413, 1, 0
      %v2422 = vsel %vm2414, 1, 0
      %v2423 = vcvt.s32.f32 %v2415
      %v2424 = vcvt.s32.f32 %v2416
      %v2425 = vcvt.s32.f32 %v2417
      %v2426 = vcvt.s32.f32 %v2418
      %v2427 = vcvt.s32.f32 %v2419
      %v2428 = vcvt.s32.f32 %v2420
      %v2429 = vcvt.s32.f32 %v2421
      %v2430 = vcvt.s32.f32 %v2422
      %v2431 = vlaneseq
      %v2432 = vshrl.u32 %v2431, 7
      %v2433 = vsub.s32 7, %v2432
      %v2434 = vrot.slane %v475, %v2433
      %2435 = vmatprep.subr.mxu0 0.0
      %2436 = vmatpush1.msra.mxu0 %v459
      %2437 = vmatprep.subr.mxu0 0.0
      %2438 = vmatpush1.msra.mxu0 %v460
      %2439 = vmatprep.subr.mxu0 0.0
      %2440 = vmatpush1.msra.mxu0 %v461
      %2441 = vmatprep.subr.mxu0 0.0
      %2442 = vmatpush1.msra.mxu0 %v462
      %2443 = vmatprep.subr.mxu0 0.0
      %2444 = vmatpush1.msra.mxu0 %v463
      %2445 = vmatprep.subr.mxu0 0.0
      %2446 = vmatpush1.msra.mxu0 %v464
      %2447 = vmatprep.subr.mxu0 0.0
      %2448 = vmatpush1.msra.mxu0 %v465
      %2449 = vmatprep.subr.mxu0 0.0
      %2450 = vmatpush1.msra.mxu0 %v466
      %2451 = vmatprep.subr.mxu0 0.0
      %2452 = vmatpush1.msra.mxu0 %v467
      %2453 = vmatprep.subr.mxu0 0.0
      %2454 = vmatpush1.msra.mxu0 %v468
      %2455 = vmatprep.subr.mxu0 0.0
      %2456 = vmatpush1.msra.mxu0 %v469
      %2457 = vmatprep.subr.mxu0 0.0
      %2458 = vmatpush1.msra.mxu0 %v470
      %2459 = vmatprep.subr.mxu0 0.0
      %2460 = vmatpush1.msra.mxu0 %v471
      %2461 = vmatprep.subr.mxu0 0.0
      %2462 = vmatpush1.msra.mxu0 %v472
      %2463 = vmatprep.subr.mxu0 0.0
      %2464 = vmatpush1.msra.mxu0 %v473
      %2465 = vmatprep.subr.mxu0 0.0
      %2466 = vmatpush1.msra.mxu0 %v474
      %2467 = vmatprep.subr.mxu0 0.0
      %2468 = vmatpush1.msra.mxu0 0.0
      %2469 = vmatprep.subr.mxu0 0.0
      %2470 = vmatpush1.msra.mxu0 0.0
      %2471 = vmatprep.subr.mxu0 0.0
      %2472 = vmatpush1.msra.mxu0 0.0
      %2473 = vmatprep.subr.mxu0 0.0
      %2474 = vmatpush1.msra.mxu0 0.0
      %2475 = vmatprep.subr.mxu0 0.0
      %2476 = vmatpush1.msra.mxu0 0.0
      %2477 = vmatprep.subr.mxu0 0.0
      %2478 = vmatpush1.msra.mxu0 0.0
      %2479 = vmatprep.subr.mxu0 0.0
      %2480 = vmatpush1.msra.mxu0 0.0
      %2481 = vmatprep.subr.mxu0 0.0
      %2482 = vmatpush1.msra.mxu0 0.0
      %2483 = vmatprep.subr.mxu0 0.0
      %2484 = vmatpush1.msra.mxu0 0.0
      %2485 = vmatprep.subr.mxu0 0.0
      %2486 = vmatpush1.msra.mxu0 0.0
      %2487 = vmatprep.subr.mxu0 0.0
      %2488 = vmatpush1.msra.mxu0 0.0
      %2489 = vmatprep.subr.mxu0 0.0
      %2490 = vmatpush1.msra.mxu0 0.0
      %2491 = vmatprep.subr.mxu0 0.0
      %2492 = vmatpush1.msra.mxu0 0.0
      %2493 = vmatprep.subr.mxu0 0.0
      %2494 = vmatpush1.msra.mxu0 0.0
      %2495 = vmatprep.subr.mxu0 0.0
      %2496 = vmatpush1.msra.mxu0 0.0
      %2497 = vmatprep.subr.mxu0 0.0
      %2498 = vmatpush1.msra.mxu0 0.0
      %2499 = vmatprep.mubr.f32.mxu0 0.0
      %2500 = vmatmul.mubr.f32.gmra.mrb[0].mxu0 %v2423
      %v2501 = vpop.f32.mrb[0].mxu0
      %v2502 = vadd.f32 %v2434, %v2501
      %v2503 = vpop.f32.mrb[0].mxu0
      %2504 = vmatprep.mubr.f32.mxu0 0.0
      %2505 = vmatmul.mubr.f32.gmra.mrb[0].mxu0 %v2424
      %v2506 = vpop.f32.mrb[0].mxu0
      %v2507 = vadd.f32 %v2434, %v2506
      %v2508 = vpop.f32.mrb[0].mxu0
      %2509 = vmatprep.mubr.f32.mxu0 0.0
      %2510 = vmatmul.mubr.f32.gmra.mrb[0].mxu0 %v2425
      %v2511 = vpop.f32.mrb[0].mxu0
      %v2512 = vadd.f32 %v2434, %v2511
      %v2513 = vpop.f32.mrb[0].mxu0
      %2514 = vmatprep.mubr.f32.mxu0 0.0
      %2515 = vmatmul.mubr.f32.gmra.mrb[0].mxu0 %v2426
      %v2516 = vpop.f32.mrb[0].mxu0
      %v2517 = vadd.f32 %v2434, %v2516
      %v2518 = vpop.f32.mrb[0].mxu0
      %2519 = vmatprep.mubr.f32.mxu0 0.0
      %2520 = vmatmul.mubr.f32.gmra.mrb[0].mxu0 %v2427
      %v2521 = vpop.f32.mrb[0].mxu0
      %v2522 = vadd.f32 %v2434, %v2521
      %v2523 = vpop.f32.mrb[0].mxu0
      %2524 = vmatprep.mubr.f32.mxu0 0.0
      %2525 = vmatmul.mubr.f32.gmra.mrb[0].mxu0 %v2428
      %v2526 = vpop.f32.mrb[0].mxu0
      %v2527 = vadd.f32 %v2434, %v2526
      %v2528 = vpop.f32.mrb[0].mxu0
      %2529 = vmatprep.mubr.f32.mxu0 0.0
      %2530 = vmatmul.mubr.f32.gmra.mrb[0].mxu0 %v2429
      %v2531 = vpop.f32.mrb[0].mxu0
      %v2532 = vadd.f32 %v2434, %v2531
      %v2533 = vpop.f32.mrb[0].mxu0
      %2534 = vmatprep.mubr.f32.mxu0 0.0
      %2535 = vmatmul.mubr.f32.gmra.mrb[0].mxu0 %v2430
      %v2536 = vpop.f32.mrb[0].mxu0
      %v2537 = vadd.f32 %v2434, %v2536
      %v2538 = vpop.f32.mrb[0].mxu0
      %2539 = vdwg.mxu0
      %v2540 = vmax.f32 %v2279, %v2502
      %v2541 = vmax.f32 %v2280, %v2507
      %v2542 = vmax.f32 %v2281, %v2512
      %v2543 = vmax.f32 %v2282, %v2517
      %v2544 = vmax.f32 %v2283, %v2522
      %v2545 = vmax.f32 %v2284, %v2527
      %v2546 = vmax.f32 %v2285, %v2532
      %v2547 = vmax.f32 %v2286, %v2537
      %vm2548 = vcmask 392192
      %2549 = vst.msk [vmem:[%s226] sm:$0xff] %vm2548, %v2540
      %2550 = vst.msk [vmem:[%s226 + $0x8] sm:$0xff] %vm2548, %v2541
      %2551 = vst.msk [vmem:[%s226 + $0x10] sm:$0xff] %vm2548, %v2542
      %2552 = vst.msk [vmem:[%s226 + $0x18] sm:$0xff] %vm2548, %v2543
      %2553 = vst.msk [vmem:[%s226 + $0x20] sm:$0xff] %vm2548, %v2544
      %2554 = vst.msk [vmem:[%s226 + $0x28] sm:$0xff] %vm2548, %v2545
      %2555 = vst.msk [vmem:[%s226 + $0x30] sm:$0xff] %vm2548, %v2546
      %2556 = vst.msk [vmem:[%s226 + $0x38] sm:$0xff] %vm2548, %v2547
      %s2557 = smul.u32 8, %s16
      %p2558 = scmp.lt.s32.totalorder %s2557, 15
      %s2559 = scalar_select %p2558, %s2557, 15
      %s2560 = smul.addr %s2559, 8
      %s2561 = scalar_lea.vmem %s5, %s2560
      // Predicated region
      $region41: #{forward.6} parent=39 // pred_check
        %p2562 = pneg %p144
      $region42: #{forward.6} parent=39 // pred_check_branch
        %2564 = sbr.rel (%p2562) target = $region44
      $region43: #{forward.6} parent=39 // pred_region
        %s2565 = smul.u32 8, %s16
      $region44: #{forward.6} parent=39 // pred_fallthru
        _
    $region40: #{forward.6} parent=5 // pred_fallthru
      _
    %p2566 = scmp.le.s32.totalorder 2, %s11
    // Predicated region
    $region45: #{forward.6} parent=5 // pred_check
      %p2567 = pneg %p2566
    $region46: #{forward.6} parent=5 // pred_check_branch
      %2569 = sbr.rel (%p2567) target = $region48
    $region47: #{forward.6} parent=5 // pred_region
      %s2570 = ssub.s32 %s11, 2
      // Predicated region
      $region49: #{forward.6} parent=47 // pred_check
        %p2571 = pneg %p150
      $region50: #{forward.6} parent=47 // pred_check_branch
        %2573 = sbr.rel (%p2571) target = $region52
      $region51: #{forward.6} parent=47 // pred_region
        %s2574 = smul.u32 8, %s17
        %p2575 = scmp.lt.s32.totalorder %s2574, 15
        %s2576 = scalar_select %p2575, %s2574, 15
        %s2577 = smul.addr %s2576, 8
        %s2578 = scalar_lea.vmem %s5, %s2577
      $region52: #{forward.6} parent=47 // pred_fallthru
        _
    $region48: #{forward.6} parent=5 // pred_fallthru
      _
  $region6: #{forward.6} parent=0 // loop_footer
    %s15 = sadd.s32 1, %s11
  $region7: #{forward.6} parent=0 // loop_footer_branch
    %10 = sbr.rel target = $region3
  $region8: #{forward.6} parent=0 // loop_exit
    _

// kernel: forward.5
$region0: #{forward.5}
  #allocation0 [shape = 'u32[]', space=smem, size = 0x4, offset = 0x4, fixed_abs, tag = 'smem constant byte address 0x4 - core index']
  #allocation1 [shape = 'u32[144,128]{1,0:T(1,128)}', space=vmem, size = 0x12000, scoped, tag = 'internal scratch']
  %s0 = inlined_call_operand.vmem [shape: bf16[128,12], index: 0, kind: input, shape index: {}]
  %s1 = inlined_call_operand.vmem [shape: bf16[12,128], index: 1, kind: input, shape index: {}]
  %s2 = inlined_call_operand.vmem [shape: f32[1,128], index: 2, kind: input, shape index: {}]
  %s3 = inlined_call_operand.vmem [shape: f32[128,24], index: 3, kind: input, shape index: {}]
  %s4 = inlined_call_operand.vmem [shape: f32[8,24], index: 4, kind: input, shape index: {}]
  %s5 = inlined_call_operand.vmem [shape: f32[128,24], index: 5, kind: output, shape index: {}]
  %s6 = sld [smem:[#allocation0]]
  $region53: #{forward.5} parent=0
    _
  %s8 = ssub.s32 1, %s6
  %s9 = scalar_select 0, %s8, %s6
  loop: start=0, step=1, limit=4
  $region2: #{forward.5} parent=0 // loop_pre_header
    _
  $region3: #{forward.5} parent=0 // loop_header
    %s11 = sphi 0, %s15
    %p12 = scmp.ge.s32.totalorder %s11, 4
    %s21 = sphi 0, %s23
    %s24 = sphi 0, %s21
    %s25 = sphi 0, %s24
    %s41 = sphi 0, %s25
    %s45 = sphi 0, %s45
    %s47 = sphi 0, %s45
    %s48 = sphi 0, %s47
    %s62 = sphi 0, %s48
    %s66 = sphi 0, %s66
    %s68 = sphi 0, %s66
    %s69 = sphi 0, %s68
    %s83 = sphi 0, %s69
    %s87 = sphi 0, %s87
    %s89 = sphi 0, %s87
    %s90 = sphi 0, %s89
    %s104 = sphi 0, %s90
    %s108 = sphi 0, %s108
    %s110 = sphi 0, %s108
    %s111 = sphi 0, %s110
    %s125 = sphi 0, %s111
    %s131 = sphi 0, %s133
    %s134 = sphi 0, %s131
    %s135 = sphi 0, %s134
    %s151 = sphi 0, %s135
  $region4: #{forward.5} parent=0 // loop_header_branch
    %14 = sbr.rel (%p12) target = $region8
  $region5: #{forward.5} parent=0 // loop_body
    %s16 = ssub.s32 %s11, 1
    %s17 = ssub.s32 %s11, 2
    %s18 = sadd.s32 %s11, 1
    %s19 = ssub.s32 %s11, %s18
    %p20 = scmp.eq.s32.totalorder %s19, 0
    %s22 = sadd.s32 %s21, 1
    %s23 = scalar_select %p20, %s21, %s22
    %p26 = pneg %p20
    %p27 = scmp.eq.s32.totalorder %s11, 1
    %p28 = por %p26, %p27
    %p29 = scmp.ne.s32.totalorder %s21, %s24
    %p30 = scmp.eq.s32.totalorder %s11, 0
    %p31 = por %p29, %p30
    %p32 = scmp.ne.s32.totalorder %s21, %s24
    %p33 = scmp.eq.s32.totalorder %s16, 1
    %p34 = por %p32, %p33
    %p35 = scmp.ne.s32.totalorder %s24, %s25
    %p36 = scmp.eq.s32.totalorder %s16, 0
    %p37 = por %p35, %p36
    %p38 = scmp.ne.s32.totalorder %s24, %s25
    %p39 = scmp.eq.s32.totalorder %s17, 1
    %p40 = por %p38, %p39
    %p42 = scmp.ne.s32.totalorder %s25, %s41
    %p43 = scmp.eq.s32.totalorder %s17, 0
    %p44 = por %p42, %p43
    %s46 = sadd.s32 %s45, 1
    %p49 = scmp.eq.s32.totalorder %s11, 1
    %p50 = scmp.ne.s32.totalorder %s45, %s47
    %p51 = scmp.eq.s32.totalorder %s11, 0
    %p52 = por %p50, %p51
    %p53 = scmp.ne.s32.totalorder %s45, %s47
    %p54 = scmp.eq.s32.totalorder %s16, 1
    %p55 = por %p53, %p54
    %p56 = scmp.ne.s32.totalorder %s47, %s48
    %p57 = scmp.eq.s32.totalorder %s16, 0
    %p58 = por %p56, %p57
    %p59 = scmp.ne.s32.totalorder %s47, %s48
    %p60 = scmp.eq.s32.totalorder %s17, 1
    %p61 = por %p59, %p60
    %p63 = scmp.ne.s32.totalorder %s48, %s62
    %p64 = scmp.eq.s32.totalorder %s17, 0
    %p65 = por %p63, %p64
    %s67 = sadd.s32 %s66, 1
    %p70 = scmp.eq.s32.totalorder %s11, 1
    %p71 = scmp.ne.s32.totalorder %s66, %s68
    %p72 = scmp.eq.s32.totalorder %s11, 0
    %p73 = por %p71, %p72
    %p74 = scmp.ne.s32.totalorder %s66, %s68
    %p75 = scmp.eq.s32.totalorder %s16, 1
    %p76 = por %p74, %p75
    %p77 = scmp.ne.s32.totalorder %s68, %s69
    %p78 = scmp.eq.s32.totalorder %s16, 0
    %p79 = por %p77, %p78
    %p80 = scmp.ne.s32.totalorder %s68, %s69
    %p81 = scmp.eq.s32.totalorder %s17, 1
    %p82 = por %p80, %p81
    %p84 = scmp.ne.s32.totalorder %s69, %s83
    %p85 = scmp.eq.s32.totalorder %s17, 0
    %p86 = por %p84, %p85
    %s88 = sadd.s32 %s87, 1
    %p91 = scmp.eq.s32.totalorder %s11, 1
    %p92 = scmp.ne.s32.totalorder %s87, %s89
    %p93 = scmp.eq.s32.totalorder %s11, 0
    %p94 = por %p92, %p93
    %p95 = scmp.ne.s32.totalorder %s87, %s89
    %p96 = scmp.eq.s32.totalorder %s16, 1
    %p97 = por %p95, %p96
    %p98 = scmp.ne.s32.totalorder %s89, %s90
    %p99 = scmp.eq.s32.totalorder %s16, 0
    %p100 = por %p98, %p99
    %p101 = scmp.ne.s32.totalorder %s89, %s90
    %p102 = scmp.eq.s32.totalorder %s17, 1
    %p103 = por %p101, %p102
    %p105 = scmp.ne.s32.totalorder %s90, %s104
    %p106 = scmp.eq.s32.totalorder %s17, 0
    %p107 = por %p105, %p106
    %s109 = sadd.s32 %s108, 1
    %p112 = scmp.eq.s32.totalorder %s11, 1
    %p113 = scmp.ne.s32.totalorder %s108, %s110
    %p114 = scmp.eq.s32.totalorder %s11, 0
    %p115 = por %p113, %p114
    %p116 = scmp.ne.s32.totalorder %s108, %s110
    %p117 = scmp.eq.s32.totalorder %s16, 1
    %p118 = por %p116, %p117
    %p119 = scmp.ne.s32.totalorder %s110, %s111
    %p120 = scmp.eq.s32.totalorder %s16, 0
    %p121 = por %p119, %p120
    %p122 = scmp.ne.s32.totalorder %s110, %s111
    %p123 = scmp.eq.s32.totalorder %s17, 1
    %p124 = por %p122, %p123
    %p126 = scmp.ne.s32.totalorder %s111, %s125
    %p127 = scmp.eq.s32.totalorder %s17, 0
    %p128 = por %p126, %p127
    %s129 = ssub.s32 %s11, %s18
    %p130 = scmp.eq.s32.totalorder %s129, 0
    %s132 = sadd.s32 %s131, 1
    %s133 = scalar_select %p130, %s131, %s132
    %p136 = pneg %p130
    %p137 = scmp.eq.s32.totalorder %s11, 1
    %p138 = por %p136, %p137
    %p139 = scmp.ne.s32.totalorder %s131, %s134
    %p140 = scmp.eq.s32.totalorder %s11, 0
    %p141 = por %p139, %p140
    %p142 = scmp.ne.s32.totalorder %s131, %s134
    %p143 = scmp.eq.s32.totalorder %s16, 1
    %p144 = por %p142, %p143
    %p145 = scmp.ne.s32.totalorder %s134, %s135
    %p146 = scmp.eq.s32.totalorder %s16, 0
    %p147 = por %p145, %p146
    %p148 = scmp.ne.s32.totalorder %s134, %s135
    %p149 = scmp.eq.s32.totalorder %s17, 1
    %p150 = por %p148, %p149
    %p152 = scmp.ne.s32.totalorder %s135, %s151
    %p153 = scmp.eq.s32.totalorder %s17, 0
    %p154 = por %p152, %p153
    %p155 = scmp.le.s32.totalorder 1, %s11
    %p156 = scmp.lt.s32.totalorder %s11, 3
    %p157 = pnand %p155, %p156
    %p158 = pneg %p157
    // Predicated region
    $region9: #{forward.5} parent=5 // pred_check
      _
    $region10: #{forward.5} parent=5 // pred_check_branch
      %160 = sbr.rel (%p157) target = $region12
    $region11: #{forward.5} parent=5 // pred_region
      %s161 = ssub.s32 %s11, 1
      // Predicated region
      $region13: #{forward.5} parent=11 // pred_check
        %p162 = pneg %p58
      $region14: #{forward.5} parent=11 // pred_check_branch
        %164 = sbr.rel (%p162) target = $region16
      $region15: #{forward.5} parent=11 // pred_region
        _
      $region16: #{forward.5} parent=11 // pred_fallthru
        _
      // Predicated region
      $region17: #{forward.5} parent=11 // pred_check
        %p165 = pneg %p79
      $region18: #{forward.5} parent=11 // pred_check_branch
        %167 = sbr.rel (%p165) target = $region20
      $region19: #{forward.5} parent=11 // pred_region
        _
      $region20: #{forward.5} parent=11 // pred_fallthru
        _
      // Predicated region
      $region21: #{forward.5} parent=11 // pred_check
        %p168 = pneg %p100
      $region22: #{forward.5} parent=11 // pred_check_branch
        %170 = sbr.rel (%p168) target = $region24
      $region23: #{forward.5} parent=11 // pred_region
        _
      $region24: #{forward.5} parent=11 // pred_fallthru
        _
      // Predicated region
      $region25: #{forward.5} parent=11 // pred_check
        %p171 = pneg %p121
      $region26: #{forward.5} parent=11 // pred_check_branch
        %173 = sbr.rel (%p171) target = $region28
      $region27: #{forward.5} parent=11 // pred_region
        _
      $region28: #{forward.5} parent=11 // pred_fallthru
        _
    $region12: #{forward.5} parent=5 // pred_fallthru
      _
    %p174 = scmp.lt.s32.totalorder %s11, 2
    // Predicated region
    $region29: #{forward.5} parent=5 // pred_check
      %p175 = pneg %p174
    $region30: #{forward.5} parent=5 // pred_check_branch
      %177 = sbr.rel (%p175) target = $region32
    $region31: #{forward.5} parent=5 // pred_region
      // Predicated region
      $region33: #{forward.5} parent=31 // pred_check
        %p178 = pneg %p31
      $region34: #{forward.5} parent=31 // pred_check_branch
        %180 = sbr.rel (%p178) target = $region36
      $region35: #{forward.5} parent=31 // pred_region
        %s181 = smul.u32 8, %s11
        %p182 = scmp.lt.s32.totalorder %s181, 15
        %s183 = scalar_select %p182, %s181, 15
        %s184 = smul.addr %s183, 4
        %s185 = scalar_lea.vmem %s0, %s184
        %s186 = smul.u32 8, %s11
      $region36: #{forward.5} parent=31 // pred_fallthru
        _
    $region32: #{forward.5} parent=5 // pred_fallthru
      _
    %p187 = scmp.le.s32.totalorder 1, %s11
    %p188 = scmp.lt.s32.totalorder %s11, 3
    %p189 = pnand %p187, %p188
    %p190 = pneg %p189
    // Predicated region
    $region37: #{forward.5} parent=5 // pred_check
      _
    $region38: #{forward.5} parent=5 // pred_check_branch
      %192 = sbr.rel (%p189) target = $region40
    $region39: #{forward.5} parent=5 // pred_region
      %s193 = ssub.s32 %s11, 1
      %s194 = smul.u32 8, %s16
      %p195 = scmp.lt.s32.totalorder %s194, 15
      %s196 = scalar_select %p195, %s194, 15
      %s197 = smul.addr %s196, 4
      %s198 = scalar_lea.vmem %s0, %s197
      %p199 = pneg %p37
      %p200 = pneg %p34
      %p201 = pneg %p58
      %p202 = pneg %p55
      %p203 = pneg %p79
      %p204 = pneg %p76
      %p205 = pneg %p100
      %p206 = pneg %p97
      %p207 = pneg %p121
      %p208 = pneg %p118
      %p209 = pneg %p147
      %p210 = pneg %p144
      %s211 = smul.u32 8, %s16
      %p212 = scmp.lt.s32.totalorder %s211, 15
      %s213 = scalar_select %p212, %s211, 15
      %s214 = smul.addr %s213, 8
      %s215 = scalar_lea.vmem %s5, %s214
      %s216 = smul.u32 8, %s16
      %p217 = scmp.lt.s32.totalorder %s216, 15
      %s218 = scalar_select %p217, %s216, 15
      %s219 = smul.addr %s218, 4
      %s220 = scalar_lea.vmem %s0, %s219
      %s221 = smul.u32 8, %s16
      %s222 = smul.u32 8, %s16
      %p223 = scmp.lt.s32.totalorder %s222, 15
      %s224 = scalar_select %p223, %s222, 15
      %s225 = smul.addr %s224, 8
      %s226 = scalar_lea.vmem %s5, %s225
      %s227 = smul.u32 8, %s16
      %v229 = vld [vmem:[%s220] sm:$0xf]
      %v230 = vld [vmem:[%s220 + $0x4] sm:$0xf]
      %v231 = vld [vmem:[%s220 + $0x8] sm:$0xf]
      %v232 = vld [vmem:[%s220 + $0xc] sm:$0xf]
      %v233 = vld [vmem:[%s220 + $0x10] sm:$0xf]
      %v234 = vld [vmem:[%s220 + $0x14] sm:$0xf]
      %v235 = vld [vmem:[%s220 + $0x18] sm:$0xf]
      %v236 = vld [vmem:[%s220 + $0x1c] sm:$0xf]
      %v237 = vld [vmem:[%s1] sm:$0xf]
      %v238 = vld [vmem:[%s1 + $0x4] sm:$0x3]
      %v247 = vunpack.c.l.b16 %v229
      %v248 = vunpack.c.l.b16 %v230
      %v249 = vunpack.c.l.b16 %v231
      %v250 = vunpack.c.l.b16 %v232
      %v251 = vunpack.c.l.b16 %v233
      %v252 = vunpack.c.l.b16 %v234
      %v253 = vunpack.c.l.b16 %v235
      %v254 = vunpack.c.l.b16 %v236
      %v255 = vpack.c.b16 %v248, %v247
      %v256 = vpack.c.b16 %v250, %v249
      %v257 = vpack.c.b16 %v252, %v251
      %v258 = vpack.c.b16 %v254, %v253
      %v261 = vunpack.c.l.b16 %v237
      %v262 = vunpack.c.l.b16 %v238
      %v263 = vpack.c.b16 %v262, %v261
      %vm264 = vcmask 97280
      %v266 = vsel %vm264, %v255, 0
      %v269 = vsel %vm264, %v256, 0
      %v272 = vsel %vm264, %v257, 0
      %v275 = vsel %vm264, %v258, 0
      %vm277 = vcmask 1045504
      %v279 = vsel %vm277, %v263, 0
      %281 = vmatprep.subr.bf16.mxu0 0
      %282 = vmatpush1.bf16.msra.mxu0 %v279
      %283 = vmatprep.subr.bf16.mxu0 0
      %284 = vmatpush1.bf16.msra.mxu0 0
      %285 = vmatprep.subr.bf16.mxu0 0
      %286 = vmatpush1.bf16.msra.mxu0 0
      %287 = vmatprep.subr.bf16.mxu0 0
      %288 = vmatpush1.bf16.msra.mxu0 0
      %289 = vmatprep.subr.bf16.mxu0 0
      %290 = vmatpush1.bf16.msra.mxu0 0
      %291 = vmatprep.subr.bf16.mxu0 0
      %292 = vmatpush1.bf16.msra.mxu0 0
      %293 = vmatprep.subr.bf16.mxu0 0
      %294 = vmatpush1.bf16.msra.mxu0 0
      %295 = vmatprep.subr.bf16.mxu0 0
      %296 = vmatpush1.bf16.msra.mxu0 0
      %297 = vmatprep.subr.bf16.mxu0 0
      %298 = vmatpush1.bf16.msra.mxu0 0
      %299 = vmatprep.subr.bf16.mxu0 0
      %300 = vmatpush1.bf16.msra.mxu0 0
      %301 = vmatprep.subr.bf16.mxu0 0
      %302 = vmatpush1.bf16.msra.mxu0 0
      %303 = vmatprep.subr.bf16.mxu0 0
      %304 = vmatpush1.bf16.msra.mxu0 0
      %305 = vmatprep.subr.bf16.mxu0 0
      %306 = vmatpush1.bf16.msra.mxu0 0
      %307 = vmatprep.subr.bf16.mxu0 0
      %308 = vmatpush1.bf16.msra.mxu0 0
      %309 = vmatprep.subr.bf16.mxu0 0
      %310 = vmatpush1.bf16.msra.mxu0 0
      %311 = vmatprep.subr.bf16.mxu0 0
      %312 = vmatpush1.bf16.msra.mxu0 0
      %313 = vmatprep.mubr.bf16.mxu0 0
      %314 = vmatmul.mubr.bf16.gmra.mrb[0].mxu0 %v266
      %v315 = vpop.f32.mrb[0].mxu0
      %v316 = vadd.f32 0.0, %v315
      %v317 = vpop.f32.mrb[0].mxu0
      %v318 = vpop.f32.mrb[0].mxu0
      %v319 = vadd.f32 0.0, %v318
      %v320 = vpop.f32.mrb[0].mxu0
      %321 = vmatprep.mubr.bf16.mxu0 0
      %322 = vmatmul.mubr.bf16.gmra.mrb[0].mxu0 %v269
      %v323 = vpop.f32.mrb[0].mxu0
      %v324 = vadd.f32 0.0, %v323
      %v325 = vpop.f32.mrb[0].mxu0
      %v326 = vpop.f32.mrb[0].mxu0
      %v327 = vadd.f32 0.0, %v326
      %v328 = vpop.f32.mrb[0].mxu0
      %329 = vmatprep.mubr.bf16.mxu0 0
      %330 = vmatmul.mubr.bf16.gmra.mrb[0].mxu0 %v272
      %v331 = vpop.f32.mrb[0].mxu0
      %v332 = vadd.f32 0.0, %v331
      %v333 = vpop.f32.mrb[0].mxu0
      %v334 = vpop.f32.mrb[0].mxu0
      %v335 = vadd.f32 0.0, %v334
      %v336 = vpop.f32.mrb[0].mxu0
      %337 = vmatprep.mubr.bf16.mxu0 0
      %338 = vmatmul.mubr.bf16.gmra.mrb[0].mxu0 %v275
      %v339 = vpop.f32.mrb[0].mxu0
      %v340 = vadd.f32 0.0, %v339
      %v341 = vpop.f32.mrb[0].mxu0
      %v342 = vpop.f32.mrb[0].mxu0
      %v343 = vadd.f32 0.0, %v342
      %v344 = vpop.f32.mrb[0].mxu0
      %345 = vdwg.mxu0
      %v346 = vld [vmem:[%s2] sm:$0x1]
      %v347 = vmul.f32 %v316, 2.0
      %v348 = vmul.f32 %v319, 2.0
      %v349 = vmul.f32 %v324, 2.0
      %v350 = vmul.f32 %v327, 2.0
      %v351 = vmul.f32 %v332, 2.0
      %v352 = vmul.f32 %v335, 2.0
      %v353 = vmul.f32 %v340, 2.0
      %v354 = vmul.f32 %v343, 2.0
      %v356 = vlaneseq
      %v357 = vshrl.u32 %v356, 7
      %v358 = vsub.s32 0, %v357
      %v359 = vrot.slane %v346, %v358
      %v361 = vsub.f32 %v359, %v347
      %v362 = vsub.f32 %v359, %v348
      %v363 = vsub.f32 %v359, %v349
      %v364 = vsub.f32 %v359, %v350
      %v365 = vsub.f32 %v359, %v351
      %v366 = vsub.f32 %v359, %v352
      %v367 = vsub.f32 %v359, %v353
      %v368 = vsub.f32 %v359, %v354
      %s369 = smul.u32 %s16, 64
      %v370 = vlaneseq
      %v371 = vshrl.u32 %v370, 7
      %v372 = vadd.s32 %v371, 8
      %v373 = vadd.s32 %v371, 16
      %v374 = vadd.s32 %v371, 24
      %v375 = vadd.s32 %v371, 32
      %v376 = vadd.s32 %v371, 40
      %v377 = vadd.s32 %v371, 48
      %v378 = vadd.s32 %v371, 56
      %v379 = vstv %s369
      %v380 = vadd.s32 %v371, %v379
      %v381 = vadd.s32 %v372, %v379
      %v382 = vadd.s32 %v373, %v379
      %v383 = vadd.s32 %v374, %v379
      %v384 = vadd.s32 %v375, %v379
      %v385 = vadd.s32 %v376, %v379
      %v386 = vadd.s32 %v377, %v379
      %v387 = vadd.s32 %v378, %v379
      %v388 = vlaneseq
      %v389 = vand.u32 %v388, 127
      %vm398 = vcmp.lt.s32.totalorder %v361, 0
      %vm399 = vcmp.lt.s32.totalorder %v362, 0
      %vm400 = vcmp.lt.s32.totalorder %v363, 0
      %vm401 = vcmp.lt.s32.totalorder %v364, 0
      %vm402 = vcmp.lt.s32.totalorder %v365, 0
      %vm403 = vcmp.lt.s32.totalorder %v366, 0
      %vm404 = vcmp.lt.s32.totalorder %v367, 0
      %vm405 = vcmp.lt.s32.totalorder %v368, 0
      %v406 = vxor.u32 %v361, 2147483647
      %v407 = vxor.u32 %v362, 2147483647
      %v408 = vxor.u32 %v363, 2147483647
      %v409 = vxor.u32 %v364, 2147483647
      %v410 = vxor.u32 %v365, 2147483647
      %v411 = vxor.u32 %v366, 2147483647
      %v412 = vxor.u32 %v367, 2147483647
      %v413 = vxor.u32 %v368, 2147483647
      %v414 = vsel %vm398, %v406, %v361
      %v415 = vsel %vm399, %v407, %v362
      %v416 = vsel %vm400, %v408, %v363
      %v417 = vsel %vm401, %v409, %v364
      %v418 = vsel %vm402, %v410, %v365
      %v419 = vsel %vm403, %v411, %v366
      %v420 = vsel %vm404, %v412, %v367
      %v421 = vsel %vm405, %v413, %v368
      %v422 = vand.u32 %v414, 4294967168
      %v423 = vand.u32 %v415, 4294967168
      %v424 = vand.u32 %v416, 4294967168
      %v425 = vand.u32 %v417, 4294967168
      %v426 = vand.u32 %v418, 4294967168
      %v427 = vand.u32 %v419, 4294967168
      %v428 = vand.u32 %v420, 4294967168
      %v429 = vand.u32 %v421, 4294967168
      %v430 = vor.u32 %v422, %v389
      %v431 = vor.u32 %v423, %v389
      %v432 = vor.u32 %v424, %v389
      %v433 = vor.u32 %v425, %v389
      %v434 = vor.u32 %v426, %v389
      %v435 = vor.u32 %v427, %v389
      %v436 = vor.u32 %v428, %v389
      %v437 = vor.u32 %v429, %v389
      %vm438 = vcmp.eq.s32.totalorder %v380, %v389
      %vm439 = vcmp.eq.s32.totalorder %v381, %v389
      %vm440 = vcmp.eq.s32.totalorder %v382, %v389
      %vm441 = vcmp.eq.s32.totalorder %v383, %v389
      %vm442 = vcmp.eq.s32.totalorder %v384, %v389
      %vm443 = vcmp.eq.s32.totalorder %v385, %v389
      %vm444 = vcmp.eq.s32.totalorder %v386, %v389
      %vm445 = vcmp.eq.s32.totalorder %v387, %v389
      %v446 = vsel %vm438, 2147483647, %v430
      %v447 = vsel %vm439, 2147483647, %v431
      %v448 = vsel %vm440, 2147483647, %v432
      %v449 = vsel %vm441, 2147483647, %v433
      %v450 = vsel %vm442, 2147483647, %v434
      %v451 = vsel %vm443, 2147483647, %v435
      %v452 = vsel %vm444, 2147483647, %v436
      %v453 = vsel %vm445, 2147483647, %v437
      %v454 = vld [vmem:[%s3] sm:$0xff]
      %v455 = vld [vmem:[%s3 + $0x8] sm:$0xff]
      %v456 = vld [vmem:[%s3 + $0x10] sm:$0xff]
      %v457 = vld [vmem:[%s3 + $0x18] sm:$0xff]
      %v458 = vld [vmem:[%s3 + $0x20] sm:$0xff]
      %v459 = vld [vmem:[%s3 + $0x28] sm:$0xff]
      %v460 = vld [vmem:[%s3 + $0x30] sm:$0xff]
      %v461 = vld [vmem:[%s3 + $0x38] sm:$0xff]
      %v462 = vld [vmem:[%s3 + $0x40] sm:$0xff]
      %v463 = vld [vmem:[%s3 + $0x48] sm:$0xff]
      %v464 = vld [vmem:[%s3 + $0x50] sm:$0xff]
      %v465 = vld [vmem:[%s3 + $0x58] sm:$0xff]
      %v466 = vld [vmem:[%s3 + $0x60] sm:$0xff]
      %v467 = vld [vmem:[%s3 + $0x68] sm:$0xff]
      %v468 = vld [vmem:[%s3 + $0x70] sm:$0xff]
      %v469 = vld [vmem:[%s3 + $0x78] sm:$0xff]
      %v470 = vld [vmem:[%s4] sm:$0xff]
      %v471 = vand.u32 %v446, 65535
      %v472 = vshra.s32 %v446, 16
      %v473 = vcvt.s32.f32 %v471
      %v474 = vcvt.s32.f32 %v472
      %475 = vmin.xlane.f32.xlu0 %v474
      %v476 = vpop.xlane.xlu0 %475
      %vm477 = vcmp.eq.f32.partialorder %v474, %v476
      %v478 = vsel %vm477, %v473, inf
      %479 = vmin.xlane.f32.xlu0 %v478
      %v480 = vpop.xlane.xlu0 %479
      %v481 = vcvt.f32.s32 %v480
      %v482 = vcvt.f32.s32 %v476
      %v483 = vshll.u32 %v482, 16
      %v484 = vadd.s32 %v483, %v481
      %v485 = vand.u32 %v447, 65535
      %v486 = vshra.s32 %v447, 16
      %v487 = vcvt.s32.f32 %v485
      %v488 = vcvt.s32.f32 %v486
      %489 = vmin.xlane.f32.xlu0 %v488
      %v490 = vpop.xlane.xlu0 %489
      %vm491 = vcmp.eq.f32.partialorder %v488, %v490
      %v492 = vsel %vm491, %v487, inf
      %493 = vmin.xlane.f32.xlu0 %v492
      %v494 = vpop.xlane.xlu0 %493
      %v495 = vcvt.f32.s32 %v494
      %v496 = vcvt.f32.s32 %v490
      %v497 = vshll.u32 %v496, 16
      %v498 = vadd.s32 %v497, %v495
      %v499 = vand.u32 %v448, 65535
      %v500 = vshra.s32 %v448, 16
      %v501 = vcvt.s32.f32 %v499
      %v502 = vcvt.s32.f32 %v500
      %503 = vmin.xlane.f32.xlu0 %v502
      %v504 = vpop.xlane.xlu0 %503
      %vm505 = vcmp.eq.f32.partialorder %v502, %v504
      %v506 = vsel %vm505, %v501, inf
      %507 = vmin.xlane.f32.xlu0 %v506
      %v508 = vpop.xlane.xlu0 %507
      %v509 = vcvt.f32.s32 %v508
      %v510 = vcvt.f32.s32 %v504
      %v511 = vshll.u32 %v510, 16
      %v512 = vadd.s32 %v511, %v509
      %v513 = vand.u32 %v449, 65535
      %v514 = vshra.s32 %v449, 16
      %v515 = vcvt.s32.f32 %v513
      %v516 = vcvt.s32.f32 %v514
      %517 = vmin.xlane.f32.xlu0 %v516
      %v518 = vpop.xlane.xlu0 %517
      %vm519 = vcmp.eq.f32.partialorder %v516, %v518
      %v520 = vsel %vm519, %v515, inf
      %521 = vmin.xlane.f32.xlu0 %v520
      %v522 = vpop.xlane.xlu0 %521
      %v523 = vcvt.f32.s32 %v522
      %v524 = vcvt.f32.s32 %v518
      %v525 = vshll.u32 %v524, 16
      %v526 = vadd.s32 %v525, %v523
      %v527 = vand.u32 %v450, 65535
      %v528 = vshra.s32 %v450, 16
      %v529 = vcvt.s32.f32 %v527
      %v530 = vcvt.s32.f32 %v528
      %531 = vmin.xlane.f32.xlu0 %v530
      %v532 = vpop.xlane.xlu0 %531
      %vm533 = vcmp.eq.f32.partialorder %v530, %v532
      %v534 = vsel %vm533, %v529, inf
      %535 = vmin.xlane.f32.xlu0 %v534
      %v536 = vpop.xlane.xlu0 %535
      %v537 = vcvt.f32.s32 %v536
      %v538 = vcvt.f32.s32 %v532
      %v539 = vshll.u32 %v538, 16
      %v540 = vadd.s32 %v539, %v537
      %v541 = vand.u32 %v451, 65535
      %v542 = vshra.s32 %v451, 16
      %v543 = vcvt.s32.f32 %v541
      %v544 = vcvt.s32.f32 %v542
      %545 = vmin.xlane.f32.xlu0 %v544
      %v546 = vpop.xlane.xlu0 %545
      %vm547 = vcmp.eq.f32.partialorder %v544, %v546
      %v548 = vsel %vm547, %v543, inf
      %549 = vmin.xlane.f32.xlu0 %v548
      %v550 = vpop.xlane.xlu0 %549
      %v551 = vcvt.f32.s32 %v550
      %v552 = vcvt.f32.s32 %v546
      %v553 = vshll.u32 %v552, 16
      %v554 = vadd.s32 %v553, %v551
      %v555 = vand.u32 %v452, 65535
      %v556 = vshra.s32 %v452, 16
      %v557 = vcvt.s32.f32 %v555
      %v558 = vcvt.s32.f32 %v556
      %559 = vmin.xlane.f32.xlu0 %v558
      %v560 = vpop.xlane.xlu0 %559
      %vm561 = vcmp.eq.f32.partialorder %v558, %v560
      %v562 = vsel %vm561, %v557, inf
      %563 = vmin.xlane.f32.xlu0 %v562
      %v564 = vpop.xlane.xlu0 %563
      %v565 = vcvt.f32.s32 %v564
      %v566 = vcvt.f32.s32 %v560
      %v567 = vshll.u32 %v566, 16
      %v568 = vadd.s32 %v567, %v565
      %v569 = vand.u32 %v453, 65535
      %v570 = vshra.s32 %v453, 16
      %v571 = vcvt.s32.f32 %v569
      %v572 = vcvt.s32.f32 %v570
      %573 = vmin.xlane.f32.xlu0 %v572
      %v574 = vpop.xlane.xlu0 %573
      %vm575 = vcmp.eq.f32.partialorder %v572, %v574
      %v576 = vsel %vm575, %v571, inf
      %577 = vmin.xlane.f32.xlu0 %v576
      %v578 = vpop.xlane.xlu0 %577
      %v579 = vcvt.f32.s32 %v578
      %v580 = vcvt.f32.s32 %v574
      %v581 = vshll.u32 %v580, 16
      %v582 = vadd.s32 %v581, %v579
      %vm583 = vcmp.eq.s32.totalorder %v446, %v484
      %vm584 = vcmp.eq.s32.totalorder %v447, %v498
      %vm585 = vcmp.eq.s32.totalorder %v448, %v512
      %vm586 = vcmp.eq.s32.totalorder %v449, %v526
      %vm587 = vcmp.eq.s32.totalorder %v450, %v540
      %vm588 = vcmp.eq.s32.totalorder %v451, %v554
      %vm589 = vcmp.eq.s32.totalorder %v452, %v568
      %vm590 = vcmp.eq.s32.totalorder %v453, %v582
      %v591 = vsel %vm583, 1, 0
      %v592 = vsel %vm584, 1, 0
      %v593 = vsel %vm585, 1, 0
      %v594 = vsel %vm586, 1, 0
      %v595 = vsel %vm587, 1, 0
      %v596 = vsel %vm588, 1, 0
      %v597 = vsel %vm589, 1, 0
      %v598 = vsel %vm590, 1, 0
      %v599 = vcvt.s32.f32 %v591
      %v600 = vcvt.s32.f32 %v592
      %v601 = vcvt.s32.f32 %v593
      %v602 = vcvt.s32.f32 %v594
      %v603 = vcvt.s32.f32 %v595
      %v604 = vcvt.s32.f32 %v596
      %v605 = vcvt.s32.f32 %v597
      %v606 = vcvt.s32.f32 %v598
      %v607 = vlaneseq
      %v608 = vshrl.u32 %v607, 7
      %v609 = vsub.s32 0, %v608
      %v610 = vrot.slane %v470, %v609
      %611 = vmatprep.subr.mxu0 0.0
      %612 = vmatpush1.msra.mxu0 %v454
      %613 = vmatprep.subr.mxu0 0.0
      %614 = vmatpush1.msra.mxu0 %v455
      %615 = vmatprep.subr.mxu0 0.0
      %616 = vmatpush1.msra.mxu0 %v456
      %617 = vmatprep.subr.mxu0 0.0
      %618 = vmatpush1.msra.mxu0 %v457
      %619 = vmatprep.subr.mxu0 0.0
      %620 = vmatpush1.msra.mxu0 %v458
      %621 = vmatprep.subr.mxu0 0.0
      %622 = vmatpush1.msra.mxu0 %v459
      %623 = vmatprep.subr.mxu0 0.0
      %624 = vmatpush1.msra.mxu0 %v460
      %625 = vmatprep.subr.mxu0 0.0
      %626 = vmatpush1.msra.mxu0 %v461
      %627 = vmatprep.subr.mxu0 0.0
      %628 = vmatpush1.msra.mxu0 %v462
      %629 = vmatprep.subr.mxu0 0.0
      %630 = vmatpush1.msra.mxu0 %v463
      %631 = vmatprep.subr.mxu0 0.0
      %632 = vmatpush1.msra.mxu0 %v464
      %633 = vmatprep.subr.mxu0 0.0
      %634 = vmatpush1.msra.mxu0 %v465
      %635 = vmatprep.subr.mxu0 0.0
      %636 = vmatpush1.msra.mxu0 %v466
      %637 = vmatprep.subr.mxu0 0.0
      %638 = vmatpush1.msra.mxu0 %v467
      %639 = vmatprep.subr.mxu0 0.0
      %640 = vmatpush1.msra.mxu0 %v468
      %641 = vmatprep.subr.mxu0 0.0
      %642 = vmatpush1.msra.mxu0 %v469
      %643 = vmatprep.subr.mxu0 0.0
      %644 = vmatpush1.msra.mxu0 0.0
      %645 = vmatprep.subr.mxu0 0.0
      %646 = vmatpush1.msra.mxu0 0.0
      %647 = vmatprep.subr.mxu0 0.0
      %648 = vmatpush1.msra.mxu0 0.0
      %649 = vmatprep.subr.mxu0 0.0
      %650 = vmatpush1.msra.mxu0 0.0
      %651 = vmatprep.subr.mxu0 0.0
      %652 = vmatpush1.msra.mxu0 0.0
      %653 = vmatprep.subr.mxu0 0.0
      %654 = vmatpush1.msra.mxu0 0.0
      %655 = vmatprep.subr.mxu0 0.0
      %656 = vmatpush1.msra.mxu0 0.0
      %657 = vmatprep.subr.mxu0 0.0
      %658 = vmatpush1.msra.mxu0 0.0
      %659 = vmatprep.subr.mxu0 0.0
      %660 = vmatpush1.msra.mxu0 0.0
      %661 = vmatprep.subr.mxu0 0.0
      %662 = vmatpush1.msra.mxu0 0.0
      %663 = vmatprep.subr.mxu0 0.0
      %664 = vmatpush1.msra.mxu0 0.0
      %665 = vmatprep.subr.mxu0 0.0
      %666 = vmatpush1.msra.mxu0 0.0
      %667 = vmatprep.subr.mxu0 0.0
      %668 = vmatpush1.msra.mxu0 0.0
      %669 = vmatprep.subr.mxu0 0.0
      %670 = vmatpush1.msra.mxu0 0.0
      %671 = vmatprep.subr.mxu0 0.0
      %672 = vmatpush1.msra.mxu0 0.0
      %673 = vmatprep.subr.mxu0 0.0
      %674 = vmatpush1.msra.mxu0 0.0
      %675 = vmatprep.mubr.f32.mxu0 0.0
      %676 = vmatmul.mubr.f32.gmra.mrb[0].mxu0 %v599
      %v677 = vpop.f32.mrb[0].mxu0
      %v678 = vadd.f32 %v610, %v677
      %v679 = vpop.f32.mrb[0].mxu0
      %680 = vmatprep.mubr.f32.mxu0 0.0
      %681 = vmatmul.mubr.f32.gmra.mrb[0].mxu0 %v600
      %v682 = vpop.f32.mrb[0].mxu0
      %v683 = vadd.f32 %v610, %v682
      %v684 = vpop.f32.mrb[0].mxu0
      %685 = vmatprep.mubr.f32.mxu0 0.0
      %686 = vmatmul.mubr.f32.gmra.mrb[0].mxu0 %v601
      %v687 = vpop.f32.mrb[0].mxu0
      %v688 = vadd.f32 %v610, %v687
      %v689 = vpop.f32.mrb[0].mxu0
      %690 = vmatprep.mubr.f32.mxu0 0.0
      %691 = vmatmul.mubr.f32.gmra.mrb[0].mxu0 %v602
      %v692 = vpop.f32.mrb[0].mxu0
      %v693 = vadd.f32 %v610, %v692
      %v694 = vpop.f32.mrb[0].mxu0
      %695 = vmatprep.mubr.f32.mxu0 0.0
      %696 = vmatmul.mubr.f32.gmra.mrb[0].mxu0 %v603
      %v697 = vpop.f32.mrb[0].mxu0
      %v698 = vadd.f32 %v610, %v697
      %v699 = vpop.f32.mrb[0].mxu0
      %700 = vmatprep.mubr.f32.mxu0 0.0
      %701 = vmatmul.mubr.f32.gmra.mrb[0].mxu0 %v604
      %v702 = vpop.f32.mrb[0].mxu0
      %v703 = vadd.f32 %v610, %v702
      %v704 = vpop.f32.mrb[0].mxu0
      %705 = vmatprep.mubr.f32.mxu0 0.0
      %706 = vmatmul.mubr.f32.gmra.mrb[0].mxu0 %v605
      %v707 = vpop.f32.mrb[0].mxu0
      %v708 = vadd.f32 %v610, %v707
      %v709 = vpop.f32.mrb[0].mxu0
      %710 = vmatprep.mubr.f32.mxu0 0.0
      %711 = vmatmul.mubr.f32.gmra.mrb[0].mxu0 %v606
      %v712 = vpop.f32.mrb[0].mxu0
      %v713 = vadd.f32 %v610, %v712
      %v714 = vpop.f32.mrb[0].mxu0
      %715 = vdwg.mxu0
      %v716 = vsel %vm583, 2147483647, %v446
      %v717 = vsel %vm584, 2147483647, %v447
      %v718 = vsel %vm585, 2147483647, %v448
      %v719 = vsel %vm586, 2147483647, %v449
      %v720 = vsel %vm587, 2147483647, %v450
      %v721 = vsel %vm588, 2147483647, %v451
      %v722 = vsel %vm589, 2147483647, %v452
      %v723 = vsel %vm590, 2147483647, %v453
      %v724 = vand.u32 %v716, 65535
      %v725 = vshra.s32 %v716, 16
      %v726 = vcvt.s32.f32 %v724
      %v727 = vcvt.s32.f32 %v725
      %728 = vmin.xlane.f32.xlu0 %v727
      %v729 = vpop.xlane.xlu0 %728
      %vm730 = vcmp.eq.f32.partialorder %v727, %v729
      %v731 = vsel %vm730, %v726, inf
      %732 = vmin.xlane.f32.xlu0 %v731
      %v733 = vpop.xlane.xlu0 %732
      %v734 = vcvt.f32.s32 %v733
      %v735 = vcvt.f32.s32 %v729
      %v736 = vshll.u32 %v735, 16
      %v737 = vadd.s32 %v736, %v734
      %v738 = vand.u32 %v717, 65535
      %v739 = vshra.s32 %v717, 16
      %v740 = vcvt.s32.f32 %v738
      %v741 = vcvt.s32.f32 %v739
      %742 = vmin.xlane.f32.xlu0 %v741
      %v743 = vpop.xlane.xlu0 %742
      %vm744 = vcmp.eq.f32.partialorder %v741, %v743
      %v745 = vsel %vm744, %v740, inf
      %746 = vmin.xlane.f32.xlu0 %v745
      %v747 = vpop.xlane.xlu0 %746
      %v748 = vcvt.f32.s32 %v747
      %v749 = vcvt.f32.s32 %v743
      %v750 = vshll.u32 %v749, 16
      %v751 = vadd.s32 %v750, %v748
      %v752 = vand.u32 %v718, 65535
      %v753 = vshra.s32 %v718, 16
      %v754 = vcvt.s32.f32 %v752
      %v755 = vcvt.s32.f32 %v753
      %756 = vmin.xlane.f32.xlu0 %v755
      %v757 = vpop.xlane.xlu0 %756
      %vm758 = vcmp.eq.f32.partialorder %v755, %v757
      %v759 = vsel %vm758, %v754, inf
      %760 = vmin.xlane.f32.xlu0 %v759
      %v761 = vpop.xlane.xlu0 %760
      %v762 = vcvt.f32.s32 %v761
      %v763 = vcvt.f32.s32 %v757
      %v764 = vshll.u32 %v763, 16
      %v765 = vadd.s32 %v764, %v762
      %v766 = vand.u32 %v719, 65535
      %v767 = vshra.s32 %v719, 16
      %v768 = vcvt.s32.f32 %v766
      %v769 = vcvt.s32.f32 %v767
      %770 = vmin.xlane.f32.xlu0 %v769
      %v771 = vpop.xlane.xlu0 %770
      %vm772 = vcmp.eq.f32.partialorder %v769, %v771
      %v773 = vsel %vm772, %v768, inf
      %774 = vmin.xlane.f32.xlu0 %v773
      %v775 = vpop.xlane.xlu0 %774
      %v776 = vcvt.f32.s32 %v775
      %v777 = vcvt.f32.s32 %v771
      %v778 = vshll.u32 %v777, 16
      %v779 = vadd.s32 %v778, %v776
      %v780 = vand.u32 %v720, 65535
      %v781 = vshra.s32 %v720, 16
      %v782 = vcvt.s32.f32 %v780
      %v783 = vcvt.s32.f32 %v781
      %784 = vmin.xlane.f32.xlu0 %v783
      %v785 = vpop.xlane.xlu0 %784
      %vm786 = vcmp.eq.f32.partialorder %v783, %v785
      %v787 = vsel %vm786, %v782, inf
      %788 = vmin.xlane.f32.xlu0 %v787
      %v789 = vpop.xlane.xlu0 %788
      %v790 = vcvt.f32.s32 %v789
      %v791 = vcvt.f32.s32 %v785
      %v792 = vshll.u32 %v791, 16
      %v793 = vadd.s32 %v792, %v790
      %v794 = vand.u32 %v721, 65535
      %v795 = vshra.s32 %v721, 16
      %v796 = vcvt.s32.f32 %v794
      %v797 = vcvt.s32.f32 %v795
      %798 = vmin.xlane.f32.xlu0 %v797
      %v799 = vpop.xlane.xlu0 %798
      %vm800 = vcmp.eq.f32.partialorder %v797, %v799
      %v801 = vsel %vm800, %v796, inf
      %802 = vmin.xlane.f32.xlu0 %v801
      %v803 = vpop.xlane.xlu0 %802
      %v804 = vcvt.f32.s32 %v803
      %v805 = vcvt.f32.s32 %v799
      %v806 = vshll.u32 %v805, 16
      %v807 = vadd.s32 %v806, %v804
      %v808 = vand.u32 %v722, 65535
      %v809 = vshra.s32 %v722, 16
      %v810 = vcvt.s32.f32 %v808
      %v811 = vcvt.s32.f32 %v809
      %812 = vmin.xlane.f32.xlu0 %v811
      %v813 = vpop.xlane.xlu0 %812
      %vm814 = vcmp.eq.f32.partialorder %v811, %v813
      %v815 = vsel %vm814, %v810, inf
      %816 = vmin.xlane.f32.xlu0 %v815
      %v817 = vpop.xlane.xlu0 %816
      %v818 = vcvt.f32.s32 %v817
      %v819 = vcvt.f32.s32 %v813
      %v820 = vshll.u32 %v819, 16
      %v821 = vadd.s32 %v820, %v818
      %v822 = vand.u32 %v723, 65535
      %v823 = vshra.s32 %v723, 16
      %v824 = vcvt.s32.f32 %v822
      %v825 = vcvt.s32.f32 %v823
      %826 = vmin.xlane.f32.xlu0 %v825
      %v827 = vpop.xlane.xlu0 %826
      %vm828 = vcmp.eq.f32.partialorder %v825, %v827
      %v829 = vsel %vm828, %v824, inf
      %830 = vmin.xlane.f32.xlu0 %v829
      %v831 = vpop.xlane.xlu0 %830
      %v832 = vcvt.f32.s32 %v831
      %v833 = vcvt.f32.s32 %v827
      %v834 = vshll.u32 %v833, 16
      %v835 = vadd.s32 %v834, %v832
      %vm836 = vcmp.eq.s32.totalorder %v716, %v737
      %vm837 = vcmp.eq.s32.totalorder %v717, %v751
      %vm838 = vcmp.eq.s32.totalorder %v718, %v765
      %vm839 = vcmp.eq.s32.totalorder %v719, %v779
      %vm840 = vcmp.eq.s32.totalorder %v720, %v793
      %vm841 = vcmp.eq.s32.totalorder %v721, %v807
      %vm842 = vcmp.eq.s32.totalorder %v722, %v821
      %vm843 = vcmp.eq.s32.totalorder %v723, %v835
      %v844 = vsel %vm836, 1, 0
      %v845 = vsel %vm837, 1, 0
      %v846 = vsel %vm838, 1, 0
      %v847 = vsel %vm839, 1, 0
      %v848 = vsel %vm840, 1, 0
      %v849 = vsel %vm841, 1, 0
      %v850 = vsel %vm842, 1, 0
      %v851 = vsel %vm843, 1, 0
      %v852 = vcvt.s32.f32 %v844
      %v853 = vcvt.s32.f32 %v845
      %v854 = vcvt.s32.f32 %v846
      %v855 = vcvt.s32.f32 %v847
      %v856 = vcvt.s32.f32 %v848
      %v857 = vcvt.s32.f32 %v849
      %v858 = vcvt.s32.f32 %v850
      %v859 = vcvt.s32.f32 %v851
      %v860 = vlaneseq
      %v861 = vshrl.u32 %v860, 7
      %v862 = vsub.s32 1, %v861
      %v863 = vrot.slane %v470, %v862
      %864 = vmatprep.subr.mxu0 0.0
      %865 = vmatpush1.msra.mxu0 %v454
      %866 = vmatprep.subr.mxu0 0.0
      %867 = vmatpush1.msra.mxu0 %v455
      %868 = vmatprep.subr.mxu0 0.0
      %869 = vmatpush1.msra.mxu0 %v456
      %870 = vmatprep.subr.mxu0 0.0
      %871 = vmatpush1.msra.mxu0 %v457
      %872 = vmatprep.subr.mxu0 0.0
      %873 = vmatpush1.msra.mxu0 %v458
      %874 = vmatprep.subr.mxu0 0.0
      %875 = vmatpush1.msra.mxu0 %v459
      %876 = vmatprep.subr.mxu0 0.0
      %877 = vmatpush1.msra.mxu0 %v460
      %878 = vmatprep.subr.mxu0 0.0
      %879 = vmatpush1.msra.mxu0 %v461
      %880 = vmatprep.subr.mxu0 0.0
      %881 = vmatpush1.msra.mxu0 %v462
      %882 = vmatprep.subr.mxu0 0.0
      %883 = vmatpush1.msra.mxu0 %v463
      %884 = vmatprep.subr.mxu0 0.0
      %885 = vmatpush1.msra.mxu0 %v464
      %886 = vmatprep.subr.mxu0 0.0
      %887 = vmatpush1.msra.mxu0 %v465
      %888 = vmatprep.subr.mxu0 0.0
      %889 = vmatpush1.msra.mxu0 %v466
      %890 = vmatprep.subr.mxu0 0.0
      %891 = vmatpush1.msra.mxu0 %v467
      %892 = vmatprep.subr.mxu0 0.0
      %893 = vmatpush1.msra.mxu0 %v468
      %894 = vmatprep.subr.mxu0 0.0
      %895 = vmatpush1.msra.mxu0 %v469
      %896 = vmatprep.subr.mxu0 0.0
      %897 = vmatpush1.msra.mxu0 0.0
      %898 = vmatprep.subr.mxu0 0.0
      %899 = vmatpush1.msra.mxu0 0.0
      %900 = vmatprep.subr.mxu0 0.0
      %901 = vmatpush1.msra.mxu0 0.0
      %902 = vmatprep.subr.mxu0 0.0
      %903 = vmatpush1.msra.mxu0 0.0
      %904 = vmatprep.subr.mxu0 0.0
      %905 = vmatpush1.msra.mxu0 0.0
      %906 = vmatprep.subr.mxu0 0.0
      %907 = vmatpush1.msra.mxu0 0.0
      %908 = vmatprep.subr.mxu0 0.0
      %909 = vmatpush1.msra.mxu0 0.0
      %910 = vmatprep.subr.mxu0 0.0
      %911 = vmatpush1.msra.mxu0 0.0
      %912 = vmatprep.subr.mxu0 0.0
      %913 = vmatpush1.msra.mxu0 0.0
      %914 = vmatprep.subr.mxu0 0.0
      %915 = vmatpush1.msra.mxu0 0.0
      %916 = vmatprep.subr.mxu0 0.0
      %917 = vmatpush1.msra.mxu0 0.0
      %918 = vmatprep.subr.mxu0 0.0
      %919 = vmatpush1.msra.mxu0 0.0
      %920 = vmatprep.subr.mxu0 0.0
      %921 = vmatpush1.msra.mxu0 0.0
      %922 = vmatprep.subr.mxu0 0.0
      %923 = vmatpush1.msra.mxu0 0.0
      %924 = vmatprep.subr.mxu0 0.0
      %925 = vmatpush1.msra.mxu0 0.0
      %926 = vmatprep.subr.mxu0 0.0
      %927 = vmatpush1.msra.mxu0 0.0
      %928 = vmatprep.mubr.f32.mxu0 0.0
      %929 = vmatmul.mubr.f32.gmra.mrb[0].mxu0 %v852
      %v930 = vpop.f32.mrb[0].mxu0
      %v931 = vadd.f32 %v863, %v930
      %v932 = vpop.f32.mrb[0].mxu0
      %933 = vmatprep.mubr.f32.mxu0 0.0
      %934 = vmatmul.mubr.f32.gmra.mrb[0].mxu0 %v853
      %v935 = vpop.f32.mrb[0].mxu0
      %v936 = vadd.f32 %v863, %v935
      %v937 = vpop.f32.mrb[0].mxu0
      %938 = vmatprep.mubr.f32.mxu0 0.0
      %939 = vmatmul.mubr.f32.gmra.mrb[0].mxu0 %v854
      %v940 = vpop.f32.mrb[0].mxu0
      %v941 = vadd.f32 %v863, %v940
      %v942 = vpop.f32.mrb[0].mxu0
      %943 = vmatprep.mubr.f32.mxu0 0.0
      %944 = vmatmul.mubr.f32.gmra.mrb[0].mxu0 %v855
      %v945 = vpop.f32.mrb[0].mxu0
      %v946 = vadd.f32 %v863, %v945
      %v947 = vpop.f32.mrb[0].mxu0
      %948 = vmatprep.mubr.f32.mxu0 0.0
      %949 = vmatmul.mubr.f32.gmra.mrb[0].mxu0 %v856
      %v950 = vpop.f32.mrb[0].mxu0
      %v951 = vadd.f32 %v863, %v950
      %v952 = vpop.f32.mrb[0].mxu0
      %953 = vmatprep.mubr.f32.mxu0 0.0
      %954 = vmatmul.mubr.f32.gmra.mrb[0].mxu0 %v857
      %v955 = vpop.f32.mrb[0].mxu0
      %v956 = vadd.f32 %v863, %v955
      %v957 = vpop.f32.mrb[0].mxu0
      %958 = vmatprep.mubr.f32.mxu0 0.0
      %959 = vmatmul.mubr.f32.gmra.mrb[0].mxu0 %v858
      %v960 = vpop.f32.mrb[0].mxu0
      %v961 = vadd.f32 %v863, %v960
      %v962 = vpop.f32.mrb[0].mxu0
      %963 = vmatprep.mubr.f32.mxu0 0.0
      %964 = vmatmul.mubr.f32.gmra.mrb[0].mxu0 %v859
      %v965 = vpop.f32.mrb[0].mxu0
      %v966 = vadd.f32 %v863, %v965
      %v967 = vpop.f32.mrb[0].mxu0
      %968 = vdwg.mxu0
      %v969 = vmax.f32 %v678, %v931
      %v970 = vmax.f32 %v683, %v936
      %v971 = vmax.f32 %v688, %v941
      %v972 = vmax.f32 %v693, %v946
      %v973 = vmax.f32 %v698, %v951
      %v974 = vmax.f32 %v703, %v956
      %v975 = vmax.f32 %v708, %v961
      %v976 = vmax.f32 %v713, %v966
      %v977 = vsel %vm836, 2147483647, %v716
      %v978 = vsel %vm837, 2147483647, %v717
      %v979 = vsel %vm838, 2147483647, %v718
      %v980 = vsel %vm839, 2147483647, %v719
      %v981 = vsel %vm840, 2147483647, %v720
      %v982 = vsel %vm841, 2147483647, %v721
      %v983 = vsel %vm842, 2147483647, %v722
      %v984 = vsel %vm843, 2147483647, %v723
      %v985 = vand.u32 %v977, 65535
      %v986 = vshra.s32 %v977, 16
      %v987 = vcvt.s32.f32 %v985
      %v988 = vcvt.s32.f32 %v986
      %989 = vmin.xlane.f32.xlu0 %v988
      %v990 = vpop.xlane.xlu0 %989
      %vm991 = vcmp.eq.f32.partialorder %v988, %v990
      %v992 = vsel %vm991, %v987, inf
      %993 = vmin.xlane.f32.xlu0 %v992
      %v994 = vpop.xlane.xlu0 %993
      %v995 = vcvt.f32.s32 %v994
      %v996 = vcvt.f32.s32 %v990
      %v997 = vshll.u32 %v996, 16
      %v998 = vadd.s32 %v997, %v995
      %v999 = vand.u32 %v978, 65535
      %v1000 = vshra.s32 %v978, 16
      %v1001 = vcvt.s32.f32 %v999
      %v1002 = vcvt.s32.f32 %v1000
      %1003 = vmin.xlane.f32.xlu0 %v1002
      %v1004 = vpop.xlane.xlu0 %1003
      %vm1005 = vcmp.eq.f32.partialorder %v1002, %v1004
      %v1006 = vsel %vm1005, %v1001, inf
      %1007 = vmin.xlane.f32.xlu0 %v1006
      %v1008 = vpop.xlane.xlu0 %1007
      %v1009 = vcvt.f32.s32 %v1008
      %v1010 = vcvt.f32.s32 %v1004
      %v1011 = vshll.u32 %v1010, 16
      %v1012 = vadd.s32 %v1011, %v1009
      %v1013 = vand.u32 %v979, 65535
      %v1014 = vshra.s32 %v979, 16
      %v1015 = vcvt.s32.f32 %v1013
      %v1016 = vcvt.s32.f32 %v1014
      %1017 = vmin.xlane.f32.xlu0 %v1016
      %v1018 = vpop.xlane.xlu0 %1017
      %vm1019 = vcmp.eq.f32.partialorder %v1016, %v1018
      %v1020 = vsel %vm1019, %v1015, inf
      %1021 = vmin.xlane.f32.xlu0 %v1020
      %v1022 = vpop.xlane.xlu0 %1021
      %v1023 = vcvt.f32.s32 %v1022
      %v1024 = vcvt.f32.s32 %v1018
      %v1025 = vshll.u32 %v1024, 16
      %v1026 = vadd.s32 %v1025, %v1023
      %v1027 = vand.u32 %v980, 65535
      %v1028 = vshra.s32 %v980, 16
      %v1029 = vcvt.s32.f32 %v1027
      %v1030 = vcvt.s32.f32 %v1028
      %1031 = vmin.xlane.f32.xlu0 %v1030
      %v1032 = vpop.xlane.xlu0 %1031
      %vm1033 = vcmp.eq.f32.partialorder %v1030, %v1032
      %v1034 = vsel %vm1033, %v1029, inf
      %1035 = vmin.xlane.f32.xlu0 %v1034
      %v1036 = vpop.xlane.xlu0 %1035
      %v1037 = vcvt.f32.s32 %v1036
      %v1038 = vcvt.f32.s32 %v1032
      %v1039 = vshll.u32 %v1038, 16
      %v1040 = vadd.s32 %v1039, %v1037
      %v1041 = vand.u32 %v981, 65535
      %v1042 = vshra.s32 %v981, 16
      %v1043 = vcvt.s32.f32 %v1041
      %v1044 = vcvt.s32.f32 %v1042
      %1045 = vmin.xlane.f32.xlu0 %v1044
      %v1046 = vpop.xlane.xlu0 %1045
      %vm1047 = vcmp.eq.f32.partialorder %v1044, %v1046
      %v1048 = vsel %vm1047, %v1043, inf
      %1049 = vmin.xlane.f32.xlu0 %v1048
      %v1050 = vpop.xlane.xlu0 %1049
      %v1051 = vcvt.f32.s32 %v1050
      %v1052 = vcvt.f32.s32 %v1046
      %v1053 = vshll.u32 %v1052, 16
      %v1054 = vadd.s32 %v1053, %v1051
      %v1055 = vand.u32 %v982, 65535
      %v1056 = vshra.s32 %v982, 16
      %v1057 = vcvt.s32.f32 %v1055
      %v1058 = vcvt.s32.f32 %v1056
      %1059 = vmin.xlane.f32.xlu0 %v1058
      %v1060 = vpop.xlane.xlu0 %1059
      %vm1061 = vcmp.eq.f32.partialorder %v1058, %v1060
      %v1062 = vsel %vm1061, %v1057, inf
      %1063 = vmin.xlane.f32.xlu0 %v1062
      %v1064 = vpop.xlane.xlu0 %1063
      %v1065 = vcvt.f32.s32 %v1064
      %v1066 = vcvt.f32.s32 %v1060
      %v1067 = vshll.u32 %v1066, 16
      %v1068 = vadd.s32 %v1067, %v1065
      %v1069 = vand.u32 %v983, 65535
      %v1070 = vshra.s32 %v983, 16
      %v1071 = vcvt.s32.f32 %v1069
      %v1072 = vcvt.s32.f32 %v1070
      %1073 = vmin.xlane.f32.xlu0 %v1072
      %v1074 = vpop.xlane.xlu0 %1073
      %vm1075 = vcmp.eq.f32.partialorder %v1072, %v1074
      %v1076 = vsel %vm1075, %v1071, inf
      %1077 = vmin.xlane.f32.xlu0 %v1076
      %v1078 = vpop.xlane.xlu0 %1077
      %v1079 = vcvt.f32.s32 %v1078
      %v1080 = vcvt.f32.s32 %v1074
      %v1081 = vshll.u32 %v1080, 16
      %v1082 = vadd.s32 %v1081, %v1079
      %v1083 = vand.u32 %v984, 65535
      %v1084 = vshra.s32 %v984, 16
      %v1085 = vcvt.s32.f32 %v1083
      %v1086 = vcvt.s32.f32 %v1084
      %1087 = vmin.xlane.f32.xlu0 %v1086
      %v1088 = vpop.xlane.xlu0 %1087
      %vm1089 = vcmp.eq.f32.partialorder %v1086, %v1088
      %v1090 = vsel %vm1089, %v1085, inf
      %1091 = vmin.xlane.f32.xlu0 %v1090
      %v1092 = vpop.xlane.xlu0 %1091
      %v1093 = vcvt.f32.s32 %v1092
      %v1094 = vcvt.f32.s32 %v1088
      %v1095 = vshll.u32 %v1094, 16
      %v1096 = vadd.s32 %v1095, %v1093
      %vm1097 = vcmp.eq.s32.totalorder %v977, %v998
      %vm1098 = vcmp.eq.s32.totalorder %v978, %v1012
      %vm1099 = vcmp.eq.s32.totalorder %v979, %v1026
      %vm1100 = vcmp.eq.s32.totalorder %v980, %v1040
      %vm1101 = vcmp.eq.s32.totalorder %v981, %v1054
      %vm1102 = vcmp.eq.s32.totalorder %v982, %v1068
      %vm1103 = vcmp.eq.s32.totalorder %v983, %v1082
      %vm1104 = vcmp.eq.s32.totalorder %v984, %v1096
      %v1105 = vsel %vm1097, 1, 0
      %v1106 = vsel %vm1098, 1, 0
      %v1107 = vsel %vm1099, 1, 0
      %v1108 = vsel %vm1100, 1, 0
      %v1109 = vsel %vm1101, 1, 0
      %v1110 = vsel %vm1102, 1, 0
      %v1111 = vsel %vm1103, 1, 0
      %v1112 = vsel %vm1104, 1, 0
      %v1113 = vcvt.s32.f32 %v1105
      %v1114 = vcvt.s32.f32 %v1106
      %v1115 = vcvt.s32.f32 %v1107
      %v1116 = vcvt.s32.f32 %v1108
      %v1117 = vcvt.s32.f32 %v1109
      %v1118 = vcvt.s32.f32 %v1110
      %v1119 = vcvt.s32.f32 %v1111
      %v1120 = vcvt.s32.f32 %v1112
      %v1121 = vlaneseq
      %v1122 = vshrl.u32 %v1121, 7
      %v1123 = vsub.s32 2, %v1122
      %v1124 = vrot.slane %v470, %v1123
      %1125 = vmatprep.subr.mxu0 0.0
      %1126 = vmatpush1.msra.mxu0 %v454
      %1127 = vmatprep.subr.mxu0 0.0
      %1128 = vmatpush1.msra.mxu0 %v455
      %1129 = vmatprep.subr.mxu0 0.0
      %1130 = vmatpush1.msra.mxu0 %v456
      %1131 = vmatprep.subr.mxu0 0.0
      %1132 = vmatpush1.msra.mxu0 %v457
      %1133 = vmatprep.subr.mxu0 0.0
      %1134 = vmatpush1.msra.mxu0 %v458
      %1135 = vmatprep.subr.mxu0 0.0
      %1136 = vmatpush1.msra.mxu0 %v459
      %1137 = vmatprep.subr.mxu0 0.0
      %1138 = vmatpush1.msra.mxu0 %v460
      %1139 = vmatprep.subr.mxu0 0.0
      %1140 = vmatpush1.msra.mxu0 %v461
      %1141 = vmatprep.subr.mxu0 0.0
      %1142 = vmatpush1.msra.mxu0 %v462
      %1143 = vmatprep.subr.mxu0 0.0
      %1144 = vmatpush1.msra.mxu0 %v463
      %1145 = vmatprep.subr.mxu0 0.0
      %1146 = vmatpush1.msra.mxu0 %v464
      %1147 = vmatprep.subr.mxu0 0.0
      %1148 = vmatpush1.msra.mxu0 %v465
      %1149 = vmatprep.subr.mxu0 0.0
      %1150 = vmatpush1.msra.mxu0 %v466
      %1151 = vmatprep.subr.mxu0 0.0
      %1152 = vmatpush1.msra.mxu0 %v467
      %1153 = vmatprep.subr.mxu0 0.0
      %1154 = vmatpush1.msra.mxu0 %v468
      %1155 = vmatprep.subr.mxu0 0.0
      %1156 = vmatpush1.msra.mxu0 %v469
      %1157 = vmatprep.subr.mxu0 0.0
      %1158 = vmatpush1.msra.mxu0 0.0
      %1159 = vmatprep.subr.mxu0 0.0
      %1160 = vmatpush1.msra.mxu0 0.0
      %1161 = vmatprep.subr.mxu0 0.0
      %1162 = vmatpush1.msra.mxu0 0.0
      %1163 = vmatprep.subr.mxu0 0.0
      %1164 = vmatpush1.msra.mxu0 0.0
      %1165 = vmatprep.subr.mxu0 0.0
      %1166 = vmatpush1.msra.mxu0 0.0
      %1167 = vmatprep.subr.mxu0 0.0
      %1168 = vmatpush1.msra.mxu0 0.0
      %1169 = vmatprep.subr.mxu0 0.0
      %1170 = vmatpush1.msra.mxu0 0.0
      %1171 = vmatprep.subr.mxu0 0.0
      %1172 = vmatpush1.msra.mxu0 0.0
      %1173 = vmatprep.subr.mxu0 0.0
      %1174 = vmatpush1.msra.mxu0 0.0
      %1175 = vmatprep.subr.mxu0 0.0
      %1176 = vmatpush1.msra.mxu0 0.0
      %1177 = vmatprep.subr.mxu0 0.0
      %1178 = vmatpush1.msra.mxu0 0.0
      %1179 = vmatprep.subr.mxu0 0.0
      %1180 = vmatpush1.msra.mxu0 0.0
      %1181 = vmatprep.subr.mxu0 0.0
      %1182 = vmatpush1.msra.mxu0 0.0
      %1183 = vmatprep.subr.mxu0 0.0
      %1184 = vmatpush1.msra.mxu0 0.0
      %1185 = vmatprep.subr.mxu0 0.0
      %1186 = vmatpush1.msra.mxu0 0.0
      %1187 = vmatprep.subr.mxu0 0.0
      %1188 = vmatpush1.msra.mxu0 0.0
      %1189 = vmatprep.mubr.f32.mxu0 0.0
      %1190 = vmatmul.mubr.f32.gmra.mrb[0].mxu0 %v1113
      %v1191 = vpop.f32.mrb[0].mxu0
      %v1192 = vadd.f32 %v1124, %v1191
      %v1193 = vpop.f32.mrb[0].mxu0
      %1194 = vmatprep.mubr.f32.mxu0 0.0
      %1195 = vmatmul.mubr.f32.gmra.mrb[0].mxu0 %v1114
      %v1196 = vpop.f32.mrb[0].mxu0
      %v1197 = vadd.f32 %v1124, %v1196
      %v1198 = vpop.f32.mrb[0].mxu0
      %1199 = vmatprep.mubr.f32.mxu0 0.0
      %1200 = vmatmul.mubr.f32.gmra.mrb[0].mxu0 %v1115
      %v1201 = vpop.f32.mrb[0].mxu0
      %v1202 = vadd.f32 %v1124, %v1201
      %v1203 = vpop.f32.mrb[0].mxu0
      %1204 = vmatprep.mubr.f32.mxu0 0.0
      %1205 = vmatmul.mubr.f32.gmra.mrb[0].mxu0 %v1116
      %v1206 = vpop.f32.mrb[0].mxu0
      %v1207 = vadd.f32 %v1124, %v1206
      %v1208 = vpop.f32.mrb[0].mxu0
      %1209 = vmatprep.mubr.f32.mxu0 0.0
      %1210 = vmatmul.mubr.f32.gmra.mrb[0].mxu0 %v1117
      %v1211 = vpop.f32.mrb[0].mxu0
      %v1212 = vadd.f32 %v1124, %v1211
      %v1213 = vpop.f32.mrb[0].mxu0
      %1214 = vmatprep.mubr.f32.mxu0 0.0
      %1215 = vmatmul.mubr.f32.gmra.mrb[0].mxu0 %v1118
      %v1216 = vpop.f32.mrb[0].mxu0
      %v1217 = vadd.f32 %v1124, %v1216
      %v1218 = vpop.f32.mrb[0].mxu0
      %1219 = vmatprep.mubr.f32.mxu0 0.0
      %1220 = vmatmul.mubr.f32.gmra.mrb[0].mxu0 %v1119
      %v1221 = vpop.f32.mrb[0].mxu0
      %v1222 = vadd.f32 %v1124, %v1221
      %v1223 = vpop.f32.mrb[0].mxu0
      %1224 = vmatprep.mubr.f32.mxu0 0.0
      %1225 = vmatmul.mubr.f32.gmra.mrb[0].mxu0 %v1120
      %v1226 = vpop.f32.mrb[0].mxu0
      %v1227 = vadd.f32 %v1124, %v1226
      %v1228 = vpop.f32.mrb[0].mxu0
      %1229 = vdwg.mxu0
      %v1230 = vmax.f32 %v969, %v1192
      %v1231 = vmax.f32 %v970, %v1197
      %v1232 = vmax.f32 %v971, %v1202
      %v1233 = vmax.f32 %v972, %v1207
      %v1234 = vmax.f32 %v973, %v1212
      %v1235 = vmax.f32 %v974, %v1217
      %v1236 = vmax.f32 %v975, %v1222
      %v1237 = vmax.f32 %v976, %v1227
      %v1238 = vsel %vm1097, 2147483647, %v977
      %v1239 = vsel %vm1098, 2147483647, %v978
      %v1240 = vsel %vm1099, 2147483647, %v979
      %v1241 = vsel %vm1100, 2147483647, %v980
      %v1242 = vsel %vm1101, 2147483647, %v981
      %v1243 = vsel %vm1102, 2147483647, %v982
      %v1244 = vsel %vm1103, 2147483647, %v983
      %v1245 = vsel %vm1104, 2147483647, %v984
      %v1246 = vand.u32 %v1238, 65535
      %v1247 = vshra.s32 %v1238, 16
      %v1248 = vcvt.s32.f32 %v1246
      %v1249 = vcvt.s32.f32 %v1247
      %1250 = vmin.xlane.f32.xlu0 %v1249
      %v1251 = vpop.xlane.xlu0 %1250
      %vm1252 = vcmp.eq.f32.partialorder %v1249, %v1251
      %v1253 = vsel %vm1252, %v1248, inf
      %1254 = vmin.xlane.f32.xlu0 %v1253
      %v1255 = vpop.xlane.xlu0 %1254
      %v1256 = vcvt.f32.s32 %v1255
      %v1257 = vcvt.f32.s32 %v1251
      %v1258 = vshll.u32 %v1257, 16
      %v1259 = vadd.s32 %v1258, %v1256
      %v1260 = vand.u32 %v1239, 65535
      %v1261 = vshra.s32 %v1239, 16
      %v1262 = vcvt.s32.f32 %v1260
      %v1263 = vcvt.s32.f32 %v1261
      %1264 = vmin.xlane.f32.xlu0 %v1263
      %v1265 = vpop.xlane.xlu0 %1264
      %vm1266 = vcmp.eq.f32.partialorder %v1263, %v1265
      %v1267 = vsel %vm1266, %v1262, inf
      %1268 = vmin.xlane.f32.xlu0 %v1267
      %v1269 = vpop.xlane.xlu0 %1268
      %v1270 = vcvt.f32.s32 %v1269
      %v1271 = vcvt.f32.s32 %v1265
      %v1272 = vshll.u32 %v1271, 16
      %v1273 = vadd.s32 %v1272, %v1270
      %v1274 = vand.u32 %v1240, 65535
      %v1275 = vshra.s32 %v1240, 16
      %v1276 = vcvt.s32.f32 %v1274
      %v1277 = vcvt.s32.f32 %v1275
      %1278 = vmin.xlane.f32.xlu0 %v1277
      %v1279 = vpop.xlane.xlu0 %1278
      %vm1280 = vcmp.eq.f32.partialorder %v1277, %v1279
      %v1281 = vsel %vm1280, %v1276, inf
      %1282 = vmin.xlane.f32.xlu0 %v1281
      %v1283 = vpop.xlane.xlu0 %1282
      %v1284 = vcvt.f32.s32 %v1283
      %v1285 = vcvt.f32.s32 %v1279
      %v1286 = vshll.u32 %v1285, 16
      %v1287 = vadd.s32 %v1286, %v1284
      %v1288 = vand.u32 %v1241, 65535
      %v1289 = vshra.s32 %v1241, 16
      %v1290 = vcvt.s32.f32 %v1288
      %v1291 = vcvt.s32.f32 %v1289
      %1292 = vmin.xlane.f32.xlu0 %v1291
      %v1293 = vpop.xlane.xlu0 %1292
      %vm1294 = vcmp.eq.f32.partialorder %v1291, %v1293
      %v1295 = vsel %vm1294, %v1290, inf
      %1296 = vmin.xlane.f32.xlu0 %v1295
      %v1297 = vpop.xlane.xlu0 %1296
      %v1298 = vcvt.f32.s32 %v1297
      %v1299 = vcvt.f32.s32 %v1293
      %v1300 = vshll.u32 %v1299, 16
      %v1301 = vadd.s32 %v1300, %v1298
      %v1302 = vand.u32 %v1242, 65535
      %v1303 = vshra.s32 %v1242, 16
      %v1304 = vcvt.s32.f32 %v1302
      %v1305 = vcvt.s32.f32 %v1303
      %1306 = vmin.xlane.f32.xlu0 %v1305
      %v1307 = vpop.xlane.xlu0 %1306
      %vm1308 = vcmp.eq.f32.partialorder %v1305, %v1307
      %v1309 = vsel %vm1308, %v1304, inf
      %1310 = vmin.xlane.f32.xlu0 %v1309
      %v1311 = vpop.xlane.xlu0 %1310
      %v1312 = vcvt.f32.s32 %v1311
      %v1313 = vcvt.f32.s32 %v1307
      %v1314 = vshll.u32 %v1313, 16
      %v1315 = vadd.s32 %v1314, %v1312
      %v1316 = vand.u32 %v1243, 65535
      %v1317 = vshra.s32 %v1243, 16
      %v1318 = vcvt.s32.f32 %v1316
      %v1319 = vcvt.s32.f32 %v1317
      %1320 = vmin.xlane.f32.xlu0 %v1319
      %v1321 = vpop.xlane.xlu0 %1320
      %vm1322 = vcmp.eq.f32.partialorder %v1319, %v1321
      %v1323 = vsel %vm1322, %v1318, inf
      %1324 = vmin.xlane.f32.xlu0 %v1323
      %v1325 = vpop.xlane.xlu0 %1324
      %v1326 = vcvt.f32.s32 %v1325
      %v1327 = vcvt.f32.s32 %v1321
      %v1328 = vshll.u32 %v1327, 16
      %v1329 = vadd.s32 %v1328, %v1326
      %v1330 = vand.u32 %v1244, 65535
      %v1331 = vshra.s32 %v1244, 16
      %v1332 = vcvt.s32.f32 %v1330
      %v1333 = vcvt.s32.f32 %v1331
      %1334 = vmin.xlane.f32.xlu0 %v1333
      %v1335 = vpop.xlane.xlu0 %1334
      %vm1336 = vcmp.eq.f32.partialorder %v1333, %v1335
      %v1337 = vsel %vm1336, %v1332, inf
      %1338 = vmin.xlane.f32.xlu0 %v1337
      %v1339 = vpop.xlane.xlu0 %1338
      %v1340 = vcvt.f32.s32 %v1339
      %v1341 = vcvt.f32.s32 %v1335
      %v1342 = vshll.u32 %v1341, 16
      %v1343 = vadd.s32 %v1342, %v1340
      %v1344 = vand.u32 %v1245, 65535
      %v1345 = vshra.s32 %v1245, 16
      %v1346 = vcvt.s32.f32 %v1344
      %v1347 = vcvt.s32.f32 %v1345
      %1348 = vmin.xlane.f32.xlu0 %v1347
      %v1349 = vpop.xlane.xlu0 %1348
      %vm1350 = vcmp.eq.f32.partialorder %v1347, %v1349
      %v1351 = vsel %vm1350, %v1346, inf
      %1352 = vmin.xlane.f32.xlu0 %v1351
      %v1353 = vpop.xlane.xlu0 %1352
      %v1354 = vcvt.f32.s32 %v1353
      %v1355 = vcvt.f32.s32 %v1349
      %v1356 = vshll.u32 %v1355, 16
      %v1357 = vadd.s32 %v1356, %v1354
      %vm1358 = vcmp.eq.s32.totalorder %v1238, %v1259
      %vm1359 = vcmp.eq.s32.totalorder %v1239, %v1273
      %vm1360 = vcmp.eq.s32.totalorder %v1240, %v1287
      %vm1361 = vcmp.eq.s32.totalorder %v1241, %v1301
      %vm1362 = vcmp.eq.s32.totalorder %v1242, %v1315
      %vm1363 = vcmp.eq.s32.totalorder %v1243, %v1329
      %vm1364 = vcmp.eq.s32.totalorder %v1244, %v1343
      %vm1365 = vcmp.eq.s32.totalorder %v1245, %v1357
      %v1366 = vsel %vm1358, 1, 0
      %v1367 = vsel %vm1359, 1, 0
      %v1368 = vsel %vm1360, 1, 0
      %v1369 = vsel %vm1361, 1, 0
      %v1370 = vsel %vm1362, 1, 0
      %v1371 = vsel %vm1363, 1, 0
      %v1372 = vsel %vm1364, 1, 0
      %v1373 = vsel %vm1365, 1, 0
      %v1374 = vcvt.s32.f32 %v1366
      %v1375 = vcvt.s32.f32 %v1367
      %v1376 = vcvt.s32.f32 %v1368
      %v1377 = vcvt.s32.f32 %v1369
      %v1378 = vcvt.s32.f32 %v1370
      %v1379 = vcvt.s32.f32 %v1371
      %v1380 = vcvt.s32.f32 %v1372
      %v1381 = vcvt.s32.f32 %v1373
      %v1382 = vlaneseq
      %v1383 = vshrl.u32 %v1382, 7
      %v1384 = vsub.s32 3, %v1383
      %v1385 = vrot.slane %v470, %v1384
      %1386 = vmatprep.subr.mxu0 0.0
      %1387 = vmatpush1.msra.mxu0 %v454
      %1388 = vmatprep.subr.mxu0 0.0
      %1389 = vmatpush1.msra.mxu0 %v455
      %1390 = vmatprep.subr.mxu0 0.0
      %1391 = vmatpush1.msra.mxu0 %v456
      %1392 = vmatprep.subr.mxu0 0.0
      %1393 = vmatpush1.msra.mxu0 %v457
      %1394 = vmatprep.subr.mxu0 0.0
      %1395 = vmatpush1.msra.mxu0 %v458
      %1396 = vmatprep.subr.mxu0 0.0
      %1397 = vmatpush1.msra.mxu0 %v459
      %1398 = vmatprep.subr.mxu0 0.0
      %1399 = vmatpush1.msra.mxu0 %v460
      %1400 = vmatprep.subr.mxu0 0.0
      %1401 = vmatpush1.msra.mxu0 %v461
      %1402 = vmatprep.subr.mxu0 0.0
      %1403 = vmatpush1.msra.mxu0 %v462
      %1404 = vmatprep.subr.mxu0 0.0
      %1405 = vmatpush1.msra.mxu0 %v463
      %1406 = vmatprep.subr.mxu0 0.0
      %1407 = vmatpush1.msra.mxu0 %v464
      %1408 = vmatprep.subr.mxu0 0.0
      %1409 = vmatpush1.msra.mxu0 %v465
      %1410 = vmatprep.subr.mxu0 0.0
      %1411 = vmatpush1.msra.mxu0 %v466
      %1412 = vmatprep.subr.mxu0 0.0
      %1413 = vmatpush1.msra.mxu0 %v467
      %1414 = vmatprep.subr.mxu0 0.0
      %1415 = vmatpush1.msra.mxu0 %v468
      %1416 = vmatprep.subr.mxu0 0.0
      %1417 = vmatpush1.msra.mxu0 %v469
      %1418 = vmatprep.subr.mxu0 0.0
      %1419 = vmatpush1.msra.mxu0 0.0
      %1420 = vmatprep.subr.mxu0 0.0
      %1421 = vmatpush1.msra.mxu0 0.0
      %1422 = vmatprep.subr.mxu0 0.0
      %1423 = vmatpush1.msra.mxu0 0.0
      %1424 = vmatprep.subr.mxu0 0.0
      %1425 = vmatpush1.msra.mxu0 0.0
      %1426 = vmatprep.subr.mxu0 0.0
      %1427 = vmatpush1.msra.mxu0 0.0
      %1428 = vmatprep.subr.mxu0 0.0
      %1429 = vmatpush1.msra.mxu0 0.0
      %1430 = vmatprep.subr.mxu0 0.0
      %1431 = vmatpush1.msra.mxu0 0.0
      %1432 = vmatprep.subr.mxu0 0.0
      %1433 = vmatpush1.msra.mxu0 0.0
      %1434 = vmatprep.subr.mxu0 0.0
      %1435 = vmatpush1.msra.mxu0 0.0
      %1436 = vmatprep.subr.mxu0 0.0
      %1437 = vmatpush1.msra.mxu0 0.0
      %1438 = vmatprep.subr.mxu0 0.0
      %1439 = vmatpush1.msra.mxu0 0.0
      %1440 = vmatprep.subr.mxu0 0.0
      %1441 = vmatpush1.msra.mxu0 0.0
      %1442 = vmatprep.subr.mxu0 0.0
      %1443 = vmatpush1.msra.mxu0 0.0
      %1444 = vmatprep.subr.mxu0 0.0
      %1445 = vmatpush1.msra.mxu0 0.0
      %1446 = vmatprep.subr.mxu0 0.0
      %1447 = vmatpush1.msra.mxu0 0.0
      %1448 = vmatprep.subr.mxu0 0.0
      %1449 = vmatpush1.msra.mxu0 0.0
      %1450 = vmatprep.mubr.f32.mxu0 0.0
      %1451 = vmatmul.mubr.f32.gmra.mrb[0].mxu0 %v1374
      %v1452 = vpop.f32.mrb[0].mxu0
      %v1453 = vadd.f32 %v1385, %v1452
      %v1454 = vpop.f32.mrb[0].mxu0
      %1455 = vmatprep.mubr.f32.mxu0 0.0
      %1456 = vmatmul.mubr.f32.gmra.mrb[0].mxu0 %v1375
      %v1457 = vpop.f32.mrb[0].mxu0
      %v1458 = vadd.f32 %v1385, %v1457
      %v1459 = vpop.f32.mrb[0].mxu0
      %1460 = vmatprep.mubr.f32.mxu0 0.0
      %1461 = vmatmul.mubr.f32.gmra.mrb[0].mxu0 %v1376
      %v1462 = vpop.f32.mrb[0].mxu0
      %v1463 = vadd.f32 %v1385, %v1462
      %v1464 = vpop.f32.mrb[0].mxu0
      %1465 = vmatprep.mubr.f32.mxu0 0.0
      %1466 = vmatmul.mubr.f32.gmra.mrb[0].mxu0 %v1377
      %v1467 = vpop.f32.mrb[0].mxu0
      %v1468 = vadd.f32 %v1385, %v1467
      %v1469 = vpop.f32.mrb[0].mxu0
      %1470 = vmatprep.mubr.f32.mxu0 0.0
      %1471 = vmatmul.mubr.f32.gmra.mrb[0].mxu0 %v1378
      %v1472 = vpop.f32.mrb[0].mxu0
      %v1473 = vadd.f32 %v1385, %v1472
      %v1474 = vpop.f32.mrb[0].mxu0
      %1475 = vmatprep.mubr.f32.mxu0 0.0
      %1476 = vmatmul.mubr.f32.gmra.mrb[0].mxu0 %v1379
      %v1477 = vpop.f32.mrb[0].mxu0
      %v1478 = vadd.f32 %v1385, %v1477
      %v1479 = vpop.f32.mrb[0].mxu0
      %1480 = vmatprep.mubr.f32.mxu0 0.0
      %1481 = vmatmul.mubr.f32.gmra.mrb[0].mxu0 %v1380
      %v1482 = vpop.f32.mrb[0].mxu0
      %v1483 = vadd.f32 %v1385, %v1482
      %v1484 = vpop.f32.mrb[0].mxu0
      %1485 = vmatprep.mubr.f32.mxu0 0.0
      %1486 = vmatmul.mubr.f32.gmra.mrb[0].mxu0 %v1381
      %v1487 = vpop.f32.mrb[0].mxu0
      %v1488 = vadd.f32 %v1385, %v1487
      %v1489 = vpop.f32.mrb[0].mxu0
      %1490 = vdwg.mxu0
      %v1491 = vmax.f32 %v1230, %v1453
      %v1492 = vmax.f32 %v1231, %v1458
      %v1493 = vmax.f32 %v1232, %v1463
      %v1494 = vmax.f32 %v1233, %v1468
      %v1495 = vmax.f32 %v1234, %v1473
      %v1496 = vmax.f32 %v1235, %v1478
      %v1497 = vmax.f32 %v1236, %v1483
      %v1498 = vmax.f32 %v1237, %v1488
      %v1499 = vsel %vm1358, 2147483647, %v1238
      %v1500 = vsel %vm1359, 2147483647, %v1239
      %v1501 = vsel %vm1360, 2147483647, %v1240
      %v1502 = vsel %vm1361, 2147483647, %v1241
      %v1503 = vsel %vm1362, 2147483647, %v1242
      %v1504 = vsel %vm1363, 2147483647, %v1243
      %v1505 = vsel %vm1364, 2147483647, %v1244
      %v1506 = vsel %vm1365, 2147483647, %v1245
      %v1507 = vand.u32 %v1499, 65535
      %v1508 = vshra.s32 %v1499, 16
      %v1509 = vcvt.s32.f32 %v1507
      %v1510 = vcvt.s32.f32 %v1508
      %1511 = vmin.xlane.f32.xlu0 %v1510
      %v1512 = vpop.xlane.xlu0 %1511
      %vm1513 = vcmp.eq.f32.partialorder %v1510, %v1512
      %v1514 = vsel %vm1513, %v1509, inf
      %1515 = vmin.xlane.f32.xlu0 %v1514
      %v1516 = vpop.xlane.xlu0 %1515
      %v1517 = vcvt.f32.s32 %v1516
      %v1518 = vcvt.f32.s32 %v1512
      %v1519 = vshll.u32 %v1518, 16
      %v1520 = vadd.s32 %v1519, %v1517
      %v1521 = vand.u32 %v1500, 65535
      %v1522 = vshra.s32 %v1500, 16
      %v1523 = vcvt.s32.f32 %v1521
      %v1524 = vcvt.s32.f32 %v1522
      %1525 = vmin.xlane.f32.xlu0 %v1524
      %v1526 = vpop.xlane.xlu0 %1525
      %vm1527 = vcmp.eq.f32.partialorder %v1524, %v1526
      %v1528 = vsel %vm1527, %v1523, inf
      %1529 = vmin.xlane.f32.xlu0 %v1528
      %v1530 = vpop.xlane.xlu0 %1529
      %v1531 = vcvt.f32.s32 %v1530
      %v1532 = vcvt.f32.s32 %v1526
      %v1533 = vshll.u32 %v1532, 16
      %v1534 = vadd.s32 %v1533, %v1531
      %v1535 = vand.u32 %v1501, 65535
      %v1536 = vshra.s32 %v1501, 16
      %v1537 = vcvt.s32.f32 %v1535
      %v1538 = vcvt.s32.f32 %v1536
      %1539 = vmin.xlane.f32.xlu0 %v1538
      %v1540 = vpop.xlane.xlu0 %1539
      %vm1541 = vcmp.eq.f32.partialorder %v1538, %v1540
      %v1542 = vsel %vm1541, %v1537, inf
      %1543 = vmin.xlane.f32.xlu0 %v1542
      %v1544 = vpop.xlane.xlu0 %1543
      %v1545 = vcvt.f32.s32 %v1544
      %v1546 = vcvt.f32.s32 %v1540
      %v1547 = vshll.u32 %v1546, 16
      %v1548 = vadd.s32 %v1547, %v1545
      %v1549 = vand.u32 %v1502, 65535
      %v1550 = vshra.s32 %v1502, 16
      %v1551 = vcvt.s32.f32 %v1549
      %v1552 = vcvt.s32.f32 %v1550
      %1553 = vmin.xlane.f32.xlu0 %v1552
      %v1554 = vpop.xlane.xlu0 %1553
      %vm1555 = vcmp.eq.f32.partialorder %v1552, %v1554
      %v1556 = vsel %vm1555, %v1551, inf
      %1557 = vmin.xlane.f32.xlu0 %v1556
      %v1558 = vpop.xlane.xlu0 %1557
      %v1559 = vcvt.f32.s32 %v1558
      %v1560 = vcvt.f32.s32 %v1554
      %v1561 = vshll.u32 %v1560, 16
      %v1562 = vadd.s32 %v1561, %v1559
      %v1563 = vand.u32 %v1503, 65535
      %v1564 = vshra.s32 %v1503, 16
      %v1565 = vcvt.s32.f32 %v1563
      %v1566 = vcvt.s32.f32 %v1564
      %1567 = vmin.xlane.f32.xlu0 %v1566
      %v1568 = vpop.xlane.xlu0 %1567
      %vm1569 = vcmp.eq.f32.partialorder %v1566, %v1568
      %v1570 = vsel %vm1569, %v1565, inf
      %1571 = vmin.xlane.f32.xlu0 %v1570
      %v1572 = vpop.xlane.xlu0 %1571
      %v1573 = vcvt.f32.s32 %v1572
      %v1574 = vcvt.f32.s32 %v1568
      %v1575 = vshll.u32 %v1574, 16
      %v1576 = vadd.s32 %v1575, %v1573
      %v1577 = vand.u32 %v1504, 65535
      %v1578 = vshra.s32 %v1504, 16
      %v1579 = vcvt.s32.f32 %v1577
      %v1580 = vcvt.s32.f32 %v1578
      %1581 = vmin.xlane.f32.xlu0 %v1580
      %v1582 = vpop.xlane.xlu0 %1581
      %vm1583 = vcmp.eq.f32.partialorder %v1580, %v1582
      %v1584 = vsel %vm1583, %v1579, inf
      %1585 = vmin.xlane.f32.xlu0 %v1584
      %v1586 = vpop.xlane.xlu0 %1585
      %v1587 = vcvt.f32.s32 %v1586
      %v1588 = vcvt.f32.s32 %v1582
      %v1589 = vshll.u32 %v1588, 16
      %v1590 = vadd.s32 %v1589, %v1587
      %v1591 = vand.u32 %v1505, 65535
      %v1592 = vshra.s32 %v1505, 16
      %v1593 = vcvt.s32.f32 %v1591
      %v1594 = vcvt.s32.f32 %v1592
      %1595 = vmin.xlane.f32.xlu0 %v1594
      %v1596 = vpop.xlane.xlu0 %1595
      %vm1597 = vcmp.eq.f32.partialorder %v1594, %v1596
      %v1598 = vsel %vm1597, %v1593, inf
      %1599 = vmin.xlane.f32.xlu0 %v1598
      %v1600 = vpop.xlane.xlu0 %1599
      %v1601 = vcvt.f32.s32 %v1600
      %v1602 = vcvt.f32.s32 %v1596
      %v1603 = vshll.u32 %v1602, 16
      %v1604 = vadd.s32 %v1603, %v1601
      %v1605 = vand.u32 %v1506, 65535
      %v1606 = vshra.s32 %v1506, 16
      %v1607 = vcvt.s32.f32 %v1605
      %v1608 = vcvt.s32.f32 %v1606
      %1609 = vmin.xlane.f32.xlu0 %v1608
      %v1610 = vpop.xlane.xlu0 %1609
      %vm1611 = vcmp.eq.f32.partialorder %v1608, %v1610
      %v1612 = vsel %vm1611, %v1607, inf
      %1613 = vmin.xlane.f32.xlu0 %v1612
      %v1614 = vpop.xlane.xlu0 %1613
      %v1615 = vcvt.f32.s32 %v1614
      %v1616 = vcvt.f32.s32 %v1610
      %v1617 = vshll.u32 %v1616, 16
      %v1618 = vadd.s32 %v1617, %v1615
      %vm1619 = vcmp.eq.s32.totalorder %v1499, %v1520
      %vm1620 = vcmp.eq.s32.totalorder %v1500, %v1534
      %vm1621 = vcmp.eq.s32.totalorder %v1501, %v1548
      %vm1622 = vcmp.eq.s32.totalorder %v1502, %v1562
      %vm1623 = vcmp.eq.s32.totalorder %v1503, %v1576
      %vm1624 = vcmp.eq.s32.totalorder %v1504, %v1590
      %vm1625 = vcmp.eq.s32.totalorder %v1505, %v1604
      %vm1626 = vcmp.eq.s32.totalorder %v1506, %v1618
      %v1627 = vsel %vm1619, 1, 0
      %v1628 = vsel %vm1620, 1, 0
      %v1629 = vsel %vm1621, 1, 0
      %v1630 = vsel %vm1622, 1, 0
      %v1631 = vsel %vm1623, 1, 0
      %v1632 = vsel %vm1624, 1, 0
      %v1633 = vsel %vm1625, 1, 0
      %v1634 = vsel %vm1626, 1, 0
      %v1635 = vcvt.s32.f32 %v1627
      %v1636 = vcvt.s32.f32 %v1628
      %v1637 = vcvt.s32.f32 %v1629
      %v1638 = vcvt.s32.f32 %v1630
      %v1639 = vcvt.s32.f32 %v1631
      %v1640 = vcvt.s32.f32 %v1632
      %v1641 = vcvt.s32.f32 %v1633
      %v1642 = vcvt.s32.f32 %v1634
      %v1643 = vlaneseq
      %v1644 = vshrl.u32 %v1643, 7
      %v1645 = vsub.s32 4, %v1644
      %v1646 = vrot.slane %v470, %v1645
      %1647 = vmatprep.subr.mxu0 0.0
      %1648 = vmatpush1.msra.mxu0 %v454
      %1649 = vmatprep.subr.mxu0 0.0
      %1650 = vmatpush1.msra.mxu0 %v455
      %1651 = vmatprep.subr.mxu0 0.0
      %1652 = vmatpush1.msra.mxu0 %v456
      %1653 = vmatprep.subr.mxu0 0.0
      %1654 = vmatpush1.msra.mxu0 %v457
      %1655 = vmatprep.subr.mxu0 0.0
      %1656 = vmatpush1.msra.mxu0 %v458
      %1657 = vmatprep.subr.mxu0 0.0
      %1658 = vmatpush1.msra.mxu0 %v459
      %1659 = vmatprep.subr.mxu0 0.0
      %1660 = vmatpush1.msra.mxu0 %v460
      %1661 = vmatprep.subr.mxu0 0.0
      %1662 = vmatpush1.msra.mxu0 %v461
      %1663 = vmatprep.subr.mxu0 0.0
      %1664 = vmatpush1.msra.mxu0 %v462
      %1665 = vmatprep.subr.mxu0 0.0
      %1666 = vmatpush1.msra.mxu0 %v463
      %1667 = vmatprep.subr.mxu0 0.0
      %1668 = vmatpush1.msra.mxu0 %v464
      %1669 = vmatprep.subr.mxu0 0.0
      %1670 = vmatpush1.msra.mxu0 %v465
      %1671 = vmatprep.subr.mxu0 0.0
      %1672 = vmatpush1.msra.mxu0 %v466
      %1673 = vmatprep.subr.mxu0 0.0
      %1674 = vmatpush1.msra.mxu0 %v467
      %1675 = vmatprep.subr.mxu0 0.0
      %1676 = vmatpush1.msra.mxu0 %v468
      %1677 = vmatprep.subr.mxu0 0.0
      %1678 = vmatpush1.msra.mxu0 %v469
      %1679 = vmatprep.subr.mxu0 0.0
      %1680 = vmatpush1.msra.mxu0 0.0
      %1681 = vmatprep.subr.mxu0 0.0
      %1682 = vmatpush1.msra.mxu0 0.0
      %1683 = vmatprep.subr.mxu0 0.0
      %1684 = vmatpush1.msra.mxu0 0.0
      %1685 = vmatprep.subr.mxu0 0.0
      %1686 = vmatpush1.msra.mxu0 0.0
      %1687 = vmatprep.subr.mxu0 0.0
      %1688 = vmatpush1.msra.mxu0 0.0
      %1689 = vmatprep.subr.mxu0 0.0
      %1690 = vmatpush1.msra.mxu0 0.0
      %1691 = vmatprep.subr.mxu0 0.0
      %1692 = vmatpush1.msra.mxu0 0.0
      %1693 = vmatprep.subr.mxu0 0.0
      %1694 = vmatpush1.msra.mxu0 0.0
      %1695 = vmatprep.subr.mxu0 0.0
      %1696 = vmatpush1.msra.mxu0 0.0
      %1697 = vmatprep.subr.mxu0 0.0
      %1698 = vmatpush1.msra.mxu0 0.0
      %1699 = vmatprep.subr.mxu0 0.0
      %1700 = vmatpush1.msra.mxu0 0.0
      %1701 = vmatprep.subr.mxu0 0.0
      %1702 = vmatpush1.msra.mxu0 0.0
      %1703 = vmatprep.subr.mxu0 0.0
      %1704 = vmatpush1.msra.mxu0 0.0
      %1705 = vmatprep.subr.mxu0 0.0
      %1706 = vmatpush1.msra.mxu0 0.0
      %1707 = vmatprep.subr.mxu0 0.0
      %1708 = vmatpush1.msra.mxu0 0.0
      %1709 = vmatprep.subr.mxu0 0.0
      %1710 = vmatpush1.msra.mxu0 0.0
      %1711 = vmatprep.mubr.f32.mxu0 0.0
      %1712 = vmatmul.mubr.f32.gmra.mrb[0].mxu0 %v1635
      %v1713 = vpop.f32.mrb[0].mxu0
      %v1714 = vadd.f32 %v1646, %v1713
      %v1715 = vpop.f32.mrb[0].mxu0
      %1716 = vmatprep.mubr.f32.mxu0 0.0
      %1717 = vmatmul.mubr.f32.gmra.mrb[0].mxu0 %v1636
      %v1718 = vpop.f32.mrb[0].mxu0
      %v1719 = vadd.f32 %v1646, %v1718
      %v1720 = vpop.f32.mrb[0].mxu0
      %1721 = vmatprep.mubr.f32.mxu0 0.0
      %1722 = vmatmul.mubr.f32.gmra.mrb[0].mxu0 %v1637
      %v1723 = vpop.f32.mrb[0].mxu0
      %v1724 = vadd.f32 %v1646, %v1723
      %v1725 = vpop.f32.mrb[0].mxu0
      %1726 = vmatprep.mubr.f32.mxu0 0.0
      %1727 = vmatmul.mubr.f32.gmra.mrb[0].mxu0 %v1638
      %v1728 = vpop.f32.mrb[0].mxu0
      %v1729 = vadd.f32 %v1646, %v1728
      %v1730 = vpop.f32.mrb[0].mxu0
      %1731 = vmatprep.mubr.f32.mxu0 0.0
      %1732 = vmatmul.mubr.f32.gmra.mrb[0].mxu0 %v1639
      %v1733 = vpop.f32.mrb[0].mxu0
      %v1734 = vadd.f32 %v1646, %v1733
      %v1735 = vpop.f32.mrb[0].mxu0
      %1736 = vmatprep.mubr.f32.mxu0 0.0
      %1737 = vmatmul.mubr.f32.gmra.mrb[0].mxu0 %v1640
      %v1738 = vpop.f32.mrb[0].mxu0
      %v1739 = vadd.f32 %v1646, %v1738
      %v1740 = vpop.f32.mrb[0].mxu0
      %1741 = vmatprep.mubr.f32.mxu0 0.0
      %1742 = vmatmul.mubr.f32.gmra.mrb[0].mxu0 %v1641
      %v1743 = vpop.f32.mrb[0].mxu0
      %v1744 = vadd.f32 %v1646, %v1743
      %v1745 = vpop.f32.mrb[0].mxu0
      %1746 = vmatprep.mubr.f32.mxu0 0.0
      %1747 = vmatmul.mubr.f32.gmra.mrb[0].mxu0 %v1642
      %v1748 = vpop.f32.mrb[0].mxu0
      %v1749 = vadd.f32 %v1646, %v1748
      %v1750 = vpop.f32.mrb[0].mxu0
      %1751 = vdwg.mxu0
      %v1752 = vmax.f32 %v1491, %v1714
      %v1753 = vmax.f32 %v1492, %v1719
      %v1754 = vmax.f32 %v1493, %v1724
      %v1755 = vmax.f32 %v1494, %v1729
      %v1756 = vmax.f32 %v1495, %v1734
      %v1757 = vmax.f32 %v1496, %v1739
      %v1758 = vmax.f32 %v1497, %v1744
      %v1759 = vmax.f32 %v1498, %v1749
      %v1760 = vsel %vm1619, 2147483647, %v1499
      %v1761 = vsel %vm1620, 2147483647, %v1500
      %v1762 = vsel %vm1621, 2147483647, %v1501
      %v1763 = vsel %vm1622, 2147483647, %v1502
      %v1764 = vsel %vm1623, 2147483647, %v1503
      %v1765 = vsel %vm1624, 2147483647, %v1504
      %v1766 = vsel %vm1625, 2147483647, %v1505
      %v1767 = vsel %vm1626, 2147483647, %v1506
      %v1768 = vand.u32 %v1760, 65535
      %v1769 = vshra.s32 %v1760, 16
      %v1770 = vcvt.s32.f32 %v1768
      %v1771 = vcvt.s32.f32 %v1769
      %1772 = vmin.xlane.f32.xlu0 %v1771
      %v1773 = vpop.xlane.xlu0 %1772
      %vm1774 = vcmp.eq.f32.partialorder %v1771, %v1773
      %v1775 = vsel %vm1774, %v1770, inf
      %1776 = vmin.xlane.f32.xlu0 %v1775
      %v1777 = vpop.xlane.xlu0 %1776
      %v1778 = vcvt.f32.s32 %v1777
      %v1779 = vcvt.f32.s32 %v1773
      %v1780 = vshll.u32 %v1779, 16
      %v1781 = vadd.s32 %v1780, %v1778
      %v1782 = vand.u32 %v1761, 65535
      %v1783 = vshra.s32 %v1761, 16
      %v1784 = vcvt.s32.f32 %v1782
      %v1785 = vcvt.s32.f32 %v1783
      %1786 = vmin.xlane.f32.xlu0 %v1785
      %v1787 = vpop.xlane.xlu0 %1786
      %vm1788 = vcmp.eq.f32.partialorder %v1785, %v1787
      %v1789 = vsel %vm1788, %v1784, inf
      %1790 = vmin.xlane.f32.xlu0 %v1789
      %v1791 = vpop.xlane.xlu0 %1790
      %v1792 = vcvt.f32.s32 %v1791
      %v1793 = vcvt.f32.s32 %v1787
      %v1794 = vshll.u32 %v1793, 16
      %v1795 = vadd.s32 %v1794, %v1792
      %v1796 = vand.u32 %v1762, 65535
      %v1797 = vshra.s32 %v1762, 16
      %v1798 = vcvt.s32.f32 %v1796
      %v1799 = vcvt.s32.f32 %v1797
      %1800 = vmin.xlane.f32.xlu0 %v1799
      %v1801 = vpop.xlane.xlu0 %1800
      %vm1802 = vcmp.eq.f32.partialorder %v1799, %v1801
      %v1803 = vsel %vm1802, %v1798, inf
      %1804 = vmin.xlane.f32.xlu0 %v1803
      %v1805 = vpop.xlane.xlu0 %1804
      %v1806 = vcvt.f32.s32 %v1805
      %v1807 = vcvt.f32.s32 %v1801
      %v1808 = vshll.u32 %v1807, 16
      %v1809 = vadd.s32 %v1808, %v1806
      %v1810 = vand.u32 %v1763, 65535
      %v1811 = vshra.s32 %v1763, 16
      %v1812 = vcvt.s32.f32 %v1810
      %v1813 = vcvt.s32.f32 %v1811
      %1814 = vmin.xlane.f32.xlu0 %v1813
      %v1815 = vpop.xlane.xlu0 %1814
      %vm1816 = vcmp.eq.f32.partialorder %v1813, %v1815
      %v1817 = vsel %vm1816, %v1812, inf
      %1818 = vmin.xlane.f32.xlu0 %v1817
      %v1819 = vpop.xlane.xlu0 %1818
      %v1820 = vcvt.f32.s32 %v1819
      %v1821 = vcvt.f32.s32 %v1815
      %v1822 = vshll.u32 %v1821, 16
      %v1823 = vadd.s32 %v1822, %v1820
      %v1824 = vand.u32 %v1764, 65535
      %v1825 = vshra.s32 %v1764, 16
      %v1826 = vcvt.s32.f32 %v1824
      %v1827 = vcvt.s32.f32 %v1825
      %1828 = vmin.xlane.f32.xlu0 %v1827
      %v1829 = vpop.xlane.xlu0 %1828
      %vm1830 = vcmp.eq.f32.partialorder %v1827, %v1829
      %v1831 = vsel %vm1830, %v1826, inf
      %1832 = vmin.xlane.f32.xlu0 %v1831
      %v1833 = vpop.xlane.xlu0 %1832
      %v1834 = vcvt.f32.s32 %v1833
      %v1835 = vcvt.f32.s32 %v1829
      %v1836 = vshll.u32 %v1835, 16
      %v1837 = vadd.s32 %v1836, %v1834
      %v1838 = vand.u32 %v1765, 65535
      %v1839 = vshra.s32 %v1765, 16
      %v1840 = vcvt.s32.f32 %v1838
      %v1841 = vcvt.s32.f32 %v1839
      %1842 = vmin.xlane.f32.xlu0 %v1841
      %v1843 = vpop.xlane.xlu0 %1842
      %vm1844 = vcmp.eq.f32.partialorder %v1841, %v1843
      %v1845 = vsel %vm1844, %v1840, inf
      %1846 = vmin.xlane.f32.xlu0 %v1845
      %v1847 = vpop.xlane.xlu0 %1846
      %v1848 = vcvt.f32.s32 %v1847
      %v1849 = vcvt.f32.s32 %v1843
      %v1850 = vshll.u32 %v1849, 16
      %v1851 = vadd.s32 %v1850, %v1848
      %v1852 = vand.u32 %v1766, 65535
      %v1853 = vshra.s32 %v1766, 16
      %v1854 = vcvt.s32.f32 %v1852
      %v1855 = vcvt.s32.f32 %v1853
      %1856 = vmin.xlane.f32.xlu0 %v1855
      %v1857 = vpop.xlane.xlu0 %1856
      %vm1858 = vcmp.eq.f32.partialorder %v1855, %v1857
      %v1859 = vsel %vm1858, %v1854, inf
      %1860 = vmin.xlane.f32.xlu0 %v1859
      %v1861 = vpop.xlane.xlu0 %1860
      %v1862 = vcvt.f32.s32 %v1861
      %v1863 = vcvt.f32.s32 %v1857
      %v1864 = vshll.u32 %v1863, 16
      %v1865 = vadd.s32 %v1864, %v1862
      %v1866 = vand.u32 %v1767, 65535
      %v1867 = vshra.s32 %v1767, 16
      %v1868 = vcvt.s32.f32 %v1866
      %v1869 = vcvt.s32.f32 %v1867
      %1870 = vmin.xlane.f32.xlu0 %v1869
      %v1871 = vpop.xlane.xlu0 %1870
      %vm1872 = vcmp.eq.f32.partialorder %v1869, %v1871
      %v1873 = vsel %vm1872, %v1868, inf
      %1874 = vmin.xlane.f32.xlu0 %v1873
      %v1875 = vpop.xlane.xlu0 %1874
      %v1876 = vcvt.f32.s32 %v1875
      %v1877 = vcvt.f32.s32 %v1871
      %v1878 = vshll.u32 %v1877, 16
      %v1879 = vadd.s32 %v1878, %v1876
      %vm1880 = vcmp.eq.s32.totalorder %v1760, %v1781
      %vm1881 = vcmp.eq.s32.totalorder %v1761, %v1795
      %vm1882 = vcmp.eq.s32.totalorder %v1762, %v1809
      %vm1883 = vcmp.eq.s32.totalorder %v1763, %v1823
      %vm1884 = vcmp.eq.s32.totalorder %v1764, %v1837
      %vm1885 = vcmp.eq.s32.totalorder %v1765, %v1851
      %vm1886 = vcmp.eq.s32.totalorder %v1766, %v1865
      %vm1887 = vcmp.eq.s32.totalorder %v1767, %v1879
      %v1888 = vsel %vm1880, 1, 0
      %v1889 = vsel %vm1881, 1, 0
      %v1890 = vsel %vm1882, 1, 0
      %v1891 = vsel %vm1883, 1, 0
      %v1892 = vsel %vm1884, 1, 0
      %v1893 = vsel %vm1885, 1, 0
      %v1894 = vsel %vm1886, 1, 0
      %v1895 = vsel %vm1887, 1, 0
      %v1896 = vcvt.s32.f32 %v1888
      %v1897 = vcvt.s32.f32 %v1889
      %v1898 = vcvt.s32.f32 %v1890
      %v1899 = vcvt.s32.f32 %v1891
      %v1900 = vcvt.s32.f32 %v1892
      %v1901 = vcvt.s32.f32 %v1893
      %v1902 = vcvt.s32.f32 %v1894
      %v1903 = vcvt.s32.f32 %v1895
      %v1904 = vlaneseq
      %v1905 = vshrl.u32 %v1904, 7
      %v1906 = vsub.s32 5, %v1905
      %v1907 = vrot.slane %v470, %v1906
      %1908 = vmatprep.subr.mxu0 0.0
      %1909 = vmatpush1.msra.mxu0 %v454
      %1910 = vmatprep.subr.mxu0 0.0
      %1911 = vmatpush1.msra.mxu0 %v455
      %1912 = vmatprep.subr.mxu0 0.0
      %1913 = vmatpush1.msra.mxu0 %v456
      %1914 = vmatprep.subr.mxu0 0.0
      %1915 = vmatpush1.msra.mxu0 %v457
      %1916 = vmatprep.subr.mxu0 0.0
      %1917 = vmatpush1.msra.mxu0 %v458
      %1918 = vmatprep.subr.mxu0 0.0
      %1919 = vmatpush1.msra.mxu0 %v459
      %1920 = vmatprep.subr.mxu0 0.0
      %1921 = vmatpush1.msra.mxu0 %v460
      %1922 = vmatprep.subr.mxu0 0.0
      %1923 = vmatpush1.msra.mxu0 %v461
      %1924 = vmatprep.subr.mxu0 0.0
      %1925 = vmatpush1.msra.mxu0 %v462
      %1926 = vmatprep.subr.mxu0 0.0
      %1927 = vmatpush1.msra.mxu0 %v463
      %1928 = vmatprep.subr.mxu0 0.0
      %1929 = vmatpush1.msra.mxu0 %v464
      %1930 = vmatprep.subr.mxu0 0.0
      %1931 = vmatpush1.msra.mxu0 %v465
      %1932 = vmatprep.subr.mxu0 0.0
      %1933 = vmatpush1.msra.mxu0 %v466
      %1934 = vmatprep.subr.mxu0 0.0
      %1935 = vmatpush1.msra.mxu0 %v467
      %1936 = vmatprep.subr.mxu0 0.0
      %1937 = vmatpush1.msra.mxu0 %v468
      %1938 = vmatprep.subr.mxu0 0.0
      %1939 = vmatpush1.msra.mxu0 %v469
      %1940 = vmatprep.subr.mxu0 0.0
      %1941 = vmatpush1.msra.mxu0 0.0
      %1942 = vmatprep.subr.mxu0 0.0
      %1943 = vmatpush1.msra.mxu0 0.0
      %1944 = vmatprep.subr.mxu0 0.0
      %1945 = vmatpush1.msra.mxu0 0.0
      %1946 = vmatprep.subr.mxu0 0.0
      %1947 = vmatpush1.msra.mxu0 0.0
      %1948 = vmatprep.subr.mxu0 0.0
      %1949 = vmatpush1.msra.mxu0 0.0
      %1950 = vmatprep.subr.mxu0 0.0
      %1951 = vmatpush1.msra.mxu0 0.0
      %1952 = vmatprep.subr.mxu0 0.0
      %1953 = vmatpush1.msra.mxu0 0.0
      %1954 = vmatprep.subr.mxu0 0.0
      %1955 = vmatpush1.msra.mxu0 0.0
      %1956 = vmatprep.subr.mxu0 0.0
      %1957 = vmatpush1.msra.mxu0 0.0
      %1958 = vmatprep.subr.mxu0 0.0
      %1959 = vmatpush1.msra.mxu0 0.0
      %1960 = vmatprep.subr.mxu0 0.0
      %1961 = vmatpush1.msra.mxu0 0.0
      %1962 = vmatprep.subr.mxu0 0.0
      %1963 = vmatpush1.msra.mxu0 0.0
      %1964 = vmatprep.subr.mxu0 0.0
      %1965 = vmatpush1.msra.mxu0 0.0
      %1966 = vmatprep.subr.mxu0 0.0
      %1967 = vmatpush1.msra.mxu0 0.0
      %1968 = vmatprep.subr.mxu0 0.0
      %1969 = vmatpush1.msra.mxu0 0.0
      %1970 = vmatprep.subr.mxu0 0.0
      %1971 = vmatpush1.msra.mxu0 0.0
      %1972 = vmatprep.mubr.f32.mxu0 0.0
      %1973 = vmatmul.mubr.f32.gmra.mrb[0].mxu0 %v1896
      %v1974 = vpop.f32.mrb[0].mxu0
      %v1975 = vadd.f32 %v1907, %v1974
      %v1976 = vpop.f32.mrb[0].mxu0
      %1977 = vmatprep.mubr.f32.mxu0 0.0
      %1978 = vmatmul.mubr.f32.gmra.mrb[0].mxu0 %v1897
      %v1979 = vpop.f32.mrb[0].mxu0
      %v1980 = vadd.f32 %v1907, %v1979
      %v1981 = vpop.f32.mrb[0].mxu0
      %1982 = vmatprep.mubr.f32.mxu0 0.0
      %1983 = vmatmul.mubr.f32.gmra.mrb[0].mxu0 %v1898
      %v1984 = vpop.f32.mrb[0].mxu0
      %v1985 = vadd.f32 %v1907, %v1984
      %v1986 = vpop.f32.mrb[0].mxu0
      %1987 = vmatprep.mubr.f32.mxu0 0.0
      %1988 = vmatmul.mubr.f32.gmra.mrb[0].mxu0 %v1899
      %v1989 = vpop.f32.mrb[0].mxu0
      %v1990 = vadd.f32 %v1907, %v1989
      %v1991 = vpop.f32.mrb[0].mxu0
      %1992 = vmatprep.mubr.f32.mxu0 0.0
      %1993 = vmatmul.mubr.f32.gmra.mrb[0].mxu0 %v1900
      %v1994 = vpop.f32.mrb[0].mxu0
      %v1995 = vadd.f32 %v1907, %v1994
      %v1996 = vpop.f32.mrb[0].mxu0
      %1997 = vmatprep.mubr.f32.mxu0 0.0
      %1998 = vmatmul.mubr.f32.gmra.mrb[0].mxu0 %v1901
      %v1999 = vpop.f32.mrb[0].mxu0
      %v2000 = vadd.f32 %v1907, %v1999
      %v2001 = vpop.f32.mrb[0].mxu0
      %2002 = vmatprep.mubr.f32.mxu0 0.0
      %2003 = vmatmul.mubr.f32.gmra.mrb[0].mxu0 %v1902
      %v2004 = vpop.f32.mrb[0].mxu0
      %v2005 = vadd.f32 %v1907, %v2004
      %v2006 = vpop.f32.mrb[0].mxu0
      %2007 = vmatprep.mubr.f32.mxu0 0.0
      %2008 = vmatmul.mubr.f32.gmra.mrb[0].mxu0 %v1903
      %v2009 = vpop.f32.mrb[0].mxu0
      %v2010 = vadd.f32 %v1907, %v2009
      %v2011 = vpop.f32.mrb[0].mxu0
      %2012 = vdwg.mxu0
      %v2013 = vmax.f32 %v1752, %v1975
      %v2014 = vmax.f32 %v1753, %v1980
      %v2015 = vmax.f32 %v1754, %v1985
      %v2016 = vmax.f32 %v1755, %v1990
      %v2017 = vmax.f32 %v1756, %v1995
      %v2018 = vmax.f32 %v1757, %v2000
      %v2019 = vmax.f32 %v1758, %v2005
      %v2020 = vmax.f32 %v1759, %v2010
      %v2021 = vsel %vm1880, 2147483647, %v1760
      %v2022 = vsel %vm1881, 2147483647, %v1761
      %v2023 = vsel %vm1882, 2147483647, %v1762
      %v2024 = vsel %vm1883, 2147483647, %v1763
      %v2025 = vsel %vm1884, 2147483647, %v1764
      %v2026 = vsel %vm1885, 2147483647, %v1765
      %v2027 = vsel %vm1886, 2147483647, %v1766
      %v2028 = vsel %vm1887, 2147483647, %v1767
      %v2029 = vand.u32 %v2021, 65535
      %v2030 = vshra.s32 %v2021, 16
      %v2031 = vcvt.s32.f32 %v2029
      %v2032 = vcvt.s32.f32 %v2030
      %2033 = vmin.xlane.f32.xlu0 %v2032
      %v2034 = vpop.xlane.xlu0 %2033
      %vm2035 = vcmp.eq.f32.partialorder %v2032, %v2034
      %v2036 = vsel %vm2035, %v2031, inf
      %2037 = vmin.xlane.f32.xlu0 %v2036
      %v2038 = vpop.xlane.xlu0 %2037
      %v2039 = vcvt.f32.s32 %v2038
      %v2040 = vcvt.f32.s32 %v2034
      %v2041 = vshll.u32 %v2040, 16
      %v2042 = vadd.s32 %v2041, %v2039
      %v2043 = vand.u32 %v2022, 65535
      %v2044 = vshra.s32 %v2022, 16
      %v2045 = vcvt.s32.f32 %v2043
      %v2046 = vcvt.s32.f32 %v2044
      %2047 = vmin.xlane.f32.xlu0 %v2046
      %v2048 = vpop.xlane.xlu0 %2047
      %vm2049 = vcmp.eq.f32.partialorder %v2046, %v2048
      %v2050 = vsel %vm2049, %v2045, inf
      %2051 = vmin.xlane.f32.xlu0 %v2050
      %v2052 = vpop.xlane.xlu0 %2051
      %v2053 = vcvt.f32.s32 %v2052
      %v2054 = vcvt.f32.s32 %v2048
      %v2055 = vshll.u32 %v2054, 16
      %v2056 = vadd.s32 %v2055, %v2053
      %v2057 = vand.u32 %v2023, 65535
      %v2058 = vshra.s32 %v2023, 16
      %v2059 = vcvt.s32.f32 %v2057
      %v2060 = vcvt.s32.f32 %v2058
      %2061 = vmin.xlane.f32.xlu0 %v2060
      %v2062 = vpop.xlane.xlu0 %2061
      %vm2063 = vcmp.eq.f32.partialorder %v2060, %v2062
      %v2064 = vsel %vm2063, %v2059, inf
      %2065 = vmin.xlane.f32.xlu0 %v2064
      %v2066 = vpop.xlane.xlu0 %2065
      %v2067 = vcvt.f32.s32 %v2066
      %v2068 = vcvt.f32.s32 %v2062
      %v2069 = vshll.u32 %v2068, 16
      %v2070 = vadd.s32 %v2069, %v2067
      %v2071 = vand.u32 %v2024, 65535
      %v2072 = vshra.s32 %v2024, 16
      %v2073 = vcvt.s32.f32 %v2071
      %v2074 = vcvt.s32.f32 %v2072
      %2075 = vmin.xlane.f32.xlu0 %v2074
      %v2076 = vpop.xlane.xlu0 %2075
      %vm2077 = vcmp.eq.f32.partialorder %v2074, %v2076
      %v2078 = vsel %vm2077, %v2073, inf
      %2079 = vmin.xlane.f32.xlu0 %v2078
      %v2080 = vpop.xlane.xlu0 %2079
      %v2081 = vcvt.f32.s32 %v2080
      %v2082 = vcvt.f32.s32 %v2076
      %v2083 = vshll.u32 %v2082, 16
      %v2084 = vadd.s32 %v2083, %v2081
      %v2085 = vand.u32 %v2025, 65535
      %v2086 = vshra.s32 %v2025, 16
      %v2087 = vcvt.s32.f32 %v2085
      %v2088 = vcvt.s32.f32 %v2086
      %2089 = vmin.xlane.f32.xlu0 %v2088
      %v2090 = vpop.xlane.xlu0 %2089
      %vm2091 = vcmp.eq.f32.partialorder %v2088, %v2090
      %v2092 = vsel %vm2091, %v2087, inf
      %2093 = vmin.xlane.f32.xlu0 %v2092
      %v2094 = vpop.xlane.xlu0 %2093
      %v2095 = vcvt.f32.s32 %v2094
      %v2096 = vcvt.f32.s32 %v2090
      %v2097 = vshll.u32 %v2096, 16
      %v2098 = vadd.s32 %v2097, %v2095
      %v2099 = vand.u32 %v2026, 65535
      %v2100 = vshra.s32 %v2026, 16
      %v2101 = vcvt.s32.f32 %v2099
      %v2102 = vcvt.s32.f32 %v2100
      %2103 = vmin.xlane.f32.xlu0 %v2102
      %v2104 = vpop.xlane.xlu0 %2103
      %vm2105 = vcmp.eq.f32.partialorder %v2102, %v2104
      %v2106 = vsel %vm2105, %v2101, inf
      %2107 = vmin.xlane.f32.xlu0 %v2106
      %v2108 = vpop.xlane.xlu0 %2107
      %v2109 = vcvt.f32.s32 %v2108
      %v2110 = vcvt.f32.s32 %v2104
      %v2111 = vshll.u32 %v2110, 16
      %v2112 = vadd.s32 %v2111, %v2109
      %v2113 = vand.u32 %v2027, 65535
      %v2114 = vshra.s32 %v2027, 16
      %v2115 = vcvt.s32.f32 %v2113
      %v2116 = vcvt.s32.f32 %v2114
      %2117 = vmin.xlane.f32.xlu0 %v2116
      %v2118 = vpop.xlane.xlu0 %2117
      %vm2119 = vcmp.eq.f32.partialorder %v2116, %v2118
      %v2120 = vsel %vm2119, %v2115, inf
      %2121 = vmin.xlane.f32.xlu0 %v2120
      %v2122 = vpop.xlane.xlu0 %2121
      %v2123 = vcvt.f32.s32 %v2122
      %v2124 = vcvt.f32.s32 %v2118
      %v2125 = vshll.u32 %v2124, 16
      %v2126 = vadd.s32 %v2125, %v2123
      %v2127 = vand.u32 %v2028, 65535
      %v2128 = vshra.s32 %v2028, 16
      %v2129 = vcvt.s32.f32 %v2127
      %v2130 = vcvt.s32.f32 %v2128
      %2131 = vmin.xlane.f32.xlu0 %v2130
      %v2132 = vpop.xlane.xlu0 %2131
      %vm2133 = vcmp.eq.f32.partialorder %v2130, %v2132
      %v2134 = vsel %vm2133, %v2129, inf
      %2135 = vmin.xlane.f32.xlu0 %v2134
      %v2136 = vpop.xlane.xlu0 %2135
      %v2137 = vcvt.f32.s32 %v2136
      %v2138 = vcvt.f32.s32 %v2132
      %v2139 = vshll.u32 %v2138, 16
      %v2140 = vadd.s32 %v2139, %v2137
      %vm2141 = vcmp.eq.s32.totalorder %v2021, %v2042
      %vm2142 = vcmp.eq.s32.totalorder %v2022, %v2056
      %vm2143 = vcmp.eq.s32.totalorder %v2023, %v2070
      %vm2144 = vcmp.eq.s32.totalorder %v2024, %v2084
      %vm2145 = vcmp.eq.s32.totalorder %v2025, %v2098
      %vm2146 = vcmp.eq.s32.totalorder %v2026, %v2112
      %vm2147 = vcmp.eq.s32.totalorder %v2027, %v2126
      %vm2148 = vcmp.eq.s32.totalorder %v2028, %v2140
      %v2149 = vsel %vm2141, 1, 0
      %v2150 = vsel %vm2142, 1, 0
      %v2151 = vsel %vm2143, 1, 0
      %v2152 = vsel %vm2144, 1, 0
      %v2153 = vsel %vm2145, 1, 0
      %v2154 = vsel %vm2146, 1, 0
      %v2155 = vsel %vm2147, 1, 0
      %v2156 = vsel %vm2148, 1, 0
      %v2157 = vcvt.s32.f32 %v2149
      %v2158 = vcvt.s32.f32 %v2150
      %v2159 = vcvt.s32.f32 %v2151
      %v2160 = vcvt.s32.f32 %v2152
      %v2161 = vcvt.s32.f32 %v2153
      %v2162 = vcvt.s32.f32 %v2154
      %v2163 = vcvt.s32.f32 %v2155
      %v2164 = vcvt.s32.f32 %v2156
      %v2165 = vlaneseq
      %v2166 = vshrl.u32 %v2165, 7
      %v2167 = vsub.s32 6, %v2166
      %v2168 = vrot.slane %v470, %v2167
      %2169 = vmatprep.subr.mxu0 0.0
      %2170 = vmatpush1.msra.mxu0 %v454
      %2171 = vmatprep.subr.mxu0 0.0
      %2172 = vmatpush1.msra.mxu0 %v455
      %2173 = vmatprep.subr.mxu0 0.0
      %2174 = vmatpush1.msra.mxu0 %v456
      %2175 = vmatprep.subr.mxu0 0.0
      %2176 = vmatpush1.msra.mxu0 %v457
      %2177 = vmatprep.subr.mxu0 0.0
      %2178 = vmatpush1.msra.mxu0 %v458
      %2179 = vmatprep.subr.mxu0 0.0
      %2180 = vmatpush1.msra.mxu0 %v459
      %2181 = vmatprep.subr.mxu0 0.0
      %2182 = vmatpush1.msra.mxu0 %v460
      %2183 = vmatprep.subr.mxu0 0.0
      %2184 = vmatpush1.msra.mxu0 %v461
      %2185 = vmatprep.subr.mxu0 0.0
      %2186 = vmatpush1.msra.mxu0 %v462
      %2187 = vmatprep.subr.mxu0 0.0
      %2188 = vmatpush1.msra.mxu0 %v463
      %2189 = vmatprep.subr.mxu0 0.0
      %2190 = vmatpush1.msra.mxu0 %v464
      %2191 = vmatprep.subr.mxu0 0.0
      %2192 = vmatpush1.msra.mxu0 %v465
      %2193 = vmatprep.subr.mxu0 0.0
      %2194 = vmatpush1.msra.mxu0 %v466
      %2195 = vmatprep.subr.mxu0 0.0
      %2196 = vmatpush1.msra.mxu0 %v467
      %2197 = vmatprep.subr.mxu0 0.0
      %2198 = vmatpush1.msra.mxu0 %v468
      %2199 = vmatprep.subr.mxu0 0.0
      %2200 = vmatpush1.msra.mxu0 %v469
      %2201 = vmatprep.subr.mxu0 0.0
      %2202 = vmatpush1.msra.mxu0 0.0
      %2203 = vmatprep.subr.mxu0 0.0
      %2204 = vmatpush1.msra.mxu0 0.0
      %2205 = vmatprep.subr.mxu0 0.0
      %2206 = vmatpush1.msra.mxu0 0.0
      %2207 = vmatprep.subr.mxu0 0.0
      %2208 = vmatpush1.msra.mxu0 0.0
      %2209 = vmatprep.subr.mxu0 0.0
      %2210 = vmatpush1.msra.mxu0 0.0
      %2211 = vmatprep.subr.mxu0 0.0
      %2212 = vmatpush1.msra.mxu0 0.0
      %2213 = vmatprep.subr.mxu0 0.0
      %2214 = vmatpush1.msra.mxu0 0.0
      %2215 = vmatprep.subr.mxu0 0.0
      %2216 = vmatpush1.msra.mxu0 0.0
      %2217 = vmatprep.subr.mxu0 0.0
      %2218 = vmatpush1.msra.mxu0 0.0
      %2219 = vmatprep.subr.mxu0 0.0
      %2220 = vmatpush1.msra.mxu0 0.0
      %2221 = vmatprep.subr.mxu0 0.0
      %2222 = vmatpush1.msra.mxu0 0.0
      %2223 = vmatprep.subr.mxu0 0.0
      %2224 = vmatpush1.msra.mxu0 0.0
      %2225 = vmatprep.subr.mxu0 0.0
      %2226 = vmatpush1.msra.mxu0 0.0
      %2227 = vmatprep.subr.mxu0 0.0
      %2228 = vmatpush1.msra.mxu0 0.0
      %2229 = vmatprep.subr.mxu0 0.0
      %2230 = vmatpush1.msra.mxu0 0.0
      %2231 = vmatprep.subr.mxu0 0.0
      %2232 = vmatpush1.msra.mxu0 0.0
      %2233 = vmatprep.mubr.f32.mxu0 0.0
      %2234 = vmatmul.mubr.f32.gmra.mrb[0].mxu0 %v2157
      %v2235 = vpop.f32.mrb[0].mxu0
      %v2236 = vadd.f32 %v2168, %v2235
      %v2237 = vpop.f32.mrb[0].mxu0
      %2238 = vmatprep.mubr.f32.mxu0 0.0
      %2239 = vmatmul.mubr.f32.gmra.mrb[0].mxu0 %v2158
      %v2240 = vpop.f32.mrb[0].mxu0
      %v2241 = vadd.f32 %v2168, %v2240
      %v2242 = vpop.f32.mrb[0].mxu0
      %2243 = vmatprep.mubr.f32.mxu0 0.0
      %2244 = vmatmul.mubr.f32.gmra.mrb[0].mxu0 %v2159
      %v2245 = vpop.f32.mrb[0].mxu0
      %v2246 = vadd.f32 %v2168, %v2245
      %v2247 = vpop.f32.mrb[0].mxu0
      %2248 = vmatprep.mubr.f32.mxu0 0.0
      %2249 = vmatmul.mubr.f32.gmra.mrb[0].mxu0 %v2160
      %v2250 = vpop.f32.mrb[0].mxu0
      %v2251 = vadd.f32 %v2168, %v2250
      %v2252 = vpop.f32.mrb[0].mxu0
      %2253 = vmatprep.mubr.f32.mxu0 0.0
      %2254 = vmatmul.mubr.f32.gmra.mrb[0].mxu0 %v2161
      %v2255 = vpop.f32.mrb[0].mxu0
      %v2256 = vadd.f32 %v2168, %v2255
      %v2257 = vpop.f32.mrb[0].mxu0
      %2258 = vmatprep.mubr.f32.mxu0 0.0
      %2259 = vmatmul.mubr.f32.gmra.mrb[0].mxu0 %v2162
      %v2260 = vpop.f32.mrb[0].mxu0
      %v2261 = vadd.f32 %v2168, %v2260
      %v2262 = vpop.f32.mrb[0].mxu0
      %2263 = vmatprep.mubr.f32.mxu0 0.0
      %2264 = vmatmul.mubr.f32.gmra.mrb[0].mxu0 %v2163
      %v2265 = vpop.f32.mrb[0].mxu0
      %v2266 = vadd.f32 %v2168, %v2265
      %v2267 = vpop.f32.mrb[0].mxu0
      %2268 = vmatprep.mubr.f32.mxu0 0.0
      %2269 = vmatmul.mubr.f32.gmra.mrb[0].mxu0 %v2164
      %v2270 = vpop.f32.mrb[0].mxu0
      %v2271 = vadd.f32 %v2168, %v2270
      %v2272 = vpop.f32.mrb[0].mxu0
      %2273 = vdwg.mxu0
      %v2274 = vmax.f32 %v2013, %v2236
      %v2275 = vmax.f32 %v2014, %v2241
      %v2276 = vmax.f32 %v2015, %v2246
      %v2277 = vmax.f32 %v2016, %v2251
      %v2278 = vmax.f32 %v2017, %v2256
      %v2279 = vmax.f32 %v2018, %v2261
      %v2280 = vmax.f32 %v2019, %v2266
      %v2281 = vmax.f32 %v2020, %v2271
      %v2282 = vsel %vm2141, 2147483647, %v2021
      %v2283 = vsel %vm2142, 2147483647, %v2022
      %v2284 = vsel %vm2143, 2147483647, %v2023
      %v2285 = vsel %vm2144, 2147483647, %v2024
      %v2286 = vsel %vm2145, 2147483647, %v2025
      %v2287 = vsel %vm2146, 2147483647, %v2026
      %v2288 = vsel %vm2147, 2147483647, %v2027
      %v2289 = vsel %vm2148, 2147483647, %v2028
      %v2290 = vand.u32 %v2282, 65535
      %v2291 = vshra.s32 %v2282, 16
      %v2292 = vcvt.s32.f32 %v2290
      %v2293 = vcvt.s32.f32 %v2291
      %2294 = vmin.xlane.f32.xlu0 %v2293
      %v2295 = vpop.xlane.xlu0 %2294
      %vm2296 = vcmp.eq.f32.partialorder %v2293, %v2295
      %v2297 = vsel %vm2296, %v2292, inf
      %2298 = vmin.xlane.f32.xlu0 %v2297
      %v2299 = vpop.xlane.xlu0 %2298
      %v2300 = vcvt.f32.s32 %v2299
      %v2301 = vcvt.f32.s32 %v2295
      %v2302 = vshll.u32 %v2301, 16
      %v2303 = vadd.s32 %v2302, %v2300
      %v2304 = vand.u32 %v2283, 65535
      %v2305 = vshra.s32 %v2283, 16
      %v2306 = vcvt.s32.f32 %v2304
      %v2307 = vcvt.s32.f32 %v2305
      %2308 = vmin.xlane.f32.xlu0 %v2307
      %v2309 = vpop.xlane.xlu0 %2308
      %vm2310 = vcmp.eq.f32.partialorder %v2307, %v2309
      %v2311 = vsel %vm2310, %v2306, inf
      %2312 = vmin.xlane.f32.xlu0 %v2311
      %v2313 = vpop.xlane.xlu0 %2312
      %v2314 = vcvt.f32.s32 %v2313
      %v2315 = vcvt.f32.s32 %v2309
      %v2316 = vshll.u32 %v2315, 16
      %v2317 = vadd.s32 %v2316, %v2314
      %v2318 = vand.u32 %v2284, 65535
      %v2319 = vshra.s32 %v2284, 16
      %v2320 = vcvt.s32.f32 %v2318
      %v2321 = vcvt.s32.f32 %v2319
      %2322 = vmin.xlane.f32.xlu0 %v2321
      %v2323 = vpop.xlane.xlu0 %2322
      %vm2324 = vcmp.eq.f32.partialorder %v2321, %v2323
      %v2325 = vsel %vm2324, %v2320, inf
      %2326 = vmin.xlane.f32.xlu0 %v2325
      %v2327 = vpop.xlane.xlu0 %2326
      %v2328 = vcvt.f32.s32 %v2327
      %v2329 = vcvt.f32.s32 %v2323
      %v2330 = vshll.u32 %v2329, 16
      %v2331 = vadd.s32 %v2330, %v2328
      %v2332 = vand.u32 %v2285, 65535
      %v2333 = vshra.s32 %v2285, 16
      %v2334 = vcvt.s32.f32 %v2332
      %v2335 = vcvt.s32.f32 %v2333
      %2336 = vmin.xlane.f32.xlu0 %v2335
      %v2337 = vpop.xlane.xlu0 %2336
      %vm2338 = vcmp.eq.f32.partialorder %v2335, %v2337
      %v2339 = vsel %vm2338, %v2334, inf
      %2340 = vmin.xlane.f32.xlu0 %v2339
      %v2341 = vpop.xlane.xlu0 %2340
      %v2342 = vcvt.f32.s32 %v2341
      %v2343 = vcvt.f32.s32 %v2337
      %v2344 = vshll.u32 %v2343, 16
      %v2345 = vadd.s32 %v2344, %v2342
      %v2346 = vand.u32 %v2286, 65535
      %v2347 = vshra.s32 %v2286, 16
      %v2348 = vcvt.s32.f32 %v2346
      %v2349 = vcvt.s32.f32 %v2347
      %2350 = vmin.xlane.f32.xlu0 %v2349
      %v2351 = vpop.xlane.xlu0 %2350
      %vm2352 = vcmp.eq.f32.partialorder %v2349, %v2351
      %v2353 = vsel %vm2352, %v2348, inf
      %2354 = vmin.xlane.f32.xlu0 %v2353
      %v2355 = vpop.xlane.xlu0 %2354
      %v2356 = vcvt.f32.s32 %v2355
      %v2357 = vcvt.f32.s32 %v2351
      %v2358 = vshll.u32 %v2357, 16
      %v2359 = vadd.s32 %v2358, %v2356
      %v2360 = vand.u32 %v2287, 65535
      %v2361 = vshra.s32 %v2287, 16
      %v2362 = vcvt.s32.f32 %v2360
      %v2363 = vcvt.s32.f32 %v2361
      %2364 = vmin.xlane.f32.xlu0 %v2363
      %v2365 = vpop.xlane.xlu0 %2364
      %vm2366 = vcmp.eq.f32.partialorder %v2363, %v2365
      %v2367 = vsel %vm2366, %v2362, inf
      %2368 = vmin.xlane.f32.xlu0 %v2367
      %v2369 = vpop.xlane.xlu0 %2368
      %v2370 = vcvt.f32.s32 %v2369
      %v2371 = vcvt.f32.s32 %v2365
      %v2372 = vshll.u32 %v2371, 16
      %v2373 = vadd.s32 %v2372, %v2370
      %v2374 = vand.u32 %v2288, 65535
      %v2375 = vshra.s32 %v2288, 16
      %v2376 = vcvt.s32.f32 %v2374
      %v2377 = vcvt.s32.f32 %v2375
      %2378 = vmin.xlane.f32.xlu0 %v2377
      %v2379 = vpop.xlane.xlu0 %2378
      %vm2380 = vcmp.eq.f32.partialorder %v2377, %v2379
      %v2381 = vsel %vm2380, %v2376, inf
      %2382 = vmin.xlane.f32.xlu0 %v2381
      %v2383 = vpop.xlane.xlu0 %2382
      %v2384 = vcvt.f32.s32 %v2383
      %v2385 = vcvt.f32.s32 %v2379
      %v2386 = vshll.u32 %v2385, 16
      %v2387 = vadd.s32 %v2386, %v2384
      %v2388 = vand.u32 %v2289, 65535
      %v2389 = vshra.s32 %v2289, 16
      %v2390 = vcvt.s32.f32 %v2388
      %v2391 = vcvt.s32.f32 %v2389
      %2392 = vmin.xlane.f32.xlu0 %v2391
      %v2393 = vpop.xlane.xlu0 %2392
      %vm2394 = vcmp.eq.f32.partialorder %v2391, %v2393
      %v2395 = vsel %vm2394, %v2390, inf
      %2396 = vmin.xlane.f32.xlu0 %v2395
      %v2397 = vpop.xlane.xlu0 %2396
      %v2398 = vcvt.f32.s32 %v2397
      %v2399 = vcvt.f32.s32 %v2393
      %v2400 = vshll.u32 %v2399, 16
      %v2401 = vadd.s32 %v2400, %v2398
      %vm2402 = vcmp.eq.s32.totalorder %v2282, %v2303
      %vm2403 = vcmp.eq.s32.totalorder %v2283, %v2317
      %vm2404 = vcmp.eq.s32.totalorder %v2284, %v2331
      %vm2405 = vcmp.eq.s32.totalorder %v2285, %v2345
      %vm2406 = vcmp.eq.s32.totalorder %v2286, %v2359
      %vm2407 = vcmp.eq.s32.totalorder %v2287, %v2373
      %vm2408 = vcmp.eq.s32.totalorder %v2288, %v2387
      %vm2409 = vcmp.eq.s32.totalorder %v2289, %v2401
      %v2410 = vsel %vm2402, 1, 0
      %v2411 = vsel %vm2403, 1, 0
      %v2412 = vsel %vm2404, 1, 0
      %v2413 = vsel %vm2405, 1, 0
      %v2414 = vsel %vm2406, 1, 0
      %v2415 = vsel %vm2407, 1, 0
      %v2416 = vsel %vm2408, 1, 0
      %v2417 = vsel %vm2409, 1, 0
      %v2418 = vcvt.s32.f32 %v2410
      %v2419 = vcvt.s32.f32 %v2411
      %v2420 = vcvt.s32.f32 %v2412
      %v2421 = vcvt.s32.f32 %v2413
      %v2422 = vcvt.s32.f32 %v2414
      %v2423 = vcvt.s32.f32 %v2415
      %v2424 = vcvt.s32.f32 %v2416
      %v2425 = vcvt.s32.f32 %v2417
      %v2426 = vlaneseq
      %v2427 = vshrl.u32 %v2426, 7
      %v2428 = vsub.s32 7, %v2427
      %v2429 = vrot.slane %v470, %v2428
      %2430 = vmatprep.subr.mxu0 0.0
      %2431 = vmatpush1.msra.mxu0 %v454
      %2432 = vmatprep.subr.mxu0 0.0
      %2433 = vmatpush1.msra.mxu0 %v455
      %2434 = vmatprep.subr.mxu0 0.0
      %2435 = vmatpush1.msra.mxu0 %v456
      %2436 = vmatprep.subr.mxu0 0.0
      %2437 = vmatpush1.msra.mxu0 %v457
      %2438 = vmatprep.subr.mxu0 0.0
      %2439 = vmatpush1.msra.mxu0 %v458
      %2440 = vmatprep.subr.mxu0 0.0
      %2441 = vmatpush1.msra.mxu0 %v459
      %2442 = vmatprep.subr.mxu0 0.0
      %2443 = vmatpush1.msra.mxu0 %v460
      %2444 = vmatprep.subr.mxu0 0.0
      %2445 = vmatpush1.msra.mxu0 %v461
      %2446 = vmatprep.subr.mxu0 0.0
      %2447 = vmatpush1.msra.mxu0 %v462
      %2448 = vmatprep.subr.mxu0 0.0
      %2449 = vmatpush1.msra.mxu0 %v463
      %2450 = vmatprep.subr.mxu0 0.0
      %2451 = vmatpush1.msra.mxu0 %v464
      %2452 = vmatprep.subr.mxu0 0.0
      %2453 = vmatpush1.msra.mxu0 %v465
      %2454 = vmatprep.subr.mxu0 0.0
      %2455 = vmatpush1.msra.mxu0 %v466
      %2456 = vmatprep.subr.mxu0 0.0
      %2457 = vmatpush1.msra.mxu0 %v467
      %2458 = vmatprep.subr.mxu0 0.0
      %2459 = vmatpush1.msra.mxu0 %v468
      %2460 = vmatprep.subr.mxu0 0.0
      %2461 = vmatpush1.msra.mxu0 %v469
      %2462 = vmatprep.subr.mxu0 0.0
      %2463 = vmatpush1.msra.mxu0 0.0
      %2464 = vmatprep.subr.mxu0 0.0
      %2465 = vmatpush1.msra.mxu0 0.0
      %2466 = vmatprep.subr.mxu0 0.0
      %2467 = vmatpush1.msra.mxu0 0.0
      %2468 = vmatprep.subr.mxu0 0.0
      %2469 = vmatpush1.msra.mxu0 0.0
      %2470 = vmatprep.subr.mxu0 0.0
      %2471 = vmatpush1.msra.mxu0 0.0
      %2472 = vmatprep.subr.mxu0 0.0
      %2473 = vmatpush1.msra.mxu0 0.0
      %2474 = vmatprep.subr.mxu0 0.0
      %2475 = vmatpush1.msra.mxu0 0.0
      %2476 = vmatprep.subr.mxu0 0.0
      %2477 = vmatpush1.msra.mxu0 0.0
      %2478 = vmatprep.subr.mxu0 0.0
      %2479 = vmatpush1.msra.mxu0 0.0
      %2480 = vmatprep.subr.mxu0 0.0
      %2481 = vmatpush1.msra.mxu0 0.0
      %2482 = vmatprep.subr.mxu0 0.0
      %2483 = vmatpush1.msra.mxu0 0.0
      %2484 = vmatprep.subr.mxu0 0.0
      %2485 = vmatpush1.msra.mxu0 0.0
      %2486 = vmatprep.subr.mxu0 0.0
      %2487 = vmatpush1.msra.mxu0 0.0
      %2488 = vmatprep.subr.mxu0 0.0
      %2489 = vmatpush1.msra.mxu0 0.0
      %2490 = vmatprep.subr.mxu0 0.0
      %2491 = vmatpush1.msra.mxu0 0.0
      %2492 = vmatprep.subr.mxu0 0.0
      %2493 = vmatpush1.msra.mxu0 0.0
      %2494 = vmatprep.mubr.f32.mxu0 0.0
      %2495 = vmatmul.mubr.f32.gmra.mrb[0].mxu0 %v2418
      %v2496 = vpop.f32.mrb[0].mxu0
      %v2497 = vadd.f32 %v2429, %v2496
      %v2498 = vpop.f32.mrb[0].mxu0
      %2499 = vmatprep.mubr.f32.mxu0 0.0
      %2500 = vmatmul.mubr.f32.gmra.mrb[0].mxu0 %v2419
      %v2501 = vpop.f32.mrb[0].mxu0
      %v2502 = vadd.f32 %v2429, %v2501
      %v2503 = vpop.f32.mrb[0].mxu0
      %2504 = vmatprep.mubr.f32.mxu0 0.0
      %2505 = vmatmul.mubr.f32.gmra.mrb[0].mxu0 %v2420
      %v2506 = vpop.f32.mrb[0].mxu0
      %v2507 = vadd.f32 %v2429, %v2506
      %v2508 = vpop.f32.mrb[0].mxu0
      %2509 = vmatprep.mubr.f32.mxu0 0.0
      %2510 = vmatmul.mubr.f32.gmra.mrb[0].mxu0 %v2421
      %v2511 = vpop.f32.mrb[0].mxu0
      %v2512 = vadd.f32 %v2429, %v2511
      %v2513 = vpop.f32.mrb[0].mxu0
      %2514 = vmatprep.mubr.f32.mxu0 0.0
      %2515 = vmatmul.mubr.f32.gmra.mrb[0].mxu0 %v2422
      %v2516 = vpop.f32.mrb[0].mxu0
      %v2517 = vadd.f32 %v2429, %v2516
      %v2518 = vpop.f32.mrb[0].mxu0
      %2519 = vmatprep.mubr.f32.mxu0 0.0
      %2520 = vmatmul.mubr.f32.gmra.mrb[0].mxu0 %v2423
      %v2521 = vpop.f32.mrb[0].mxu0
      %v2522 = vadd.f32 %v2429, %v2521
      %v2523 = vpop.f32.mrb[0].mxu0
      %2524 = vmatprep.mubr.f32.mxu0 0.0
      %2525 = vmatmul.mubr.f32.gmra.mrb[0].mxu0 %v2424
      %v2526 = vpop.f32.mrb[0].mxu0
      %v2527 = vadd.f32 %v2429, %v2526
      %v2528 = vpop.f32.mrb[0].mxu0
      %2529 = vmatprep.mubr.f32.mxu0 0.0
      %2530 = vmatmul.mubr.f32.gmra.mrb[0].mxu0 %v2425
      %v2531 = vpop.f32.mrb[0].mxu0
      %v2532 = vadd.f32 %v2429, %v2531
      %v2533 = vpop.f32.mrb[0].mxu0
      %2534 = vdwg.mxu0
      %v2535 = vmax.f32 %v2274, %v2497
      %v2536 = vmax.f32 %v2275, %v2502
      %v2537 = vmax.f32 %v2276, %v2507
      %v2538 = vmax.f32 %v2277, %v2512
      %v2539 = vmax.f32 %v2278, %v2517
      %v2540 = vmax.f32 %v2279, %v2522
      %v2541 = vmax.f32 %v2280, %v2527
      %v2542 = vmax.f32 %v2281, %v2532
      %vm2543 = vcmask 195584
      %2544 = vst.msk [vmem:[%s226] sm:$0xff] %vm2543, %v2535
      %2545 = vst.msk [vmem:[%s226 + $0x8] sm:$0xff] %vm2543, %v2536
      %2546 = vst.msk [vmem:[%s226 + $0x10] sm:$0xff] %vm2543, %v2537
      %2547 = vst.msk [vmem:[%s226 + $0x18] sm:$0xff] %vm2543, %v2538
      %2548 = vst.msk [vmem:[%s226 + $0x20] sm:$0xff] %vm2543, %v2539
      %2549 = vst.msk [vmem:[%s226 + $0x28] sm:$0xff] %vm2543, %v2540
      %2550 = vst.msk [vmem:[%s226 + $0x30] sm:$0xff] %vm2543, %v2541
      %2551 = vst.msk [vmem:[%s226 + $0x38] sm:$0xff] %vm2543, %v2542
      %s2552 = smul.u32 8, %s16
      %p2553 = scmp.lt.s32.totalorder %s2552, 15
      %s2554 = scalar_select %p2553, %s2552, 15
      %s2555 = smul.addr %s2554, 8
      %s2556 = scalar_lea.vmem %s5, %s2555
      // Predicated region
      $region41: #{forward.5} parent=39 // pred_check
        %p2557 = pneg %p144
      $region42: #{forward.5} parent=39 // pred_check_branch
        %2559 = sbr.rel (%p2557) target = $region44
      $region43: #{forward.5} parent=39 // pred_region
        %s2560 = smul.u32 8, %s16
      $region44: #{forward.5} parent=39 // pred_fallthru
        _
    $region40: #{forward.5} parent=5 // pred_fallthru
      _
    %p2561 = scmp.le.s32.totalorder 2, %s11
    // Predicated region
    $region45: #{forward.5} parent=5 // pred_check
      %p2562 = pneg %p2561
    $region46: #{forward.5} parent=5 // pred_check_branch
      %2564 = sbr.rel (%p2562) target = $region48
    $region47: #{forward.5} parent=5 // pred_region
      %s2565 = ssub.s32 %s11, 2
      // Predicated region
      $region49: #{forward.5} parent=47 // pred_check
        %p2566 = pneg %p150
      $region50: #{forward.5} parent=47 // pred_check_branch
        %2568 = sbr.rel (%p2566) target = $region52
      $region51: #{forward.5} parent=47 // pred_region
        %s2569 = smul.u32 8, %s17
        %p2570 = scmp.lt.s32.totalorder %s2569, 15
        %s2571 = scalar_select %p2570, %s2569, 15
        %s2572 = smul.addr %s2571, 8
        %s2573 = scalar_lea.vmem %s5, %s2572
      $region52: #{forward.5} parent=47 // pred_fallthru
        _
    $region48: #{forward.5} parent=5 // pred_fallthru
      _
  $region6: #{forward.5} parent=0 // loop_footer
    %s15 = sadd.s32 1, %s11
  $region7: #{forward.5} parent=0 // loop_footer_branch
    %10 = sbr.rel target = $region3
  $region8: #{forward.5} parent=0 // loop_exit
    _

// kernel: forward.4
$region0: #{forward.4}
  #allocation0 [shape = 'u32[]', space=smem, size = 0x4, offset = 0x4, fixed_abs, tag = 'smem constant byte address 0x4 - core index']
  #allocation1 [shape = 'u32[144,128]{1,0:T(1,128)}', space=vmem, size = 0x12000, scoped, tag = 'internal scratch']
  %s0 = inlined_call_operand.vmem [shape: bf16[128,3], index: 0, kind: input, shape index: {}]
  %s1 = inlined_call_operand.vmem [shape: bf16[3,128], index: 1, kind: input, shape index: {}]
  %s2 = inlined_call_operand.vmem [shape: f32[1,128], index: 2, kind: input, shape index: {}]
  %s3 = inlined_call_operand.vmem [shape: f32[128,12], index: 3, kind: input, shape index: {}]
  %s4 = inlined_call_operand.vmem [shape: f32[8,12], index: 4, kind: input, shape index: {}]
  %s5 = inlined_call_operand.vmem [shape: f32[128,12], index: 5, kind: output, shape index: {}]
  %s6 = sld [smem:[#allocation0]]
  $region53: #{forward.4} parent=0
    _
  %s8 = ssub.s32 1, %s6
  %s9 = scalar_select 0, %s8, %s6
  loop: start=0, step=1, limit=4
  $region2: #{forward.4} parent=0 // loop_pre_header
    _
  $region3: #{forward.4} parent=0 // loop_header
    %s11 = sphi 0, %s15
    %p12 = scmp.ge.s32.totalorder %s11, 4
    %s21 = sphi 0, %s23
    %s24 = sphi 0, %s21
    %s25 = sphi 0, %s24
    %s41 = sphi 0, %s25
    %s45 = sphi 0, %s45
    %s47 = sphi 0, %s45
    %s48 = sphi 0, %s47
    %s62 = sphi 0, %s48
    %s66 = sphi 0, %s66
    %s68 = sphi 0, %s66
    %s69 = sphi 0, %s68
    %s83 = sphi 0, %s69
    %s87 = sphi 0, %s87
    %s89 = sphi 0, %s87
    %s90 = sphi 0, %s89
    %s104 = sphi 0, %s90
    %s108 = sphi 0, %s108
    %s110 = sphi 0, %s108
    %s111 = sphi 0, %s110
    %s125 = sphi 0, %s111
    %s131 = sphi 0, %s133
    %s134 = sphi 0, %s131
    %s135 = sphi 0, %s134
    %s151 = sphi 0, %s135
  $region4: #{forward.4} parent=0 // loop_header_branch
    %14 = sbr.rel (%p12) target = $region8
  $region5: #{forward.4} parent=0 // loop_body
    %s16 = ssub.s32 %s11, 1
    %s17 = ssub.s32 %s11, 2
    %s18 = sadd.s32 %s11, 1
    %s19 = ssub.s32 %s11, %s18
    %p20 = scmp.eq.s32.totalorder %s19, 0
    %s22 = sadd.s32 %s21, 1
    %s23 = scalar_select %p20, %s21, %s22
    %p26 = pneg %p20
    %p27 = scmp.eq.s32.totalorder %s11, 1
    %p28 = por %p26, %p27
    %p29 = scmp.ne.s32.totalorder %s21, %s24
    %p30 = scmp.eq.s32.totalorder %s11, 0
    %p31 = por %p29, %p30
    %p32 = scmp.ne.s32.totalorder %s21, %s24
    %p33 = scmp.eq.s32.totalorder %s16, 1
    %p34 = por %p32, %p33
    %p35 = scmp.ne.s32.totalorder %s24, %s25
    %p36 = scmp.eq.s32.totalorder %s16, 0
    %p37 = por %p35, %p36
    %p38 = scmp.ne.s32.totalorder %s24, %s25
    %p39 = scmp.eq.s32.totalorder %s17, 1
    %p40 = por %p38, %p39
    %p42 = scmp.ne.s32.totalorder %s25, %s41
    %p43 = scmp.eq.s32.totalorder %s17, 0
    %p44 = por %p42, %p43
    %s46 = sadd.s32 %s45, 1
    %p49 = scmp.eq.s32.totalorder %s11, 1
    %p50 = scmp.ne.s32.totalorder %s45, %s47
    %p51 = scmp.eq.s32.totalorder %s11, 0
    %p52 = por %p50, %p51
    %p53 = scmp.ne.s32.totalorder %s45, %s47
    %p54 = scmp.eq.s32.totalorder %s16, 1
    %p55 = por %p53, %p54
    %p56 = scmp.ne.s32.totalorder %s47, %s48
    %p57 = scmp.eq.s32.totalorder %s16, 0
    %p58 = por %p56, %p57
    %p59 = scmp.ne.s32.totalorder %s47, %s48
    %p60 = scmp.eq.s32.totalorder %s17, 1
    %p61 = por %p59, %p60
    %p63 = scmp.ne.s32.totalorder %s48, %s62
    %p64 = scmp.eq.s32.totalorder %s17, 0
    %p65 = por %p63, %p64
    %s67 = sadd.s32 %s66, 1
    %p70 = scmp.eq.s32.totalorder %s11, 1
    %p71 = scmp.ne.s32.totalorder %s66, %s68
    %p72 = scmp.eq.s32.totalorder %s11, 0
    %p73 = por %p71, %p72
    %p74 = scmp.ne.s32.totalorder %s66, %s68
    %p75 = scmp.eq.s32.totalorder %s16, 1
    %p76 = por %p74, %p75
    %p77 = scmp.ne.s32.totalorder %s68, %s69
    %p78 = scmp.eq.s32.totalorder %s16, 0
    %p79 = por %p77, %p78
    %p80 = scmp.ne.s32.totalorder %s68, %s69
    %p81 = scmp.eq.s32.totalorder %s17, 1
    %p82 = por %p80, %p81
    %p84 = scmp.ne.s32.totalorder %s69, %s83
    %p85 = scmp.eq.s32.totalorder %s17, 0
    %p86 = por %p84, %p85
    %s88 = sadd.s32 %s87, 1
    %p91 = scmp.eq.s32.totalorder %s11, 1
    %p92 = scmp.ne.s32.totalorder %s87, %s89
    %p93 = scmp.eq.s32.totalorder %s11, 0
    %p94 = por %p92, %p93
    %p95 = scmp.ne.s32.totalorder %s87, %s89
    %p96 = scmp.eq.s32.totalorder %s16, 1
    %p97 = por %p95, %p96
    %p98 = scmp.ne.s32.totalorder %s89, %s90
    %p99 = scmp.eq.s32.totalorder %s16, 0
    %p100 = por %p98, %p99
    %p101 = scmp.ne.s32.totalorder %s89, %s90
    %p102 = scmp.eq.s32.totalorder %s17, 1
    %p103 = por %p101, %p102
    %p105 = scmp.ne.s32.totalorder %s90, %s104
    %p106 = scmp.eq.s32.totalorder %s17, 0
    %p107 = por %p105, %p106
    %s109 = sadd.s32 %s108, 1
    %p112 = scmp.eq.s32.totalorder %s11, 1
    %p113 = scmp.ne.s32.totalorder %s108, %s110
    %p114 = scmp.eq.s32.totalorder %s11, 0
    %p115 = por %p113, %p114
    %p116 = scmp.ne.s32.totalorder %s108, %s110
    %p117 = scmp.eq.s32.totalorder %s16, 1
    %p118 = por %p116, %p117
    %p119 = scmp.ne.s32.totalorder %s110, %s111
    %p120 = scmp.eq.s32.totalorder %s16, 0
    %p121 = por %p119, %p120
    %p122 = scmp.ne.s32.totalorder %s110, %s111
    %p123 = scmp.eq.s32.totalorder %s17, 1
    %p124 = por %p122, %p123
    %p126 = scmp.ne.s32.totalorder %s111, %s125
    %p127 = scmp.eq.s32.totalorder %s17, 0
    %p128 = por %p126, %p127
    %s129 = ssub.s32 %s11, %s18
    %p130 = scmp.eq.s32.totalorder %s129, 0
    %s132 = sadd.s32 %s131, 1
    %s133 = scalar_select %p130, %s131, %s132
    %p136 = pneg %p130
    %p137 = scmp.eq.s32.totalorder %s11, 1
    %p138 = por %p136, %p137
    %p139 = scmp.ne.s32.totalorder %s131, %s134
    %p140 = scmp.eq.s32.totalorder %s11, 0
    %p141 = por %p139, %p140
    %p142 = scmp.ne.s32.totalorder %s131, %s134
    %p143 = scmp.eq.s32.totalorder %s16, 1
    %p144 = por %p142, %p143
    %p145 = scmp.ne.s32.totalorder %s134, %s135
    %p146 = scmp.eq.s32.totalorder %s16, 0
    %p147 = por %p145, %p146
    %p148 = scmp.ne.s32.totalorder %s134, %s135
    %p149 = scmp.eq.s32.totalorder %s17, 1
    %p150 = por %p148, %p149
    %p152 = scmp.ne.s32.totalorder %s135, %s151
    %p153 = scmp.eq.s32.totalorder %s17, 0
    %p154 = por %p152, %p153
    %p155 = scmp.le.s32.totalorder 1, %s11
    %p156 = scmp.lt.s32.totalorder %s11, 3
    %p157 = pnand %p155, %p156
    %p158 = pneg %p157
    // Predicated region
    $region9: #{forward.4} parent=5 // pred_check
      _
    $region10: #{forward.4} parent=5 // pred_check_branch
      %160 = sbr.rel (%p157) target = $region12
    $region11: #{forward.4} parent=5 // pred_region
      %s161 = ssub.s32 %s11, 1
      // Predicated region
      $region13: #{forward.4} parent=11 // pred_check
        %p162 = pneg %p58
      $region14: #{forward.4} parent=11 // pred_check_branch
        %164 = sbr.rel (%p162) target = $region16
      $region15: #{forward.4} parent=11 // pred_region
        _
      $region16: #{forward.4} parent=11 // pred_fallthru
        _
      // Predicated region
      $region17: #{forward.4} parent=11 // pred_check
        %p165 = pneg %p79
      $region18: #{forward.4} parent=11 // pred_check_branch
        %167 = sbr.rel (%p165) target = $region20
      $region19: #{forward.4} parent=11 // pred_region
        _
      $region20: #{forward.4} parent=11 // pred_fallthru
        _
      // Predicated region
      $region21: #{forward.4} parent=11 // pred_check
        %p168 = pneg %p100
      $region22: #{forward.4} parent=11 // pred_check_branch
        %170 = sbr.rel (%p168) target = $region24
      $region23: #{forward.4} parent=11 // pred_region
        _
      $region24: #{forward.4} parent=11 // pred_fallthru
        _
      // Predicated region
      $region25: #{forward.4} parent=11 // pred_check
        %p171 = pneg %p121
      $region26: #{forward.4} parent=11 // pred_check_branch
        %173 = sbr.rel (%p171) target = $region28
      $region27: #{forward.4} parent=11 // pred_region
        _
      $region28: #{forward.4} parent=11 // pred_fallthru
        _
    $region12: #{forward.4} parent=5 // pred_fallthru
      _
    %p174 = scmp.lt.s32.totalorder %s11, 2
    // Predicated region
    $region29: #{forward.4} parent=5 // pred_check
      %p175 = pneg %p174
    $region30: #{forward.4} parent=5 // pred_check_branch
      %177 = sbr.rel (%p175) target = $region32
    $region31: #{forward.4} parent=5 // pred_region
      // Predicated region
      $region33: #{forward.4} parent=31 // pred_check
        %p178 = pneg %p31
      $region34: #{forward.4} parent=31 // pred_check_branch
        %180 = sbr.rel (%p178) target = $region36
      $region35: #{forward.4} parent=31 // pred_region
        %s181 = smul.u32 8, %s11
        %p182 = scmp.lt.s32.totalorder %s181, 15
        %s183 = scalar_select %p182, %s181, 15
        %s184 = smul.addr %s183, 4
        %s185 = scalar_lea.vmem %s0, %s184
        %s186 = smul.u32 8, %s11
      $region36: #{forward.4} parent=31 // pred_fallthru
        _
    $region32: #{forward.4} parent=5 // pred_fallthru
      _
    %p187 = scmp.le.s32.totalorder 1, %s11
    %p188 = scmp.lt.s32.totalorder %s11, 3
    %p189 = pnand %p187, %p188
    %p190 = pneg %p189
    // Predicated region
    $region37: #{forward.4} parent=5 // pred_check
      _
    $region38: #{forward.4} parent=5 // pred_check_branch
      %192 = sbr.rel (%p189) target = $region40
    $region39: #{forward.4} parent=5 // pred_region
      %s193 = ssub.s32 %s11, 1
      %s194 = smul.u32 8, %s16
      %p195 = scmp.lt.s32.totalorder %s194, 15
      %s196 = scalar_select %p195, %s194, 15
      %s197 = smul.addr %s196, 4
      %s198 = scalar_lea.vmem %s0, %s197
      %p199 = pneg %p37
      %p200 = pneg %p34
      %p201 = pneg %p58
      %p202 = pneg %p55
      %p203 = pneg %p79
      %p204 = pneg %p76
      %p205 = pneg %p100
      %p206 = pneg %p97
      %p207 = pneg %p121
      %p208 = pneg %p118
      %p209 = pneg %p147
      %p210 = pneg %p144
      %s211 = smul.u32 8, %s16
      %p212 = scmp.lt.s32.totalorder %s211, 15
      %s213 = scalar_select %p212, %s211, 15
      %s214 = smul.addr %s213, 8
      %s215 = scalar_lea.vmem %s5, %s214
      %s216 = smul.u32 8, %s16
      %p217 = scmp.lt.s32.totalorder %s216, 15
      %s218 = scalar_select %p217, %s216, 15
      %s219 = smul.addr %s218, 4
      %s220 = scalar_lea.vmem %s0, %s219
      %s221 = smul.u32 8, %s16
      %s222 = smul.u32 8, %s16
      %p223 = scmp.lt.s32.totalorder %s222, 15
      %s224 = scalar_select %p223, %s222, 15
      %s225 = smul.addr %s224, 8
      %s226 = scalar_lea.vmem %s5, %s225
      %s227 = smul.u32 8, %s16
      %v229 = vld [vmem:[%s220] sm:$0xf]
      %v230 = vld [vmem:[%s220 + $0x4] sm:$0xf]
      %v231 = vld [vmem:[%s220 + $0x8] sm:$0xf]
      %v232 = vld [vmem:[%s220 + $0xc] sm:$0xf]
      %v233 = vld [vmem:[%s220 + $0x10] sm:$0xf]
      %v234 = vld [vmem:[%s220 + $0x14] sm:$0xf]
      %v235 = vld [vmem:[%s220 + $0x18] sm:$0xf]
      %v236 = vld [vmem:[%s220 + $0x1c] sm:$0xf]
      %v237 = vld [vmem:[%s1] sm:$0x3]
      %v246 = vunpack.c.l.b16 %v229
      %v247 = vunpack.c.l.b16 %v230
      %v248 = vunpack.c.l.b16 %v231
      %v249 = vunpack.c.l.b16 %v232
      %v250 = vunpack.c.l.b16 %v233
      %v251 = vunpack.c.l.b16 %v234
      %v252 = vunpack.c.l.b16 %v235
      %v253 = vunpack.c.l.b16 %v236
      %v254 = vpack.c.b16 %v247, %v246
      %v255 = vpack.c.b16 %v249, %v248
      %v256 = vpack.c.b16 %v251, %v250
      %v257 = vpack.c.b16 %v253, %v252
      %vm258 = vcmask 23552
      %v260 = vsel %vm258, %v254, 0
      %v263 = vsel %vm258, %v255, 0
      %v266 = vsel %vm258, %v256, 0
      %v269 = vsel %vm258, %v257, 0
      %vm271 = vcmask 1040384
      %vm272 = vcmask 1041408
      %v273 = vsel %vm271, 4294967295, 65535
      %v274 = vsel %vm272, %v273, 0
      %v276 = vand.u32 %v237, %v274
      %278 = vmatprep.subr.bf16.mxu0 0
      %279 = vmatpush1.bf16.msra.mxu0 %v276
      %280 = vmatprep.subr.bf16.mxu0 0
      %281 = vmatpush1.bf16.msra.mxu0 0
      %282 = vmatprep.subr.bf16.mxu0 0
      %283 = vmatpush1.bf16.msra.mxu0 0
      %284 = vmatprep.subr.bf16.mxu0 0
      %285 = vmatpush1.bf16.msra.mxu0 0
      %286 = vmatprep.subr.bf16.mxu0 0
      %287 = vmatpush1.bf16.msra.mxu0 0
      %288 = vmatprep.subr.bf16.mxu0 0
      %289 = vmatpush1.bf16.msra.mxu0 0
      %290 = vmatprep.subr.bf16.mxu0 0
      %291 = vmatpush1.bf16.msra.mxu0 0
      %292 = vmatprep.subr.bf16.mxu0 0
      %293 = vmatpush1.bf16.msra.mxu0 0
      %294 = vmatprep.subr.bf16.mxu0 0
      %295 = vmatpush1.bf16.msra.mxu0 0
      %296 = vmatprep.subr.bf16.mxu0 0
      %297 = vmatpush1.bf16.msra.mxu0 0
      %298 = vmatprep.subr.bf16.mxu0 0
      %299 = vmatpush1.bf16.msra.mxu0 0
      %300 = vmatprep.subr.bf16.mxu0 0
      %301 = vmatpush1.bf16.msra.mxu0 0
      %302 = vmatprep.subr.bf16.mxu0 0
      %303 = vmatpush1.bf16.msra.mxu0 0
      %304 = vmatprep.subr.bf16.mxu0 0
      %305 = vmatpush1.bf16.msra.mxu0 0
      %306 = vmatprep.subr.bf16.mxu0 0
      %307 = vmatpush1.bf16.msra.mxu0 0
      %308 = vmatprep.subr.bf16.mxu0 0
      %309 = vmatpush1.bf16.msra.mxu0 0
      %310 = vmatprep.mubr.bf16.mxu0 0
      %311 = vmatmul.mubr.bf16.gmra.mrb[0].mxu0 %v260
      %v312 = vpop.f32.mrb[0].mxu0
      %v313 = vadd.f32 0.0, %v312
      %v314 = vpop.f32.mrb[0].mxu0
      %v315 = vpop.f32.mrb[0].mxu0
      %v316 = vadd.f32 0.0, %v315
      %v317 = vpop.f32.mrb[0].mxu0
      %318 = vmatprep.mubr.bf16.mxu0 0
      %319 = vmatmul.mubr.bf16.gmra.mrb[0].mxu0 %v263
      %v320 = vpop.f32.mrb[0].mxu0
      %v321 = vadd.f32 0.0, %v320
      %v322 = vpop.f32.mrb[0].mxu0
      %v323 = vpop.f32.mrb[0].mxu0
      %v324 = vadd.f32 0.0, %v323
      %v325 = vpop.f32.mrb[0].mxu0
      %326 = vmatprep.mubr.bf16.mxu0 0
      %327 = vmatmul.mubr.bf16.gmra.mrb[0].mxu0 %v266
      %v328 = vpop.f32.mrb[0].mxu0
      %v329 = vadd.f32 0.0, %v328
      %v330 = vpop.f32.mrb[0].mxu0
      %v331 = vpop.f32.mrb[0].mxu0
      %v332 = vadd.f32 0.0, %v331
      %v333 = vpop.f32.mrb[0].mxu0
      %334 = vmatprep.mubr.bf16.mxu0 0
      %335 = vmatmul.mubr.bf16.gmra.mrb[0].mxu0 %v269
      %v336 = vpop.f32.mrb[0].mxu0
      %v337 = vadd.f32 0.0, %v336
      %v338 = vpop.f32.mrb[0].mxu0
      %v339 = vpop.f32.mrb[0].mxu0
      %v340 = vadd.f32 0.0, %v339
      %v341 = vpop.f32.mrb[0].mxu0
      %342 = vdwg.mxu0
      %v343 = vld [vmem:[%s2] sm:$0x1]
      %v344 = vmul.f32 %v313, 2.0
      %v345 = vmul.f32 %v316, 2.0
      %v346 = vmul.f32 %v321, 2.0
      %v347 = vmul.f32 %v324, 2.0
      %v348 = vmul.f32 %v329, 2.0
      %v349 = vmul.f32 %v332, 2.0
      %v350 = vmul.f32 %v337, 2.0
      %v351 = vmul.f32 %v340, 2.0
      %v353 = vlaneseq
      %v354 = vshrl.u32 %v353, 7
      %v355 = vsub.s32 0, %v354
      %v356 = vrot.slane %v343, %v355
      %v358 = vsub.f32 %v356, %v344
      %v359 = vsub.f32 %v356, %v345
      %v360 = vsub.f32 %v356, %v346
      %v361 = vsub.f32 %v356, %v347
      %v362 = vsub.f32 %v356, %v348
      %v363 = vsub.f32 %v356, %v349
      %v364 = vsub.f32 %v356, %v350
      %v365 = vsub.f32 %v356, %v351
      %s366 = smul.u32 %s16, 64
      %v367 = vlaneseq
      %v368 = vshrl.u32 %v367, 7
      %v369 = vadd.s32 %v368, 8
      %v370 = vadd.s32 %v368, 16
      %v371 = vadd.s32 %v368, 24
      %v372 = vadd.s32 %v368, 32
      %v373 = vadd.s32 %v368, 40
      %v374 = vadd.s32 %v368, 48
      %v375 = vadd.s32 %v368, 56
      %v376 = vstv %s366
      %v377 = vadd.s32 %v368, %v376
      %v378 = vadd.s32 %v369, %v376
      %v379 = vadd.s32 %v370, %v376
      %v380 = vadd.s32 %v371, %v376
      %v381 = vadd.s32 %v372, %v376
      %v382 = vadd.s32 %v373, %v376
      %v383 = vadd.s32 %v374, %v376
      %v384 = vadd.s32 %v375, %v376
      %v385 = vlaneseq
      %v386 = vand.u32 %v385, 127
      %vm395 = vcmp.lt.s32.totalorder %v358, 0
      %vm396 = vcmp.lt.s32.totalorder %v359, 0
      %vm397 = vcmp.lt.s32.totalorder %v360, 0
      %vm398 = vcmp.lt.s32.totalorder %v361, 0
      %vm399 = vcmp.lt.s32.totalorder %v362, 0
      %vm400 = vcmp.lt.s32.totalorder %v363, 0
      %vm401 = vcmp.lt.s32.totalorder %v364, 0
      %vm402 = vcmp.lt.s32.totalorder %v365, 0
      %v403 = vxor.u32 %v358, 2147483647
      %v404 = vxor.u32 %v359, 2147483647
      %v405 = vxor.u32 %v360, 2147483647
      %v406 = vxor.u32 %v361, 2147483647
      %v407 = vxor.u32 %v362, 2147483647
      %v408 = vxor.u32 %v363, 2147483647
      %v409 = vxor.u32 %v364, 2147483647
      %v410 = vxor.u32 %v365, 2147483647
      %v411 = vsel %vm395, %v403, %v358
      %v412 = vsel %vm396, %v404, %v359
      %v413 = vsel %vm397, %v405, %v360
      %v414 = vsel %vm398, %v406, %v361
      %v415 = vsel %vm399, %v407, %v362
      %v416 = vsel %vm400, %v408, %v363
      %v417 = vsel %vm401, %v409, %v364
      %v418 = vsel %vm402, %v410, %v365
      %v419 = vand.u32 %v411, 4294967168
      %v420 = vand.u32 %v412, 4294967168
      %v421 = vand.u32 %v413, 4294967168
      %v422 = vand.u32 %v414, 4294967168
      %v423 = vand.u32 %v415, 4294967168
      %v424 = vand.u32 %v416, 4294967168
      %v425 = vand.u32 %v417, 4294967168
      %v426 = vand.u32 %v418, 4294967168
      %v427 = vor.u32 %v419, %v386
      %v428 = vor.u32 %v420, %v386
      %v429 = vor.u32 %v421, %v386
      %v430 = vor.u32 %v422, %v386
      %v431 = vor.u32 %v423, %v386
      %v432 = vor.u32 %v424, %v386
      %v433 = vor.u32 %v425, %v386
      %v434 = vor.u32 %v426, %v386
      %vm435 = vcmp.eq.s32.totalorder %v377, %v386
      %vm436 = vcmp.eq.s32.totalorder %v378, %v386
      %vm437 = vcmp.eq.s32.totalorder %v379, %v386
      %vm438 = vcmp.eq.s32.totalorder %v380, %v386
      %vm439 = vcmp.eq.s32.totalorder %v381, %v386
      %vm440 = vcmp.eq.s32.totalorder %v382, %v386
      %vm441 = vcmp.eq.s32.totalorder %v383, %v386
      %vm442 = vcmp.eq.s32.totalorder %v384, %v386
      %v443 = vsel %vm435, 2147483647, %v427
      %v444 = vsel %vm436, 2147483647, %v428
      %v445 = vsel %vm437, 2147483647, %v429
      %v446 = vsel %vm438, 2147483647, %v430
      %v447 = vsel %vm439, 2147483647, %v431
      %v448 = vsel %vm440, 2147483647, %v432
      %v449 = vsel %vm441, 2147483647, %v433
      %v450 = vsel %vm442, 2147483647, %v434
      %v451 = vld [vmem:[%s3] sm:$0xff]
      %v452 = vld [vmem:[%s3 + $0x8] sm:$0xff]
      %v453 = vld [vmem:[%s3 + $0x10] sm:$0xff]
      %v454 = vld [vmem:[%s3 + $0x18] sm:$0xff]
      %v455 = vld [vmem:[%s3 + $0x20] sm:$0xff]
      %v456 = vld [vmem:[%s3 + $0x28] sm:$0xff]
      %v457 = vld [vmem:[%s3 + $0x30] sm:$0xff]
      %v458 = vld [vmem:[%s3 + $0x38] sm:$0xff]
      %v459 = vld [vmem:[%s3 + $0x40] sm:$0xff]
      %v460 = vld [vmem:[%s3 + $0x48] sm:$0xff]
      %v461 = vld [vmem:[%s3 + $0x50] sm:$0xff]
      %v462 = vld [vmem:[%s3 + $0x58] sm:$0xff]
      %v463 = vld [vmem:[%s3 + $0x60] sm:$0xff]
      %v464 = vld [vmem:[%s3 + $0x68] sm:$0xff]
      %v465 = vld [vmem:[%s3 + $0x70] sm:$0xff]
      %v466 = vld [vmem:[%s3 + $0x78] sm:$0xff]
      %v467 = vld [vmem:[%s4] sm:$0xff]
      %v468 = vand.u32 %v443, 65535
      %v469 = vshra.s32 %v443, 16
      %v470 = vcvt.s32.f32 %v468
      %v471 = vcvt.s32.f32 %v469
      %472 = vmin.xlane.f32.xlu0 %v471
      %v473 = vpop.xlane.xlu0 %472
      %vm474 = vcmp.eq.f32.partialorder %v471, %v473
      %v475 = vsel %vm474, %v470, inf
      %476 = vmin.xlane.f32.xlu0 %v475
      %v477 = vpop.xlane.xlu0 %476
      %v478 = vcvt.f32.s32 %v477
      %v479 = vcvt.f32.s32 %v473
      %v480 = vshll.u32 %v479, 16
      %v481 = vadd.s32 %v480, %v478
      %v482 = vand.u32 %v444, 65535
      %v483 = vshra.s32 %v444, 16
      %v484 = vcvt.s32.f32 %v482
      %v485 = vcvt.s32.f32 %v483
      %486 = vmin.xlane.f32.xlu0 %v485
      %v487 = vpop.xlane.xlu0 %486
      %vm488 = vcmp.eq.f32.partialorder %v485, %v487
      %v489 = vsel %vm488, %v484, inf
      %490 = vmin.xlane.f32.xlu0 %v489
      %v491 = vpop.xlane.xlu0 %490
      %v492 = vcvt.f32.s32 %v491
      %v493 = vcvt.f32.s32 %v487
      %v494 = vshll.u32 %v493, 16
      %v495 = vadd.s32 %v494, %v492
      %v496 = vand.u32 %v445, 65535
      %v497 = vshra.s32 %v445, 16
      %v498 = vcvt.s32.f32 %v496
      %v499 = vcvt.s32.f32 %v497
      %500 = vmin.xlane.f32.xlu0 %v499
      %v501 = vpop.xlane.xlu0 %500
      %vm502 = vcmp.eq.f32.partialorder %v499, %v501
      %v503 = vsel %vm502, %v498, inf
      %504 = vmin.xlane.f32.xlu0 %v503
      %v505 = vpop.xlane.xlu0 %504
      %v506 = vcvt.f32.s32 %v505
      %v507 = vcvt.f32.s32 %v501
      %v508 = vshll.u32 %v507, 16
      %v509 = vadd.s32 %v508, %v506
      %v510 = vand.u32 %v446, 65535
      %v511 = vshra.s32 %v446, 16
      %v512 = vcvt.s32.f32 %v510
      %v513 = vcvt.s32.f32 %v511
      %514 = vmin.xlane.f32.xlu0 %v513
      %v515 = vpop.xlane.xlu0 %514
      %vm516 = vcmp.eq.f32.partialorder %v513, %v515
      %v517 = vsel %vm516, %v512, inf
      %518 = vmin.xlane.f32.xlu0 %v517
      %v519 = vpop.xlane.xlu0 %518
      %v520 = vcvt.f32.s32 %v519
      %v521 = vcvt.f32.s32 %v515
      %v522 = vshll.u32 %v521, 16
      %v523 = vadd.s32 %v522, %v520
      %v524 = vand.u32 %v447, 65535
      %v525 = vshra.s32 %v447, 16
      %v526 = vcvt.s32.f32 %v524
      %v527 = vcvt.s32.f32 %v525
      %528 = vmin.xlane.f32.xlu0 %v527
      %v529 = vpop.xlane.xlu0 %528
      %vm530 = vcmp.eq.f32.partialorder %v527, %v529
      %v531 = vsel %vm530, %v526, inf
      %532 = vmin.xlane.f32.xlu0 %v531
      %v533 = vpop.xlane.xlu0 %532
      %v534 = vcvt.f32.s32 %v533
      %v535 = vcvt.f32.s32 %v529
      %v536 = vshll.u32 %v535, 16
      %v537 = vadd.s32 %v536, %v534
      %v538 = vand.u32 %v448, 65535
      %v539 = vshra.s32 %v448, 16
      %v540 = vcvt.s32.f32 %v538
      %v541 = vcvt.s32.f32 %v539
      %542 = vmin.xlane.f32.xlu0 %v541
      %v543 = vpop.xlane.xlu0 %542
      %vm544 = vcmp.eq.f32.partialorder %v541, %v543
      %v545 = vsel %vm544, %v540, inf
      %546 = vmin.xlane.f32.xlu0 %v545
      %v547 = vpop.xlane.xlu0 %546
      %v548 = vcvt.f32.s32 %v547
      %v549 = vcvt.f32.s32 %v543
      %v550 = vshll.u32 %v549, 16
      %v551 = vadd.s32 %v550, %v548
      %v552 = vand.u32 %v449, 65535
      %v553 = vshra.s32 %v449, 16
      %v554 = vcvt.s32.f32 %v552
      %v555 = vcvt.s32.f32 %v553
      %556 = vmin.xlane.f32.xlu0 %v555
      %v557 = vpop.xlane.xlu0 %556
      %vm558 = vcmp.eq.f32.partialorder %v555, %v557
      %v559 = vsel %vm558, %v554, inf
      %560 = vmin.xlane.f32.xlu0 %v559
      %v561 = vpop.xlane.xlu0 %560
      %v562 = vcvt.f32.s32 %v561
      %v563 = vcvt.f32.s32 %v557
      %v564 = vshll.u32 %v563, 16
      %v565 = vadd.s32 %v564, %v562
      %v566 = vand.u32 %v450, 65535
      %v567 = vshra.s32 %v450, 16
      %v568 = vcvt.s32.f32 %v566
      %v569 = vcvt.s32.f32 %v567
      %570 = vmin.xlane.f32.xlu0 %v569
      %v571 = vpop.xlane.xlu0 %570
      %vm572 = vcmp.eq.f32.partialorder %v569, %v571
      %v573 = vsel %vm572, %v568, inf
      %574 = vmin.xlane.f32.xlu0 %v573
      %v575 = vpop.xlane.xlu0 %574
      %v576 = vcvt.f32.s32 %v575
      %v577 = vcvt.f32.s32 %v571
      %v578 = vshll.u32 %v577, 16
      %v579 = vadd.s32 %v578, %v576
      %vm580 = vcmp.eq.s32.totalorder %v443, %v481
      %vm581 = vcmp.eq.s32.totalorder %v444, %v495
      %vm582 = vcmp.eq.s32.totalorder %v445, %v509
      %vm583 = vcmp.eq.s32.totalorder %v446, %v523
      %vm584 = vcmp.eq.s32.totalorder %v447, %v537
      %vm585 = vcmp.eq.s32.totalorder %v448, %v551
      %vm586 = vcmp.eq.s32.totalorder %v449, %v565
      %vm587 = vcmp.eq.s32.totalorder %v450, %v579
      %v588 = vsel %vm580, 1, 0
      %v589 = vsel %vm581, 1, 0
      %v590 = vsel %vm582, 1, 0
      %v591 = vsel %vm583, 1, 0
      %v592 = vsel %vm584, 1, 0
      %v593 = vsel %vm585, 1, 0
      %v594 = vsel %vm586, 1, 0
      %v595 = vsel %vm587, 1, 0
      %v596 = vcvt.s32.f32 %v588
      %v597 = vcvt.s32.f32 %v589
      %v598 = vcvt.s32.f32 %v590
      %v599 = vcvt.s32.f32 %v591
      %v600 = vcvt.s32.f32 %v592
      %v601 = vcvt.s32.f32 %v593
      %v602 = vcvt.s32.f32 %v594
      %v603 = vcvt.s32.f32 %v595
      %v604 = vlaneseq
      %v605 = vshrl.u32 %v604, 7
      %v606 = vsub.s32 0, %v605
      %v607 = vrot.slane %v467, %v606
      %608 = vmatprep.subr.mxu0 0.0
      %609 = vmatpush1.msra.mxu0 %v451
      %610 = vmatprep.subr.mxu0 0.0
      %611 = vmatpush1.msra.mxu0 %v452
      %612 = vmatprep.subr.mxu0 0.0
      %613 = vmatpush1.msra.mxu0 %v453
      %614 = vmatprep.subr.mxu0 0.0
      %615 = vmatpush1.msra.mxu0 %v454
      %616 = vmatprep.subr.mxu0 0.0
      %617 = vmatpush1.msra.mxu0 %v455
      %618 = vmatprep.subr.mxu0 0.0
      %619 = vmatpush1.msra.mxu0 %v456
      %620 = vmatprep.subr.mxu0 0.0
      %621 = vmatpush1.msra.mxu0 %v457
      %622 = vmatprep.subr.mxu0 0.0
      %623 = vmatpush1.msra.mxu0 %v458
      %624 = vmatprep.subr.mxu0 0.0
      %625 = vmatpush1.msra.mxu0 %v459
      %626 = vmatprep.subr.mxu0 0.0
      %627 = vmatpush1.msra.mxu0 %v460
      %628 = vmatprep.subr.mxu0 0.0
      %629 = vmatpush1.msra.mxu0 %v461
      %630 = vmatprep.subr.mxu0 0.0
      %631 = vmatpush1.msra.mxu0 %v462
      %632 = vmatprep.subr.mxu0 0.0
      %633 = vmatpush1.msra.mxu0 %v463
      %634 = vmatprep.subr.mxu0 0.0
      %635 = vmatpush1.msra.mxu0 %v464
      %636 = vmatprep.subr.mxu0 0.0
      %637 = vmatpush1.msra.mxu0 %v465
      %638 = vmatprep.subr.mxu0 0.0
      %639 = vmatpush1.msra.mxu0 %v466
      %640 = vmatprep.subr.mxu0 0.0
      %641 = vmatpush1.msra.mxu0 0.0
      %642 = vmatprep.subr.mxu0 0.0
      %643 = vmatpush1.msra.mxu0 0.0
      %644 = vmatprep.subr.mxu0 0.0
      %645 = vmatpush1.msra.mxu0 0.0
      %646 = vmatprep.subr.mxu0 0.0
      %647 = vmatpush1.msra.mxu0 0.0
      %648 = vmatprep.subr.mxu0 0.0
      %649 = vmatpush1.msra.mxu0 0.0
      %650 = vmatprep.subr.mxu0 0.0
      %651 = vmatpush1.msra.mxu0 0.0
      %652 = vmatprep.subr.mxu0 0.0
      %653 = vmatpush1.msra.mxu0 0.0
      %654 = vmatprep.subr.mxu0 0.0
      %655 = vmatpush1.msra.mxu0 0.0
      %656 = vmatprep.subr.mxu0 0.0
      %657 = vmatpush1.msra.mxu0 0.0
      %658 = vmatprep.subr.mxu0 0.0
      %659 = vmatpush1.msra.mxu0 0.0
      %660 = vmatprep.subr.mxu0 0.0
      %661 = vmatpush1.msra.mxu0 0.0
      %662 = vmatprep.subr.mxu0 0.0
      %663 = vmatpush1.msra.mxu0 0.0
      %664 = vmatprep.subr.mxu0 0.0
      %665 = vmatpush1.msra.mxu0 0.0
      %666 = vmatprep.subr.mxu0 0.0
      %667 = vmatpush1.msra.mxu0 0.0
      %668 = vmatprep.subr.mxu0 0.0
      %669 = vmatpush1.msra.mxu0 0.0
      %670 = vmatprep.subr.mxu0 0.0
      %671 = vmatpush1.msra.mxu0 0.0
      %672 = vmatprep.mubr.f32.mxu0 0.0
      %673 = vmatmul.mubr.f32.gmra.mrb[0].mxu0 %v596
      %v674 = vpop.f32.mrb[0].mxu0
      %v675 = vadd.f32 %v607, %v674
      %v676 = vpop.f32.mrb[0].mxu0
      %677 = vmatprep.mubr.f32.mxu0 0.0
      %678 = vmatmul.mubr.f32.gmra.mrb[0].mxu0 %v597
      %v679 = vpop.f32.mrb[0].mxu0
      %v680 = vadd.f32 %v607, %v679
      %v681 = vpop.f32.mrb[0].mxu0
      %682 = vmatprep.mubr.f32.mxu0 0.0
      %683 = vmatmul.mubr.f32.gmra.mrb[0].mxu0 %v598
      %v684 = vpop.f32.mrb[0].mxu0
      %v685 = vadd.f32 %v607, %v684
      %v686 = vpop.f32.mrb[0].mxu0
      %687 = vmatprep.mubr.f32.mxu0 0.0
      %688 = vmatmul.mubr.f32.gmra.mrb[0].mxu0 %v599
      %v689 = vpop.f32.mrb[0].mxu0
      %v690 = vadd.f32 %v607, %v689
      %v691 = vpop.f32.mrb[0].mxu0
      %692 = vmatprep.mubr.f32.mxu0 0.0
      %693 = vmatmul.mubr.f32.gmra.mrb[0].mxu0 %v600
      %v694 = vpop.f32.mrb[0].mxu0
      %v695 = vadd.f32 %v607, %v694
      %v696 = vpop.f32.mrb[0].mxu0
      %697 = vmatprep.mubr.f32.mxu0 0.0
      %698 = vmatmul.mubr.f32.gmra.mrb[0].mxu0 %v601
      %v699 = vpop.f32.mrb[0].mxu0
      %v700 = vadd.f32 %v607, %v699
      %v701 = vpop.f32.mrb[0].mxu0
      %702 = vmatprep.mubr.f32.mxu0 0.0
      %703 = vmatmul.mubr.f32.gmra.mrb[0].mxu0 %v602
      %v704 = vpop.f32.mrb[0].mxu0
      %v705 = vadd.f32 %v607, %v704
      %v706 = vpop.f32.mrb[0].mxu0
      %707 = vmatprep.mubr.f32.mxu0 0.0
      %708 = vmatmul.mubr.f32.gmra.mrb[0].mxu0 %v603
      %v709 = vpop.f32.mrb[0].mxu0
      %v710 = vadd.f32 %v607, %v709
      %v711 = vpop.f32.mrb[0].mxu0
      %712 = vdwg.mxu0
      %v713 = vsel %vm580, 2147483647, %v443
      %v714 = vsel %vm581, 2147483647, %v444
      %v715 = vsel %vm582, 2147483647, %v445
      %v716 = vsel %vm583, 2147483647, %v446
      %v717 = vsel %vm584, 2147483647, %v447
      %v718 = vsel %vm585, 2147483647, %v448
      %v719 = vsel %vm586, 2147483647, %v449
      %v720 = vsel %vm587, 2147483647, %v450
      %v721 = vand.u32 %v713, 65535
      %v722 = vshra.s32 %v713, 16
      %v723 = vcvt.s32.f32 %v721
      %v724 = vcvt.s32.f32 %v722
      %725 = vmin.xlane.f32.xlu0 %v724
      %v726 = vpop.xlane.xlu0 %725
      %vm727 = vcmp.eq.f32.partialorder %v724, %v726
      %v728 = vsel %vm727, %v723, inf
      %729 = vmin.xlane.f32.xlu0 %v728
      %v730 = vpop.xlane.xlu0 %729
      %v731 = vcvt.f32.s32 %v730
      %v732 = vcvt.f32.s32 %v726
      %v733 = vshll.u32 %v732, 16
      %v734 = vadd.s32 %v733, %v731
      %v735 = vand.u32 %v714, 65535
      %v736 = vshra.s32 %v714, 16
      %v737 = vcvt.s32.f32 %v735
      %v738 = vcvt.s32.f32 %v736
      %739 = vmin.xlane.f32.xlu0 %v738
      %v740 = vpop.xlane.xlu0 %739
      %vm741 = vcmp.eq.f32.partialorder %v738, %v740
      %v742 = vsel %vm741, %v737, inf
      %743 = vmin.xlane.f32.xlu0 %v742
      %v744 = vpop.xlane.xlu0 %743
      %v745 = vcvt.f32.s32 %v744
      %v746 = vcvt.f32.s32 %v740
      %v747 = vshll.u32 %v746, 16
      %v748 = vadd.s32 %v747, %v745
      %v749 = vand.u32 %v715, 65535
      %v750 = vshra.s32 %v715, 16
      %v751 = vcvt.s32.f32 %v749
      %v752 = vcvt.s32.f32 %v750
      %753 = vmin.xlane.f32.xlu0 %v752
      %v754 = vpop.xlane.xlu0 %753
      %vm755 = vcmp.eq.f32.partialorder %v752, %v754
      %v756 = vsel %vm755, %v751, inf
      %757 = vmin.xlane.f32.xlu0 %v756
      %v758 = vpop.xlane.xlu0 %757
      %v759 = vcvt.f32.s32 %v758
      %v760 = vcvt.f32.s32 %v754
      %v761 = vshll.u32 %v760, 16
      %v762 = vadd.s32 %v761, %v759
      %v763 = vand.u32 %v716, 65535
      %v764 = vshra.s32 %v716, 16
      %v765 = vcvt.s32.f32 %v763
      %v766 = vcvt.s32.f32 %v764
      %767 = vmin.xlane.f32.xlu0 %v766
      %v768 = vpop.xlane.xlu0 %767
      %vm769 = vcmp.eq.f32.partialorder %v766, %v768
      %v770 = vsel %vm769, %v765, inf
      %771 = vmin.xlane.f32.xlu0 %v770
      %v772 = vpop.xlane.xlu0 %771
      %v773 = vcvt.f32.s32 %v772
      %v774 = vcvt.f32.s32 %v768
      %v775 = vshll.u32 %v774, 16
      %v776 = vadd.s32 %v775, %v773
      %v777 = vand.u32 %v717, 65535
      %v778 = vshra.s32 %v717, 16
      %v779 = vcvt.s32.f32 %v777
      %v780 = vcvt.s32.f32 %v778
      %781 = vmin.xlane.f32.xlu0 %v780
      %v782 = vpop.xlane.xlu0 %781
      %vm783 = vcmp.eq.f32.partialorder %v780, %v782
      %v784 = vsel %vm783, %v779, inf
      %785 = vmin.xlane.f32.xlu0 %v784
      %v786 = vpop.xlane.xlu0 %785
      %v787 = vcvt.f32.s32 %v786
      %v788 = vcvt.f32.s32 %v782
      %v789 = vshll.u32 %v788, 16
      %v790 = vadd.s32 %v789, %v787
      %v791 = vand.u32 %v718, 65535
      %v792 = vshra.s32 %v718, 16
      %v793 = vcvt.s32.f32 %v791
      %v794 = vcvt.s32.f32 %v792
      %795 = vmin.xlane.f32.xlu0 %v794
      %v796 = vpop.xlane.xlu0 %795
      %vm797 = vcmp.eq.f32.partialorder %v794, %v796
      %v798 = vsel %vm797, %v793, inf
      %799 = vmin.xlane.f32.xlu0 %v798
      %v800 = vpop.xlane.xlu0 %799
      %v801 = vcvt.f32.s32 %v800
      %v802 = vcvt.f32.s32 %v796
      %v803 = vshll.u32 %v802, 16
      %v804 = vadd.s32 %v803, %v801
      %v805 = vand.u32 %v719, 65535
      %v806 = vshra.s32 %v719, 16
      %v807 = vcvt.s32.f32 %v805
      %v808 = vcvt.s32.f32 %v806
      %809 = vmin.xlane.f32.xlu0 %v808
      %v810 = vpop.xlane.xlu0 %809
      %vm811 = vcmp.eq.f32.partialorder %v808, %v810
      %v812 = vsel %vm811, %v807, inf
      %813 = vmin.xlane.f32.xlu0 %v812
      %v814 = vpop.xlane.xlu0 %813
      %v815 = vcvt.f32.s32 %v814
      %v816 = vcvt.f32.s32 %v810
      %v817 = vshll.u32 %v816, 16
      %v818 = vadd.s32 %v817, %v815
      %v819 = vand.u32 %v720, 65535
      %v820 = vshra.s32 %v720, 16
      %v821 = vcvt.s32.f32 %v819
      %v822 = vcvt.s32.f32 %v820
      %823 = vmin.xlane.f32.xlu0 %v822
      %v824 = vpop.xlane.xlu0 %823
      %vm825 = vcmp.eq.f32.partialorder %v822, %v824
      %v826 = vsel %vm825, %v821, inf
      %827 = vmin.xlane.f32.xlu0 %v826
      %v828 = vpop.xlane.xlu0 %827
      %v829 = vcvt.f32.s32 %v828
      %v830 = vcvt.f32.s32 %v824
      %v831 = vshll.u32 %v830, 16
      %v832 = vadd.s32 %v831, %v829
      %vm833 = vcmp.eq.s32.totalorder %v713, %v734
      %vm834 = vcmp.eq.s32.totalorder %v714, %v748
      %vm835 = vcmp.eq.s32.totalorder %v715, %v762
      %vm836 = vcmp.eq.s32.totalorder %v716, %v776
      %vm837 = vcmp.eq.s32.totalorder %v717, %v790
      %vm838 = vcmp.eq.s32.totalorder %v718, %v804
      %vm839 = vcmp.eq.s32.totalorder %v719, %v818
      %vm840 = vcmp.eq.s32.totalorder %v720, %v832
      %v841 = vsel %vm833, 1, 0
      %v842 = vsel %vm834, 1, 0
      %v843 = vsel %vm835, 1, 0
      %v844 = vsel %vm836, 1, 0
      %v845 = vsel %vm837, 1, 0
      %v846 = vsel %vm838, 1, 0
      %v847 = vsel %vm839, 1, 0
      %v848 = vsel %vm840, 1, 0
      %v849 = vcvt.s32.f32 %v841
      %v850 = vcvt.s32.f32 %v842
      %v851 = vcvt.s32.f32 %v843
      %v852 = vcvt.s32.f32 %v844
      %v853 = vcvt.s32.f32 %v845
      %v854 = vcvt.s32.f32 %v846
      %v855 = vcvt.s32.f32 %v847
      %v856 = vcvt.s32.f32 %v848
      %v857 = vlaneseq
      %v858 = vshrl.u32 %v857, 7
      %v859 = vsub.s32 1, %v858
      %v860 = vrot.slane %v467, %v859
      %861 = vmatprep.subr.mxu0 0.0
      %862 = vmatpush1.msra.mxu0 %v451
      %863 = vmatprep.subr.mxu0 0.0
      %864 = vmatpush1.msra.mxu0 %v452
      %865 = vmatprep.subr.mxu0 0.0
      %866 = vmatpush1.msra.mxu0 %v453
      %867 = vmatprep.subr.mxu0 0.0
      %868 = vmatpush1.msra.mxu0 %v454
      %869 = vmatprep.subr.mxu0 0.0
      %870 = vmatpush1.msra.mxu0 %v455
      %871 = vmatprep.subr.mxu0 0.0
      %872 = vmatpush1.msra.mxu0 %v456
      %873 = vmatprep.subr.mxu0 0.0
      %874 = vmatpush1.msra.mxu0 %v457
      %875 = vmatprep.subr.mxu0 0.0
      %876 = vmatpush1.msra.mxu0 %v458
      %877 = vmatprep.subr.mxu0 0.0
      %878 = vmatpush1.msra.mxu0 %v459
      %879 = vmatprep.subr.mxu0 0.0
      %880 = vmatpush1.msra.mxu0 %v460
      %881 = vmatprep.subr.mxu0 0.0
      %882 = vmatpush1.msra.mxu0 %v461
      %883 = vmatprep.subr.mxu0 0.0
      %884 = vmatpush1.msra.mxu0 %v462
      %885 = vmatprep.subr.mxu0 0.0
      %886 = vmatpush1.msra.mxu0 %v463
      %887 = vmatprep.subr.mxu0 0.0
      %888 = vmatpush1.msra.mxu0 %v464
      %889 = vmatprep.subr.mxu0 0.0
      %890 = vmatpush1.msra.mxu0 %v465
      %891 = vmatprep.subr.mxu0 0.0
      %892 = vmatpush1.msra.mxu0 %v466
      %893 = vmatprep.subr.mxu0 0.0
      %894 = vmatpush1.msra.mxu0 0.0
      %895 = vmatprep.subr.mxu0 0.0
      %896 = vmatpush1.msra.mxu0 0.0
      %897 = vmatprep.subr.mxu0 0.0
      %898 = vmatpush1.msra.mxu0 0.0
      %899 = vmatprep.subr.mxu0 0.0
      %900 = vmatpush1.msra.mxu0 0.0
      %901 = vmatprep.subr.mxu0 0.0
      %902 = vmatpush1.msra.mxu0 0.0
      %903 = vmatprep.subr.mxu0 0.0
      %904 = vmatpush1.msra.mxu0 0.0
      %905 = vmatprep.subr.mxu0 0.0
      %906 = vmatpush1.msra.mxu0 0.0
      %907 = vmatprep.subr.mxu0 0.0
      %908 = vmatpush1.msra.mxu0 0.0
      %909 = vmatprep.subr.mxu0 0.0
      %910 = vmatpush1.msra.mxu0 0.0
      %911 = vmatprep.subr.mxu0 0.0
      %912 = vmatpush1.msra.mxu0 0.0
      %913 = vmatprep.subr.mxu0 0.0
      %914 = vmatpush1.msra.mxu0 0.0
      %915 = vmatprep.subr.mxu0 0.0
      %916 = vmatpush1.msra.mxu0 0.0
      %917 = vmatprep.subr.mxu0 0.0
      %918 = vmatpush1.msra.mxu0 0.0
      %919 = vmatprep.subr.mxu0 0.0
      %920 = vmatpush1.msra.mxu0 0.0
      %921 = vmatprep.subr.mxu0 0.0
      %922 = vmatpush1.msra.mxu0 0.0
      %923 = vmatprep.subr.mxu0 0.0
      %924 = vmatpush1.msra.mxu0 0.0
      %925 = vmatprep.mubr.f32.mxu0 0.0
      %926 = vmatmul.mubr.f32.gmra.mrb[0].mxu0 %v849
      %v927 = vpop.f32.mrb[0].mxu0
      %v928 = vadd.f32 %v860, %v927
      %v929 = vpop.f32.mrb[0].mxu0
      %930 = vmatprep.mubr.f32.mxu0 0.0
      %931 = vmatmul.mubr.f32.gmra.mrb[0].mxu0 %v850
      %v932 = vpop.f32.mrb[0].mxu0
      %v933 = vadd.f32 %v860, %v932
      %v934 = vpop.f32.mrb[0].mxu0
      %935 = vmatprep.mubr.f32.mxu0 0.0
      %936 = vmatmul.mubr.f32.gmra.mrb[0].mxu0 %v851
      %v937 = vpop.f32.mrb[0].mxu0
      %v938 = vadd.f32 %v860, %v937
      %v939 = vpop.f32.mrb[0].mxu0
      %940 = vmatprep.mubr.f32.mxu0 0.0
      %941 = vmatmul.mubr.f32.gmra.mrb[0].mxu0 %v852
      %v942 = vpop.f32.mrb[0].mxu0
      %v943 = vadd.f32 %v860, %v942
      %v944 = vpop.f32.mrb[0].mxu0
      %945 = vmatprep.mubr.f32.mxu0 0.0
      %946 = vmatmul.mubr.f32.gmra.mrb[0].mxu0 %v853
      %v947 = vpop.f32.mrb[0].mxu0
      %v948 = vadd.f32 %v860, %v947
      %v949 = vpop.f32.mrb[0].mxu0
      %950 = vmatprep.mubr.f32.mxu0 0.0
      %951 = vmatmul.mubr.f32.gmra.mrb[0].mxu0 %v854
      %v952 = vpop.f32.mrb[0].mxu0
      %v953 = vadd.f32 %v860, %v952
      %v954 = vpop.f32.mrb[0].mxu0
      %955 = vmatprep.mubr.f32.mxu0 0.0
      %956 = vmatmul.mubr.f32.gmra.mrb[0].mxu0 %v855
      %v957 = vpop.f32.mrb[0].mxu0
      %v958 = vadd.f32 %v860, %v957
      %v959 = vpop.f32.mrb[0].mxu0
      %960 = vmatprep.mubr.f32.mxu0 0.0
      %961 = vmatmul.mubr.f32.gmra.mrb[0].mxu0 %v856
      %v962 = vpop.f32.mrb[0].mxu0
      %v963 = vadd.f32 %v860, %v962
      %v964 = vpop.f32.mrb[0].mxu0
      %965 = vdwg.mxu0
      %v966 = vmax.f32 %v675, %v928
      %v967 = vmax.f32 %v680, %v933
      %v968 = vmax.f32 %v685, %v938
      %v969 = vmax.f32 %v690, %v943
      %v970 = vmax.f32 %v695, %v948
      %v971 = vmax.f32 %v700, %v953
      %v972 = vmax.f32 %v705, %v958
      %v973 = vmax.f32 %v710, %v963
      %v974 = vsel %vm833, 2147483647, %v713
      %v975 = vsel %vm834, 2147483647, %v714
      %v976 = vsel %vm835, 2147483647, %v715
      %v977 = vsel %vm836, 2147483647, %v716
      %v978 = vsel %vm837, 2147483647, %v717
      %v979 = vsel %vm838, 2147483647, %v718
      %v980 = vsel %vm839, 2147483647, %v719
      %v981 = vsel %vm840, 2147483647, %v720
      %v982 = vand.u32 %v974, 65535
      %v983 = vshra.s32 %v974, 16
      %v984 = vcvt.s32.f32 %v982
      %v985 = vcvt.s32.f32 %v983
      %986 = vmin.xlane.f32.xlu0 %v985
      %v987 = vpop.xlane.xlu0 %986
      %vm988 = vcmp.eq.f32.partialorder %v985, %v987
      %v989 = vsel %vm988, %v984, inf
      %990 = vmin.xlane.f32.xlu0 %v989
      %v991 = vpop.xlane.xlu0 %990
      %v992 = vcvt.f32.s32 %v991
      %v993 = vcvt.f32.s32 %v987
      %v994 = vshll.u32 %v993, 16
      %v995 = vadd.s32 %v994, %v992
      %v996 = vand.u32 %v975, 65535
      %v997 = vshra.s32 %v975, 16
      %v998 = vcvt.s32.f32 %v996
      %v999 = vcvt.s32.f32 %v997
      %1000 = vmin.xlane.f32.xlu0 %v999
      %v1001 = vpop.xlane.xlu0 %1000
      %vm1002 = vcmp.eq.f32.partialorder %v999, %v1001
      %v1003 = vsel %vm1002, %v998, inf
      %1004 = vmin.xlane.f32.xlu0 %v1003
      %v1005 = vpop.xlane.xlu0 %1004
      %v1006 = vcvt.f32.s32 %v1005
      %v1007 = vcvt.f32.s32 %v1001
      %v1008 = vshll.u32 %v1007, 16
      %v1009 = vadd.s32 %v1008, %v1006
      %v1010 = vand.u32 %v976, 65535
      %v1011 = vshra.s32 %v976, 16
      %v1012 = vcvt.s32.f32 %v1010
      %v1013 = vcvt.s32.f32 %v1011
      %1014 = vmin.xlane.f32.xlu0 %v1013
      %v1015 = vpop.xlane.xlu0 %1014
      %vm1016 = vcmp.eq.f32.partialorder %v1013, %v1015
      %v1017 = vsel %vm1016, %v1012, inf
      %1018 = vmin.xlane.f32.xlu0 %v1017
      %v1019 = vpop.xlane.xlu0 %1018
      %v1020 = vcvt.f32.s32 %v1019
      %v1021 = vcvt.f32.s32 %v1015
      %v1022 = vshll.u32 %v1021, 16
      %v1023 = vadd.s32 %v1022, %v1020
      %v1024 = vand.u32 %v977, 65535
      %v1025 = vshra.s32 %v977, 16
      %v1026 = vcvt.s32.f32 %v1024
      %v1027 = vcvt.s32.f32 %v1025
      %1028 = vmin.xlane.f32.xlu0 %v1027
      %v1029 = vpop.xlane.xlu0 %1028
      %vm1030 = vcmp.eq.f32.partialorder %v1027, %v1029
      %v1031 = vsel %vm1030, %v1026, inf
      %1032 = vmin.xlane.f32.xlu0 %v1031
      %v1033 = vpop.xlane.xlu0 %1032
      %v1034 = vcvt.f32.s32 %v1033
      %v1035 = vcvt.f32.s32 %v1029
      %v1036 = vshll.u32 %v1035, 16
      %v1037 = vadd.s32 %v1036, %v1034
      %v1038 = vand.u32 %v978, 65535
      %v1039 = vshra.s32 %v978, 16
      %v1040 = vcvt.s32.f32 %v1038
      %v1041 = vcvt.s32.f32 %v1039
      %1042 = vmin.xlane.f32.xlu0 %v1041
      %v1043 = vpop.xlane.xlu0 %1042
      %vm1044 = vcmp.eq.f32.partialorder %v1041, %v1043
      %v1045 = vsel %vm1044, %v1040, inf
      %1046 = vmin.xlane.f32.xlu0 %v1045
      %v1047 = vpop.xlane.xlu0 %1046
      %v1048 = vcvt.f32.s32 %v1047
      %v1049 = vcvt.f32.s32 %v1043
      %v1050 = vshll.u32 %v1049, 16
      %v1051 = vadd.s32 %v1050, %v1048
      %v1052 = vand.u32 %v979, 65535
      %v1053 = vshra.s32 %v979, 16
      %v1054 = vcvt.s32.f32 %v1052
      %v1055 = vcvt.s32.f32 %v1053
      %1056 = vmin.xlane.f32.xlu0 %v1055
      %v1057 = vpop.xlane.xlu0 %1056
      %vm1058 = vcmp.eq.f32.partialorder %v1055, %v1057
      %v1059 = vsel %vm1058, %v1054, inf
      %1060 = vmin.xlane.f32.xlu0 %v1059
      %v1061 = vpop.xlane.xlu0 %1060
      %v1062 = vcvt.f32.s32 %v1061
      %v1063 = vcvt.f32.s32 %v1057
      %v1064 = vshll.u32 %v1063, 16
      %v1065 = vadd.s32 %v1064, %v1062
      %v1066 = vand.u32 %v980, 65535
      %v1067 = vshra.s32 %v980, 16
      %v1068 = vcvt.s32.f32 %v1066
      %v1069 = vcvt.s32.f32 %v1067
      %1070 = vmin.xlane.f32.xlu0 %v1069
      %v1071 = vpop.xlane.xlu0 %1070
      %vm1072 = vcmp.eq.f32.partialorder %v1069, %v1071
      %v1073 = vsel %vm1072, %v1068, inf
      %1074 = vmin.xlane.f32.xlu0 %v1073
      %v1075 = vpop.xlane.xlu0 %1074
      %v1076 = vcvt.f32.s32 %v1075
      %v1077 = vcvt.f32.s32 %v1071
      %v1078 = vshll.u32 %v1077, 16
      %v1079 = vadd.s32 %v1078, %v1076
      %v1080 = vand.u32 %v981, 65535
      %v1081 = vshra.s32 %v981, 16
      %v1082 = vcvt.s32.f32 %v1080
      %v1083 = vcvt.s32.f32 %v1081
      %1084 = vmin.xlane.f32.xlu0 %v1083
      %v1085 = vpop.xlane.xlu0 %1084
      %vm1086 = vcmp.eq.f32.partialorder %v1083, %v1085
      %v1087 = vsel %vm1086, %v1082, inf
      %1088 = vmin.xlane.f32.xlu0 %v1087
      %v1089 = vpop.xlane.xlu0 %1088
      %v1090 = vcvt.f32.s32 %v1089
      %v1091 = vcvt.f32.s32 %v1085
      %v1092 = vshll.u32 %v1091, 16
      %v1093 = vadd.s32 %v1092, %v1090
      %vm1094 = vcmp.eq.s32.totalorder %v974, %v995
      %vm1095 = vcmp.eq.s32.totalorder %v975, %v1009
      %vm1096 = vcmp.eq.s32.totalorder %v976, %v1023
      %vm1097 = vcmp.eq.s32.totalorder %v977, %v1037
      %vm1098 = vcmp.eq.s32.totalorder %v978, %v1051
      %vm1099 = vcmp.eq.s32.totalorder %v979, %v1065
      %vm1100 = vcmp.eq.s32.totalorder %v980, %v1079
      %vm1101 = vcmp.eq.s32.totalorder %v981, %v1093
      %v1102 = vsel %vm1094, 1, 0
      %v1103 = vsel %vm1095, 1, 0
      %v1104 = vsel %vm1096, 1, 0
      %v1105 = vsel %vm1097, 1, 0
      %v1106 = vsel %vm1098, 1, 0
      %v1107 = vsel %vm1099, 1, 0
      %v1108 = vsel %vm1100, 1, 0
      %v1109 = vsel %vm1101, 1, 0
      %v1110 = vcvt.s32.f32 %v1102
      %v1111 = vcvt.s32.f32 %v1103
      %v1112 = vcvt.s32.f32 %v1104
      %v1113 = vcvt.s32.f32 %v1105
      %v1114 = vcvt.s32.f32 %v1106
      %v1115 = vcvt.s32.f32 %v1107
      %v1116 = vcvt.s32.f32 %v1108
      %v1117 = vcvt.s32.f32 %v1109
      %v1118 = vlaneseq
      %v1119 = vshrl.u32 %v1118, 7
      %v1120 = vsub.s32 2, %v1119
      %v1121 = vrot.slane %v467, %v1120
      %1122 = vmatprep.subr.mxu0 0.0
      %1123 = vmatpush1.msra.mxu0 %v451
      %1124 = vmatprep.subr.mxu0 0.0
      %1125 = vmatpush1.msra.mxu0 %v452
      %1126 = vmatprep.subr.mxu0 0.0
      %1127 = vmatpush1.msra.mxu0 %v453
      %1128 = vmatprep.subr.mxu0 0.0
      %1129 = vmatpush1.msra.mxu0 %v454
      %1130 = vmatprep.subr.mxu0 0.0
      %1131 = vmatpush1.msra.mxu0 %v455
      %1132 = vmatprep.subr.mxu0 0.0
      %1133 = vmatpush1.msra.mxu0 %v456
      %1134 = vmatprep.subr.mxu0 0.0
      %1135 = vmatpush1.msra.mxu0 %v457
      %1136 = vmatprep.subr.mxu0 0.0
      %1137 = vmatpush1.msra.mxu0 %v458
      %1138 = vmatprep.subr.mxu0 0.0
      %1139 = vmatpush1.msra.mxu0 %v459
      %1140 = vmatprep.subr.mxu0 0.0
      %1141 = vmatpush1.msra.mxu0 %v460
      %1142 = vmatprep.subr.mxu0 0.0
      %1143 = vmatpush1.msra.mxu0 %v461
      %1144 = vmatprep.subr.mxu0 0.0
      %1145 = vmatpush1.msra.mxu0 %v462
      %1146 = vmatprep.subr.mxu0 0.0
      %1147 = vmatpush1.msra.mxu0 %v463
      %1148 = vmatprep.subr.mxu0 0.0
      %1149 = vmatpush1.msra.mxu0 %v464
      %1150 = vmatprep.subr.mxu0 0.0
      %1151 = vmatpush1.msra.mxu0 %v465
      %1152 = vmatprep.subr.mxu0 0.0
      %1153 = vmatpush1.msra.mxu0 %v466
      %1154 = vmatprep.subr.mxu0 0.0
      %1155 = vmatpush1.msra.mxu0 0.0
      %1156 = vmatprep.subr.mxu0 0.0
      %1157 = vmatpush1.msra.mxu0 0.0
      %1158 = vmatprep.subr.mxu0 0.0
      %1159 = vmatpush1.msra.mxu0 0.0
      %1160 = vmatprep.subr.mxu0 0.0
      %1161 = vmatpush1.msra.mxu0 0.0
      %1162 = vmatprep.subr.mxu0 0.0
      %1163 = vmatpush1.msra.mxu0 0.0
      %1164 = vmatprep.subr.mxu0 0.0
      %1165 = vmatpush1.msra.mxu0 0.0
      %1166 = vmatprep.subr.mxu0 0.0
      %1167 = vmatpush1.msra.mxu0 0.0
      %1168 = vmatprep.subr.mxu0 0.0
      %1169 = vmatpush1.msra.mxu0 0.0
      %1170 = vmatprep.subr.mxu0 0.0
      %1171 = vmatpush1.msra.mxu0 0.0
      %1172 = vmatprep.subr.mxu0 0.0
      %1173 = vmatpush1.msra.mxu0 0.0
      %1174 = vmatprep.subr.mxu0 0.0
      %1175 = vmatpush1.msra.mxu0 0.0
      %1176 = vmatprep.subr.mxu0 0.0
      %1177 = vmatpush1.msra.mxu0 0.0
      %1178 = vmatprep.subr.mxu0 0.0
      %1179 = vmatpush1.msra.mxu0 0.0
      %1180 = vmatprep.subr.mxu0 0.0
      %1181 = vmatpush1.msra.mxu0 0.0
      %1182 = vmatprep.subr.mxu0 0.0
      %1183 = vmatpush1.msra.mxu0 0.0
      %1184 = vmatprep.subr.mxu0 0.0
      %1185 = vmatpush1.msra.mxu0 0.0
      %1186 = vmatprep.mubr.f32.mxu0 0.0
      %1187 = vmatmul.mubr.f32.gmra.mrb[0].mxu0 %v1110
      %v1188 = vpop.f32.mrb[0].mxu0
      %v1189 = vadd.f32 %v1121, %v1188
      %v1190 = vpop.f32.mrb[0].mxu0
      %1191 = vmatprep.mubr.f32.mxu0 0.0
      %1192 = vmatmul.mubr.f32.gmra.mrb[0].mxu0 %v1111
      %v1193 = vpop.f32.mrb[0].mxu0
      %v1194 = vadd.f32 %v1121, %v1193
      %v1195 = vpop.f32.mrb[0].mxu0
      %1196 = vmatprep.mubr.f32.mxu0 0.0
      %1197 = vmatmul.mubr.f32.gmra.mrb[0].mxu0 %v1112
      %v1198 = vpop.f32.mrb[0].mxu0
      %v1199 = vadd.f32 %v1121, %v1198
      %v1200 = vpop.f32.mrb[0].mxu0
      %1201 = vmatprep.mubr.f32.mxu0 0.0
      %1202 = vmatmul.mubr.f32.gmra.mrb[0].mxu0 %v1113
      %v1203 = vpop.f32.mrb[0].mxu0
      %v1204 = vadd.f32 %v1121, %v1203
      %v1205 = vpop.f32.mrb[0].mxu0
      %1206 = vmatprep.mubr.f32.mxu0 0.0
      %1207 = vmatmul.mubr.f32.gmra.mrb[0].mxu0 %v1114
      %v1208 = vpop.f32.mrb[0].mxu0
      %v1209 = vadd.f32 %v1121, %v1208
      %v1210 = vpop.f32.mrb[0].mxu0
      %1211 = vmatprep.mubr.f32.mxu0 0.0
      %1212 = vmatmul.mubr.f32.gmra.mrb[0].mxu0 %v1115
      %v1213 = vpop.f32.mrb[0].mxu0
      %v1214 = vadd.f32 %v1121, %v1213
      %v1215 = vpop.f32.mrb[0].mxu0
      %1216 = vmatprep.mubr.f32.mxu0 0.0
      %1217 = vmatmul.mubr.f32.gmra.mrb[0].mxu0 %v1116
      %v1218 = vpop.f32.mrb[0].mxu0
      %v1219 = vadd.f32 %v1121, %v1218
      %v1220 = vpop.f32.mrb[0].mxu0
      %1221 = vmatprep.mubr.f32.mxu0 0.0
      %1222 = vmatmul.mubr.f32.gmra.mrb[0].mxu0 %v1117
      %v1223 = vpop.f32.mrb[0].mxu0
      %v1224 = vadd.f32 %v1121, %v1223
      %v1225 = vpop.f32.mrb[0].mxu0
      %1226 = vdwg.mxu0
      %v1227 = vmax.f32 %v966, %v1189
      %v1228 = vmax.f32 %v967, %v1194
      %v1229 = vmax.f32 %v968, %v1199
      %v1230 = vmax.f32 %v969, %v1204
      %v1231 = vmax.f32 %v970, %v1209
      %v1232 = vmax.f32 %v971, %v1214
      %v1233 = vmax.f32 %v972, %v1219
      %v1234 = vmax.f32 %v973, %v1224
      %v1235 = vsel %vm1094, 2147483647, %v974
      %v1236 = vsel %vm1095, 2147483647, %v975
      %v1237 = vsel %vm1096, 2147483647, %v976
      %v1238 = vsel %vm1097, 2147483647, %v977
      %v1239 = vsel %vm1098, 2147483647, %v978
      %v1240 = vsel %vm1099, 2147483647, %v979
      %v1241 = vsel %vm1100, 2147483647, %v980
      %v1242 = vsel %vm1101, 2147483647, %v981
      %v1243 = vand.u32 %v1235, 65535
      %v1244 = vshra.s32 %v1235, 16
      %v1245 = vcvt.s32.f32 %v1243
      %v1246 = vcvt.s32.f32 %v1244
      %1247 = vmin.xlane.f32.xlu0 %v1246
      %v1248 = vpop.xlane.xlu0 %1247
      %vm1249 = vcmp.eq.f32.partialorder %v1246, %v1248
      %v1250 = vsel %vm1249, %v1245, inf
      %1251 = vmin.xlane.f32.xlu0 %v1250
      %v1252 = vpop.xlane.xlu0 %1251
      %v1253 = vcvt.f32.s32 %v1252
      %v1254 = vcvt.f32.s32 %v1248
      %v1255 = vshll.u32 %v1254, 16
      %v1256 = vadd.s32 %v1255, %v1253
      %v1257 = vand.u32 %v1236, 65535
      %v1258 = vshra.s32 %v1236, 16
      %v1259 = vcvt.s32.f32 %v1257
      %v1260 = vcvt.s32.f32 %v1258
      %1261 = vmin.xlane.f32.xlu0 %v1260
      %v1262 = vpop.xlane.xlu0 %1261
      %vm1263 = vcmp.eq.f32.partialorder %v1260, %v1262
      %v1264 = vsel %vm1263, %v1259, inf
      %1265 = vmin.xlane.f32.xlu0 %v1264
      %v1266 = vpop.xlane.xlu0 %1265
      %v1267 = vcvt.f32.s32 %v1266
      %v1268 = vcvt.f32.s32 %v1262
      %v1269 = vshll.u32 %v1268, 16
      %v1270 = vadd.s32 %v1269, %v1267
      %v1271 = vand.u32 %v1237, 65535
      %v1272 = vshra.s32 %v1237, 16
      %v1273 = vcvt.s32.f32 %v1271
      %v1274 = vcvt.s32.f32 %v1272
      %1275 = vmin.xlane.f32.xlu0 %v1274
      %v1276 = vpop.xlane.xlu0 %1275
      %vm1277 = vcmp.eq.f32.partialorder %v1274, %v1276
      %v1278 = vsel %vm1277, %v1273, inf
      %1279 = vmin.xlane.f32.xlu0 %v1278
      %v1280 = vpop.xlane.xlu0 %1279
      %v1281 = vcvt.f32.s32 %v1280
      %v1282 = vcvt.f32.s32 %v1276
      %v1283 = vshll.u32 %v1282, 16
      %v1284 = vadd.s32 %v1283, %v1281
      %v1285 = vand.u32 %v1238, 65535
      %v1286 = vshra.s32 %v1238, 16
      %v1287 = vcvt.s32.f32 %v1285
      %v1288 = vcvt.s32.f32 %v1286
      %1289 = vmin.xlane.f32.xlu0 %v1288
      %v1290 = vpop.xlane.xlu0 %1289
      %vm1291 = vcmp.eq.f32.partialorder %v1288, %v1290
      %v1292 = vsel %vm1291, %v1287, inf
      %1293 = vmin.xlane.f32.xlu0 %v1292
      %v1294 = vpop.xlane.xlu0 %1293
      %v1295 = vcvt.f32.s32 %v1294
      %v1296 = vcvt.f32.s32 %v1290
      %v1297 = vshll.u32 %v1296, 16
      %v1298 = vadd.s32 %v1297, %v1295
      %v1299 = vand.u32 %v1239, 65535
      %v1300 = vshra.s32 %v1239, 16
      %v1301 = vcvt.s32.f32 %v1299
      %v1302 = vcvt.s32.f32 %v1300
      %1303 = vmin.xlane.f32.xlu0 %v1302
      %v1304 = vpop.xlane.xlu0 %1303
      %vm1305 = vcmp.eq.f32.partialorder %v1302, %v1304
      %v1306 = vsel %vm1305, %v1301, inf
      %1307 = vmin.xlane.f32.xlu0 %v1306
      %v1308 = vpop.xlane.xlu0 %1307
      %v1309 = vcvt.f32.s32 %v1308
      %v1310 = vcvt.f32.s32 %v1304
      %v1311 = vshll.u32 %v1310, 16
      %v1312 = vadd.s32 %v1311, %v1309
      %v1313 = vand.u32 %v1240, 65535
      %v1314 = vshra.s32 %v1240, 16
      %v1315 = vcvt.s32.f32 %v1313
      %v1316 = vcvt.s32.f32 %v1314
      %1317 = vmin.xlane.f32.xlu0 %v1316
      %v1318 = vpop.xlane.xlu0 %1317
      %vm1319 = vcmp.eq.f32.partialorder %v1316, %v1318
      %v1320 = vsel %vm1319, %v1315, inf
      %1321 = vmin.xlane.f32.xlu0 %v1320
      %v1322 = vpop.xlane.xlu0 %1321
      %v1323 = vcvt.f32.s32 %v1322
      %v1324 = vcvt.f32.s32 %v1318
      %v1325 = vshll.u32 %v1324, 16
      %v1326 = vadd.s32 %v1325, %v1323
      %v1327 = vand.u32 %v1241, 65535
      %v1328 = vshra.s32 %v1241, 16
      %v1329 = vcvt.s32.f32 %v1327
      %v1330 = vcvt.s32.f32 %v1328
      %1331 = vmin.xlane.f32.xlu0 %v1330
      %v1332 = vpop.xlane.xlu0 %1331
      %vm1333 = vcmp.eq.f32.partialorder %v1330, %v1332
      %v1334 = vsel %vm1333, %v1329, inf
      %1335 = vmin.xlane.f32.xlu0 %v1334
      %v1336 = vpop.xlane.xlu0 %1335
      %v1337 = vcvt.f32.s32 %v1336
      %v1338 = vcvt.f32.s32 %v1332
      %v1339 = vshll.u32 %v1338, 16
      %v1340 = vadd.s32 %v1339, %v1337
      %v1341 = vand.u32 %v1242, 65535
      %v1342 = vshra.s32 %v1242, 16
      %v1343 = vcvt.s32.f32 %v1341
      %v1344 = vcvt.s32.f32 %v1342
      %1345 = vmin.xlane.f32.xlu0 %v1344
      %v1346 = vpop.xlane.xlu0 %1345
      %vm1347 = vcmp.eq.f32.partialorder %v1344, %v1346
      %v1348 = vsel %vm1347, %v1343, inf
      %1349 = vmin.xlane.f32.xlu0 %v1348
      %v1350 = vpop.xlane.xlu0 %1349
      %v1351 = vcvt.f32.s32 %v1350
      %v1352 = vcvt.f32.s32 %v1346
      %v1353 = vshll.u32 %v1352, 16
      %v1354 = vadd.s32 %v1353, %v1351
      %vm1355 = vcmp.eq.s32.totalorder %v1235, %v1256
      %vm1356 = vcmp.eq.s32.totalorder %v1236, %v1270
      %vm1357 = vcmp.eq.s32.totalorder %v1237, %v1284
      %vm1358 = vcmp.eq.s32.totalorder %v1238, %v1298
      %vm1359 = vcmp.eq.s32.totalorder %v1239, %v1312
      %vm1360 = vcmp.eq.s32.totalorder %v1240, %v1326
      %vm1361 = vcmp.eq.s32.totalorder %v1241, %v1340
      %vm1362 = vcmp.eq.s32.totalorder %v1242, %v1354
      %v1363 = vsel %vm1355, 1, 0
      %v1364 = vsel %vm1356, 1, 0
      %v1365 = vsel %vm1357, 1, 0
      %v1366 = vsel %vm1358, 1, 0
      %v1367 = vsel %vm1359, 1, 0
      %v1368 = vsel %vm1360, 1, 0
      %v1369 = vsel %vm1361, 1, 0
      %v1370 = vsel %vm1362, 1, 0
      %v1371 = vcvt.s32.f32 %v1363
      %v1372 = vcvt.s32.f32 %v1364
      %v1373 = vcvt.s32.f32 %v1365
      %v1374 = vcvt.s32.f32 %v1366
      %v1375 = vcvt.s32.f32 %v1367
      %v1376 = vcvt.s32.f32 %v1368
      %v1377 = vcvt.s32.f32 %v1369
      %v1378 = vcvt.s32.f32 %v1370
      %v1379 = vlaneseq
      %v1380 = vshrl.u32 %v1379, 7
      %v1381 = vsub.s32 3, %v1380
      %v1382 = vrot.slane %v467, %v1381
      %1383 = vmatprep.subr.mxu0 0.0
      %1384 = vmatpush1.msra.mxu0 %v451
      %1385 = vmatprep.subr.mxu0 0.0
      %1386 = vmatpush1.msra.mxu0 %v452
      %1387 = vmatprep.subr.mxu0 0.0
      %1388 = vmatpush1.msra.mxu0 %v453
      %1389 = vmatprep.subr.mxu0 0.0
      %1390 = vmatpush1.msra.mxu0 %v454
      %1391 = vmatprep.subr.mxu0 0.0
      %1392 = vmatpush1.msra.mxu0 %v455
      %1393 = vmatprep.subr.mxu0 0.0
      %1394 = vmatpush1.msra.mxu0 %v456
      %1395 = vmatprep.subr.mxu0 0.0
      %1396 = vmatpush1.msra.mxu0 %v457
      %1397 = vmatprep.subr.mxu0 0.0
      %1398 = vmatpush1.msra.mxu0 %v458
      %1399 = vmatprep.subr.mxu0 0.0
      %1400 = vmatpush1.msra.mxu0 %v459
      %1401 = vmatprep.subr.mxu0 0.0
      %1402 = vmatpush1.msra.mxu0 %v460
      %1403 = vmatprep.subr.mxu0 0.0
      %1404 = vmatpush1.msra.mxu0 %v461
      %1405 = vmatprep.subr.mxu0 0.0
      %1406 = vmatpush1.msra.mxu0 %v462
      %1407 = vmatprep.subr.mxu0 0.0
      %1408 = vmatpush1.msra.mxu0 %v463
      %1409 = vmatprep.subr.mxu0 0.0
      %1410 = vmatpush1.msra.mxu0 %v464
      %1411 = vmatprep.subr.mxu0 0.0
      %1412 = vmatpush1.msra.mxu0 %v465
      %1413 = vmatprep.subr.mxu0 0.0
      %1414 = vmatpush1.msra.mxu0 %v466
      %1415 = vmatprep.subr.mxu0 0.0
      %1416 = vmatpush1.msra.mxu0 0.0
      %1417 = vmatprep.subr.mxu0 0.0
      %1418 = vmatpush1.msra.mxu0 0.0
      %1419 = vmatprep.subr.mxu0 0.0
      %1420 = vmatpush1.msra.mxu0 0.0
      %1421 = vmatprep.subr.mxu0 0.0
      %1422 = vmatpush1.msra.mxu0 0.0
      %1423 = vmatprep.subr.mxu0 0.0
      %1424 = vmatpush1.msra.mxu0 0.0
      %1425 = vmatprep.subr.mxu0 0.0
      %1426 = vmatpush1.msra.mxu0 0.0
      %1427 = vmatprep.subr.mxu0 0.0
      %1428 = vmatpush1.msra.mxu0 0.0
      %1429 = vmatprep.subr.mxu0 0.0
      %1430 = vmatpush1.msra.mxu0 0.0
      %1431 = vmatprep.subr.mxu0 0.0
      %1432 = vmatpush1.msra.mxu0 0.0
      %1433 = vmatprep.subr.mxu0 0.0
      %1434 = vmatpush1.msra.mxu0 0.0
      %1435 = vmatprep.subr.mxu0 0.0
      %1436 = vmatpush1.msra.mxu0 0.0
      %1437 = vmatprep.subr.mxu0 0.0
      %1438 = vmatpush1.msra.mxu0 0.0
      %1439 = vmatprep.subr.mxu0 0.0
      %1440 = vmatpush1.msra.mxu0 0.0
      %1441 = vmatprep.subr.mxu0 0.0
      %1442 = vmatpush1.msra.mxu0 0.0
      %1443 = vmatprep.subr.mxu0 0.0
      %1444 = vmatpush1.msra.mxu0 0.0
      %1445 = vmatprep.subr.mxu0 0.0
      %1446 = vmatpush1.msra.mxu0 0.0
      %1447 = vmatprep.mubr.f32.mxu0 0.0
      %1448 = vmatmul.mubr.f32.gmra.mrb[0].mxu0 %v1371
      %v1449 = vpop.f32.mrb[0].mxu0
      %v1450 = vadd.f32 %v1382, %v1449
      %v1451 = vpop.f32.mrb[0].mxu0
      %1452 = vmatprep.mubr.f32.mxu0 0.0
      %1453 = vmatmul.mubr.f32.gmra.mrb[0].mxu0 %v1372
      %v1454 = vpop.f32.mrb[0].mxu0
      %v1455 = vadd.f32 %v1382, %v1454
      %v1456 = vpop.f32.mrb[0].mxu0
      %1457 = vmatprep.mubr.f32.mxu0 0.0
      %1458 = vmatmul.mubr.f32.gmra.mrb[0].mxu0 %v1373
      %v1459 = vpop.f32.mrb[0].mxu0
      %v1460 = vadd.f32 %v1382, %v1459
      %v1461 = vpop.f32.mrb[0].mxu0
      %1462 = vmatprep.mubr.f32.mxu0 0.0
      %1463 = vmatmul.mubr.f32.gmra.mrb[0].mxu0 %v1374
      %v1464 = vpop.f32.mrb[0].mxu0
      %v1465 = vadd.f32 %v1382, %v1464
      %v1466 = vpop.f32.mrb[0].mxu0
      %1467 = vmatprep.mubr.f32.mxu0 0.0
      %1468 = vmatmul.mubr.f32.gmra.mrb[0].mxu0 %v1375
      %v1469 = vpop.f32.mrb[0].mxu0
      %v1470 = vadd.f32 %v1382, %v1469
      %v1471 = vpop.f32.mrb[0].mxu0
      %1472 = vmatprep.mubr.f32.mxu0 0.0
      %1473 = vmatmul.mubr.f32.gmra.mrb[0].mxu0 %v1376
      %v1474 = vpop.f32.mrb[0].mxu0
      %v1475 = vadd.f32 %v1382, %v1474
      %v1476 = vpop.f32.mrb[0].mxu0
      %1477 = vmatprep.mubr.f32.mxu0 0.0
      %1478 = vmatmul.mubr.f32.gmra.mrb[0].mxu0 %v1377
      %v1479 = vpop.f32.mrb[0].mxu0
      %v1480 = vadd.f32 %v1382, %v1479
      %v1481 = vpop.f32.mrb[0].mxu0
      %1482 = vmatprep.mubr.f32.mxu0 0.0
      %1483 = vmatmul.mubr.f32.gmra.mrb[0].mxu0 %v1378
      %v1484 = vpop.f32.mrb[0].mxu0
      %v1485 = vadd.f32 %v1382, %v1484
      %v1486 = vpop.f32.mrb[0].mxu0
      %1487 = vdwg.mxu0
      %v1488 = vmax.f32 %v1227, %v1450
      %v1489 = vmax.f32 %v1228, %v1455
      %v1490 = vmax.f32 %v1229, %v1460
      %v1491 = vmax.f32 %v1230, %v1465
      %v1492 = vmax.f32 %v1231, %v1470
      %v1493 = vmax.f32 %v1232, %v1475
      %v1494 = vmax.f32 %v1233, %v1480
      %v1495 = vmax.f32 %v1234, %v1485
      %v1496 = vsel %vm1355, 2147483647, %v1235
      %v1497 = vsel %vm1356, 2147483647, %v1236
      %v1498 = vsel %vm1357, 2147483647, %v1237
      %v1499 = vsel %vm1358, 2147483647, %v1238
      %v1500 = vsel %vm1359, 2147483647, %v1239
      %v1501 = vsel %vm1360, 2147483647, %v1240
      %v1502 = vsel %vm1361, 2147483647, %v1241
      %v1503 = vsel %vm1362, 2147483647, %v1242
      %v1504 = vand.u32 %v1496, 65535
      %v1505 = vshra.s32 %v1496, 16
      %v1506 = vcvt.s32.f32 %v1504
      %v1507 = vcvt.s32.f32 %v1505
      %1508 = vmin.xlane.f32.xlu0 %v1507
      %v1509 = vpop.xlane.xlu0 %1508
      %vm1510 = vcmp.eq.f32.partialorder %v1507, %v1509
      %v1511 = vsel %vm1510, %v1506, inf
      %1512 = vmin.xlane.f32.xlu0 %v1511
      %v1513 = vpop.xlane.xlu0 %1512
      %v1514 = vcvt.f32.s32 %v1513
      %v1515 = vcvt.f32.s32 %v1509
      %v1516 = vshll.u32 %v1515, 16
      %v1517 = vadd.s32 %v1516, %v1514
      %v1518 = vand.u32 %v1497, 65535
      %v1519 = vshra.s32 %v1497, 16
      %v1520 = vcvt.s32.f32 %v1518
      %v1521 = vcvt.s32.f32 %v1519
      %1522 = vmin.xlane.f32.xlu0 %v1521
      %v1523 = vpop.xlane.xlu0 %1522
      %vm1524 = vcmp.eq.f32.partialorder %v1521, %v1523
      %v1525 = vsel %vm1524, %v1520, inf
      %1526 = vmin.xlane.f32.xlu0 %v1525
      %v1527 = vpop.xlane.xlu0 %1526
      %v1528 = vcvt.f32.s32 %v1527
      %v1529 = vcvt.f32.s32 %v1523
      %v1530 = vshll.u32 %v1529, 16
      %v1531 = vadd.s32 %v1530, %v1528
      %v1532 = vand.u32 %v1498, 65535
      %v1533 = vshra.s32 %v1498, 16
      %v1534 = vcvt.s32.f32 %v1532
      %v1535 = vcvt.s32.f32 %v1533
      %1536 = vmin.xlane.f32.xlu0 %v1535
      %v1537 = vpop.xlane.xlu0 %1536
      %vm1538 = vcmp.eq.f32.partialorder %v1535, %v1537
      %v1539 = vsel %vm1538, %v1534, inf
      %1540 = vmin.xlane.f32.xlu0 %v1539
      %v1541 = vpop.xlane.xlu0 %1540
      %v1542 = vcvt.f32.s32 %v1541
      %v1543 = vcvt.f32.s32 %v1537
      %v1544 = vshll.u32 %v1543, 16
      %v1545 = vadd.s32 %v1544, %v1542
      %v1546 = vand.u32 %v1499, 65535
      %v1547 = vshra.s32 %v1499, 16
      %v1548 = vcvt.s32.f32 %v1546
      %v1549 = vcvt.s32.f32 %v1547
      %1550 = vmin.xlane.f32.xlu0 %v1549
      %v1551 = vpop.xlane.xlu0 %1550
      %vm1552 = vcmp.eq.f32.partialorder %v1549, %v1551
      %v1553 = vsel %vm1552, %v1548, inf
      %1554 = vmin.xlane.f32.xlu0 %v1553
      %v1555 = vpop.xlane.xlu0 %1554
      %v1556 = vcvt.f32.s32 %v1555
      %v1557 = vcvt.f32.s32 %v1551
      %v1558 = vshll.u32 %v1557, 16
      %v1559 = vadd.s32 %v1558, %v1556
      %v1560 = vand.u32 %v1500, 65535
      %v1561 = vshra.s32 %v1500, 16
      %v1562 = vcvt.s32.f32 %v1560
      %v1563 = vcvt.s32.f32 %v1561
      %1564 = vmin.xlane.f32.xlu0 %v1563
      %v1565 = vpop.xlane.xlu0 %1564
      %vm1566 = vcmp.eq.f32.partialorder %v1563, %v1565
      %v1567 = vsel %vm1566, %v1562, inf
      %1568 = vmin.xlane.f32.xlu0 %v1567
      %v1569 = vpop.xlane.xlu0 %1568
      %v1570 = vcvt.f32.s32 %v1569
      %v1571 = vcvt.f32.s32 %v1565
      %v1572 = vshll.u32 %v1571, 16
      %v1573 = vadd.s32 %v1572, %v1570
      %v1574 = vand.u32 %v1501, 65535
      %v1575 = vshra.s32 %v1501, 16
      %v1576 = vcvt.s32.f32 %v1574
      %v1577 = vcvt.s32.f32 %v1575
      %1578 = vmin.xlane.f32.xlu0 %v1577
      %v1579 = vpop.xlane.xlu0 %1578
      %vm1580 = vcmp.eq.f32.partialorder %v1577, %v1579
      %v1581 = vsel %vm1580, %v1576, inf
      %1582 = vmin.xlane.f32.xlu0 %v1581
      %v1583 = vpop.xlane.xlu0 %1582
      %v1584 = vcvt.f32.s32 %v1583
      %v1585 = vcvt.f32.s32 %v1579
      %v1586 = vshll.u32 %v1585, 16
      %v1587 = vadd.s32 %v1586, %v1584
      %v1588 = vand.u32 %v1502, 65535
      %v1589 = vshra.s32 %v1502, 16
      %v1590 = vcvt.s32.f32 %v1588
      %v1591 = vcvt.s32.f32 %v1589
      %1592 = vmin.xlane.f32.xlu0 %v1591
      %v1593 = vpop.xlane.xlu0 %1592
      %vm1594 = vcmp.eq.f32.partialorder %v1591, %v1593
      %v1595 = vsel %vm1594, %v1590, inf
      %1596 = vmin.xlane.f32.xlu0 %v1595
      %v1597 = vpop.xlane.xlu0 %1596
      %v1598 = vcvt.f32.s32 %v1597
      %v1599 = vcvt.f32.s32 %v1593
      %v1600 = vshll.u32 %v1599, 16
      %v1601 = vadd.s32 %v1600, %v1598
      %v1602 = vand.u32 %v1503, 65535
      %v1603 = vshra.s32 %v1503, 16
      %v1604 = vcvt.s32.f32 %v1602
      %v1605 = vcvt.s32.f32 %v1603
      %1606 = vmin.xlane.f32.xlu0 %v1605
      %v1607 = vpop.xlane.xlu0 %1606
      %vm1608 = vcmp.eq.f32.partialorder %v1605, %v1607
      %v1609 = vsel %vm1608, %v1604, inf
      %1610 = vmin.xlane.f32.xlu0 %v1609
      %v1611 = vpop.xlane.xlu0 %1610
      %v1612 = vcvt.f32.s32 %v1611
      %v1613 = vcvt.f32.s32 %v1607
      %v1614 = vshll.u32 %v1613, 16
      %v1615 = vadd.s32 %v1614, %v1612
      %vm1616 = vcmp.eq.s32.totalorder %v1496, %v1517
      %vm1617 = vcmp.eq.s32.totalorder %v1497, %v1531
      %vm1618 = vcmp.eq.s32.totalorder %v1498, %v1545
      %vm1619 = vcmp.eq.s32.totalorder %v1499, %v1559
      %vm1620 = vcmp.eq.s32.totalorder %v1500, %v1573
      %vm1621 = vcmp.eq.s32.totalorder %v1501, %v1587
      %vm1622 = vcmp.eq.s32.totalorder %v1502, %v1601
      %vm1623 = vcmp.eq.s32.totalorder %v1503, %v1615
      %v1624 = vsel %vm1616, 1, 0
      %v1625 = vsel %vm1617, 1, 0
      %v1626 = vsel %vm1618, 1, 0
      %v1627 = vsel %vm1619, 1, 0
      %v1628 = vsel %vm1620, 1, 0
      %v1629 = vsel %vm1621, 1, 0
      %v1630 = vsel %vm1622, 1, 0
      %v1631 = vsel %vm1623, 1, 0
      %v1632 = vcvt.s32.f32 %v1624
      %v1633 = vcvt.s32.f32 %v1625
      %v1634 = vcvt.s32.f32 %v1626
      %v1635 = vcvt.s32.f32 %v1627
      %v1636 = vcvt.s32.f32 %v1628
      %v1637 = vcvt.s32.f32 %v1629
      %v1638 = vcvt.s32.f32 %v1630
      %v1639 = vcvt.s32.f32 %v1631
      %v1640 = vlaneseq
      %v1641 = vshrl.u32 %v1640, 7
      %v1642 = vsub.s32 4, %v1641
      %v1643 = vrot.slane %v467, %v1642
      %1644 = vmatprep.subr.mxu0 0.0
      %1645 = vmatpush1.msra.mxu0 %v451
      %1646 = vmatprep.subr.mxu0 0.0
      %1647 = vmatpush1.msra.mxu0 %v452
      %1648 = vmatprep.subr.mxu0 0.0
      %1649 = vmatpush1.msra.mxu0 %v453
      %1650 = vmatprep.subr.mxu0 0.0
      %1651 = vmatpush1.msra.mxu0 %v454
      %1652 = vmatprep.subr.mxu0 0.0
      %1653 = vmatpush1.msra.mxu0 %v455
      %1654 = vmatprep.subr.mxu0 0.0
      %1655 = vmatpush1.msra.mxu0 %v456
      %1656 = vmatprep.subr.mxu0 0.0
      %1657 = vmatpush1.msra.mxu0 %v457
      %1658 = vmatprep.subr.mxu0 0.0
      %1659 = vmatpush1.msra.mxu0 %v458
      %1660 = vmatprep.subr.mxu0 0.0
      %1661 = vmatpush1.msra.mxu0 %v459
      %1662 = vmatprep.subr.mxu0 0.0
      %1663 = vmatpush1.msra.mxu0 %v460
      %1664 = vmatprep.subr.mxu0 0.0
      %1665 = vmatpush1.msra.mxu0 %v461
      %1666 = vmatprep.subr.mxu0 0.0
      %1667 = vmatpush1.msra.mxu0 %v462
      %1668 = vmatprep.subr.mxu0 0.0
      %1669 = vmatpush1.msra.mxu0 %v463
      %1670 = vmatprep.subr.mxu0 0.0
      %1671 = vmatpush1.msra.mxu0 %v464
      %1672 = vmatprep.subr.mxu0 0.0
      %1673 = vmatpush1.msra.mxu0 %v465
      %1674 = vmatprep.subr.mxu0 0.0
      %1675 = vmatpush1.msra.mxu0 %v466
      %1676 = vmatprep.subr.mxu0 0.0
      %1677 = vmatpush1.msra.mxu0 0.0
      %1678 = vmatprep.subr.mxu0 0.0
      %1679 = vmatpush1.msra.mxu0 0.0
      %1680 = vmatprep.subr.mxu0 0.0
      %1681 = vmatpush1.msra.mxu0 0.0
      %1682 = vmatprep.subr.mxu0 0.0
      %1683 = vmatpush1.msra.mxu0 0.0
      %1684 = vmatprep.subr.mxu0 0.0
      %1685 = vmatpush1.msra.mxu0 0.0
      %1686 = vmatprep.subr.mxu0 0.0
      %1687 = vmatpush1.msra.mxu0 0.0
      %1688 = vmatprep.subr.mxu0 0.0
      %1689 = vmatpush1.msra.mxu0 0.0
      %1690 = vmatprep.subr.mxu0 0.0
      %1691 = vmatpush1.msra.mxu0 0.0
      %1692 = vmatprep.subr.mxu0 0.0
      %1693 = vmatpush1.msra.mxu0 0.0
      %1694 = vmatprep.subr.mxu0 0.0
      %1695 = vmatpush1.msra.mxu0 0.0
      %1696 = vmatprep.subr.mxu0 0.0
      %1697 = vmatpush1.msra.mxu0 0.0
      %1698 = vmatprep.subr.mxu0 0.0
      %1699 = vmatpush1.msra.mxu0 0.0
      %1700 = vmatprep.subr.mxu0 0.0
      %1701 = vmatpush1.msra.mxu0 0.0
      %1702 = vmatprep.subr.mxu0 0.0
      %1703 = vmatpush1.msra.mxu0 0.0
      %1704 = vmatprep.subr.mxu0 0.0
      %1705 = vmatpush1.msra.mxu0 0.0
      %1706 = vmatprep.subr.mxu0 0.0
      %1707 = vmatpush1.msra.mxu0 0.0
      %1708 = vmatprep.mubr.f32.mxu0 0.0
      %1709 = vmatmul.mubr.f32.gmra.mrb[0].mxu0 %v1632
      %v1710 = vpop.f32.mrb[0].mxu0
      %v1711 = vadd.f32 %v1643, %v1710
      %v1712 = vpop.f32.mrb[0].mxu0
      %1713 = vmatprep.mubr.f32.mxu0 0.0
      %1714 = vmatmul.mubr.f32.gmra.mrb[0].mxu0 %v1633
      %v1715 = vpop.f32.mrb[0].mxu0
      %v1716 = vadd.f32 %v1643, %v1715
      %v1717 = vpop.f32.mrb[0].mxu0
      %1718 = vmatprep.mubr.f32.mxu0 0.0
      %1719 = vmatmul.mubr.f32.gmra.mrb[0].mxu0 %v1634
      %v1720 = vpop.f32.mrb[0].mxu0
      %v1721 = vadd.f32 %v1643, %v1720
      %v1722 = vpop.f32.mrb[0].mxu0
      %1723 = vmatprep.mubr.f32.mxu0 0.0
      %1724 = vmatmul.mubr.f32.gmra.mrb[0].mxu0 %v1635
      %v1725 = vpop.f32.mrb[0].mxu0
      %v1726 = vadd.f32 %v1643, %v1725
      %v1727 = vpop.f32.mrb[0].mxu0
      %1728 = vmatprep.mubr.f32.mxu0 0.0
      %1729 = vmatmul.mubr.f32.gmra.mrb[0].mxu0 %v1636
      %v1730 = vpop.f32.mrb[0].mxu0
      %v1731 = vadd.f32 %v1643, %v1730
      %v1732 = vpop.f32.mrb[0].mxu0
      %1733 = vmatprep.mubr.f32.mxu0 0.0
      %1734 = vmatmul.mubr.f32.gmra.mrb[0].mxu0 %v1637
      %v1735 = vpop.f32.mrb[0].mxu0
      %v1736 = vadd.f32 %v1643, %v1735
      %v1737 = vpop.f32.mrb[0].mxu0
      %1738 = vmatprep.mubr.f32.mxu0 0.0
      %1739 = vmatmul.mubr.f32.gmra.mrb[0].mxu0 %v1638
      %v1740 = vpop.f32.mrb[0].mxu0
      %v1741 = vadd.f32 %v1643, %v1740
      %v1742 = vpop.f32.mrb[0].mxu0
      %1743 = vmatprep.mubr.f32.mxu0 0.0
      %1744 = vmatmul.mubr.f32.gmra.mrb[0].mxu0 %v1639
      %v1745 = vpop.f32.mrb[0].mxu0
      %v1746 = vadd.f32 %v1643, %v1745
      %v1747 = vpop.f32.mrb[0].mxu0
      %1748 = vdwg.mxu0
      %v1749 = vmax.f32 %v1488, %v1711
      %v1750 = vmax.f32 %v1489, %v1716
      %v1751 = vmax.f32 %v1490, %v1721
      %v1752 = vmax.f32 %v1491, %v1726
      %v1753 = vmax.f32 %v1492, %v1731
      %v1754 = vmax.f32 %v1493, %v1736
      %v1755 = vmax.f32 %v1494, %v1741
      %v1756 = vmax.f32 %v1495, %v1746
      %v1757 = vsel %vm1616, 2147483647, %v1496
      %v1758 = vsel %vm1617, 2147483647, %v1497
      %v1759 = vsel %vm1618, 2147483647, %v1498
      %v1760 = vsel %vm1619, 2147483647, %v1499
      %v1761 = vsel %vm1620, 2147483647, %v1500
      %v1762 = vsel %vm1621, 2147483647, %v1501
      %v1763 = vsel %vm1622, 2147483647, %v1502
      %v1764 = vsel %vm1623, 2147483647, %v1503
      %v1765 = vand.u32 %v1757, 65535
      %v1766 = vshra.s32 %v1757, 16
      %v1767 = vcvt.s32.f32 %v1765
      %v1768 = vcvt.s32.f32 %v1766
      %1769 = vmin.xlane.f32.xlu0 %v1768
      %v1770 = vpop.xlane.xlu0 %1769
      %vm1771 = vcmp.eq.f32.partialorder %v1768, %v1770
      %v1772 = vsel %vm1771, %v1767, inf
      %1773 = vmin.xlane.f32.xlu0 %v1772
      %v1774 = vpop.xlane.xlu0 %1773
      %v1775 = vcvt.f32.s32 %v1774
      %v1776 = vcvt.f32.s32 %v1770
      %v1777 = vshll.u32 %v1776, 16
      %v1778 = vadd.s32 %v1777, %v1775
      %v1779 = vand.u32 %v1758, 65535
      %v1780 = vshra.s32 %v1758, 16
      %v1781 = vcvt.s32.f32 %v1779
      %v1782 = vcvt.s32.f32 %v1780
      %1783 = vmin.xlane.f32.xlu0 %v1782
      %v1784 = vpop.xlane.xlu0 %1783
      %vm1785 = vcmp.eq.f32.partialorder %v1782, %v1784
      %v1786 = vsel %vm1785, %v1781, inf
      %1787 = vmin.xlane.f32.xlu0 %v1786
      %v1788 = vpop.xlane.xlu0 %1787
      %v1789 = vcvt.f32.s32 %v1788
      %v1790 = vcvt.f32.s32 %v1784
      %v1791 = vshll.u32 %v1790, 16
      %v1792 = vadd.s32 %v1791, %v1789
      %v1793 = vand.u32 %v1759, 65535
      %v1794 = vshra.s32 %v1759, 16
      %v1795 = vcvt.s32.f32 %v1793
      %v1796 = vcvt.s32.f32 %v1794
      %1797 = vmin.xlane.f32.xlu0 %v1796
      %v1798 = vpop.xlane.xlu0 %1797
      %vm1799 = vcmp.eq.f32.partialorder %v1796, %v1798
      %v1800 = vsel %vm1799, %v1795, inf
      %1801 = vmin.xlane.f32.xlu0 %v1800
      %v1802 = vpop.xlane.xlu0 %1801
      %v1803 = vcvt.f32.s32 %v1802
      %v1804 = vcvt.f32.s32 %v1798
      %v1805 = vshll.u32 %v1804, 16
      %v1806 = vadd.s32 %v1805, %v1803
      %v1807 = vand.u32 %v1760, 65535
      %v1808 = vshra.s32 %v1760, 16
      %v1809 = vcvt.s32.f32 %v1807
      %v1810 = vcvt.s32.f32 %v1808
      %1811 = vmin.xlane.f32.xlu0 %v1810
      %v1812 = vpop.xlane.xlu0 %1811
      %vm1813 = vcmp.eq.f32.partialorder %v1810, %v1812
      %v1814 = vsel %vm1813, %v1809, inf
      %1815 = vmin.xlane.f32.xlu0 %v1814
      %v1816 = vpop.xlane.xlu0 %1815
      %v1817 = vcvt.f32.s32 %v1816
      %v1818 = vcvt.f32.s32 %v1812
      %v1819 = vshll.u32 %v1818, 16
      %v1820 = vadd.s32 %v1819, %v1817
      %v1821 = vand.u32 %v1761, 65535
      %v1822 = vshra.s32 %v1761, 16
      %v1823 = vcvt.s32.f32 %v1821
      %v1824 = vcvt.s32.f32 %v1822
      %1825 = vmin.xlane.f32.xlu0 %v1824
      %v1826 = vpop.xlane.xlu0 %1825
      %vm1827 = vcmp.eq.f32.partialorder %v1824, %v1826
      %v1828 = vsel %vm1827, %v1823, inf
      %1829 = vmin.xlane.f32.xlu0 %v1828
      %v1830 = vpop.xlane.xlu0 %1829
      %v1831 = vcvt.f32.s32 %v1830
      %v1832 = vcvt.f32.s32 %v1826
      %v1833 = vshll.u32 %v1832, 16
      %v1834 = vadd.s32 %v1833, %v1831
      %v1835 = vand.u32 %v1762, 65535
      %v1836 = vshra.s32 %v1762, 16
      %v1837 = vcvt.s32.f32 %v1835
      %v1838 = vcvt.s32.f32 %v1836
      %1839 = vmin.xlane.f32.xlu0 %v1838
      %v1840 = vpop.xlane.xlu0 %1839
      %vm1841 = vcmp.eq.f32.partialorder %v1838, %v1840
      %v1842 = vsel %vm1841, %v1837, inf
      %1843 = vmin.xlane.f32.xlu0 %v1842
      %v1844 = vpop.xlane.xlu0 %1843
      %v1845 = vcvt.f32.s32 %v1844
      %v1846 = vcvt.f32.s32 %v1840
      %v1847 = vshll.u32 %v1846, 16
      %v1848 = vadd.s32 %v1847, %v1845
      %v1849 = vand.u32 %v1763, 65535
      %v1850 = vshra.s32 %v1763, 16
      %v1851 = vcvt.s32.f32 %v1849
      %v1852 = vcvt.s32.f32 %v1850
      %1853 = vmin.xlane.f32.xlu0 %v1852
      %v1854 = vpop.xlane.xlu0 %1853
      %vm1855 = vcmp.eq.f32.partialorder %v1852, %v1854
      %v1856 = vsel %vm1855, %v1851, inf
      %1857 = vmin.xlane.f32.xlu0 %v1856
      %v1858 = vpop.xlane.xlu0 %1857
      %v1859 = vcvt.f32.s32 %v1858
      %v1860 = vcvt.f32.s32 %v1854
      %v1861 = vshll.u32 %v1860, 16
      %v1862 = vadd.s32 %v1861, %v1859
      %v1863 = vand.u32 %v1764, 65535
      %v1864 = vshra.s32 %v1764, 16
      %v1865 = vcvt.s32.f32 %v1863
      %v1866 = vcvt.s32.f32 %v1864
      %1867 = vmin.xlane.f32.xlu0 %v1866
      %v1868 = vpop.xlane.xlu0 %1867
      %vm1869 = vcmp.eq.f32.partialorder %v1866, %v1868
      %v1870 = vsel %vm1869, %v1865, inf
      %1871 = vmin.xlane.f32.xlu0 %v1870
      %v1872 = vpop.xlane.xlu0 %1871
      %v1873 = vcvt.f32.s32 %v1872
      %v1874 = vcvt.f32.s32 %v1868
      %v1875 = vshll.u32 %v1874, 16
      %v1876 = vadd.s32 %v1875, %v1873
      %vm1877 = vcmp.eq.s32.totalorder %v1757, %v1778
      %vm1878 = vcmp.eq.s32.totalorder %v1758, %v1792
      %vm1879 = vcmp.eq.s32.totalorder %v1759, %v1806
      %vm1880 = vcmp.eq.s32.totalorder %v1760, %v1820
      %vm1881 = vcmp.eq.s32.totalorder %v1761, %v1834
      %vm1882 = vcmp.eq.s32.totalorder %v1762, %v1848
      %vm1883 = vcmp.eq.s32.totalorder %v1763, %v1862
      %vm1884 = vcmp.eq.s32.totalorder %v1764, %v1876
      %v1885 = vsel %vm1877, 1, 0
      %v1886 = vsel %vm1878, 1, 0
      %v1887 = vsel %vm1879, 1, 0
      %v1888 = vsel %vm1880, 1, 0
      %v1889 = vsel %vm1881, 1, 0
      %v1890 = vsel %vm1882, 1, 0
      %v1891 = vsel %vm1883, 1, 0
      %v1892 = vsel %vm1884, 1, 0
      %v1893 = vcvt.s32.f32 %v1885
      %v1894 = vcvt.s32.f32 %v1886
      %v1895 = vcvt.s32.f32 %v1887
      %v1896 = vcvt.s32.f32 %v1888
      %v1897 = vcvt.s32.f32 %v1889
      %v1898 = vcvt.s32.f32 %v1890
      %v1899 = vcvt.s32.f32 %v1891
      %v1900 = vcvt.s32.f32 %v1892
      %v1901 = vlaneseq
      %v1902 = vshrl.u32 %v1901, 7
      %v1903 = vsub.s32 5, %v1902
      %v1904 = vrot.slane %v467, %v1903
      %1905 = vmatprep.subr.mxu0 0.0
      %1906 = vmatpush1.msra.mxu0 %v451
      %1907 = vmatprep.subr.mxu0 0.0
      %1908 = vmatpush1.msra.mxu0 %v452
      %1909 = vmatprep.subr.mxu0 0.0
      %1910 = vmatpush1.msra.mxu0 %v453
      %1911 = vmatprep.subr.mxu0 0.0
      %1912 = vmatpush1.msra.mxu0 %v454
      %1913 = vmatprep.subr.mxu0 0.0
      %1914 = vmatpush1.msra.mxu0 %v455
      %1915 = vmatprep.subr.mxu0 0.0
      %1916 = vmatpush1.msra.mxu0 %v456
      %1917 = vmatprep.subr.mxu0 0.0
      %1918 = vmatpush1.msra.mxu0 %v457
      %1919 = vmatprep.subr.mxu0 0.0
      %1920 = vmatpush1.msra.mxu0 %v458
      %1921 = vmatprep.subr.mxu0 0.0
      %1922 = vmatpush1.msra.mxu0 %v459
      %1923 = vmatprep.subr.mxu0 0.0
      %1924 = vmatpush1.msra.mxu0 %v460
      %1925 = vmatprep.subr.mxu0 0.0
      %1926 = vmatpush1.msra.mxu0 %v461
      %1927 = vmatprep.subr.mxu0 0.0
      %1928 = vmatpush1.msra.mxu0 %v462
      %1929 = vmatprep.subr.mxu0 0.0
      %1930 = vmatpush1.msra.mxu0 %v463
      %1931 = vmatprep.subr.mxu0 0.0
      %1932 = vmatpush1.msra.mxu0 %v464
      %1933 = vmatprep.subr.mxu0 0.0
      %1934 = vmatpush1.msra.mxu0 %v465
      %1935 = vmatprep.subr.mxu0 0.0
      %1936 = vmatpush1.msra.mxu0 %v466
      %1937 = vmatprep.subr.mxu0 0.0
      %1938 = vmatpush1.msra.mxu0 0.0
      %1939 = vmatprep.subr.mxu0 0.0
      %1940 = vmatpush1.msra.mxu0 0.0
      %1941 = vmatprep.subr.mxu0 0.0
      %1942 = vmatpush1.msra.mxu0 0.0
      %1943 = vmatprep.subr.mxu0 0.0
      %1944 = vmatpush1.msra.mxu0 0.0
      %1945 = vmatprep.subr.mxu0 0.0
      %1946 = vmatpush1.msra.mxu0 0.0
      %1947 = vmatprep.subr.mxu0 0.0
      %1948 = vmatpush1.msra.mxu0 0.0
      %1949 = vmatprep.subr.mxu0 0.0
      %1950 = vmatpush1.msra.mxu0 0.0
      %1951 = vmatprep.subr.mxu0 0.0
      %1952 = vmatpush1.msra.mxu0 0.0
      %1953 = vmatprep.subr.mxu0 0.0
      %1954 = vmatpush1.msra.mxu0 0.0
      %1955 = vmatprep.subr.mxu0 0.0
      %1956 = vmatpush1.msra.mxu0 0.0
      %1957 = vmatprep.subr.mxu0 0.0
      %1958 = vmatpush1.msra.mxu0 0.0
      %1959 = vmatprep.subr.mxu0 0.0
      %1960 = vmatpush1.msra.mxu0 0.0
      %1961 = vmatprep.subr.mxu0 0.0
      %1962 = vmatpush1.msra.mxu0 0.0
      %1963 = vmatprep.subr.mxu0 0.0
      %1964 = vmatpush1.msra.mxu0 0.0
      %1965 = vmatprep.subr.mxu0 0.0
      %1966 = vmatpush1.msra.mxu0 0.0
      %1967 = vmatprep.subr.mxu0 0.0
      %1968 = vmatpush1.msra.mxu0 0.0
      %1969 = vmatprep.mubr.f32.mxu0 0.0
      %1970 = vmatmul.mubr.f32.gmra.mrb[0].mxu0 %v1893
      %v1971 = vpop.f32.mrb[0].mxu0
      %v1972 = vadd.f32 %v1904, %v1971
      %v1973 = vpop.f32.mrb[0].mxu0
      %1974 = vmatprep.mubr.f32.mxu0 0.0
      %1975 = vmatmul.mubr.f32.gmra.mrb[0].mxu0 %v1894
      %v1976 = vpop.f32.mrb[0].mxu0
      %v1977 = vadd.f32 %v1904, %v1976
      %v1978 = vpop.f32.mrb[0].mxu0
      %1979 = vmatprep.mubr.f32.mxu0 0.0
      %1980 = vmatmul.mubr.f32.gmra.mrb[0].mxu0 %v1895
      %v1981 = vpop.f32.mrb[0].mxu0
      %v1982 = vadd.f32 %v1904, %v1981
      %v1983 = vpop.f32.mrb[0].mxu0
      %1984 = vmatprep.mubr.f32.mxu0 0.0
      %1985 = vmatmul.mubr.f32.gmra.mrb[0].mxu0 %v1896
      %v1986 = vpop.f32.mrb[0].mxu0
      %v1987 = vadd.f32 %v1904, %v1986
      %v1988 = vpop.f32.mrb[0].mxu0
      %1989 = vmatprep.mubr.f32.mxu0 0.0
      %1990 = vmatmul.mubr.f32.gmra.mrb[0].mxu0 %v1897
      %v1991 = vpop.f32.mrb[0].mxu0
      %v1992 = vadd.f32 %v1904, %v1991
      %v1993 = vpop.f32.mrb[0].mxu0
      %1994 = vmatprep.mubr.f32.mxu0 0.0
      %1995 = vmatmul.mubr.f32.gmra.mrb[0].mxu0 %v1898
      %v1996 = vpop.f32.mrb[0].mxu0
      %v1997 = vadd.f32 %v1904, %v1996
      %v1998 = vpop.f32.mrb[0].mxu0
      %1999 = vmatprep.mubr.f32.mxu0 0.0
      %2000 = vmatmul.mubr.f32.gmra.mrb[0].mxu0 %v1899
      %v2001 = vpop.f32.mrb[0].mxu0
      %v2002 = vadd.f32 %v1904, %v2001
      %v2003 = vpop.f32.mrb[0].mxu0
      %2004 = vmatprep.mubr.f32.mxu0 0.0
      %2005 = vmatmul.mubr.f32.gmra.mrb[0].mxu0 %v1900
      %v2006 = vpop.f32.mrb[0].mxu0
      %v2007 = vadd.f32 %v1904, %v2006
      %v2008 = vpop.f32.mrb[0].mxu0
      %2009 = vdwg.mxu0
      %v2010 = vmax.f32 %v1749, %v1972
      %v2011 = vmax.f32 %v1750, %v1977
      %v2012 = vmax.f32 %v1751, %v1982
      %v2013 = vmax.f32 %v1752, %v1987
      %v2014 = vmax.f32 %v1753, %v1992
      %v2015 = vmax.f32 %v1754, %v1997
      %v2016 = vmax.f32 %v1755, %v2002
      %v2017 = vmax.f32 %v1756, %v2007
      %v2018 = vsel %vm1877, 2147483647, %v1757
      %v2019 = vsel %vm1878, 2147483647, %v1758
      %v2020 = vsel %vm1879, 2147483647, %v1759
      %v2021 = vsel %vm1880, 2147483647, %v1760
      %v2022 = vsel %vm1881, 2147483647, %v1761
      %v2023 = vsel %vm1882, 2147483647, %v1762
      %v2024 = vsel %vm1883, 2147483647, %v1763
      %v2025 = vsel %vm1884, 2147483647, %v1764
      %v2026 = vand.u32 %v2018, 65535
      %v2027 = vshra.s32 %v2018, 16
      %v2028 = vcvt.s32.f32 %v2026
      %v2029 = vcvt.s32.f32 %v2027
      %2030 = vmin.xlane.f32.xlu0 %v2029
      %v2031 = vpop.xlane.xlu0 %2030
      %vm2032 = vcmp.eq.f32.partialorder %v2029, %v2031
      %v2033 = vsel %vm2032, %v2028, inf
      %2034 = vmin.xlane.f32.xlu0 %v2033
      %v2035 = vpop.xlane.xlu0 %2034
      %v2036 = vcvt.f32.s32 %v2035
      %v2037 = vcvt.f32.s32 %v2031
      %v2038 = vshll.u32 %v2037, 16
      %v2039 = vadd.s32 %v2038, %v2036
      %v2040 = vand.u32 %v2019, 65535
      %v2041 = vshra.s32 %v2019, 16
      %v2042 = vcvt.s32.f32 %v2040
      %v2043 = vcvt.s32.f32 %v2041
      %2044 = vmin.xlane.f32.xlu0 %v2043
      %v2045 = vpop.xlane.xlu0 %2044
      %vm2046 = vcmp.eq.f32.partialorder %v2043, %v2045
      %v2047 = vsel %vm2046, %v2042, inf
      %2048 = vmin.xlane.f32.xlu0 %v2047
      %v2049 = vpop.xlane.xlu0 %2048
      %v2050 = vcvt.f32.s32 %v2049
      %v2051 = vcvt.f32.s32 %v2045
      %v2052 = vshll.u32 %v2051, 16
      %v2053 = vadd.s32 %v2052, %v2050
      %v2054 = vand.u32 %v2020, 65535
      %v2055 = vshra.s32 %v2020, 16
      %v2056 = vcvt.s32.f32 %v2054
      %v2057 = vcvt.s32.f32 %v2055
      %2058 = vmin.xlane.f32.xlu0 %v2057
      %v2059 = vpop.xlane.xlu0 %2058
      %vm2060 = vcmp.eq.f32.partialorder %v2057, %v2059
      %v2061 = vsel %vm2060, %v2056, inf
      %2062 = vmin.xlane.f32.xlu0 %v2061
      %v2063 = vpop.xlane.xlu0 %2062
      %v2064 = vcvt.f32.s32 %v2063
      %v2065 = vcvt.f32.s32 %v2059
      %v2066 = vshll.u32 %v2065, 16
      %v2067 = vadd.s32 %v2066, %v2064
      %v2068 = vand.u32 %v2021, 65535
      %v2069 = vshra.s32 %v2021, 16
      %v2070 = vcvt.s32.f32 %v2068
      %v2071 = vcvt.s32.f32 %v2069
      %2072 = vmin.xlane.f32.xlu0 %v2071
      %v2073 = vpop.xlane.xlu0 %2072
      %vm2074 = vcmp.eq.f32.partialorder %v2071, %v2073
      %v2075 = vsel %vm2074, %v2070, inf
      %2076 = vmin.xlane.f32.xlu0 %v2075
      %v2077 = vpop.xlane.xlu0 %2076
      %v2078 = vcvt.f32.s32 %v2077
      %v2079 = vcvt.f32.s32 %v2073
      %v2080 = vshll.u32 %v2079, 16
      %v2081 = vadd.s32 %v2080, %v2078
      %v2082 = vand.u32 %v2022, 65535
      %v2083 = vshra.s32 %v2022, 16
      %v2084 = vcvt.s32.f32 %v2082
      %v2085 = vcvt.s32.f32 %v2083
      %2086 = vmin.xlane.f32.xlu0 %v2085
      %v2087 = vpop.xlane.xlu0 %2086
      %vm2088 = vcmp.eq.f32.partialorder %v2085, %v2087
      %v2089 = vsel %vm2088, %v2084, inf
      %2090 = vmin.xlane.f32.xlu0 %v2089
      %v2091 = vpop.xlane.xlu0 %2090
      %v2092 = vcvt.f32.s32 %v2091
      %v2093 = vcvt.f32.s32 %v2087
      %v2094 = vshll.u32 %v2093, 16
      %v2095 = vadd.s32 %v2094, %v2092
      %v2096 = vand.u32 %v2023, 65535
      %v2097 = vshra.s32 %v2023, 16
      %v2098 = vcvt.s32.f32 %v2096
      %v2099 = vcvt.s32.f32 %v2097
      %2100 = vmin.xlane.f32.xlu0 %v2099
      %v2101 = vpop.xlane.xlu0 %2100
      %vm2102 = vcmp.eq.f32.partialorder %v2099, %v2101
      %v2103 = vsel %vm2102, %v2098, inf
      %2104 = vmin.xlane.f32.xlu0 %v2103
      %v2105 = vpop.xlane.xlu0 %2104
      %v2106 = vcvt.f32.s32 %v2105
      %v2107 = vcvt.f32.s32 %v2101
      %v2108 = vshll.u32 %v2107, 16
      %v2109 = vadd.s32 %v2108, %v2106
      %v2110 = vand.u32 %v2024, 65535
      %v2111 = vshra.s32 %v2024, 16
      %v2112 = vcvt.s32.f32 %v2110
      %v2113 = vcvt.s32.f32 %v2111
      %2114 = vmin.xlane.f32.xlu0 %v2113
      %v2115 = vpop.xlane.xlu0 %2114
      %vm2116 = vcmp.eq.f32.partialorder %v2113, %v2115
      %v2117 = vsel %vm2116, %v2112, inf
      %2118 = vmin.xlane.f32.xlu0 %v2117
      %v2119 = vpop.xlane.xlu0 %2118
      %v2120 = vcvt.f32.s32 %v2119
      %v2121 = vcvt.f32.s32 %v2115
      %v2122 = vshll.u32 %v2121, 16
      %v2123 = vadd.s32 %v2122, %v2120
      %v2124 = vand.u32 %v2025, 65535
      %v2125 = vshra.s32 %v2025, 16
      %v2126 = vcvt.s32.f32 %v2124
      %v2127 = vcvt.s32.f32 %v2125
      %2128 = vmin.xlane.f32.xlu0 %v2127
      %v2129 = vpop.xlane.xlu0 %2128
      %vm2130 = vcmp.eq.f32.partialorder %v2127, %v2129
      %v2131 = vsel %vm2130, %v2126, inf
      %2132 = vmin.xlane.f32.xlu0 %v2131
      %v2133 = vpop.xlane.xlu0 %2132
      %v2134 = vcvt.f32.s32 %v2133
      %v2135 = vcvt.f32.s32 %v2129
      %v2136 = vshll.u32 %v2135, 16
      %v2137 = vadd.s32 %v2136, %v2134
      %vm2138 = vcmp.eq.s32.totalorder %v2018, %v2039
      %vm2139 = vcmp.eq.s32.totalorder %v2019, %v2053
      %vm2140 = vcmp.eq.s32.totalorder %v2020, %v2067
      %vm2141 = vcmp.eq.s32.totalorder %v2021, %v2081
      %vm2142 = vcmp.eq.s32.totalorder %v2022, %v2095
      %vm2143 = vcmp.eq.s32.totalorder %v2023, %v2109
      %vm2144 = vcmp.eq.s32.totalorder %v2024, %v2123
      %vm2145 = vcmp.eq.s32.totalorder %v2025, %v2137
      %v2146 = vsel %vm2138, 1, 0
      %v2147 = vsel %vm2139, 1, 0
      %v2148 = vsel %vm2140, 1, 0
      %v2149 = vsel %vm2141, 1, 0
      %v2150 = vsel %vm2142, 1, 0
      %v2151 = vsel %vm2143, 1, 0
      %v2152 = vsel %vm2144, 1, 0
      %v2153 = vsel %vm2145, 1, 0
      %v2154 = vcvt.s32.f32 %v2146
      %v2155 = vcvt.s32.f32 %v2147
      %v2156 = vcvt.s32.f32 %v2148
      %v2157 = vcvt.s32.f32 %v2149
      %v2158 = vcvt.s32.f32 %v2150
      %v2159 = vcvt.s32.f32 %v2151
      %v2160 = vcvt.s32.f32 %v2152
      %v2161 = vcvt.s32.f32 %v2153
      %v2162 = vlaneseq
      %v2163 = vshrl.u32 %v2162, 7
      %v2164 = vsub.s32 6, %v2163
      %v2165 = vrot.slane %v467, %v2164
      %2166 = vmatprep.subr.mxu0 0.0
      %2167 = vmatpush1.msra.mxu0 %v451
      %2168 = vmatprep.subr.mxu0 0.0
      %2169 = vmatpush1.msra.mxu0 %v452
      %2170 = vmatprep.subr.mxu0 0.0
      %2171 = vmatpush1.msra.mxu0 %v453
      %2172 = vmatprep.subr.mxu0 0.0
      %2173 = vmatpush1.msra.mxu0 %v454
      %2174 = vmatprep.subr.mxu0 0.0
      %2175 = vmatpush1.msra.mxu0 %v455
      %2176 = vmatprep.subr.mxu0 0.0
      %2177 = vmatpush1.msra.mxu0 %v456
      %2178 = vmatprep.subr.mxu0 0.0
      %2179 = vmatpush1.msra.mxu0 %v457
      %2180 = vmatprep.subr.mxu0 0.0
      %2181 = vmatpush1.msra.mxu0 %v458
      %2182 = vmatprep.subr.mxu0 0.0
      %2183 = vmatpush1.msra.mxu0 %v459
      %2184 = vmatprep.subr.mxu0 0.0
      %2185 = vmatpush1.msra.mxu0 %v460
      %2186 = vmatprep.subr.mxu0 0.0
      %2187 = vmatpush1.msra.mxu0 %v461
      %2188 = vmatprep.subr.mxu0 0.0
      %2189 = vmatpush1.msra.mxu0 %v462
      %2190 = vmatprep.subr.mxu0 0.0
      %2191 = vmatpush1.msra.mxu0 %v463
      %2192 = vmatprep.subr.mxu0 0.0
      %2193 = vmatpush1.msra.mxu0 %v464
      %2194 = vmatprep.subr.mxu0 0.0
      %2195 = vmatpush1.msra.mxu0 %v465
      %2196 = vmatprep.subr.mxu0 0.0
      %2197 = vmatpush1.msra.mxu0 %v466
      %2198 = vmatprep.subr.mxu0 0.0
      %2199 = vmatpush1.msra.mxu0 0.0
      %2200 = vmatprep.subr.mxu0 0.0
      %2201 = vmatpush1.msra.mxu0 0.0
      %2202 = vmatprep.subr.mxu0 0.0
      %2203 = vmatpush1.msra.mxu0 0.0
      %2204 = vmatprep.subr.mxu0 0.0
      %2205 = vmatpush1.msra.mxu0 0.0
      %2206 = vmatprep.subr.mxu0 0.0
      %2207 = vmatpush1.msra.mxu0 0.0
      %2208 = vmatprep.subr.mxu0 0.0
      %2209 = vmatpush1.msra.mxu0 0.0
      %2210 = vmatprep.subr.mxu0 0.0
      %2211 = vmatpush1.msra.mxu0 0.0
      %2212 = vmatprep.subr.mxu0 0.0
      %2213 = vmatpush1.msra.mxu0 0.0
      %2214 = vmatprep.subr.mxu0 0.0
      %2215 = vmatpush1.msra.mxu0 0.0
      %2216 = vmatprep.subr.mxu0 0.0
      %2217 = vmatpush1.msra.mxu0 0.0
      %2218 = vmatprep.subr.mxu0 0.0
      %2219 = vmatpush1.msra.mxu0 0.0
      %2220 = vmatprep.subr.mxu0 0.0
      %2221 = vmatpush1.msra.mxu0 0.0
      %2222 = vmatprep.subr.mxu0 0.0
      %2223 = vmatpush1.msra.mxu0 0.0
      %2224 = vmatprep.subr.mxu0 0.0
      %2225 = vmatpush1.msra.mxu0 0.0
      %2226 = vmatprep.subr.mxu0 0.0
      %2227 = vmatpush1.msra.mxu0 0.0
      %2228 = vmatprep.subr.mxu0 0.0
      %2229 = vmatpush1.msra.mxu0 0.0
      %2230 = vmatprep.mubr.f32.mxu0 0.0
      %2231 = vmatmul.mubr.f32.gmra.mrb[0].mxu0 %v2154
      %v2232 = vpop.f32.mrb[0].mxu0
      %v2233 = vadd.f32 %v2165, %v2232
      %v2234 = vpop.f32.mrb[0].mxu0
      %2235 = vmatprep.mubr.f32.mxu0 0.0
      %2236 = vmatmul.mubr.f32.gmra.mrb[0].mxu0 %v2155
      %v2237 = vpop.f32.mrb[0].mxu0
      %v2238 = vadd.f32 %v2165, %v2237
      %v2239 = vpop.f32.mrb[0].mxu0
      %2240 = vmatprep.mubr.f32.mxu0 0.0
      %2241 = vmatmul.mubr.f32.gmra.mrb[0].mxu0 %v2156
      %v2242 = vpop.f32.mrb[0].mxu0
      %v2243 = vadd.f32 %v2165, %v2242
      %v2244 = vpop.f32.mrb[0].mxu0
      %2245 = vmatprep.mubr.f32.mxu0 0.0
      %2246 = vmatmul.mubr.f32.gmra.mrb[0].mxu0 %v2157
      %v2247 = vpop.f32.mrb[0].mxu0
      %v2248 = vadd.f32 %v2165, %v2247
      %v2249 = vpop.f32.mrb[0].mxu0
      %2250 = vmatprep.mubr.f32.mxu0 0.0
      %2251 = vmatmul.mubr.f32.gmra.mrb[0].mxu0 %v2158
      %v2252 = vpop.f32.mrb[0].mxu0
      %v2253 = vadd.f32 %v2165, %v2252
      %v2254 = vpop.f32.mrb[0].mxu0
      %2255 = vmatprep.mubr.f32.mxu0 0.0
      %2256 = vmatmul.mubr.f32.gmra.mrb[0].mxu0 %v2159
      %v2257 = vpop.f32.mrb[0].mxu0
      %v2258 = vadd.f32 %v2165, %v2257
      %v2259 = vpop.f32.mrb[0].mxu0
      %2260 = vmatprep.mubr.f32.mxu0 0.0
      %2261 = vmatmul.mubr.f32.gmra.mrb[0].mxu0 %v2160
      %v2262 = vpop.f32.mrb[0].mxu0
      %v2263 = vadd.f32 %v2165, %v2262
      %v2264 = vpop.f32.mrb[0].mxu0
      %2265 = vmatprep.mubr.f32.mxu0 0.0
      %2266 = vmatmul.mubr.f32.gmra.mrb[0].mxu0 %v2161
      %v2267 = vpop.f32.mrb[0].mxu0
      %v2268 = vadd.f32 %v2165, %v2267
      %v2269 = vpop.f32.mrb[0].mxu0
      %2270 = vdwg.mxu0
      %v2271 = vmax.f32 %v2010, %v2233
      %v2272 = vmax.f32 %v2011, %v2238
      %v2273 = vmax.f32 %v2012, %v2243
      %v2274 = vmax.f32 %v2013, %v2248
      %v2275 = vmax.f32 %v2014, %v2253
      %v2276 = vmax.f32 %v2015, %v2258
      %v2277 = vmax.f32 %v2016, %v2263
      %v2278 = vmax.f32 %v2017, %v2268
      %v2279 = vsel %vm2138, 2147483647, %v2018
      %v2280 = vsel %vm2139, 2147483647, %v2019
      %v2281 = vsel %vm2140, 2147483647, %v2020
      %v2282 = vsel %vm2141, 2147483647, %v2021
      %v2283 = vsel %vm2142, 2147483647, %v2022
      %v2284 = vsel %vm2143, 2147483647, %v2023
      %v2285 = vsel %vm2144, 2147483647, %v2024
      %v2286 = vsel %vm2145, 2147483647, %v2025
      %v2287 = vand.u32 %v2279, 65535
      %v2288 = vshra.s32 %v2279, 16
      %v2289 = vcvt.s32.f32 %v2287
      %v2290 = vcvt.s32.f32 %v2288
      %2291 = vmin.xlane.f32.xlu0 %v2290
      %v2292 = vpop.xlane.xlu0 %2291
      %vm2293 = vcmp.eq.f32.partialorder %v2290, %v2292
      %v2294 = vsel %vm2293, %v2289, inf
      %2295 = vmin.xlane.f32.xlu0 %v2294
      %v2296 = vpop.xlane.xlu0 %2295
      %v2297 = vcvt.f32.s32 %v2296
      %v2298 = vcvt.f32.s32 %v2292
      %v2299 = vshll.u32 %v2298, 16
      %v2300 = vadd.s32 %v2299, %v2297
      %v2301 = vand.u32 %v2280, 65535
      %v2302 = vshra.s32 %v2280, 16
      %v2303 = vcvt.s32.f32 %v2301
      %v2304 = vcvt.s32.f32 %v2302
      %2305 = vmin.xlane.f32.xlu0 %v2304
      %v2306 = vpop.xlane.xlu0 %2305
      %vm2307 = vcmp.eq.f32.partialorder %v2304, %v2306
      %v2308 = vsel %vm2307, %v2303, inf
      %2309 = vmin.xlane.f32.xlu0 %v2308
      %v2310 = vpop.xlane.xlu0 %2309
      %v2311 = vcvt.f32.s32 %v2310
      %v2312 = vcvt.f32.s32 %v2306
      %v2313 = vshll.u32 %v2312, 16
      %v2314 = vadd.s32 %v2313, %v2311
      %v2315 = vand.u32 %v2281, 65535
      %v2316 = vshra.s32 %v2281, 16
      %v2317 = vcvt.s32.f32 %v2315
      %v2318 = vcvt.s32.f32 %v2316
      %2319 = vmin.xlane.f32.xlu0 %v2318
      %v2320 = vpop.xlane.xlu0 %2319
      %vm2321 = vcmp.eq.f32.partialorder %v2318, %v2320
      %v2322 = vsel %vm2321, %v2317, inf
      %2323 = vmin.xlane.f32.xlu0 %v2322
      %v2324 = vpop.xlane.xlu0 %2323
      %v2325 = vcvt.f32.s32 %v2324
      %v2326 = vcvt.f32.s32 %v2320
      %v2327 = vshll.u32 %v2326, 16
      %v2328 = vadd.s32 %v2327, %v2325
      %v2329 = vand.u32 %v2282, 65535
      %v2330 = vshra.s32 %v2282, 16
      %v2331 = vcvt.s32.f32 %v2329
      %v2332 = vcvt.s32.f32 %v2330
      %2333 = vmin.xlane.f32.xlu0 %v2332
      %v2334 = vpop.xlane.xlu0 %2333
      %vm2335 = vcmp.eq.f32.partialorder %v2332, %v2334
      %v2336 = vsel %vm2335, %v2331, inf
      %2337 = vmin.xlane.f32.xlu0 %v2336
      %v2338 = vpop.xlane.xlu0 %2337
      %v2339 = vcvt.f32.s32 %v2338
      %v2340 = vcvt.f32.s32 %v2334
      %v2341 = vshll.u32 %v2340, 16
      %v2342 = vadd.s32 %v2341, %v2339
      %v2343 = vand.u32 %v2283, 65535
      %v2344 = vshra.s32 %v2283, 16
      %v2345 = vcvt.s32.f32 %v2343
      %v2346 = vcvt.s32.f32 %v2344
      %2347 = vmin.xlane.f32.xlu0 %v2346
      %v2348 = vpop.xlane.xlu0 %2347
      %vm2349 = vcmp.eq.f32.partialorder %v2346, %v2348
      %v2350 = vsel %vm2349, %v2345, inf
      %2351 = vmin.xlane.f32.xlu0 %v2350
      %v2352 = vpop.xlane.xlu0 %2351
      %v2353 = vcvt.f32.s32 %v2352
      %v2354 = vcvt.f32.s32 %v2348
      %v2355 = vshll.u32 %v2354, 16
      %v2356 = vadd.s32 %v2355, %v2353
      %v2357 = vand.u32 %v2284, 65535
      %v2358 = vshra.s32 %v2284, 16
      %v2359 = vcvt.s32.f32 %v2357
      %v2360 = vcvt.s32.f32 %v2358
      %2361 = vmin.xlane.f32.xlu0 %v2360
      %v2362 = vpop.xlane.xlu0 %2361
      %vm2363 = vcmp.eq.f32.partialorder %v2360, %v2362
      %v2364 = vsel %vm2363, %v2359, inf
      %2365 = vmin.xlane.f32.xlu0 %v2364
      %v2366 = vpop.xlane.xlu0 %2365
      %v2367 = vcvt.f32.s32 %v2366
      %v2368 = vcvt.f32.s32 %v2362
      %v2369 = vshll.u32 %v2368, 16
      %v2370 = vadd.s32 %v2369, %v2367
      %v2371 = vand.u32 %v2285, 65535
      %v2372 = vshra.s32 %v2285, 16
      %v2373 = vcvt.s32.f32 %v2371
      %v2374 = vcvt.s32.f32 %v2372
      %2375 = vmin.xlane.f32.xlu0 %v2374
      %v2376 = vpop.xlane.xlu0 %2375
      %vm2377 = vcmp.eq.f32.partialorder %v2374, %v2376
      %v2378 = vsel %vm2377, %v2373, inf
      %2379 = vmin.xlane.f32.xlu0 %v2378
      %v2380 = vpop.xlane.xlu0 %2379
      %v2381 = vcvt.f32.s32 %v2380
      %v2382 = vcvt.f32.s32 %v2376
      %v2383 = vshll.u32 %v2382, 16
      %v2384 = vadd.s32 %v2383, %v2381
      %v2385 = vand.u32 %v2286, 65535
      %v2386 = vshra.s32 %v2286, 16
      %v2387 = vcvt.s32.f32 %v2385
      %v2388 = vcvt.s32.f32 %v2386
      %2389 = vmin.xlane.f32.xlu0 %v2388
      %v2390 = vpop.xlane.xlu0 %2389
      %vm2391 = vcmp.eq.f32.partialorder %v2388, %v2390
      %v2392 = vsel %vm2391, %v2387, inf
      %2393 = vmin.xlane.f32.xlu0 %v2392
      %v2394 = vpop.xlane.xlu0 %2393
      %v2395 = vcvt.f32.s32 %v2394
      %v2396 = vcvt.f32.s32 %v2390
      %v2397 = vshll.u32 %v2396, 16
      %v2398 = vadd.s32 %v2397, %v2395
      %vm2399 = vcmp.eq.s32.totalorder %v2279, %v2300
      %vm2400 = vcmp.eq.s32.totalorder %v2280, %v2314
      %vm2401 = vcmp.eq.s32.totalorder %v2281, %v2328
      %vm2402 = vcmp.eq.s32.totalorder %v2282, %v2342
      %vm2403 = vcmp.eq.s32.totalorder %v2283, %v2356
      %vm2404 = vcmp.eq.s32.totalorder %v2284, %v2370
      %vm2405 = vcmp.eq.s32.totalorder %v2285, %v2384
      %vm2406 = vcmp.eq.s32.totalorder %v2286, %v2398
      %v2407 = vsel %vm2399, 1, 0
      %v2408 = vsel %vm2400, 1, 0
      %v2409 = vsel %vm2401, 1, 0
      %v2410 = vsel %vm2402, 1, 0
      %v2411 = vsel %vm2403, 1, 0
      %v2412 = vsel %vm2404, 1, 0
      %v2413 = vsel %vm2405, 1, 0
      %v2414 = vsel %vm2406, 1, 0
      %v2415 = vcvt.s32.f32 %v2407
      %v2416 = vcvt.s32.f32 %v2408
      %v2417 = vcvt.s32.f32 %v2409
      %v2418 = vcvt.s32.f32 %v2410
      %v2419 = vcvt.s32.f32 %v2411
      %v2420 = vcvt.s32.f32 %v2412
      %v2421 = vcvt.s32.f32 %v2413
      %v2422 = vcvt.s32.f32 %v2414
      %v2423 = vlaneseq
      %v2424 = vshrl.u32 %v2423, 7
      %v2425 = vsub.s32 7, %v2424
      %v2426 = vrot.slane %v467, %v2425
      %2427 = vmatprep.subr.mxu0 0.0
      %2428 = vmatpush1.msra.mxu0 %v451
      %2429 = vmatprep.subr.mxu0 0.0
      %2430 = vmatpush1.msra.mxu0 %v452
      %2431 = vmatprep.subr.mxu0 0.0
      %2432 = vmatpush1.msra.mxu0 %v453
      %2433 = vmatprep.subr.mxu0 0.0
      %2434 = vmatpush1.msra.mxu0 %v454
      %2435 = vmatprep.subr.mxu0 0.0
      %2436 = vmatpush1.msra.mxu0 %v455
      %2437 = vmatprep.subr.mxu0 0.0
      %2438 = vmatpush1.msra.mxu0 %v456
      %2439 = vmatprep.subr.mxu0 0.0
      %2440 = vmatpush1.msra.mxu0 %v457
      %2441 = vmatprep.subr.mxu0 0.0
      %2442 = vmatpush1.msra.mxu0 %v458
      %2443 = vmatprep.subr.mxu0 0.0
      %2444 = vmatpush1.msra.mxu0 %v459
      %2445 = vmatprep.subr.mxu0 0.0
      %2446 = vmatpush1.msra.mxu0 %v460
      %2447 = vmatprep.subr.mxu0 0.0
      %2448 = vmatpush1.msra.mxu0 %v461
      %2449 = vmatprep.subr.mxu0 0.0
      %2450 = vmatpush1.msra.mxu0 %v462
      %2451 = vmatprep.subr.mxu0 0.0
      %2452 = vmatpush1.msra.mxu0 %v463
      %2453 = vmatprep.subr.mxu0 0.0
      %2454 = vmatpush1.msra.mxu0 %v464
      %2455 = vmatprep.subr.mxu0 0.0
      %2456 = vmatpush1.msra.mxu0 %v465
      %2457 = vmatprep.subr.mxu0 0.0
      %2458 = vmatpush1.msra.mxu0 %v466
      %2459 = vmatprep.subr.mxu0 0.0
      %2460 = vmatpush1.msra.mxu0 0.0
      %2461 = vmatprep.subr.mxu0 0.0
      %2462 = vmatpush1.msra.mxu0 0.0
      %2463 = vmatprep.subr.mxu0 0.0
      %2464 = vmatpush1.msra.mxu0 0.0
      %2465 = vmatprep.subr.mxu0 0.0
      %2466 = vmatpush1.msra.mxu0 0.0
      %2467 = vmatprep.subr.mxu0 0.0
      %2468 = vmatpush1.msra.mxu0 0.0
      %2469 = vmatprep.subr.mxu0 0.0
      %2470 = vmatpush1.msra.mxu0 0.0
      %2471 = vmatprep.subr.mxu0 0.0
      %2472 = vmatpush1.msra.mxu0 0.0
      %2473 = vmatprep.subr.mxu0 0.0
      %2474 = vmatpush1.msra.mxu0 0.0
      %2475 = vmatprep.subr.mxu0 0.0
      %2476 = vmatpush1.msra.mxu0 0.0
      %2477 = vmatprep.subr.mxu0 0.0
      %2478 = vmatpush1.msra.mxu0 0.0
      %2479 = vmatprep.subr.mxu0 0.0
      %2480 = vmatpush1.msra.mxu0 0.0
      %2481 = vmatprep.subr.mxu0 0.0
      %2482 = vmatpush1.msra.mxu0 0.0
      %2483 = vmatprep.subr.mxu0 0.0
      %2484 = vmatpush1.msra.mxu0 0.0
      %2485 = vmatprep.subr.mxu0 0.0
      %2486 = vmatpush1.msra.mxu0 0.0
      %2487 = vmatprep.subr.mxu0 0.0
      %2488 = vmatpush1.msra.mxu0 0.0
      %2489 = vmatprep.subr.mxu0 0.0
      %2490 = vmatpush1.msra.mxu0 0.0
      %2491 = vmatprep.mubr.f32.mxu0 0.0
      %2492 = vmatmul.mubr.f32.gmra.mrb[0].mxu0 %v2415
      %v2493 = vpop.f32.mrb[0].mxu0
      %v2494 = vadd.f32 %v2426, %v2493
      %v2495 = vpop.f32.mrb[0].mxu0
      %2496 = vmatprep.mubr.f32.mxu0 0.0
      %2497 = vmatmul.mubr.f32.gmra.mrb[0].mxu0 %v2416
      %v2498 = vpop.f32.mrb[0].mxu0
      %v2499 = vadd.f32 %v2426, %v2498
      %v2500 = vpop.f32.mrb[0].mxu0
      %2501 = vmatprep.mubr.f32.mxu0 0.0
      %2502 = vmatmul.mubr.f32.gmra.mrb[0].mxu0 %v2417
      %v2503 = vpop.f32.mrb[0].mxu0
      %v2504 = vadd.f32 %v2426, %v2503
      %v2505 = vpop.f32.mrb[0].mxu0
      %2506 = vmatprep.mubr.f32.mxu0 0.0
      %2507 = vmatmul.mubr.f32.gmra.mrb[0].mxu0 %v2418
      %v2508 = vpop.f32.mrb[0].mxu0
      %v2509 = vadd.f32 %v2426, %v2508
      %v2510 = vpop.f32.mrb[0].mxu0
      %2511 = vmatprep.mubr.f32.mxu0 0.0
      %2512 = vmatmul.mubr.f32.gmra.mrb[0].mxu0 %v2419
      %v2513 = vpop.f32.mrb[0].mxu0
      %v2514 = vadd.f32 %v2426, %v2513
      %v2515 = vpop.f32.mrb[0].mxu0
      %2516 = vmatprep.mubr.f32.mxu0 0.0
      %2517 = vmatmul.mubr.f32.gmra.mrb[0].mxu0 %v2420
      %v2518 = vpop.f32.mrb[0].mxu0
      %v2519 = vadd.f32 %v2426, %v2518
      %v2520 = vpop.f32.mrb[0].mxu0
      %2521 = vmatprep.mubr.f32.mxu0 0.0
      %2522 = vmatmul.mubr.f32.gmra.mrb[0].mxu0 %v2421
      %v2523 = vpop.f32.mrb[0].mxu0
      %v2524 = vadd.f32 %v2426, %v2523
      %v2525 = vpop.f32.mrb[0].mxu0
      %2526 = vmatprep.mubr.f32.mxu0 0.0
      %2527 = vmatmul.mubr.f32.gmra.mrb[0].mxu0 %v2422
      %v2528 = vpop.f32.mrb[0].mxu0
      %v2529 = vadd.f32 %v2426, %v2528
      %v2530 = vpop.f32.mrb[0].mxu0
      %2531 = vdwg.mxu0
      %v2532 = vmax.f32 %v2271, %v2494
      %v2533 = vmax.f32 %v2272, %v2499
      %v2534 = vmax.f32 %v2273, %v2504
      %v2535 = vmax.f32 %v2274, %v2509
      %v2536 = vmax.f32 %v2275, %v2514
      %v2537 = vmax.f32 %v2276, %v2519
      %v2538 = vmax.f32 %v2277, %v2524
      %v2539 = vmax.f32 %v2278, %v2529
      %vm2540 = vcmask 97280
      %2541 = vst.msk [vmem:[%s226] sm:$0xff] %vm2540, %v2532
      %2542 = vst.msk [vmem:[%s226 + $0x8] sm:$0xff] %vm2540, %v2533
      %2543 = vst.msk [vmem:[%s226 + $0x10] sm:$0xff] %vm2540, %v2534
      %2544 = vst.msk [vmem:[%s226 + $0x18] sm:$0xff] %vm2540, %v2535
      %2545 = vst.msk [vmem:[%s226 + $0x20] sm:$0xff] %vm2540, %v2536
      %2546 = vst.msk [vmem:[%s226 + $0x28] sm:$0xff] %vm2540, %v2537
      %2547 = vst.msk [vmem:[%s226 + $0x30] sm:$0xff] %vm2540, %v2538
      %2548 = vst.msk [vmem:[%s226 + $0x38] sm:$0xff] %vm2540, %v2539
      %s2549 = smul.u32 8, %s16
      %p2550 = scmp.lt.s32.totalorder %s2549, 15
      %s2551 = scalar_select %p2550, %s2549, 15
      %s2552 = smul.addr %s2551, 8
      %s2553 = scalar_lea.vmem %s5, %s2552
      // Predicated region
      $region41: #{forward.4} parent=39 // pred_check
        %p2554 = pneg %p144
      $region42: #{forward.4} parent=39 // pred_check_branch
        %2556 = sbr.rel (%p2554) target = $region44
      $region43: #{forward.4} parent=39 // pred_region
        %s2557 = smul.u32 8, %s16
      $region44: #{forward.4} parent=39 // pred_fallthru
        _
    $region40: #{forward.4} parent=5 // pred_fallthru
      _
    %p2558 = scmp.le.s32.totalorder 2, %s11
    // Predicated region
    $region45: #{forward.4} parent=5 // pred_check
      %p2559 = pneg %p2558
    $region46: #{forward.4} parent=5 // pred_check_branch
      %2561 = sbr.rel (%p2559) target = $region48
    $region47: #{forward.4} parent=5 // pred_region
      %s2562 = ssub.s32 %s11, 2
      // Predicated region
      $region49: #{forward.4} parent=47 // pred_check
        %p2563 = pneg %p150
      $region50: #{forward.4} parent=47 // pred_check_branch
        %2565 = sbr.rel (%p2563) target = $region52
      $region51: #{forward.4} parent=47 // pred_region
        %s2566 = smul.u32 8, %s17
        %p2567 = scmp.lt.s32.totalorder %s2566, 15
        %s2568 = scalar_select %p2567, %s2566, 15
        %s2569 = smul.addr %s2568, 8
        %s2570 = scalar_lea.vmem %s5, %s2569
      $region52: #{forward.4} parent=47 // pred_fallthru
        _
    $region48: #{forward.4} parent=5 // pred_fallthru
      _
  $region6: #{forward.4} parent=0 // loop_footer
    %s15 = sadd.s32 1, %s11
  $region7: #{forward.4} parent=0 // loop_footer_branch
    %10 = sbr.rel target = $region3
  $region8: #{forward.4} parent=0 // loop_exit
    _

// kernel: forward.7
$region0: #{forward.7}
  #allocation0 [shape = 'u32[]', space=smem, size = 0x4, offset = 0x4, fixed_abs, tag = 'smem constant byte address 0x4 - core index']
  #allocation1 [shape = 'u32[144,128]{1,0:T(1,128)}', space=vmem, size = 0x12000, scoped, tag = 'internal scratch']
  %s0 = inlined_call_operand.vmem [shape: f32[128,84], index: 0, kind: input, shape index: {}]
  %s1 = inlined_call_operand.vmem [shape: f32[84,1024], index: 1, kind: input, shape index: {}]
  %s2 = inlined_call_operand.vmem [shape: f32[1,1024], index: 2, kind: input, shape index: {}]
  %s3 = inlined_call_operand.vmem [shape: f32[1024,256], index: 3, kind: input, shape index: {}]
  %s4 = inlined_call_operand.vmem [shape: f32[1,256], index: 4, kind: input, shape index: {}]
  %s5 = inlined_call_operand.vmem [shape: f32[256,128], index: 5, kind: input, shape index: {}]
  %s6 = inlined_call_operand.vmem [shape: f32[1,128], index: 6, kind: input, shape index: {}]
  %s7 = inlined_call_operand.vmem [shape: f32[128,10], index: 7, kind: input, shape index: {}]
  %s8 = inlined_call_operand.vmem [shape: f32[1,10], index: 8, kind: input, shape index: {}]
  %s9 = inlined_call_operand.vmem [shape: f32[128,10], index: 9, kind: output, shape index: {}]
  %s10 = sld [smem:[#allocation0]]
  $region69: #{forward.7} parent=0
    _
  %s12 = ssub.s32 1, %s10
  %s13 = scalar_select 0, %s12, %s10
  loop: start=0, step=1, limit=4
  $region2: #{forward.7} parent=0 // loop_pre_header
    _
  $region3: #{forward.7} parent=0 // loop_header
    %s15 = sphi 0, %s19
    %p16 = scmp.ge.s32.totalorder %s15, 4
    %s25 = sphi 0, %s27
    %s28 = sphi 0, %s25
    %s29 = sphi 0, %s28
    %s45 = sphi 0, %s29
    %s49 = sphi 0, %s49
    %s51 = sphi 0, %s49
    %s52 = sphi 0, %s51
    %s66 = sphi 0, %s52
    %s70 = sphi 0, %s70
    %s72 = sphi 0, %s70
    %s73 = sphi 0, %s72
    %s87 = sphi 0, %s73
    %s91 = sphi 0, %s91
    %s93 = sphi 0, %s91
    %s94 = sphi 0, %s93
    %s108 = sphi 0, %s94
    %s112 = sphi 0, %s112
    %s114 = sphi 0, %s112
    %s115 = sphi 0, %s114
    %s129 = sphi 0, %s115
    %s133 = sphi 0, %s133
    %s135 = sphi 0, %s133
    %s136 = sphi 0, %s135
    %s150 = sphi 0, %s136
    %s154 = sphi 0, %s154
    %s156 = sphi 0, %s154
    %s157 = sphi 0, %s156
    %s171 = sphi 0, %s157
    %s175 = sphi 0, %s175
    %s177 = sphi 0, %s175
    %s178 = sphi 0, %s177
    %s192 = sphi 0, %s178
    %s196 = sphi 0, %s196
    %s198 = sphi 0, %s196
    %s199 = sphi 0, %s198
    %s213 = sphi 0, %s199
    %s219 = sphi 0, %s221
    %s222 = sphi 0, %s219
    %s223 = sphi 0, %s222
    %s239 = sphi 0, %s223
  $region4: #{forward.7} parent=0 // loop_header_branch
    %18 = sbr.rel (%p16) target = $region8
  $region5: #{forward.7} parent=0 // loop_body
    %s20 = ssub.s32 %s15, 1
    %s21 = ssub.s32 %s15, 2
    %s22 = sadd.s32 %s15, 1
    %s23 = ssub.s32 %s15, %s22
    %p24 = scmp.eq.s32.totalorder %s23, 0
    %s26 = sadd.s32 %s25, 1
    %s27 = scalar_select %p24, %s25, %s26
    %p30 = pneg %p24
    %p31 = scmp.eq.s32.totalorder %s15, 1
    %p32 = por %p30, %p31
    %p33 = scmp.ne.s32.totalorder %s25, %s28
    %p34 = scmp.eq.s32.totalorder %s15, 0
    %p35 = por %p33, %p34
    %p36 = scmp.ne.s32.totalorder %s25, %s28
    %p37 = scmp.eq.s32.totalorder %s20, 1
    %p38 = por %p36, %p37
    %p39 = scmp.ne.s32.totalorder %s28, %s29
    %p40 = scmp.eq.s32.totalorder %s20, 0
    %p41 = por %p39, %p40
    %p42 = scmp.ne.s32.totalorder %s28, %s29
    %p43 = scmp.eq.s32.totalorder %s21, 1
    %p44 = por %p42, %p43
    %p46 = scmp.ne.s32.totalorder %s29, %s45
    %p47 = scmp.eq.s32.totalorder %s21, 0
    %p48 = por %p46, %p47
    %s50 = sadd.s32 %s49, 1
    %p53 = scmp.eq.s32.totalorder %s15, 1
    %p54 = scmp.ne.s32.totalorder %s49, %s51
    %p55 = scmp.eq.s32.totalorder %s15, 0
    %p56 = por %p54, %p55
    %p57 = scmp.ne.s32.totalorder %s49, %s51
    %p58 = scmp.eq.s32.totalorder %s20, 1
    %p59 = por %p57, %p58
    %p60 = scmp.ne.s32.totalorder %s51, %s52
    %p61 = scmp.eq.s32.totalorder %s20, 0
    %p62 = por %p60, %p61
    %p63 = scmp.ne.s32.totalorder %s51, %s52
    %p64 = scmp.eq.s32.totalorder %s21, 1
    %p65 = por %p63, %p64
    %p67 = scmp.ne.s32.totalorder %s52, %s66
    %p68 = scmp.eq.s32.totalorder %s21, 0
    %p69 = por %p67, %p68
    %s71 = sadd.s32 %s70, 1
    %p74 = scmp.eq.s32.totalorder %s15, 1
    %p75 = scmp.ne.s32.totalorder %s70, %s72
    %p76 = scmp.eq.s32.totalorder %s15, 0
    %p77 = por %p75, %p76
    %p78 = scmp.ne.s32.totalorder %s70, %s72
    %p79 = scmp.eq.s32.totalorder %s20, 1
    %p80 = por %p78, %p79
    %p81 = scmp.ne.s32.totalorder %s72, %s73
    %p82 = scmp.eq.s32.totalorder %s20, 0
    %p83 = por %p81, %p82
    %p84 = scmp.ne.s32.totalorder %s72, %s73
    %p85 = scmp.eq.s32.totalorder %s21, 1
    %p86 = por %p84, %p85
    %p88 = scmp.ne.s32.totalorder %s73, %s87
    %p89 = scmp.eq.s32.totalorder %s21, 0
    %p90 = por %p88, %p89
    %s92 = sadd.s32 %s91, 1
    %p95 = scmp.eq.s32.totalorder %s15, 1
    %p96 = scmp.ne.s32.totalorder %s91, %s93
    %p97 = scmp.eq.s32.totalorder %s15, 0
    %p98 = por %p96, %p97
    %p99 = scmp.ne.s32.totalorder %s91, %s93
    %p100 = scmp.eq.s32.totalorder %s20, 1
    %p101 = por %p99, %p100
    %p102 = scmp.ne.s32.totalorder %s93, %s94
    %p103 = scmp.eq.s32.totalorder %s20, 0
    %p104 = por %p102, %p103
    %p105 = scmp.ne.s32.totalorder %s93, %s94
    %p106 = scmp.eq.s32.totalorder %s21, 1
    %p107 = por %p105, %p106
    %p109 = scmp.ne.s32.totalorder %s94, %s108
    %p110 = scmp.eq.s32.totalorder %s21, 0
    %p111 = por %p109, %p110
    %s113 = sadd.s32 %s112, 1
    %p116 = scmp.eq.s32.totalorder %s15, 1
    %p117 = scmp.ne.s32.totalorder %s112, %s114
    %p118 = scmp.eq.s32.totalorder %s15, 0
    %p119 = por %p117, %p118
    %p120 = scmp.ne.s32.totalorder %s112, %s114
    %p121 = scmp.eq.s32.totalorder %s20, 1
    %p122 = por %p120, %p121
    %p123 = scmp.ne.s32.totalorder %s114, %s115
    %p124 = scmp.eq.s32.totalorder %s20, 0
    %p125 = por %p123, %p124
    %p126 = scmp.ne.s32.totalorder %s114, %s115
    %p127 = scmp.eq.s32.totalorder %s21, 1
    %p128 = por %p126, %p127
    %p130 = scmp.ne.s32.totalorder %s115, %s129
    %p131 = scmp.eq.s32.totalorder %s21, 0
    %p132 = por %p130, %p131
    %s134 = sadd.s32 %s133, 1
    %p137 = scmp.eq.s32.totalorder %s15, 1
    %p138 = scmp.ne.s32.totalorder %s133, %s135
    %p139 = scmp.eq.s32.totalorder %s15, 0
    %p140 = por %p138, %p139
    %p141 = scmp.ne.s32.totalorder %s133, %s135
    %p142 = scmp.eq.s32.totalorder %s20, 1
    %p143 = por %p141, %p142
    %p144 = scmp.ne.s32.totalorder %s135, %s136
    %p145 = scmp.eq.s32.totalorder %s20, 0
    %p146 = por %p144, %p145
    %p147 = scmp.ne.s32.totalorder %s135, %s136
    %p148 = scmp.eq.s32.totalorder %s21, 1
    %p149 = por %p147, %p148
    %p151 = scmp.ne.s32.totalorder %s136, %s150
    %p152 = scmp.eq.s32.totalorder %s21, 0
    %p153 = por %p151, %p152
    %s155 = sadd.s32 %s154, 1
    %p158 = scmp.eq.s32.totalorder %s15, 1
    %p159 = scmp.ne.s32.totalorder %s154, %s156
    %p160 = scmp.eq.s32.totalorder %s15, 0
    %p161 = por %p159, %p160
    %p162 = scmp.ne.s32.totalorder %s154, %s156
    %p163 = scmp.eq.s32.totalorder %s20, 1
    %p164 = por %p162, %p163
    %p165 = scmp.ne.s32.totalorder %s156, %s157
    %p166 = scmp.eq.s32.totalorder %s20, 0
    %p167 = por %p165, %p166
    %p168 = scmp.ne.s32.totalorder %s156, %s157
    %p169 = scmp.eq.s32.totalorder %s21, 1
    %p170 = por %p168, %p169
    %p172 = scmp.ne.s32.totalorder %s157, %s171
    %p173 = scmp.eq.s32.totalorder %s21, 0
    %p174 = por %p172, %p173
    %s176 = sadd.s32 %s175, 1
    %p179 = scmp.eq.s32.totalorder %s15, 1
    %p180 = scmp.ne.s32.totalorder %s175, %s177
    %p181 = scmp.eq.s32.totalorder %s15, 0
    %p182 = por %p180, %p181
    %p183 = scmp.ne.s32.totalorder %s175, %s177
    %p184 = scmp.eq.s32.totalorder %s20, 1
    %p185 = por %p183, %p184
    %p186 = scmp.ne.s32.totalorder %s177, %s178
    %p187 = scmp.eq.s32.totalorder %s20, 0
    %p188 = por %p186, %p187
    %p189 = scmp.ne.s32.totalorder %s177, %s178
    %p190 = scmp.eq.s32.totalorder %s21, 1
    %p191 = por %p189, %p190
    %p193 = scmp.ne.s32.totalorder %s178, %s192
    %p194 = scmp.eq.s32.totalorder %s21, 0
    %p195 = por %p193, %p194
    %s197 = sadd.s32 %s196, 1
    %p200 = scmp.eq.s32.totalorder %s15, 1
    %p201 = scmp.ne.s32.totalorder %s196, %s198
    %p202 = scmp.eq.s32.totalorder %s15, 0
    %p203 = por %p201, %p202
    %p204 = scmp.ne.s32.totalorder %s196, %s198
    %p205 = scmp.eq.s32.totalorder %s20, 1
    %p206 = por %p204, %p205
    %p207 = scmp.ne.s32.totalorder %s198, %s199
    %p208 = scmp.eq.s32.totalorder %s20, 0
    %p209 = por %p207, %p208
    %p210 = scmp.ne.s32.totalorder %s198, %s199
    %p211 = scmp.eq.s32.totalorder %s21, 1
    %p212 = por %p210, %p211
    %p214 = scmp.ne.s32.totalorder %s199, %s213
    %p215 = scmp.eq.s32.totalorder %s21, 0
    %p216 = por %p214, %p215
    %s217 = ssub.s32 %s15, %s22
    %p218 = scmp.eq.s32.totalorder %s217, 0
    %s220 = sadd.s32 %s219, 1
    %s221 = scalar_select %p218, %s219, %s220
    %p224 = pneg %p218
    %p225 = scmp.eq.s32.totalorder %s15, 1
    %p226 = por %p224, %p225
    %p227 = scmp.ne.s32.totalorder %s219, %s222
    %p228 = scmp.eq.s32.totalorder %s15, 0
    %p229 = por %p227, %p228
    %p230 = scmp.ne.s32.totalorder %s219, %s222
    %p231 = scmp.eq.s32.totalorder %s20, 1
    %p232 = por %p230, %p231
    %p233 = scmp.ne.s32.totalorder %s222, %s223
    %p234 = scmp.eq.s32.totalorder %s20, 0
    %p235 = por %p233, %p234
    %p236 = scmp.ne.s32.totalorder %s222, %s223
    %p237 = scmp.eq.s32.totalorder %s21, 1
    %p238 = por %p236, %p237
    %p240 = scmp.ne.s32.totalorder %s223, %s239
    %p241 = scmp.eq.s32.totalorder %s21, 0
    %p242 = por %p240, %p241
    %p243 = scmp.le.s32.totalorder 1, %s15
    %p244 = scmp.lt.s32.totalorder %s15, 3
    %p245 = pnand %p243, %p244
    %p246 = pneg %p245
    // Predicated region
    $region9: #{forward.7} parent=5 // pred_check
      _
    $region10: #{forward.7} parent=5 // pred_check_branch
      %248 = sbr.rel (%p245) target = $region12
    $region11: #{forward.7} parent=5 // pred_region
      %s249 = ssub.s32 %s15, 1
      // Predicated region
      $region13: #{forward.7} parent=11 // pred_check
        %p250 = pneg %p62
      $region14: #{forward.7} parent=11 // pred_check_branch
        %252 = sbr.rel (%p250) target = $region16
      $region15: #{forward.7} parent=11 // pred_region
        _
      $region16: #{forward.7} parent=11 // pred_fallthru
        _
      // Predicated region
      $region17: #{forward.7} parent=11 // pred_check
        %p253 = pneg %p83
      $region18: #{forward.7} parent=11 // pred_check_branch
        %255 = sbr.rel (%p253) target = $region20
      $region19: #{forward.7} parent=11 // pred_region
        _
      $region20: #{forward.7} parent=11 // pred_fallthru
        _
      // Predicated region
      $region21: #{forward.7} parent=11 // pred_check
        %p256 = pneg %p104
      $region22: #{forward.7} parent=11 // pred_check_branch
        %258 = sbr.rel (%p256) target = $region24
      $region23: #{forward.7} parent=11 // pred_region
        _
      $region24: #{forward.7} parent=11 // pred_fallthru
        _
      // Predicated region
      $region25: #{forward.7} parent=11 // pred_check
        %p259 = pneg %p125
      $region26: #{forward.7} parent=11 // pred_check_branch
        %261 = sbr.rel (%p259) target = $region28
      $region27: #{forward.7} parent=11 // pred_region
        _
      $region28: #{forward.7} parent=11 // pred_fallthru
        _
      // Predicated region
      $region29: #{forward.7} parent=11 // pred_check
        %p262 = pneg %p146
      $region30: #{forward.7} parent=11 // pred_check_branch
        %264 = sbr.rel (%p262) target = $region32
      $region31: #{forward.7} parent=11 // pred_region
        _
      $region32: #{forward.7} parent=11 // pred_fallthru
        _
      // Predicated region
      $region33: #{forward.7} parent=11 // pred_check
        %p265 = pneg %p167
      $region34: #{forward.7} parent=11 // pred_check_branch
        %267 = sbr.rel (%p265) target = $region36
      $region35: #{forward.7} parent=11 // pred_region
        _
      $region36: #{forward.7} parent=11 // pred_fallthru
        _
      // Predicated region
      $region37: #{forward.7} parent=11 // pred_check
        %p268 = pneg %p188
      $region38: #{forward.7} parent=11 // pred_check_branch
        %270 = sbr.rel (%p268) target = $region40
      $region39: #{forward.7} parent=11 // pred_region
        _
      $region40: #{forward.7} parent=11 // pred_fallthru
        _
      // Predicated region
      $region41: #{forward.7} parent=11 // pred_check
        %p271 = pneg %p209
      $region42: #{forward.7} parent=11 // pred_check_branch
        %273 = sbr.rel (%p271) target = $region44
      $region43: #{forward.7} parent=11 // pred_region
        _
      $region44: #{forward.7} parent=11 // pred_fallthru
        _
    $region12: #{forward.7} parent=5 // pred_fallthru
      _
    %p274 = scmp.lt.s32.totalorder %s15, 2
    // Predicated region
    $region45: #{forward.7} parent=5 // pred_check
      %p275 = pneg %p274
    $region46: #{forward.7} parent=5 // pred_check_branch
      %277 = sbr.rel (%p275) target = $region48
    $region47: #{forward.7} parent=5 // pred_region
      // Predicated region
      $region49: #{forward.7} parent=47 // pred_check
        %p278 = pneg %p35
      $region50: #{forward.7} parent=47 // pred_check_branch
        %280 = sbr.rel (%p278) target = $region52
      $region51: #{forward.7} parent=47 // pred_region
        %s281 = smul.u32 8, %s15
        %p282 = scmp.lt.s32.totalorder %s281, 15
        %s283 = scalar_select %p282, %s281, 15
        %s284 = smul.addr %s283, 8
        %s285 = scalar_lea.vmem %s0, %s284
        %s286 = smul.u32 8, %s15
      $region52: #{forward.7} parent=47 // pred_fallthru
        _
    $region48: #{forward.7} parent=5 // pred_fallthru
      _
    %p287 = scmp.le.s32.totalorder 1, %s15
    %p288 = scmp.lt.s32.totalorder %s15, 3
    %p289 = pnand %p287, %p288
    %p290 = pneg %p289
    // Predicated region
    $region53: #{forward.7} parent=5 // pred_check
      _
    $region54: #{forward.7} parent=5 // pred_check_branch
      %292 = sbr.rel (%p289) target = $region56
    $region55: #{forward.7} parent=5 // pred_region
      %s293 = ssub.s32 %s15, 1
      %s294 = smul.u32 8, %s20
      %p295 = scmp.lt.s32.totalorder %s294, 15
      %s296 = scalar_select %p295, %s294, 15
      %s297 = smul.addr %s296, 8
      %s298 = scalar_lea.vmem %s0, %s297
      %p299 = pneg %p41
      %p300 = pneg %p38
      %p301 = pneg %p62
      %p302 = pneg %p59
      %p303 = pneg %p83
      %p304 = pneg %p80
      %p305 = pneg %p104
      %p306 = pneg %p101
      %p307 = pneg %p125
      %p308 = pneg %p122
      %p309 = pneg %p146
      %p310 = pneg %p143
      %p311 = pneg %p167
      %p312 = pneg %p164
      %p313 = pneg %p188
      %p314 = pneg %p185
      %p315 = pneg %p209
      %p316 = pneg %p206
      %p317 = pneg %p235
      %p318 = pneg %p232
      %s319 = smul.u32 8, %s20
      %p320 = scmp.lt.s32.totalorder %s319, 15
      %s321 = scalar_select %p320, %s319, 15
      %s322 = smul.addr %s321, 8
      %s323 = scalar_lea.vmem %s9, %s322
      %s324 = smul.u32 8, %s20
      %p325 = scmp.lt.s32.totalorder %s324, 15
      %s326 = scalar_select %p325, %s324, 15
      %s327 = smul.addr %s326, 8
      %s328 = scalar_lea.vmem %s0, %s327
      %s329 = smul.u32 8, %s20
      %s330 = smul.u32 8, %s20
      %p331 = scmp.lt.s32.totalorder %s330, 15
      %s332 = scalar_select %p331, %s330, 15
      %s333 = smul.addr %s332, 8
      %s334 = scalar_lea.vmem %s9, %s333
      %s335 = smul.u32 8, %s20
      %v336 = vld [vmem:[%s328] sm:$0xff]
      %v337 = vld [vmem:[%s328 + $0x8] sm:$0xff]
      %v338 = vld [vmem:[%s328 + $0x10] sm:$0xff]
      %v339 = vld [vmem:[%s328 + $0x18] sm:$0xff]
      %v340 = vld [vmem:[%s328 + $0x20] sm:$0xff]
      %v341 = vld [vmem:[%s328 + $0x28] sm:$0xff]
      %v342 = vld [vmem:[%s328 + $0x30] sm:$0xff]
      %v343 = vld [vmem:[%s328 + $0x38] sm:$0xff]
      %v344 = vld [vmem:[%s1] sm:$0xff]
      %v345 = vld [vmem:[%s1 + $0x8] sm:$0xff]
      %v346 = vld [vmem:[%s1 + $0x10] sm:$0xff]
      %v347 = vld [vmem:[%s1 + $0x18] sm:$0xff]
      %v348 = vld [vmem:[%s1 + $0x20] sm:$0xff]
      %v349 = vld [vmem:[%s1 + $0x28] sm:$0xff]
      %v350 = vld [vmem:[%s1 + $0x30] sm:$0xff]
      %v351 = vld [vmem:[%s1 + $0x38] sm:$0xff]
      %v352 = vld [vmem:[%s1 + $0x40] sm:$0xff]
      %v353 = vld [vmem:[%s1 + $0x48] sm:$0xff]
      %v354 = vld [vmem:[%s1 + $0x50] sm:$0xff]
      %v355 = vld [vmem:[%s1 + $0x58] sm:$0xff]
      %v356 = vld [vmem:[%s1 + $0x60] sm:$0xff]
      %v357 = vld [vmem:[%s1 + $0x68] sm:$0xff]
      %v358 = vld [vmem:[%s1 + $0x70] sm:$0xff]
      %v359 = vld [vmem:[%s1 + $0x78] sm:$0xff]
      %v360 = vld [vmem:[%s1 + $0x80] sm:$0xff]
      %v361 = vld [vmem:[%s1 + $0x88] sm:$0xff]
      %v362 = vld [vmem:[%s1 + $0x90] sm:$0xff]
      %v363 = vld [vmem:[%s1 + $0x98] sm:$0xff]
      %v364 = vld [vmem:[%s1 + $0xa0] sm:$0xff]
      %v365 = vld [vmem:[%s1 + $0xa8] sm:$0xff]
      %v366 = vld [vmem:[%s1 + $0xb0] sm:$0xff]
      %v367 = vld [vmem:[%s1 + $0xb8] sm:$0xff]
      %v368 = vld [vmem:[%s1 + $0xc0] sm:$0xff]
      %v369 = vld [vmem:[%s1 + $0xc8] sm:$0xff]
      %v370 = vld [vmem:[%s1 + $0xd0] sm:$0xff]
      %v371 = vld [vmem:[%s1 + $0xd8] sm:$0xff]
      %v372 = vld [vmem:[%s1 + $0xe0] sm:$0xff]
      %v373 = vld [vmem:[%s1 + $0xe8] sm:$0xff]
      %v374 = vld [vmem:[%s1 + $0xf0] sm:$0xff]
      %v375 = vld [vmem:[%s1 + $0xf8] sm:$0xff]
      %v376 = vld [vmem:[%s1 + $0x100] sm:$0xff]
      %v377 = vld [vmem:[%s1 + $0x108] sm:$0xff]
      %v378 = vld [vmem:[%s1 + $0x110] sm:$0xff]
      %v379 = vld [vmem:[%s1 + $0x118] sm:$0xff]
      %v380 = vld [vmem:[%s1 + $0x120] sm:$0xff]
      %v381 = vld [vmem:[%s1 + $0x128] sm:$0xff]
      %v382 = vld [vmem:[%s1 + $0x130] sm:$0xff]
      %v383 = vld [vmem:[%s1 + $0x138] sm:$0xff]
      %v384 = vld [vmem:[%s1 + $0x140] sm:$0xff]
      %v385 = vld [vmem:[%s1 + $0x148] sm:$0xff]
      %v386 = vld [vmem:[%s1 + $0x150] sm:$0xff]
      %v387 = vld [vmem:[%s1 + $0x158] sm:$0xff]
      %v388 = vld [vmem:[%s1 + $0x160] sm:$0xff]
      %v389 = vld [vmem:[%s1 + $0x168] sm:$0xff]
      %v390 = vld [vmem:[%s1 + $0x170] sm:$0xff]
      %v391 = vld [vmem:[%s1 + $0x178] sm:$0xff]
      %v392 = vld [vmem:[%s1 + $0x180] sm:$0xff]
      %v393 = vld [vmem:[%s1 + $0x188] sm:$0xff]
      %v394 = vld [vmem:[%s1 + $0x190] sm:$0xff]
      %v395 = vld [vmem:[%s1 + $0x198] sm:$0xff]
      %v396 = vld [vmem:[%s1 + $0x1a0] sm:$0xff]
      %v397 = vld [vmem:[%s1 + $0x1a8] sm:$0xff]
      %v398 = vld [vmem:[%s1 + $0x1b0] sm:$0xff]
      %v399 = vld [vmem:[%s1 + $0x1b8] sm:$0xff]
      %v400 = vld [vmem:[%s1 + $0x1c0] sm:$0xff]
      %v401 = vld [vmem:[%s1 + $0x1c8] sm:$0xff]
      %v402 = vld [vmem:[%s1 + $0x1d0] sm:$0xff]
      %v403 = vld [vmem:[%s1 + $0x1d8] sm:$0xff]
      %v404 = vld [vmem:[%s1 + $0x1e0] sm:$0xff]
      %v405 = vld [vmem:[%s1 + $0x1e8] sm:$0xff]
      %v406 = vld [vmem:[%s1 + $0x1f0] sm:$0xff]
      %v407 = vld [vmem:[%s1 + $0x1f8] sm:$0xff]
      %v408 = vld [vmem:[%s1 + $0x200] sm:$0xff]
      %v409 = vld [vmem:[%s1 + $0x208] sm:$0xff]
      %v410 = vld [vmem:[%s1 + $0x210] sm:$0xff]
      %v411 = vld [vmem:[%s1 + $0x218] sm:$0xff]
      %v412 = vld [vmem:[%s1 + $0x220] sm:$0xff]
      %v413 = vld [vmem:[%s1 + $0x228] sm:$0xff]
      %v414 = vld [vmem:[%s1 + $0x230] sm:$0xff]
      %v415 = vld [vmem:[%s1 + $0x238] sm:$0xff]
      %v416 = vld [vmem:[%s1 + $0x240] sm:$0xff]
      %v417 = vld [vmem:[%s1 + $0x248] sm:$0xff]
      %v418 = vld [vmem:[%s1 + $0x250] sm:$0xff]
      %v419 = vld [vmem:[%s1 + $0x258] sm:$0xff]
      %v420 = vld [vmem:[%s1 + $0x260] sm:$0xff]
      %v421 = vld [vmem:[%s1 + $0x268] sm:$0xff]
      %v422 = vld [vmem:[%s1 + $0x270] sm:$0xff]
      %v423 = vld [vmem:[%s1 + $0x278] sm:$0xff]
      %v424 = vld [vmem:[%s1 + $0x280] sm:$0xf]
      %v425 = vld [vmem:[%s1 + $0x288] sm:$0xf]
      %v426 = vld [vmem:[%s1 + $0x290] sm:$0xf]
      %v427 = vld [vmem:[%s1 + $0x298] sm:$0xf]
      %v428 = vld [vmem:[%s1 + $0x2a0] sm:$0xf]
      %v429 = vld [vmem:[%s1 + $0x2a8] sm:$0xf]
      %v430 = vld [vmem:[%s1 + $0x2b0] sm:$0xf]
      %v431 = vld [vmem:[%s1 + $0x2b8] sm:$0xf]
      %v432 = vld [vmem:[%s2] sm:$0xff]
      %v434 = vlaneseq
      %v435 = vshrl.u32 %v434, 7
      %v436 = vsub.s32 0, %v435
      %v437 = vrot.slane %v432, %v436
      %v438 = vlaneseq
      %v439 = vshrl.u32 %v438, 7
      %v440 = vsub.s32 1, %v439
      %v441 = vrot.slane %v432, %v440
      %v442 = vlaneseq
      %v443 = vshrl.u32 %v442, 7
      %v444 = vsub.s32 2, %v443
      %v445 = vrot.slane %v432, %v444
      %v446 = vlaneseq
      %v447 = vshrl.u32 %v446, 7
      %v448 = vsub.s32 3, %v447
      %v449 = vrot.slane %v432, %v448
      %v450 = vlaneseq
      %v451 = vshrl.u32 %v450, 7
      %v452 = vsub.s32 4, %v451
      %v453 = vrot.slane %v432, %v452
      %v454 = vlaneseq
      %v455 = vshrl.u32 %v454, 7
      %v456 = vsub.s32 5, %v455
      %v457 = vrot.slane %v432, %v456
      %v458 = vlaneseq
      %v459 = vshrl.u32 %v458, 7
      %v460 = vsub.s32 6, %v459
      %v461 = vrot.slane %v432, %v460
      %v462 = vlaneseq
      %v463 = vshrl.u32 %v462, 7
      %v464 = vsub.s32 7, %v463
      %v465 = vrot.slane %v432, %v464
      %vm474 = vcmask 687104
      %v476 = vsel %vm474, %v336, 0
      %v479 = vsel %vm474, %v337, 0
      %v482 = vsel %vm474, %v338, 0
      %v485 = vsel %vm474, %v339, 0
      %v488 = vsel %vm474, %v340, 0
      %v491 = vsel %vm474, %v341, 0
      %v494 = vsel %vm474, %v342, 0
      %v497 = vsel %vm474, %v343, 0
      %vm499 = vcmask 1043456
      %v501 = vsel %vm499, %v424, 0
      %v504 = vsel %vm499, %v425, 0
      %v507 = vsel %vm499, %v426, 0
      %v510 = vsel %vm499, %v427, 0
      %v513 = vsel %vm499, %v428, 0
      %v516 = vsel %vm499, %v429, 0
      %v519 = vsel %vm499, %v430, 0
      %v522 = vsel %vm499, %v431, 0
      %524 = vmatprep.subr.mxu0 %v345
      %525 = vmatpush1.msra.mxu0 %v344
      %526 = vmatprep.subr.mxu0 %v353
      %527 = vmatpush1.msra.mxu0 %v352
      %528 = vmatprep.subr.mxu0 %v361
      %529 = vmatpush1.msra.mxu0 %v360
      %530 = vmatprep.subr.mxu0 %v369
      %531 = vmatpush1.msra.mxu0 %v368
      %532 = vmatprep.subr.mxu0 %v377
      %533 = vmatpush1.msra.mxu0 %v376
      %534 = vmatprep.subr.mxu0 %v385
      %535 = vmatpush1.msra.mxu0 %v384
      %536 = vmatprep.subr.mxu0 %v393
      %537 = vmatpush1.msra.mxu0 %v392
      %538 = vmatprep.subr.mxu0 %v401
      %539 = vmatpush1.msra.mxu0 %v400
      %540 = vmatprep.subr.mxu0 %v409
      %541 = vmatpush1.msra.mxu0 %v408
      %542 = vmatprep.subr.mxu0 %v417
      %543 = vmatpush1.msra.mxu0 %v416
      %544 = vmatprep.subr.mxu0 %v504
      %545 = vmatpush1.msra.mxu0 %v501
      %546 = vmatprep.subr.mxu0 0.0
      %547 = vmatpush1.msra.mxu0 0.0
      %548 = vmatprep.subr.mxu0 0.0
      %549 = vmatpush1.msra.mxu0 0.0
      %550 = vmatprep.subr.mxu0 0.0
      %551 = vmatpush1.msra.mxu0 0.0
      %552 = vmatprep.subr.mxu0 0.0
      %553 = vmatpush1.msra.mxu0 0.0
      %554 = vmatprep.subr.mxu0 0.0
      %555 = vmatpush1.msra.mxu0 0.0
      %556 = vmatprep.subr.mxu0 0.0
      %557 = vmatpush1.msra.mxu0 0.0
      %558 = vmatprep.subr.mxu0 0.0
      %559 = vmatpush1.msra.mxu0 0.0
      %560 = vmatprep.subr.mxu0 0.0
      %561 = vmatpush1.msra.mxu0 0.0
      %562 = vmatprep.subr.mxu0 0.0
      %563 = vmatpush1.msra.mxu0 0.0
      %564 = vmatprep.subr.mxu0 0.0
      %565 = vmatpush1.msra.mxu0 0.0
      %566 = vmatprep.subr.mxu0 0.0
      %567 = vmatpush1.msra.mxu0 0.0
      %568 = vmatprep.subr.mxu0 0.0
      %569 = vmatpush1.msra.mxu0 0.0
      %570 = vmatprep.subr.mxu0 0.0
      %571 = vmatpush1.msra.mxu0 0.0
      %572 = vmatprep.subr.mxu0 0.0
      %573 = vmatpush1.msra.mxu0 0.0
      %574 = vmatprep.subr.mxu0 0.0
      %575 = vmatpush1.msra.mxu0 0.0
      %576 = vmatprep.subr.mxu0 0.0
      %577 = vmatpush1.msra.mxu0 0.0
      %578 = vmatprep.subr.mxu0 0.0
      %579 = vmatpush1.msra.mxu0 0.0
      %580 = vmatprep.subr.mxu0 0.0
      %581 = vmatpush1.msra.mxu0 0.0
      %582 = vmatprep.subr.mxu0 0.0
      %583 = vmatpush1.msra.mxu0 0.0
      %584 = vmatprep.subr.mxu0 0.0
      %585 = vmatpush1.msra.mxu0 0.0
      %586 = vmatprep.subr.mxu0 0.0
      %587 = vmatpush1.msra.mxu0 0.0
      %588 = vmatprep.mubr.f32.mxu0 0.0
      %589 = vmatmul.mubr.f32.gmra.mrb[0].mxu0 %v476
      %v590 = vpop.f32.mrb[0].mxu0
      %v591 = vadd.f32 %v437, %v590
      %v592 = vpop.f32.mrb[0].mxu0
      %v593 = vadd.f32 %v441, %v592
      %594 = vmatprep.mubr.f32.mxu0 0.0
      %595 = vmatmul.mubr.f32.gmra.mrb[0].mxu0 %v479
      %v596 = vpop.f32.mrb[0].mxu0
      %v597 = vadd.f32 %v437, %v596
      %v598 = vpop.f32.mrb[0].mxu0
      %v599 = vadd.f32 %v441, %v598
      %600 = vmatprep.mubr.f32.mxu0 0.0
      %601 = vmatmul.mubr.f32.gmra.mrb[0].mxu0 %v482
      %v602 = vpop.f32.mrb[0].mxu0
      %v603 = vadd.f32 %v437, %v602
      %v604 = vpop.f32.mrb[0].mxu0
      %v605 = vadd.f32 %v441, %v604
      %606 = vmatprep.mubr.f32.mxu0 0.0
      %607 = vmatmul.mubr.f32.gmra.mrb[0].mxu0 %v485
      %v608 = vpop.f32.mrb[0].mxu0
      %v609 = vadd.f32 %v437, %v608
      %v610 = vpop.f32.mrb[0].mxu0
      %v611 = vadd.f32 %v441, %v610
      %612 = vmatprep.mubr.f32.mxu0 0.0
      %613 = vmatmul.mubr.f32.gmra.mrb[0].mxu0 %v488
      %v614 = vpop.f32.mrb[0].mxu0
      %v615 = vadd.f32 %v437, %v614
      %v616 = vpop.f32.mrb[0].mxu0
      %v617 = vadd.f32 %v441, %v616
      %618 = vmatprep.mubr.f32.mxu0 0.0
      %619 = vmatmul.mubr.f32.gmra.mrb[0].mxu0 %v491
      %v620 = vpop.f32.mrb[0].mxu0
      %v621 = vadd.f32 %v437, %v620
      %v622 = vpop.f32.mrb[0].mxu0
      %v623 = vadd.f32 %v441, %v622
      %624 = vmatprep.mubr.f32.mxu0 0.0
      %625 = vmatmul.mubr.f32.gmra.mrb[0].mxu0 %v494
      %v626 = vpop.f32.mrb[0].mxu0
      %v627 = vadd.f32 %v437, %v626
      %v628 = vpop.f32.mrb[0].mxu0
      %v629 = vadd.f32 %v441, %v628
      %630 = vmatprep.mubr.f32.mxu0 0.0
      %631 = vmatmul.mubr.f32.gmra.mrb[0].mxu0 %v497
      %v632 = vpop.f32.mrb[0].mxu0
      %v633 = vadd.f32 %v437, %v632
      %v634 = vpop.f32.mrb[0].mxu0
      %v635 = vadd.f32 %v441, %v634
      %636 = vdwg.mxu0
      %637 = vmatprep.subr.mxu0 %v347
      %638 = vmatpush1.msra.mxu0 %v346
      %639 = vmatprep.subr.mxu0 %v355
      %640 = vmatpush1.msra.mxu0 %v354
      %641 = vmatprep.subr.mxu0 %v363
      %642 = vmatpush1.msra.mxu0 %v362
      %643 = vmatprep.subr.mxu0 %v371
      %644 = vmatpush1.msra.mxu0 %v370
      %645 = vmatprep.subr.mxu0 %v379
      %646 = vmatpush1.msra.mxu0 %v378
      %647 = vmatprep.subr.mxu0 %v387
      %648 = vmatpush1.msra.mxu0 %v386
      %649 = vmatprep.subr.mxu0 %v395
      %650 = vmatpush1.msra.mxu0 %v394
      %651 = vmatprep.subr.mxu0 %v403
      %652 = vmatpush1.msra.mxu0 %v402
      %653 = vmatprep.subr.mxu0 %v411
      %654 = vmatpush1.msra.mxu0 %v410
      %655 = vmatprep.subr.mxu0 %v419
      %656 = vmatpush1.msra.mxu0 %v418
      %657 = vmatprep.subr.mxu0 %v510
      %658 = vmatpush1.msra.mxu0 %v507
      %659 = vmatprep.subr.mxu0 0.0
      %660 = vmatpush1.msra.mxu0 0.0
      %661 = vmatprep.subr.mxu0 0.0
      %662 = vmatpush1.msra.mxu0 0.0
      %663 = vmatprep.subr.mxu0 0.0
      %664 = vmatpush1.msra.mxu0 0.0
      %665 = vmatprep.subr.mxu0 0.0
      %666 = vmatpush1.msra.mxu0 0.0
      %667 = vmatprep.subr.mxu0 0.0
      %668 = vmatpush1.msra.mxu0 0.0
      %669 = vmatprep.subr.mxu0 0.0
      %670 = vmatpush1.msra.mxu0 0.0
      %671 = vmatprep.subr.mxu0 0.0
      %672 = vmatpush1.msra.mxu0 0.0
      %673 = vmatprep.subr.mxu0 0.0
      %674 = vmatpush1.msra.mxu0 0.0
      %675 = vmatprep.subr.mxu0 0.0
      %676 = vmatpush1.msra.mxu0 0.0
      %677 = vmatprep.subr.mxu0 0.0
      %678 = vmatpush1.msra.mxu0 0.0
      %679 = vmatprep.subr.mxu0 0.0
      %680 = vmatpush1.msra.mxu0 0.0
      %681 = vmatprep.subr.mxu0 0.0
      %682 = vmatpush1.msra.mxu0 0.0
      %683 = vmatprep.subr.mxu0 0.0
      %684 = vmatpush1.msra.mxu0 0.0
      %685 = vmatprep.subr.mxu0 0.0
      %686 = vmatpush1.msra.mxu0 0.0
      %687 = vmatprep.subr.mxu0 0.0
      %688 = vmatpush1.msra.mxu0 0.0
      %689 = vmatprep.subr.mxu0 0.0
      %690 = vmatpush1.msra.mxu0 0.0
      %691 = vmatprep.subr.mxu0 0.0
      %692 = vmatpush1.msra.mxu0 0.0
      %693 = vmatprep.subr.mxu0 0.0
      %694 = vmatpush1.msra.mxu0 0.0
      %695 = vmatprep.subr.mxu0 0.0
      %696 = vmatpush1.msra.mxu0 0.0
      %697 = vmatprep.subr.mxu0 0.0
      %698 = vmatpush1.msra.mxu0 0.0
      %699 = vmatprep.subr.mxu0 0.0
      %700 = vmatpush1.msra.mxu0 0.0
      %701 = vmatprep.mubr.f32.mxu0 0.0
      %702 = vmatmul.mubr.f32.gmra.mrb[0].mxu0 %v476
      %v703 = vpop.f32.mrb[0].mxu0
      %v704 = vadd.f32 %v445, %v703
      %v705 = vpop.f32.mrb[0].mxu0
      %v706 = vadd.f32 %v449, %v705
      %707 = vmatprep.mubr.f32.mxu0 0.0
      %708 = vmatmul.mubr.f32.gmra.mrb[0].mxu0 %v479
      %v709 = vpop.f32.mrb[0].mxu0
      %v710 = vadd.f32 %v445, %v709
      %v711 = vpop.f32.mrb[0].mxu0
      %v712 = vadd.f32 %v449, %v711
      %713 = vmatprep.mubr.f32.mxu0 0.0
      %714 = vmatmul.mubr.f32.gmra.mrb[0].mxu0 %v482
      %v715 = vpop.f32.mrb[0].mxu0
      %v716 = vadd.f32 %v445, %v715
      %v717 = vpop.f32.mrb[0].mxu0
      %v718 = vadd.f32 %v449, %v717
      %719 = vmatprep.mubr.f32.mxu0 0.0
      %720 = vmatmul.mubr.f32.gmra.mrb[0].mxu0 %v485
      %v721 = vpop.f32.mrb[0].mxu0
      %v722 = vadd.f32 %v445, %v721
      %v723 = vpop.f32.mrb[0].mxu0
      %v724 = vadd.f32 %v449, %v723
      %725 = vmatprep.mubr.f32.mxu0 0.0
      %726 = vmatmul.mubr.f32.gmra.mrb[0].mxu0 %v488
      %v727 = vpop.f32.mrb[0].mxu0
      %v728 = vadd.f32 %v445, %v727
      %v729 = vpop.f32.mrb[0].mxu0
      %v730 = vadd.f32 %v449, %v729
      %731 = vmatprep.mubr.f32.mxu0 0.0
      %732 = vmatmul.mubr.f32.gmra.mrb[0].mxu0 %v491
      %v733 = vpop.f32.mrb[0].mxu0
      %v734 = vadd.f32 %v445, %v733
      %v735 = vpop.f32.mrb[0].mxu0
      %v736 = vadd.f32 %v449, %v735
      %737 = vmatprep.mubr.f32.mxu0 0.0
      %738 = vmatmul.mubr.f32.gmra.mrb[0].mxu0 %v494
      %v739 = vpop.f32.mrb[0].mxu0
      %v740 = vadd.f32 %v445, %v739
      %v741 = vpop.f32.mrb[0].mxu0
      %v742 = vadd.f32 %v449, %v741
      %743 = vmatprep.mubr.f32.mxu0 0.0
      %744 = vmatmul.mubr.f32.gmra.mrb[0].mxu0 %v497
      %v745 = vpop.f32.mrb[0].mxu0
      %v746 = vadd.f32 %v445, %v745
      %v747 = vpop.f32.mrb[0].mxu0
      %v748 = vadd.f32 %v449, %v747
      %749 = vdwg.mxu0
      %750 = vmatprep.subr.mxu0 %v349
      %751 = vmatpush1.msra.mxu0 %v348
      %752 = vmatprep.subr.mxu0 %v357
      %753 = vmatpush1.msra.mxu0 %v356
      %754 = vmatprep.subr.mxu0 %v365
      %755 = vmatpush1.msra.mxu0 %v364
      %756 = vmatprep.subr.mxu0 %v373
      %757 = vmatpush1.msra.mxu0 %v372
      %758 = vmatprep.subr.mxu0 %v381
      %759 = vmatpush1.msra.mxu0 %v380
      %760 = vmatprep.subr.mxu0 %v389
      %761 = vmatpush1.msra.mxu0 %v388
      %762 = vmatprep.subr.mxu0 %v397
      %763 = vmatpush1.msra.mxu0 %v396
      %764 = vmatprep.subr.mxu0 %v405
      %765 = vmatpush1.msra.mxu0 %v404
      %766 = vmatprep.subr.mxu0 %v413
      %767 = vmatpush1.msra.mxu0 %v412
      %768 = vmatprep.subr.mxu0 %v421
      %769 = vmatpush1.msra.mxu0 %v420
      %770 = vmatprep.subr.mxu0 %v516
      %771 = vmatpush1.msra.mxu0 %v513
      %772 = vmatprep.subr.mxu0 0.0
      %773 = vmatpush1.msra.mxu0 0.0
      %774 = vmatprep.subr.mxu0 0.0
      %775 = vmatpush1.msra.mxu0 0.0
      %776 = vmatprep.subr.mxu0 0.0
      %777 = vmatpush1.msra.mxu0 0.0
      %778 = vmatprep.subr.mxu0 0.0
      %779 = vmatpush1.msra.mxu0 0.0
      %780 = vmatprep.subr.mxu0 0.0
      %781 = vmatpush1.msra.mxu0 0.0
      %782 = vmatprep.subr.mxu0 0.0
      %783 = vmatpush1.msra.mxu0 0.0
      %784 = vmatprep.subr.mxu0 0.0
      %785 = vmatpush1.msra.mxu0 0.0
      %786 = vmatprep.subr.mxu0 0.0
      %787 = vmatpush1.msra.mxu0 0.0
      %788 = vmatprep.subr.mxu0 0.0
      %789 = vmatpush1.msra.mxu0 0.0
      %790 = vmatprep.subr.mxu0 0.0
      %791 = vmatpush1.msra.mxu0 0.0
      %792 = vmatprep.subr.mxu0 0.0
      %793 = vmatpush1.msra.mxu0 0.0
      %794 = vmatprep.subr.mxu0 0.0
      %795 = vmatpush1.msra.mxu0 0.0
      %796 = vmatprep.subr.mxu0 0.0
      %797 = vmatpush1.msra.mxu0 0.0
      %798 = vmatprep.subr.mxu0 0.0
      %799 = vmatpush1.msra.mxu0 0.0
      %800 = vmatprep.subr.mxu0 0.0
      %801 = vmatpush1.msra.mxu0 0.0
      %802 = vmatprep.subr.mxu0 0.0
      %803 = vmatpush1.msra.mxu0 0.0
      %804 = vmatprep.subr.mxu0 0.0
      %805 = vmatpush1.msra.mxu0 0.0
      %806 = vmatprep.subr.mxu0 0.0
      %807 = vmatpush1.msra.mxu0 0.0
      %808 = vmatprep.subr.mxu0 0.0
      %809 = vmatpush1.msra.mxu0 0.0
      %810 = vmatprep.subr.mxu0 0.0
      %811 = vmatpush1.msra.mxu0 0.0
      %812 = vmatprep.subr.mxu0 0.0
      %813 = vmatpush1.msra.mxu0 0.0
      %814 = vmatprep.mubr.f32.mxu0 0.0
      %815 = vmatmul.mubr.f32.gmra.mrb[0].mxu0 %v476
      %v816 = vpop.f32.mrb[0].mxu0
      %v817 = vadd.f32 %v453, %v816
      %v818 = vpop.f32.mrb[0].mxu0
      %v819 = vadd.f32 %v457, %v818
      %820 = vmatprep.mubr.f32.mxu0 0.0
      %821 = vmatmul.mubr.f32.gmra.mrb[0].mxu0 %v479
      %v822 = vpop.f32.mrb[0].mxu0
      %v823 = vadd.f32 %v453, %v822
      %v824 = vpop.f32.mrb[0].mxu0
      %v825 = vadd.f32 %v457, %v824
      %826 = vmatprep.mubr.f32.mxu0 0.0
      %827 = vmatmul.mubr.f32.gmra.mrb[0].mxu0 %v482
      %v828 = vpop.f32.mrb[0].mxu0
      %v829 = vadd.f32 %v453, %v828
      %v830 = vpop.f32.mrb[0].mxu0
      %v831 = vadd.f32 %v457, %v830
      %832 = vmatprep.mubr.f32.mxu0 0.0
      %833 = vmatmul.mubr.f32.gmra.mrb[0].mxu0 %v485
      %v834 = vpop.f32.mrb[0].mxu0
      %v835 = vadd.f32 %v453, %v834
      %v836 = vpop.f32.mrb[0].mxu0
      %v837 = vadd.f32 %v457, %v836
      %838 = vmatprep.mubr.f32.mxu0 0.0
      %839 = vmatmul.mubr.f32.gmra.mrb[0].mxu0 %v488
      %v840 = vpop.f32.mrb[0].mxu0
      %v841 = vadd.f32 %v453, %v840
      %v842 = vpop.f32.mrb[0].mxu0
      %v843 = vadd.f32 %v457, %v842
      %844 = vmatprep.mubr.f32.mxu0 0.0
      %845 = vmatmul.mubr.f32.gmra.mrb[0].mxu0 %v491
      %v846 = vpop.f32.mrb[0].mxu0
      %v847 = vadd.f32 %v453, %v846
      %v848 = vpop.f32.mrb[0].mxu0
      %v849 = vadd.f32 %v457, %v848
      %850 = vmatprep.mubr.f32.mxu0 0.0
      %851 = vmatmul.mubr.f32.gmra.mrb[0].mxu0 %v494
      %v852 = vpop.f32.mrb[0].mxu0
      %v853 = vadd.f32 %v453, %v852
      %v854 = vpop.f32.mrb[0].mxu0
      %v855 = vadd.f32 %v457, %v854
      %856 = vmatprep.mubr.f32.mxu0 0.0
      %857 = vmatmul.mubr.f32.gmra.mrb[0].mxu0 %v497
      %v858 = vpop.f32.mrb[0].mxu0
      %v859 = vadd.f32 %v453, %v858
      %v860 = vpop.f32.mrb[0].mxu0
      %v861 = vadd.f32 %v457, %v860
      %862 = vdwg.mxu0
      %863 = vmatprep.subr.mxu0 %v351
      %864 = vmatpush1.msra.mxu0 %v350
      %865 = vmatprep.subr.mxu0 %v359
      %866 = vmatpush1.msra.mxu0 %v358
      %867 = vmatprep.subr.mxu0 %v367
      %868 = vmatpush1.msra.mxu0 %v366
      %869 = vmatprep.subr.mxu0 %v375
      %870 = vmatpush1.msra.mxu0 %v374
      %871 = vmatprep.subr.mxu0 %v383
      %872 = vmatpush1.msra.mxu0 %v382
      %873 = vmatprep.subr.mxu0 %v391
      %874 = vmatpush1.msra.mxu0 %v390
      %875 = vmatprep.subr.mxu0 %v399
      %876 = vmatpush1.msra.mxu0 %v398
      %877 = vmatprep.subr.mxu0 %v407
      %878 = vmatpush1.msra.mxu0 %v406
      %879 = vmatprep.subr.mxu0 %v415
      %880 = vmatpush1.msra.mxu0 %v414
      %881 = vmatprep.subr.mxu0 %v423
      %882 = vmatpush1.msra.mxu0 %v422
      %883 = vmatprep.subr.mxu0 %v522
      %884 = vmatpush1.msra.mxu0 %v519
      %885 = vmatprep.subr.mxu0 0.0
      %886 = vmatpush1.msra.mxu0 0.0
      %887 = vmatprep.subr.mxu0 0.0
      %888 = vmatpush1.msra.mxu0 0.0
      %889 = vmatprep.subr.mxu0 0.0
      %890 = vmatpush1.msra.mxu0 0.0
      %891 = vmatprep.subr.mxu0 0.0
      %892 = vmatpush1.msra.mxu0 0.0
      %893 = vmatprep.subr.mxu0 0.0
      %894 = vmatpush1.msra.mxu0 0.0
      %895 = vmatprep.subr.mxu0 0.0
      %896 = vmatpush1.msra.mxu0 0.0
      %897 = vmatprep.subr.mxu0 0.0
      %898 = vmatpush1.msra.mxu0 0.0
      %899 = vmatprep.subr.mxu0 0.0
      %900 = vmatpush1.msra.mxu0 0.0
      %901 = vmatprep.subr.mxu0 0.0
      %902 = vmatpush1.msra.mxu0 0.0
      %903 = vmatprep.subr.mxu0 0.0
      %904 = vmatpush1.msra.mxu0 0.0
      %905 = vmatprep.subr.mxu0 0.0
      %906 = vmatpush1.msra.mxu0 0.0
      %907 = vmatprep.subr.mxu0 0.0
      %908 = vmatpush1.msra.mxu0 0.0
      %909 = vmatprep.subr.mxu0 0.0
      %910 = vmatpush1.msra.mxu0 0.0
      %911 = vmatprep.subr.mxu0 0.0
      %912 = vmatpush1.msra.mxu0 0.0
      %913 = vmatprep.subr.mxu0 0.0
      %914 = vmatpush1.msra.mxu0 0.0
      %915 = vmatprep.subr.mxu0 0.0
      %916 = vmatpush1.msra.mxu0 0.0
      %917 = vmatprep.subr.mxu0 0.0
      %918 = vmatpush1.msra.mxu0 0.0
      %919 = vmatprep.subr.mxu0 0.0
      %920 = vmatpush1.msra.mxu0 0.0
      %921 = vmatprep.subr.mxu0 0.0
      %922 = vmatpush1.msra.mxu0 0.0
      %923 = vmatprep.subr.mxu0 0.0
      %924 = vmatpush1.msra.mxu0 0.0
      %925 = vmatprep.subr.mxu0 0.0
      %926 = vmatpush1.msra.mxu0 0.0
      %927 = vmatprep.mubr.f32.mxu0 0.0
      %928 = vmatmul.mubr.f32.gmra.mrb[0].mxu0 %v476
      %v929 = vpop.f32.mrb[0].mxu0
      %v930 = vadd.f32 %v461, %v929
      %v931 = vpop.f32.mrb[0].mxu0
      %v932 = vadd.f32 %v465, %v931
      %933 = vmatprep.mubr.f32.mxu0 0.0
      %934 = vmatmul.mubr.f32.gmra.mrb[0].mxu0 %v479
      %v935 = vpop.f32.mrb[0].mxu0
      %v936 = vadd.f32 %v461, %v935
      %v937 = vpop.f32.mrb[0].mxu0
      %v938 = vadd.f32 %v465, %v937
      %939 = vmatprep.mubr.f32.mxu0 0.0
      %940 = vmatmul.mubr.f32.gmra.mrb[0].mxu0 %v482
      %v941 = vpop.f32.mrb[0].mxu0
      %v942 = vadd.f32 %v461, %v941
      %v943 = vpop.f32.mrb[0].mxu0
      %v944 = vadd.f32 %v465, %v943
      %945 = vmatprep.mubr.f32.mxu0 0.0
      %946 = vmatmul.mubr.f32.gmra.mrb[0].mxu0 %v485
      %v947 = vpop.f32.mrb[0].mxu0
      %v948 = vadd.f32 %v461, %v947
      %v949 = vpop.f32.mrb[0].mxu0
      %v950 = vadd.f32 %v465, %v949
      %951 = vmatprep.mubr.f32.mxu0 0.0
      %952 = vmatmul.mubr.f32.gmra.mrb[0].mxu0 %v488
      %v953 = vpop.f32.mrb[0].mxu0
      %v954 = vadd.f32 %v461, %v953
      %v955 = vpop.f32.mrb[0].mxu0
      %v956 = vadd.f32 %v465, %v955
      %957 = vmatprep.mubr.f32.mxu0 0.0
      %958 = vmatmul.mubr.f32.gmra.mrb[0].mxu0 %v491
      %v959 = vpop.f32.mrb[0].mxu0
      %v960 = vadd.f32 %v461, %v959
      %v961 = vpop.f32.mrb[0].mxu0
      %v962 = vadd.f32 %v465, %v961
      %963 = vmatprep.mubr.f32.mxu0 0.0
      %964 = vmatmul.mubr.f32.gmra.mrb[0].mxu0 %v494
      %v965 = vpop.f32.mrb[0].mxu0
      %v966 = vadd.f32 %v461, %v965
      %v967 = vpop.f32.mrb[0].mxu0
      %v968 = vadd.f32 %v465, %v967
      %969 = vmatprep.mubr.f32.mxu0 0.0
      %970 = vmatmul.mubr.f32.gmra.mrb[0].mxu0 %v497
      %v971 = vpop.f32.mrb[0].mxu0
      %v972 = vadd.f32 %v461, %v971
      %v973 = vpop.f32.mrb[0].mxu0
      %v974 = vadd.f32 %v465, %v973
      %975 = vdwg.mxu0
      %v976 = vmax.f32 %v591, 0.0
      %v977 = vmax.f32 %v593, 0.0
      %v978 = vmax.f32 %v704, 0.0
      %v979 = vmax.f32 %v706, 0.0
      %v980 = vmax.f32 %v817, 0.0
      %v981 = vmax.f32 %v819, 0.0
      %v982 = vmax.f32 %v930, 0.0
      %v983 = vmax.f32 %v932, 0.0
      %v984 = vmax.f32 %v597, 0.0
      %v985 = vmax.f32 %v599, 0.0
      %v986 = vmax.f32 %v710, 0.0
      %v987 = vmax.f32 %v712, 0.0
      %v988 = vmax.f32 %v823, 0.0
      %v989 = vmax.f32 %v825, 0.0
      %v990 = vmax.f32 %v936, 0.0
      %v991 = vmax.f32 %v938, 0.0
      %v992 = vmax.f32 %v603, 0.0
      %v993 = vmax.f32 %v605, 0.0
      %v994 = vmax.f32 %v716, 0.0
      %v995 = vmax.f32 %v718, 0.0
      %v996 = vmax.f32 %v829, 0.0
      %v997 = vmax.f32 %v831, 0.0
      %v998 = vmax.f32 %v942, 0.0
      %v999 = vmax.f32 %v944, 0.0
      %v1000 = vmax.f32 %v609, 0.0
      %v1001 = vmax.f32 %v611, 0.0
      %v1002 = vmax.f32 %v722, 0.0
      %v1003 = vmax.f32 %v724, 0.0
      %v1004 = vmax.f32 %v835, 0.0
      %v1005 = vmax.f32 %v837, 0.0
      %v1006 = vmax.f32 %v948, 0.0
      %v1007 = vmax.f32 %v950, 0.0
      %v1008 = vmax.f32 %v615, 0.0
      %v1009 = vmax.f32 %v617, 0.0
      %v1010 = vmax.f32 %v728, 0.0
      %v1011 = vmax.f32 %v730, 0.0
      %v1012 = vmax.f32 %v841, 0.0
      %v1013 = vmax.f32 %v843, 0.0
      %v1014 = vmax.f32 %v954, 0.0
      %v1015 = vmax.f32 %v956, 0.0
      %v1016 = vmax.f32 %v621, 0.0
      %v1017 = vmax.f32 %v623, 0.0
      %v1018 = vmax.f32 %v734, 0.0
      %v1019 = vmax.f32 %v736, 0.0
      %v1020 = vmax.f32 %v847, 0.0
      %v1021 = vmax.f32 %v849, 0.0
      %v1022 = vmax.f32 %v960, 0.0
      %v1023 = vmax.f32 %v962, 0.0
      %v1024 = vmax.f32 %v627, 0.0
      %v1025 = vmax.f32 %v629, 0.0
      %v1026 = vmax.f32 %v740, 0.0
      %v1027 = vmax.f32 %v742, 0.0
      %v1028 = vmax.f32 %v853, 0.0
      %v1029 = vmax.f32 %v855, 0.0
      %v1030 = vmax.f32 %v966, 0.0
      %v1031 = vmax.f32 %v968, 0.0
      %v1032 = vmax.f32 %v633, 0.0
      %v1033 = vmax.f32 %v635, 0.0
      %v1034 = vmax.f32 %v746, 0.0
      %v1035 = vmax.f32 %v748, 0.0
      %v1036 = vmax.f32 %v859, 0.0
      %v1037 = vmax.f32 %v861, 0.0
      %v1038 = vmax.f32 %v972, 0.0
      %v1039 = vmax.f32 %v974, 0.0
      %v1040 = vld [vmem:[%s3] sm:$0xff]
      %v1041 = vld [vmem:[%s3 + $0x8] sm:$0xff]
      %v1042 = vld [vmem:[%s3 + $0x10] sm:$0xff]
      %v1043 = vld [vmem:[%s3 + $0x18] sm:$0xff]
      %v1044 = vld [vmem:[%s3 + $0x20] sm:$0xff]
      %v1045 = vld [vmem:[%s3 + $0x28] sm:$0xff]
      %v1046 = vld [vmem:[%s3 + $0x30] sm:$0xff]
      %v1047 = vld [vmem:[%s3 + $0x38] sm:$0xff]
      %v1048 = vld [vmem:[%s3 + $0x40] sm:$0xff]
      %v1049 = vld [vmem:[%s3 + $0x48] sm:$0xff]
      %v1050 = vld [vmem:[%s3 + $0x50] sm:$0xff]
      %v1051 = vld [vmem:[%s3 + $0x58] sm:$0xff]
      %v1052 = vld [vmem:[%s3 + $0x60] sm:$0xff]
      %v1053 = vld [vmem:[%s3 + $0x68] sm:$0xff]
      %v1054 = vld [vmem:[%s3 + $0x70] sm:$0xff]
      %v1055 = vld [vmem:[%s3 + $0x78] sm:$0xff]
      %v1056 = vld [vmem:[%s3 + $0x80] sm:$0xff]
      %v1057 = vld [vmem:[%s3 + $0x88] sm:$0xff]
      %v1058 = vld [vmem:[%s3 + $0x90] sm:$0xff]
      %v1059 = vld [vmem:[%s3 + $0x98] sm:$0xff]
      %v1060 = vld [vmem:[%s3 + $0xa0] sm:$0xff]
      %v1061 = vld [vmem:[%s3 + $0xa8] sm:$0xff]
      %v1062 = vld [vmem:[%s3 + $0xb0] sm:$0xff]
      %v1063 = vld [vmem:[%s3 + $0xb8] sm:$0xff]
      %v1064 = vld [vmem:[%s3 + $0xc0] sm:$0xff]
      %v1065 = vld [vmem:[%s3 + $0xc8] sm:$0xff]
      %v1066 = vld [vmem:[%s3 + $0xd0] sm:$0xff]
      %v1067 = vld [vmem:[%s3 + $0xd8] sm:$0xff]
      %v1068 = vld [vmem:[%s3 + $0xe0] sm:$0xff]
      %v1069 = vld [vmem:[%s3 + $0xe8] sm:$0xff]
      %v1070 = vld [vmem:[%s3 + $0xf0] sm:$0xff]
      %v1071 = vld [vmem:[%s3 + $0xf8] sm:$0xff]
      %v1072 = vld [vmem:[%s3 + $0x100] sm:$0xff]
      %v1073 = vld [vmem:[%s3 + $0x108] sm:$0xff]
      %v1074 = vld [vmem:[%s3 + $0x110] sm:$0xff]
      %v1075 = vld [vmem:[%s3 + $0x118] sm:$0xff]
      %v1076 = vld [vmem:[%s3 + $0x120] sm:$0xff]
      %v1077 = vld [vmem:[%s3 + $0x128] sm:$0xff]
      %v1078 = vld [vmem:[%s3 + $0x130] sm:$0xff]
      %v1079 = vld [vmem:[%s3 + $0x138] sm:$0xff]
      %v1080 = vld [vmem:[%s3 + $0x140] sm:$0xff]
      %v1081 = vld [vmem:[%s3 + $0x148] sm:$0xff]
      %v1082 = vld [vmem:[%s3 + $0x150] sm:$0xff]
      %v1083 = vld [vmem:[%s3 + $0x158] sm:$0xff]
      %v1084 = vld [vmem:[%s3 + $0x160] sm:$0xff]
      %v1085 = vld [vmem:[%s3 + $0x168] sm:$0xff]
      %v1086 = vld [vmem:[%s3 + $0x170] sm:$0xff]
      %v1087 = vld [vmem:[%s3 + $0x178] sm:$0xff]
      %v1088 = vld [vmem:[%s3 + $0x180] sm:$0xff]
      %v1089 = vld [vmem:[%s3 + $0x188] sm:$0xff]
      %v1090 = vld [vmem:[%s3 + $0x190] sm:$0xff]
      %v1091 = vld [vmem:[%s3 + $0x198] sm:$0xff]
      %v1092 = vld [vmem:[%s3 + $0x1a0] sm:$0xff]
      %v1093 = vld [vmem:[%s3 + $0x1a8] sm:$0xff]
      %v1094 = vld [vmem:[%s3 + $0x1b0] sm:$0xff]
      %v1095 = vld [vmem:[%s3 + $0x1b8] sm:$0xff]
      %v1096 = vld [vmem:[%s3 + $0x1c0] sm:$0xff]
      %v1097 = vld [vmem:[%s3 + $0x1c8] sm:$0xff]
      %v1098 = vld [vmem:[%s3 + $0x1d0] sm:$0xff]
      %v1099 = vld [vmem:[%s3 + $0x1d8] sm:$0xff]
      %v1100 = vld [vmem:[%s3 + $0x1e0] sm:$0xff]
      %v1101 = vld [vmem:[%s3 + $0x1e8] sm:$0xff]
      %v1102 = vld [vmem:[%s3 + $0x1f0] sm:$0xff]
      %v1103 = vld [vmem:[%s3 + $0x1f8] sm:$0xff]
      %v1104 = vld [vmem:[%s3 + $0x200] sm:$0xff]
      %v1105 = vld [vmem:[%s3 + $0x208] sm:$0xff]
      %v1106 = vld [vmem:[%s3 + $0x210] sm:$0xff]
      %v1107 = vld [vmem:[%s3 + $0x218] sm:$0xff]
      %v1108 = vld [vmem:[%s3 + $0x220] sm:$0xff]
      %v1109 = vld [vmem:[%s3 + $0x228] sm:$0xff]
      %v1110 = vld [vmem:[%s3 + $0x230] sm:$0xff]
      %v1111 = vld [vmem:[%s3 + $0x238] sm:$0xff]
      %v1112 = vld [vmem:[%s3 + $0x240] sm:$0xff]
      %v1113 = vld [vmem:[%s3 + $0x248] sm:$0xff]
      %v1114 = vld [vmem:[%s3 + $0x250] sm:$0xff]
      %v1115 = vld [vmem:[%s3 + $0x258] sm:$0xff]
      %v1116 = vld [vmem:[%s3 + $0x260] sm:$0xff]
      %v1117 = vld [vmem:[%s3 + $0x268] sm:$0xff]
      %v1118 = vld [vmem:[%s3 + $0x270] sm:$0xff]
      %v1119 = vld [vmem:[%s3 + $0x278] sm:$0xff]
      %v1120 = vld [vmem:[%s3 + $0x280] sm:$0xff]
      %v1121 = vld [vmem:[%s3 + $0x288] sm:$0xff]
      %v1122 = vld [vmem:[%s3 + $0x290] sm:$0xff]
      %v1123 = vld [vmem:[%s3 + $0x298] sm:$0xff]
      %v1124 = vld [vmem:[%s3 + $0x2a0] sm:$0xff]
      %v1125 = vld [vmem:[%s3 + $0x2a8] sm:$0xff]
      %v1126 = vld [vmem:[%s3 + $0x2b0] sm:$0xff]
      %v1127 = vld [vmem:[%s3 + $0x2b8] sm:$0xff]
      %v1128 = vld [vmem:[%s3 + $0x2c0] sm:$0xff]
      %v1129 = vld [vmem:[%s3 + $0x2c8] sm:$0xff]
      %v1130 = vld [vmem:[%s3 + $0x2d0] sm:$0xff]
      %v1131 = vld [vmem:[%s3 + $0x2d8] sm:$0xff]
      %v1132 = vld [vmem:[%s3 + $0x2e0] sm:$0xff]
      %v1133 = vld [vmem:[%s3 + $0x2e8] sm:$0xff]
      %v1134 = vld [vmem:[%s3 + $0x2f0] sm:$0xff]
      %v1135 = vld [vmem:[%s3 + $0x2f8] sm:$0xff]
      %v1136 = vld [vmem:[%s3 + $0x300] sm:$0xff]
      %v1137 = vld [vmem:[%s3 + $0x308] sm:$0xff]
      %v1138 = vld [vmem:[%s3 + $0x310] sm:$0xff]
      %v1139 = vld [vmem:[%s3 + $0x318] sm:$0xff]
      %v1140 = vld [vmem:[%s3 + $0x320] sm:$0xff]
      %v1141 = vld [vmem:[%s3 + $0x328] sm:$0xff]
      %v1142 = vld [vmem:[%s3 + $0x330] sm:$0xff]
      %v1143 = vld [vmem:[%s3 + $0x338] sm:$0xff]
      %v1144 = vld [vmem:[%s3 + $0x340] sm:$0xff]
      %v1145 = vld [vmem:[%s3 + $0x348] sm:$0xff]
      %v1146 = vld [vmem:[%s3 + $0x350] sm:$0xff]
      %v1147 = vld [vmem:[%s3 + $0x358] sm:$0xff]
      %v1148 = vld [vmem:[%s3 + $0x360] sm:$0xff]
      %v1149 = vld [vmem:[%s3 + $0x368] sm:$0xff]
      %v1150 = vld [vmem:[%s3 + $0x370] sm:$0xff]
      %v1151 = vld [vmem:[%s3 + $0x378] sm:$0xff]
      %v1152 = vld [vmem:[%s3 + $0x380] sm:$0xff]
      %v1153 = vld [vmem:[%s3 + $0x388] sm:$0xff]
      %v1154 = vld [vmem:[%s3 + $0x390] sm:$0xff]
      %v1155 = vld [vmem:[%s3 + $0x398] sm:$0xff]
      %v1156 = vld [vmem:[%s3 + $0x3a0] sm:$0xff]
      %v1157 = vld [vmem:[%s3 + $0x3a8] sm:$0xff]
      %v1158 = vld [vmem:[%s3 + $0x3b0] sm:$0xff]
      %v1159 = vld [vmem:[%s3 + $0x3b8] sm:$0xff]
      %v1160 = vld [vmem:[%s3 + $0x3c0] sm:$0xff]
      %v1161 = vld [vmem:[%s3 + $0x3c8] sm:$0xff]
      %v1162 = vld [vmem:[%s3 + $0x3d0] sm:$0xff]
      %v1163 = vld [vmem:[%s3 + $0x3d8] sm:$0xff]
      %v1164 = vld [vmem:[%s3 + $0x3e0] sm:$0xff]
      %v1165 = vld [vmem:[%s3 + $0x3e8] sm:$0xff]
      %v1166 = vld [vmem:[%s3 + $0x3f0] sm:$0xff]
      %v1167 = vld [vmem:[%s3 + $0x3f8] sm:$0xff]
      %v1168 = vld [vmem:[%s3 + $0x400] sm:$0xff]
      %v1169 = vld [vmem:[%s3 + $0x408] sm:$0xff]
      %v1170 = vld [vmem:[%s3 + $0x410] sm:$0xff]
      %v1171 = vld [vmem:[%s3 + $0x418] sm:$0xff]
      %v1172 = vld [vmem:[%s3 + $0x420] sm:$0xff]
      %v1173 = vld [vmem:[%s3 + $0x428] sm:$0xff]
      %v1174 = vld [vmem:[%s3 + $0x430] sm:$0xff]
      %v1175 = vld [vmem:[%s3 + $0x438] sm:$0xff]
      %v1176 = vld [vmem:[%s3 + $0x440] sm:$0xff]
      %v1177 = vld [vmem:[%s3 + $0x448] sm:$0xff]
      %v1178 = vld [vmem:[%s3 + $0x450] sm:$0xff]
      %v1179 = vld [vmem:[%s3 + $0x458] sm:$0xff]
      %v1180 = vld [vmem:[%s3 + $0x460] sm:$0xff]
      %v1181 = vld [vmem:[%s3 + $0x468] sm:$0xff]
      %v1182 = vld [vmem:[%s3 + $0x470] sm:$0xff]
      %v1183 = vld [vmem:[%s3 + $0x478] sm:$0xff]
      %v1184 = vld [vmem:[%s3 + $0x480] sm:$0xff]
      %v1185 = vld [vmem:[%s3 + $0x488] sm:$0xff]
      %v1186 = vld [vmem:[%s3 + $0x490] sm:$0xff]
      %v1187 = vld [vmem:[%s3 + $0x498] sm:$0xff]
      %v1188 = vld [vmem:[%s3 + $0x4a0] sm:$0xff]
      %v1189 = vld [vmem:[%s3 + $0x4a8] sm:$0xff]
      %v1190 = vld [vmem:[%s3 + $0x4b0] sm:$0xff]
      %v1191 = vld [vmem:[%s3 + $0x4b8] sm:$0xff]
      %v1192 = vld [vmem:[%s3 + $0x4c0] sm:$0xff]
      %v1193 = vld [vmem:[%s3 + $0x4c8] sm:$0xff]
      %v1194 = vld [vmem:[%s3 + $0x4d0] sm:$0xff]
      %v1195 = vld [vmem:[%s3 + $0x4d8] sm:$0xff]
      %v1196 = vld [vmem:[%s3 + $0x4e0] sm:$0xff]
      %v1197 = vld [vmem:[%s3 + $0x4e8] sm:$0xff]
      %v1198 = vld [vmem:[%s3 + $0x4f0] sm:$0xff]
      %v1199 = vld [vmem:[%s3 + $0x4f8] sm:$0xff]
      %v1200 = vld [vmem:[%s3 + $0x500] sm:$0xff]
      %v1201 = vld [vmem:[%s3 + $0x508] sm:$0xff]
      %v1202 = vld [vmem:[%s3 + $0x510] sm:$0xff]
      %v1203 = vld [vmem:[%s3 + $0x518] sm:$0xff]
      %v1204 = vld [vmem:[%s3 + $0x520] sm:$0xff]
      %v1205 = vld [vmem:[%s3 + $0x528] sm:$0xff]
      %v1206 = vld [vmem:[%s3 + $0x530] sm:$0xff]
      %v1207 = vld [vmem:[%s3 + $0x538] sm:$0xff]
      %v1208 = vld [vmem:[%s3 + $0x540] sm:$0xff]
      %v1209 = vld [vmem:[%s3 + $0x548] sm:$0xff]
      %v1210 = vld [vmem:[%s3 + $0x550] sm:$0xff]
      %v1211 = vld [vmem:[%s3 + $0x558] sm:$0xff]
      %v1212 = vld [vmem:[%s3 + $0x560] sm:$0xff]
      %v1213 = vld [vmem:[%s3 + $0x568] sm:$0xff]
      %v1214 = vld [vmem:[%s3 + $0x570] sm:$0xff]
      %v1215 = vld [vmem:[%s3 + $0x578] sm:$0xff]
      %v1216 = vld [vmem:[%s3 + $0x580] sm:$0xff]
      %v1217 = vld [vmem:[%s3 + $0x588] sm:$0xff]
      %v1218 = vld [vmem:[%s3 + $0x590] sm:$0xff]
      %v1219 = vld [vmem:[%s3 + $0x598] sm:$0xff]
      %v1220 = vld [vmem:[%s3 + $0x5a0] sm:$0xff]
      %v1221 = vld [vmem:[%s3 + $0x5a8] sm:$0xff]
      %v1222 = vld [vmem:[%s3 + $0x5b0] sm:$0xff]
      %v1223 = vld [vmem:[%s3 + $0x5b8] sm:$0xff]
      %v1224 = vld [vmem:[%s3 + $0x5c0] sm:$0xff]
      %v1225 = vld [vmem:[%s3 + $0x5c8] sm:$0xff]
      %v1226 = vld [vmem:[%s3 + $0x5d0] sm:$0xff]
      %v1227 = vld [vmem:[%s3 + $0x5d8] sm:$0xff]
      %v1228 = vld [vmem:[%s3 + $0x5e0] sm:$0xff]
      %v1229 = vld [vmem:[%s3 + $0x5e8] sm:$0xff]
      %v1230 = vld [vmem:[%s3 + $0x5f0] sm:$0xff]
      %v1231 = vld [vmem:[%s3 + $0x5f8] sm:$0xff]
      %v1232 = vld [vmem:[%s3 + $0x600] sm:$0xff]
      %v1233 = vld [vmem:[%s3 + $0x608] sm:$0xff]
      %v1234 = vld [vmem:[%s3 + $0x610] sm:$0xff]
      %v1235 = vld [vmem:[%s3 + $0x618] sm:$0xff]
      %v1236 = vld [vmem:[%s3 + $0x620] sm:$0xff]
      %v1237 = vld [vmem:[%s3 + $0x628] sm:$0xff]
      %v1238 = vld [vmem:[%s3 + $0x630] sm:$0xff]
      %v1239 = vld [vmem:[%s3 + $0x638] sm:$0xff]
      %v1240 = vld [vmem:[%s3 + $0x640] sm:$0xff]
      %v1241 = vld [vmem:[%s3 + $0x648] sm:$0xff]
      %v1242 = vld [vmem:[%s3 + $0x650] sm:$0xff]
      %v1243 = vld [vmem:[%s3 + $0x658] sm:$0xff]
      %v1244 = vld [vmem:[%s3 + $0x660] sm:$0xff]
      %v1245 = vld [vmem:[%s3 + $0x668] sm:$0xff]
      %v1246 = vld [vmem:[%s3 + $0x670] sm:$0xff]
      %v1247 = vld [vmem:[%s3 + $0x678] sm:$0xff]
      %v1248 = vld [vmem:[%s3 + $0x680] sm:$0xff]
      %v1249 = vld [vmem:[%s3 + $0x688] sm:$0xff]
      %v1250 = vld [vmem:[%s3 + $0x690] sm:$0xff]
      %v1251 = vld [vmem:[%s3 + $0x698] sm:$0xff]
      %v1252 = vld [vmem:[%s3 + $0x6a0] sm:$0xff]
      %v1253 = vld [vmem:[%s3 + $0x6a8] sm:$0xff]
      %v1254 = vld [vmem:[%s3 + $0x6b0] sm:$0xff]
      %v1255 = vld [vmem:[%s3 + $0x6b8] sm:$0xff]
      %v1256 = vld [vmem:[%s3 + $0x6c0] sm:$0xff]
      %v1257 = vld [vmem:[%s3 + $0x6c8] sm:$0xff]
      %v1258 = vld [vmem:[%s3 + $0x6d0] sm:$0xff]
      %v1259 = vld [vmem:[%s3 + $0x6d8] sm:$0xff]
      %v1260 = vld [vmem:[%s3 + $0x6e0] sm:$0xff]
      %v1261 = vld [vmem:[%s3 + $0x6e8] sm:$0xff]
      %v1262 = vld [vmem:[%s3 + $0x6f0] sm:$0xff]
      %v1263 = vld [vmem:[%s3 + $0x6f8] sm:$0xff]
      %v1264 = vld [vmem:[%s3 + $0x700] sm:$0xff]
      %v1265 = vld [vmem:[%s3 + $0x708] sm:$0xff]
      %v1266 = vld [vmem:[%s3 + $0x710] sm:$0xff]
      %v1267 = vld [vmem:[%s3 + $0x718] sm:$0xff]
      %v1268 = vld [vmem:[%s3 + $0x720] sm:$0xff]
      %v1269 = vld [vmem:[%s3 + $0x728] sm:$0xff]
      %v1270 = vld [vmem:[%s3 + $0x730] sm:$0xff]
      %v1271 = vld [vmem:[%s3 + $0x738] sm:$0xff]
      %v1272 = vld [vmem:[%s3 + $0x740] sm:$0xff]
      %v1273 = vld [vmem:[%s3 + $0x748] sm:$0xff]
      %v1274 = vld [vmem:[%s3 + $0x750] sm:$0xff]
      %v1275 = vld [vmem:[%s3 + $0x758] sm:$0xff]
      %v1276 = vld [vmem:[%s3 + $0x760] sm:$0xff]
      %v1277 = vld [vmem:[%s3 + $0x768] sm:$0xff]
      %v1278 = vld [vmem:[%s3 + $0x770] sm:$0xff]
      %v1279 = vld [vmem:[%s3 + $0x778] sm:$0xff]
      %v1280 = vld [vmem:[%s3 + $0x780] sm:$0xff]
      %v1281 = vld [vmem:[%s3 + $0x788] sm:$0xff]
      %v1282 = vld [vmem:[%s3 + $0x790] sm:$0xff]
      %v1283 = vld [vmem:[%s3 + $0x798] sm:$0xff]
      %v1284 = vld [vmem:[%s3 + $0x7a0] sm:$0xff]
      %v1285 = vld [vmem:[%s3 + $0x7a8] sm:$0xff]
      %v1286 = vld [vmem:[%s3 + $0x7b0] sm:$0xff]
      %v1287 = vld [vmem:[%s3 + $0x7b8] sm:$0xff]
      %v1288 = vld [vmem:[%s3 + $0x7c0] sm:$0xff]
      %v1289 = vld [vmem:[%s3 + $0x7c8] sm:$0xff]
      %v1290 = vld [vmem:[%s3 + $0x7d0] sm:$0xff]
      %v1291 = vld [vmem:[%s3 + $0x7d8] sm:$0xff]
      %v1292 = vld [vmem:[%s3 + $0x7e0] sm:$0xff]
      %v1293 = vld [vmem:[%s3 + $0x7e8] sm:$0xff]
      %v1294 = vld [vmem:[%s3 + $0x7f0] sm:$0xff]
      %v1295 = vld [vmem:[%s3 + $0x7f8] sm:$0xff]
      %v1296 = vld [vmem:[%s4] sm:$0x3]
      %v1298 = vlaneseq
      %v1299 = vshrl.u32 %v1298, 7
      %v1300 = vsub.s32 0, %v1299
      %v1301 = vrot.slane %v1296, %v1300
      %v1302 = vlaneseq
      %v1303 = vshrl.u32 %v1302, 7
      %v1304 = vsub.s32 1, %v1303
      %v1305 = vrot.slane %v1296, %v1304
      %1308 = vmatprep.subr.mxu0 %v1041
      %1309 = vmatpush1.msra.mxu0 %v1040
      %1310 = vmatprep.subr.mxu0 %v1043
      %1311 = vmatpush1.msra.mxu0 %v1042
      %1312 = vmatprep.subr.mxu0 %v1045
      %1313 = vmatpush1.msra.mxu0 %v1044
      %1314 = vmatprep.subr.mxu0 %v1047
      %1315 = vmatpush1.msra.mxu0 %v1046
      %1316 = vmatprep.subr.mxu0 %v1049
      %1317 = vmatpush1.msra.mxu0 %v1048
      %1318 = vmatprep.subr.mxu0 %v1051
      %1319 = vmatpush1.msra.mxu0 %v1050
      %1320 = vmatprep.subr.mxu0 %v1053
      %1321 = vmatpush1.msra.mxu0 %v1052
      %1322 = vmatprep.subr.mxu0 %v1055
      %1323 = vmatpush1.msra.mxu0 %v1054
      %1324 = vmatprep.subr.mxu0 %v1057
      %1325 = vmatpush1.msra.mxu0 %v1056
      %1326 = vmatprep.subr.mxu0 %v1059
      %1327 = vmatpush1.msra.mxu0 %v1058
      %1328 = vmatprep.subr.mxu0 %v1061
      %1329 = vmatpush1.msra.mxu0 %v1060
      %1330 = vmatprep.subr.mxu0 %v1063
      %1331 = vmatpush1.msra.mxu0 %v1062
      %1332 = vmatprep.subr.mxu0 %v1065
      %1333 = vmatpush1.msra.mxu0 %v1064
      %1334 = vmatprep.subr.mxu0 %v1067
      %1335 = vmatpush1.msra.mxu0 %v1066
      %1336 = vmatprep.subr.mxu0 %v1069
      %1337 = vmatpush1.msra.mxu0 %v1068
      %1338 = vmatprep.subr.mxu0 %v1071
      %1339 = vmatpush1.msra.mxu0 %v1070
      %1340 = vmatprep.subr.mxu0 %v1073
      %1341 = vmatpush1.msra.mxu0 %v1072
      %1342 = vmatprep.subr.mxu0 %v1075
      %1343 = vmatpush1.msra.mxu0 %v1074
      %1344 = vmatprep.subr.mxu0 %v1077
      %1345 = vmatpush1.msra.mxu0 %v1076
      %1346 = vmatprep.subr.mxu0 %v1079
      %1347 = vmatpush1.msra.mxu0 %v1078
      %1348 = vmatprep.subr.mxu0 %v1081
      %1349 = vmatpush1.msra.mxu0 %v1080
      %1350 = vmatprep.subr.mxu0 %v1083
      %1351 = vmatpush1.msra.mxu0 %v1082
      %1352 = vmatprep.subr.mxu0 %v1085
      %1353 = vmatpush1.msra.mxu0 %v1084
      %1354 = vmatprep.subr.mxu0 %v1087
      %1355 = vmatpush1.msra.mxu0 %v1086
      %1356 = vmatprep.subr.mxu0 %v1089
      %1357 = vmatpush1.msra.mxu0 %v1088
      %1358 = vmatprep.subr.mxu0 %v1091
      %1359 = vmatpush1.msra.mxu0 %v1090
      %1360 = vmatprep.subr.mxu0 %v1093
      %1361 = vmatpush1.msra.mxu0 %v1092
      %1362 = vmatprep.subr.mxu0 %v1095
      %1363 = vmatpush1.msra.mxu0 %v1094
      %1364 = vmatprep.subr.mxu0 %v1097
      %1365 = vmatpush1.msra.mxu0 %v1096
      %1366 = vmatprep.subr.mxu0 %v1099
      %1367 = vmatpush1.msra.mxu0 %v1098
      %1368 = vmatprep.subr.mxu0 %v1101
      %1369 = vmatpush1.msra.mxu0 %v1100
      %1370 = vmatprep.subr.mxu0 %v1103
      %1371 = vmatpush1.msra.mxu0 %v1102
      %1372 = vmatprep.mubr.f32.mxu0 %v977
      %1373 = vmatmul.mubr.f32.gmra.mrb[0].mxu0 %v976
      %v1374 = vpop.f32.mrb[0].mxu0
      %v1375 = vadd.f32 %v1301, %v1374
      %v1376 = vpop.f32.mrb[0].mxu0
      %v1377 = vadd.f32 %v1305, %v1376
      %1378 = vmatprep.mubr.f32.mxu0 %v985
      %1379 = vmatmul.mubr.f32.gmra.mrb[0].mxu0 %v984
      %v1380 = vpop.f32.mrb[0].mxu0
      %v1381 = vadd.f32 %v1301, %v1380
      %v1382 = vpop.f32.mrb[0].mxu0
      %v1383 = vadd.f32 %v1305, %v1382
      %1384 = vmatprep.mubr.f32.mxu0 %v993
      %1385 = vmatmul.mubr.f32.gmra.mrb[0].mxu0 %v992
      %v1386 = vpop.f32.mrb[0].mxu0
      %v1387 = vadd.f32 %v1301, %v1386
      %v1388 = vpop.f32.mrb[0].mxu0
      %v1389 = vadd.f32 %v1305, %v1388
      %1390 = vmatprep.mubr.f32.mxu0 %v1001
      %1391 = vmatmul.mubr.f32.gmra.mrb[0].mxu0 %v1000
      %v1392 = vpop.f32.mrb[0].mxu0
      %v1393 = vadd.f32 %v1301, %v1392
      %v1394 = vpop.f32.mrb[0].mxu0
      %v1395 = vadd.f32 %v1305, %v1394
      %1396 = vmatprep.mubr.f32.mxu0 %v1009
      %1397 = vmatmul.mubr.f32.gmra.mrb[0].mxu0 %v1008
      %v1398 = vpop.f32.mrb[0].mxu0
      %v1399 = vadd.f32 %v1301, %v1398
      %v1400 = vpop.f32.mrb[0].mxu0
      %v1401 = vadd.f32 %v1305, %v1400
      %1402 = vmatprep.mubr.f32.mxu0 %v1017
      %1403 = vmatmul.mubr.f32.gmra.mrb[0].mxu0 %v1016
      %v1404 = vpop.f32.mrb[0].mxu0
      %v1405 = vadd.f32 %v1301, %v1404
      %v1406 = vpop.f32.mrb[0].mxu0
      %v1407 = vadd.f32 %v1305, %v1406
      %1408 = vmatprep.mubr.f32.mxu0 %v1025
      %1409 = vmatmul.mubr.f32.gmra.mrb[0].mxu0 %v1024
      %v1410 = vpop.f32.mrb[0].mxu0
      %v1411 = vadd.f32 %v1301, %v1410
      %v1412 = vpop.f32.mrb[0].mxu0
      %v1413 = vadd.f32 %v1305, %v1412
      %1414 = vmatprep.mubr.f32.mxu0 %v1033
      %1415 = vmatmul.mubr.f32.gmra.mrb[0].mxu0 %v1032
      %v1416 = vpop.f32.mrb[0].mxu0
      %v1417 = vadd.f32 %v1301, %v1416
      %v1418 = vpop.f32.mrb[0].mxu0
      %v1419 = vadd.f32 %v1305, %v1418
      %1420 = vdwg.mxu0
      %1421 = vmatprep.subr.mxu0 %v1105
      %1422 = vmatpush1.msra.mxu0 %v1104
      %1423 = vmatprep.subr.mxu0 %v1107
      %1424 = vmatpush1.msra.mxu0 %v1106
      %1425 = vmatprep.subr.mxu0 %v1109
      %1426 = vmatpush1.msra.mxu0 %v1108
      %1427 = vmatprep.subr.mxu0 %v1111
      %1428 = vmatpush1.msra.mxu0 %v1110
      %1429 = vmatprep.subr.mxu0 %v1113
      %1430 = vmatpush1.msra.mxu0 %v1112
      %1431 = vmatprep.subr.mxu0 %v1115
      %1432 = vmatpush1.msra.mxu0 %v1114
      %1433 = vmatprep.subr.mxu0 %v1117
      %1434 = vmatpush1.msra.mxu0 %v1116
      %1435 = vmatprep.subr.mxu0 %v1119
      %1436 = vmatpush1.msra.mxu0 %v1118
      %1437 = vmatprep.subr.mxu0 %v1121
      %1438 = vmatpush1.msra.mxu0 %v1120
      %1439 = vmatprep.subr.mxu0 %v1123
      %1440 = vmatpush1.msra.mxu0 %v1122
      %1441 = vmatprep.subr.mxu0 %v1125
      %1442 = vmatpush1.msra.mxu0 %v1124
      %1443 = vmatprep.subr.mxu0 %v1127
      %1444 = vmatpush1.msra.mxu0 %v1126
      %1445 = vmatprep.subr.mxu0 %v1129
      %1446 = vmatpush1.msra.mxu0 %v1128
      %1447 = vmatprep.subr.mxu0 %v1131
      %1448 = vmatpush1.msra.mxu0 %v1130
      %1449 = vmatprep.subr.mxu0 %v1133
      %1450 = vmatpush1.msra.mxu0 %v1132
      %1451 = vmatprep.subr.mxu0 %v1135
      %1452 = vmatpush1.msra.mxu0 %v1134
      %1453 = vmatprep.subr.mxu0 %v1137
      %1454 = vmatpush1.msra.mxu0 %v1136
      %1455 = vmatprep.subr.mxu0 %v1139
      %1456 = vmatpush1.msra.mxu0 %v1138
      %1457 = vmatprep.subr.mxu0 %v1141
      %1458 = vmatpush1.msra.mxu0 %v1140
      %1459 = vmatprep.subr.mxu0 %v1143
      %1460 = vmatpush1.msra.mxu0 %v1142
      %1461 = vmatprep.subr.mxu0 %v1145
      %1462 = vmatpush1.msra.mxu0 %v1144
      %1463 = vmatprep.subr.mxu0 %v1147
      %1464 = vmatpush1.msra.mxu0 %v1146
      %1465 = vmatprep.subr.mxu0 %v1149
      %1466 = vmatpush1.msra.mxu0 %v1148
      %1467 = vmatprep.subr.mxu0 %v1151
      %1468 = vmatpush1.msra.mxu0 %v1150
      %1469 = vmatprep.subr.mxu0 %v1153
      %1470 = vmatpush1.msra.mxu0 %v1152
      %1471 = vmatprep.subr.mxu0 %v1155
      %1472 = vmatpush1.msra.mxu0 %v1154
      %1473 = vmatprep.subr.mxu0 %v1157
      %1474 = vmatpush1.msra.mxu0 %v1156
      %1475 = vmatprep.subr.mxu0 %v1159
      %1476 = vmatpush1.msra.mxu0 %v1158
      %1477 = vmatprep.subr.mxu0 %v1161
      %1478 = vmatpush1.msra.mxu0 %v1160
      %1479 = vmatprep.subr.mxu0 %v1163
      %1480 = vmatpush1.msra.mxu0 %v1162
      %1481 = vmatprep.subr.mxu0 %v1165
      %1482 = vmatpush1.msra.mxu0 %v1164
      %1483 = vmatprep.subr.mxu0 %v1167
      %1484 = vmatpush1.msra.mxu0 %v1166
      %1485 = vmatprep.mubr.f32.mxu0 %v979
      %1486 = vmatmul.mubr.f32.gmra.mrb[0].mxu0 %v978
      %v1487 = vpop.f32.mrb[0].mxu0
      %v1488 = vadd.f32 %v1375, %v1487
      %v1489 = vpop.f32.mrb[0].mxu0
      %v1490 = vadd.f32 %v1377, %v1489
      %1491 = vmatprep.mubr.f32.mxu0 %v987
      %1492 = vmatmul.mubr.f32.gmra.mrb[0].mxu0 %v986
      %v1493 = vpop.f32.mrb[0].mxu0
      %v1494 = vadd.f32 %v1381, %v1493
      %v1495 = vpop.f32.mrb[0].mxu0
      %v1496 = vadd.f32 %v1383, %v1495
      %1497 = vmatprep.mubr.f32.mxu0 %v995
      %1498 = vmatmul.mubr.f32.gmra.mrb[0].mxu0 %v994
      %v1499 = vpop.f32.mrb[0].mxu0
      %v1500 = vadd.f32 %v1387, %v1499
      %v1501 = vpop.f32.mrb[0].mxu0
      %v1502 = vadd.f32 %v1389, %v1501
      %1503 = vmatprep.mubr.f32.mxu0 %v1003
      %1504 = vmatmul.mubr.f32.gmra.mrb[0].mxu0 %v1002
      %v1505 = vpop.f32.mrb[0].mxu0
      %v1506 = vadd.f32 %v1393, %v1505
      %v1507 = vpop.f32.mrb[0].mxu0
      %v1508 = vadd.f32 %v1395, %v1507
      %1509 = vmatprep.mubr.f32.mxu0 %v1011
      %1510 = vmatmul.mubr.f32.gmra.mrb[0].mxu0 %v1010
      %v1511 = vpop.f32.mrb[0].mxu0
      %v1512 = vadd.f32 %v1399, %v1511
      %v1513 = vpop.f32.mrb[0].mxu0
      %v1514 = vadd.f32 %v1401, %v1513
      %1515 = vmatprep.mubr.f32.mxu0 %v1019
      %1516 = vmatmul.mubr.f32.gmra.mrb[0].mxu0 %v1018
      %v1517 = vpop.f32.mrb[0].mxu0
      %v1518 = vadd.f32 %v1405, %v1517
      %v1519 = vpop.f32.mrb[0].mxu0
      %v1520 = vadd.f32 %v1407, %v1519
      %1521 = vmatprep.mubr.f32.mxu0 %v1027
      %1522 = vmatmul.mubr.f32.gmra.mrb[0].mxu0 %v1026
      %v1523 = vpop.f32.mrb[0].mxu0
      %v1524 = vadd.f32 %v1411, %v1523
      %v1525 = vpop.f32.mrb[0].mxu0
      %v1526 = vadd.f32 %v1413, %v1525
      %1527 = vmatprep.mubr.f32.mxu0 %v1035
      %1528 = vmatmul.mubr.f32.gmra.mrb[0].mxu0 %v1034
      %v1529 = vpop.f32.mrb[0].mxu0
      %v1530 = vadd.f32 %v1417, %v1529
      %v1531 = vpop.f32.mrb[0].mxu0
      %v1532 = vadd.f32 %v1419, %v1531
      %1533 = vdwg.mxu0
      %1534 = vmatprep.subr.mxu0 %v1169
      %1535 = vmatpush1.msra.mxu0 %v1168
      %1536 = vmatprep.subr.mxu0 %v1171
      %1537 = vmatpush1.msra.mxu0 %v1170
      %1538 = vmatprep.subr.mxu0 %v1173
      %1539 = vmatpush1.msra.mxu0 %v1172
      %1540 = vmatprep.subr.mxu0 %v1175
      %1541 = vmatpush1.msra.mxu0 %v1174
      %1542 = vmatprep.subr.mxu0 %v1177
      %1543 = vmatpush1.msra.mxu0 %v1176
      %1544 = vmatprep.subr.mxu0 %v1179
      %1545 = vmatpush1.msra.mxu0 %v1178
      %1546 = vmatprep.subr.mxu0 %v1181
      %1547 = vmatpush1.msra.mxu0 %v1180
      %1548 = vmatprep.subr.mxu0 %v1183
      %1549 = vmatpush1.msra.mxu0 %v1182
      %1550 = vmatprep.subr.mxu0 %v1185
      %1551 = vmatpush1.msra.mxu0 %v1184
      %1552 = vmatprep.subr.mxu0 %v1187
      %1553 = vmatpush1.msra.mxu0 %v1186
      %1554 = vmatprep.subr.mxu0 %v1189
      %1555 = vmatpush1.msra.mxu0 %v1188
      %1556 = vmatprep.subr.mxu0 %v1191
      %1557 = vmatpush1.msra.mxu0 %v1190
      %1558 = vmatprep.subr.mxu0 %v1193
      %1559 = vmatpush1.msra.mxu0 %v1192
      %1560 = vmatprep.subr.mxu0 %v1195
      %1561 = vmatpush1.msra.mxu0 %v1194
      %1562 = vmatprep.subr.mxu0 %v1197
      %1563 = vmatpush1.msra.mxu0 %v1196
      %1564 = vmatprep.subr.mxu0 %v1199
      %1565 = vmatpush1.msra.mxu0 %v1198
      %1566 = vmatprep.subr.mxu0 %v1201
      %1567 = vmatpush1.msra.mxu0 %v1200
      %1568 = vmatprep.subr.mxu0 %v1203
      %1569 = vmatpush1.msra.mxu0 %v1202
      %1570 = vmatprep.subr.mxu0 %v1205
      %1571 = vmatpush1.msra.mxu0 %v1204
      %1572 = vmatprep.subr.mxu0 %v1207
      %1573 = vmatpush1.msra.mxu0 %v1206
      %1574 = vmatprep.subr.mxu0 %v1209
      %1575 = vmatpush1.msra.mxu0 %v1208
      %1576 = vmatprep.subr.mxu0 %v1211
      %1577 = vmatpush1.msra.mxu0 %v1210
      %1578 = vmatprep.subr.mxu0 %v1213
      %1579 = vmatpush1.msra.mxu0 %v1212
      %1580 = vmatprep.subr.mxu0 %v1215
      %1581 = vmatpush1.msra.mxu0 %v1214
      %1582 = vmatprep.subr.mxu0 %v1217
      %1583 = vmatpush1.msra.mxu0 %v1216
      %1584 = vmatprep.subr.mxu0 %v1219
      %1585 = vmatpush1.msra.mxu0 %v1218
      %1586 = vmatprep.subr.mxu0 %v1221
      %1587 = vmatpush1.msra.mxu0 %v1220
      %1588 = vmatprep.subr.mxu0 %v1223
      %1589 = vmatpush1.msra.mxu0 %v1222
      %1590 = vmatprep.subr.mxu0 %v1225
      %1591 = vmatpush1.msra.mxu0 %v1224
      %1592 = vmatprep.subr.mxu0 %v1227
      %1593 = vmatpush1.msra.mxu0 %v1226
      %1594 = vmatprep.subr.mxu0 %v1229
      %1595 = vmatpush1.msra.mxu0 %v1228
      %1596 = vmatprep.subr.mxu0 %v1231
      %1597 = vmatpush1.msra.mxu0 %v1230
      %1598 = vmatprep.mubr.f32.mxu0 %v981
      %1599 = vmatmul.mubr.f32.gmra.mrb[0].mxu0 %v980
      %v1600 = vpop.f32.mrb[0].mxu0
      %v1601 = vadd.f32 %v1488, %v1600
      %v1602 = vpop.f32.mrb[0].mxu0
      %v1603 = vadd.f32 %v1490, %v1602
      %1604 = vmatprep.mubr.f32.mxu0 %v989
      %1605 = vmatmul.mubr.f32.gmra.mrb[0].mxu0 %v988
      %v1606 = vpop.f32.mrb[0].mxu0
      %v1607 = vadd.f32 %v1494, %v1606
      %v1608 = vpop.f32.mrb[0].mxu0
      %v1609 = vadd.f32 %v1496, %v1608
      %1610 = vmatprep.mubr.f32.mxu0 %v997
      %1611 = vmatmul.mubr.f32.gmra.mrb[0].mxu0 %v996
      %v1612 = vpop.f32.mrb[0].mxu0
      %v1613 = vadd.f32 %v1500, %v1612
      %v1614 = vpop.f32.mrb[0].mxu0
      %v1615 = vadd.f32 %v1502, %v1614
      %1616 = vmatprep.mubr.f32.mxu0 %v1005
      %1617 = vmatmul.mubr.f32.gmra.mrb[0].mxu0 %v1004
      %v1618 = vpop.f32.mrb[0].mxu0
      %v1619 = vadd.f32 %v1506, %v1618
      %v1620 = vpop.f32.mrb[0].mxu0
      %v1621 = vadd.f32 %v1508, %v1620
      %1622 = vmatprep.mubr.f32.mxu0 %v1013
      %1623 = vmatmul.mubr.f32.gmra.mrb[0].mxu0 %v1012
      %v1624 = vpop.f32.mrb[0].mxu0
      %v1625 = vadd.f32 %v1512, %v1624
      %v1626 = vpop.f32.mrb[0].mxu0
      %v1627 = vadd.f32 %v1514, %v1626
      %1628 = vmatprep.mubr.f32.mxu0 %v1021
      %1629 = vmatmul.mubr.f32.gmra.mrb[0].mxu0 %v1020
      %v1630 = vpop.f32.mrb[0].mxu0
      %v1631 = vadd.f32 %v1518, %v1630
      %v1632 = vpop.f32.mrb[0].mxu0
      %v1633 = vadd.f32 %v1520, %v1632
      %1634 = vmatprep.mubr.f32.mxu0 %v1029
      %1635 = vmatmul.mubr.f32.gmra.mrb[0].mxu0 %v1028
      %v1636 = vpop.f32.mrb[0].mxu0
      %v1637 = vadd.f32 %v1524, %v1636
      %v1638 = vpop.f32.mrb[0].mxu0
      %v1639 = vadd.f32 %v1526, %v1638
      %1640 = vmatprep.mubr.f32.mxu0 %v1037
      %1641 = vmatmul.mubr.f32.gmra.mrb[0].mxu0 %v1036
      %v1642 = vpop.f32.mrb[0].mxu0
      %v1643 = vadd.f32 %v1530, %v1642
      %v1644 = vpop.f32.mrb[0].mxu0
      %v1645 = vadd.f32 %v1532, %v1644
      %1646 = vdwg.mxu0
      %1647 = vmatprep.subr.mxu0 %v1233
      %1648 = vmatpush1.msra.mxu0 %v1232
      %1649 = vmatprep.subr.mxu0 %v1235
      %1650 = vmatpush1.msra.mxu0 %v1234
      %1651 = vmatprep.subr.mxu0 %v1237
      %1652 = vmatpush1.msra.mxu0 %v1236
      %1653 = vmatprep.subr.mxu0 %v1239
      %1654 = vmatpush1.msra.mxu0 %v1238
      %1655 = vmatprep.subr.mxu0 %v1241
      %1656 = vmatpush1.msra.mxu0 %v1240
      %1657 = vmatprep.subr.mxu0 %v1243
      %1658 = vmatpush1.msra.mxu0 %v1242
      %1659 = vmatprep.subr.mxu0 %v1245
      %1660 = vmatpush1.msra.mxu0 %v1244
      %1661 = vmatprep.subr.mxu0 %v1247
      %1662 = vmatpush1.msra.mxu0 %v1246
      %1663 = vmatprep.subr.mxu0 %v1249
      %1664 = vmatpush1.msra.mxu0 %v1248
      %1665 = vmatprep.subr.mxu0 %v1251
      %1666 = vmatpush1.msra.mxu0 %v1250
      %1667 = vmatprep.subr.mxu0 %v1253
      %1668 = vmatpush1.msra.mxu0 %v1252
      %1669 = vmatprep.subr.mxu0 %v1255
      %1670 = vmatpush1.msra.mxu0 %v1254
      %1671 = vmatprep.subr.mxu0 %v1257
      %1672 = vmatpush1.msra.mxu0 %v1256
      %1673 = vmatprep.subr.mxu0 %v1259
      %1674 = vmatpush1.msra.mxu0 %v1258
      %1675 = vmatprep.subr.mxu0 %v1261
      %1676 = vmatpush1.msra.mxu0 %v1260
      %1677 = vmatprep.subr.mxu0 %v1263
      %1678 = vmatpush1.msra.mxu0 %v1262
      %1679 = vmatprep.subr.mxu0 %v1265
      %1680 = vmatpush1.msra.mxu0 %v1264
      %1681 = vmatprep.subr.mxu0 %v1267
      %1682 = vmatpush1.msra.mxu0 %v1266
      %1683 = vmatprep.subr.mxu0 %v1269
      %1684 = vmatpush1.msra.mxu0 %v1268
      %1685 = vmatprep.subr.mxu0 %v1271
      %1686 = vmatpush1.msra.mxu0 %v1270
      %1687 = vmatprep.subr.mxu0 %v1273
      %1688 = vmatpush1.msra.mxu0 %v1272
      %1689 = vmatprep.subr.mxu0 %v1275
      %1690 = vmatpush1.msra.mxu0 %v1274
      %1691 = vmatprep.subr.mxu0 %v1277
      %1692 = vmatpush1.msra.mxu0 %v1276
      %1693 = vmatprep.subr.mxu0 %v1279
      %1694 = vmatpush1.msra.mxu0 %v1278
      %1695 = vmatprep.subr.mxu0 %v1281
      %1696 = vmatpush1.msra.mxu0 %v1280
      %1697 = vmatprep.subr.mxu0 %v1283
      %1698 = vmatpush1.msra.mxu0 %v1282
      %1699 = vmatprep.subr.mxu0 %v1285
      %1700 = vmatpush1.msra.mxu0 %v1284
      %1701 = vmatprep.subr.mxu0 %v1287
      %1702 = vmatpush1.msra.mxu0 %v1286
      %1703 = vmatprep.subr.mxu0 %v1289
      %1704 = vmatpush1.msra.mxu0 %v1288
      %1705 = vmatprep.subr.mxu0 %v1291
      %1706 = vmatpush1.msra.mxu0 %v1290
      %1707 = vmatprep.subr.mxu0 %v1293
      %1708 = vmatpush1.msra.mxu0 %v1292
      %1709 = vmatprep.subr.mxu0 %v1295
      %1710 = vmatpush1.msra.mxu0 %v1294
      %1711 = vmatprep.mubr.f32.mxu0 %v983
      %1712 = vmatmul.mubr.f32.gmra.mrb[0].mxu0 %v982
      %v1713 = vpop.f32.mrb[0].mxu0
      %v1714 = vadd.f32 %v1601, %v1713
      %v1715 = vpop.f32.mrb[0].mxu0
      %v1716 = vadd.f32 %v1603, %v1715
      %1717 = vmatprep.mubr.f32.mxu0 %v991
      %1718 = vmatmul.mubr.f32.gmra.mrb[0].mxu0 %v990
      %v1719 = vpop.f32.mrb[0].mxu0
      %v1720 = vadd.f32 %v1607, %v1719
      %v1721 = vpop.f32.mrb[0].mxu0
      %v1722 = vadd.f32 %v1609, %v1721
      %1723 = vmatprep.mubr.f32.mxu0 %v999
      %1724 = vmatmul.mubr.f32.gmra.mrb[0].mxu0 %v998
      %v1725 = vpop.f32.mrb[0].mxu0
      %v1726 = vadd.f32 %v1613, %v1725
      %v1727 = vpop.f32.mrb[0].mxu0
      %v1728 = vadd.f32 %v1615, %v1727
      %1729 = vmatprep.mubr.f32.mxu0 %v1007
      %1730 = vmatmul.mubr.f32.gmra.mrb[0].mxu0 %v1006
      %v1731 = vpop.f32.mrb[0].mxu0
      %v1732 = vadd.f32 %v1619, %v1731
      %v1733 = vpop.f32.mrb[0].mxu0
      %v1734 = vadd.f32 %v1621, %v1733
      %1735 = vmatprep.mubr.f32.mxu0 %v1015
      %1736 = vmatmul.mubr.f32.gmra.mrb[0].mxu0 %v1014
      %v1737 = vpop.f32.mrb[0].mxu0
      %v1738 = vadd.f32 %v1625, %v1737
      %v1739 = vpop.f32.mrb[0].mxu0
      %v1740 = vadd.f32 %v1627, %v1739
      %1741 = vmatprep.mubr.f32.mxu0 %v1023
      %1742 = vmatmul.mubr.f32.gmra.mrb[0].mxu0 %v1022
      %v1743 = vpop.f32.mrb[0].mxu0
      %v1744 = vadd.f32 %v1631, %v1743
      %v1745 = vpop.f32.mrb[0].mxu0
      %v1746 = vadd.f32 %v1633, %v1745
      %1747 = vmatprep.mubr.f32.mxu0 %v1031
      %1748 = vmatmul.mubr.f32.gmra.mrb[0].mxu0 %v1030
      %v1749 = vpop.f32.mrb[0].mxu0
      %v1750 = vadd.f32 %v1637, %v1749
      %v1751 = vpop.f32.mrb[0].mxu0
      %v1752 = vadd.f32 %v1639, %v1751
      %1753 = vmatprep.mubr.f32.mxu0 %v1039
      %1754 = vmatmul.mubr.f32.gmra.mrb[0].mxu0 %v1038
      %v1755 = vpop.f32.mrb[0].mxu0
      %v1756 = vadd.f32 %v1643, %v1755
      %v1757 = vpop.f32.mrb[0].mxu0
      %v1758 = vadd.f32 %v1645, %v1757
      %1759 = vdwg.mxu0
      %v1760 = vmax.f32 %v1714, 0.0
      %v1761 = vmax.f32 %v1716, 0.0
      %v1762 = vmax.f32 %v1720, 0.0
      %v1763 = vmax.f32 %v1722, 0.0
      %v1764 = vmax.f32 %v1726, 0.0
      %v1765 = vmax.f32 %v1728, 0.0
      %v1766 = vmax.f32 %v1732, 0.0
      %v1767 = vmax.f32 %v1734, 0.0
      %v1768 = vmax.f32 %v1738, 0.0
      %v1769 = vmax.f32 %v1740, 0.0
      %v1770 = vmax.f32 %v1744, 0.0
      %v1771 = vmax.f32 %v1746, 0.0
      %v1772 = vmax.f32 %v1750, 0.0
      %v1773 = vmax.f32 %v1752, 0.0
      %v1774 = vmax.f32 %v1756, 0.0
      %v1775 = vmax.f32 %v1758, 0.0
      %v1776 = vld [vmem:[%s5] sm:$0xff]
      %v1777 = vld [vmem:[%s5 + $0x8] sm:$0xff]
      %v1778 = vld [vmem:[%s5 + $0x10] sm:$0xff]
      %v1779 = vld [vmem:[%s5 + $0x18] sm:$0xff]
      %v1780 = vld [vmem:[%s5 + $0x20] sm:$0xff]
      %v1781 = vld [vmem:[%s5 + $0x28] sm:$0xff]
      %v1782 = vld [vmem:[%s5 + $0x30] sm:$0xff]
      %v1783 = vld [vmem:[%s5 + $0x38] sm:$0xff]
      %v1784 = vld [vmem:[%s5 + $0x40] sm:$0xff]
      %v1785 = vld [vmem:[%s5 + $0x48] sm:$0xff]
      %v1786 = vld [vmem:[%s5 + $0x50] sm:$0xff]
      %v1787 = vld [vmem:[%s5 + $0x58] sm:$0xff]
      %v1788 = vld [vmem:[%s5 + $0x60] sm:$0xff]
      %v1789 = vld [vmem:[%s5 + $0x68] sm:$0xff]
      %v1790 = vld [vmem:[%s5 + $0x70] sm:$0xff]
      %v1791 = vld [vmem:[%s5 + $0x78] sm:$0xff]
      %v1792 = vld [vmem:[%s5 + $0x80] sm:$0xff]
      %v1793 = vld [vmem:[%s5 + $0x88] sm:$0xff]
      %v1794 = vld [vmem:[%s5 + $0x90] sm:$0xff]
      %v1795 = vld [vmem:[%s5 + $0x98] sm:$0xff]
      %v1796 = vld [vmem:[%s5 + $0xa0] sm:$0xff]
      %v1797 = vld [vmem:[%s5 + $0xa8] sm:$0xff]
      %v1798 = vld [vmem:[%s5 + $0xb0] sm:$0xff]
      %v1799 = vld [vmem:[%s5 + $0xb8] sm:$0xff]
      %v1800 = vld [vmem:[%s5 + $0xc0] sm:$0xff]
      %v1801 = vld [vmem:[%s5 + $0xc8] sm:$0xff]
      %v1802 = vld [vmem:[%s5 + $0xd0] sm:$0xff]
      %v1803 = vld [vmem:[%s5 + $0xd8] sm:$0xff]
      %v1804 = vld [vmem:[%s5 + $0xe0] sm:$0xff]
      %v1805 = vld [vmem:[%s5 + $0xe8] sm:$0xff]
      %v1806 = vld [vmem:[%s5 + $0xf0] sm:$0xff]
      %v1807 = vld [vmem:[%s5 + $0xf8] sm:$0xff]
      %v1808 = vld [vmem:[%s6] sm:$0x1]
      %v1810 = vlaneseq
      %v1811 = vshrl.u32 %v1810, 7
      %v1812 = vsub.s32 0, %v1811
      %v1813 = vrot.slane %v1808, %v1812
      %1815 = vmatprep.subr.mxu0 0.0
      %1816 = vmatpush1.msra.mxu0 %v1776
      %1817 = vmatprep.subr.mxu0 0.0
      %1818 = vmatpush1.msra.mxu0 %v1777
      %1819 = vmatprep.subr.mxu0 0.0
      %1820 = vmatpush1.msra.mxu0 %v1778
      %1821 = vmatprep.subr.mxu0 0.0
      %1822 = vmatpush1.msra.mxu0 %v1779
      %1823 = vmatprep.subr.mxu0 0.0
      %1824 = vmatpush1.msra.mxu0 %v1780
      %1825 = vmatprep.subr.mxu0 0.0
      %1826 = vmatpush1.msra.mxu0 %v1781
      %1827 = vmatprep.subr.mxu0 0.0
      %1828 = vmatpush1.msra.mxu0 %v1782
      %1829 = vmatprep.subr.mxu0 0.0
      %1830 = vmatpush1.msra.mxu0 %v1783
      %1831 = vmatprep.subr.mxu0 0.0
      %1832 = vmatpush1.msra.mxu0 %v1784
      %1833 = vmatprep.subr.mxu0 0.0
      %1834 = vmatpush1.msra.mxu0 %v1785
      %1835 = vmatprep.subr.mxu0 0.0
      %1836 = vmatpush1.msra.mxu0 %v1786
      %1837 = vmatprep.subr.mxu0 0.0
      %1838 = vmatpush1.msra.mxu0 %v1787
      %1839 = vmatprep.subr.mxu0 0.0
      %1840 = vmatpush1.msra.mxu0 %v1788
      %1841 = vmatprep.subr.mxu0 0.0
      %1842 = vmatpush1.msra.mxu0 %v1789
      %1843 = vmatprep.subr.mxu0 0.0
      %1844 = vmatpush1.msra.mxu0 %v1790
      %1845 = vmatprep.subr.mxu0 0.0
      %1846 = vmatpush1.msra.mxu0 %v1791
      %1847 = vmatprep.subr.mxu0 0.0
      %1848 = vmatpush1.msra.mxu0 %v1792
      %1849 = vmatprep.subr.mxu0 0.0
      %1850 = vmatpush1.msra.mxu0 %v1793
      %1851 = vmatprep.subr.mxu0 0.0
      %1852 = vmatpush1.msra.mxu0 %v1794
      %1853 = vmatprep.subr.mxu0 0.0
      %1854 = vmatpush1.msra.mxu0 %v1795
      %1855 = vmatprep.subr.mxu0 0.0
      %1856 = vmatpush1.msra.mxu0 %v1796
      %1857 = vmatprep.subr.mxu0 0.0
      %1858 = vmatpush1.msra.mxu0 %v1797
      %1859 = vmatprep.subr.mxu0 0.0
      %1860 = vmatpush1.msra.mxu0 %v1798
      %1861 = vmatprep.subr.mxu0 0.0
      %1862 = vmatpush1.msra.mxu0 %v1799
      %1863 = vmatprep.subr.mxu0 0.0
      %1864 = vmatpush1.msra.mxu0 %v1800
      %1865 = vmatprep.subr.mxu0 0.0
      %1866 = vmatpush1.msra.mxu0 %v1801
      %1867 = vmatprep.subr.mxu0 0.0
      %1868 = vmatpush1.msra.mxu0 %v1802
      %1869 = vmatprep.subr.mxu0 0.0
      %1870 = vmatpush1.msra.mxu0 %v1803
      %1871 = vmatprep.subr.mxu0 0.0
      %1872 = vmatpush1.msra.mxu0 %v1804
      %1873 = vmatprep.subr.mxu0 0.0
      %1874 = vmatpush1.msra.mxu0 %v1805
      %1875 = vmatprep.subr.mxu0 0.0
      %1876 = vmatpush1.msra.mxu0 %v1806
      %1877 = vmatprep.subr.mxu0 0.0
      %1878 = vmatpush1.msra.mxu0 %v1807
      %1879 = vmatprep.mubr.f32.mxu0 %v1761
      %1880 = vmatmul.mubr.f32.gmra.mrb[0].mxu0 %v1760
      %v1881 = vpop.f32.mrb[0].mxu0
      %v1882 = vadd.f32 %v1813, %v1881
      %v1883 = vpop.f32.mrb[0].mxu0
      %1884 = vmatprep.mubr.f32.mxu0 %v1763
      %1885 = vmatmul.mubr.f32.gmra.mrb[0].mxu0 %v1762
      %v1886 = vpop.f32.mrb[0].mxu0
      %v1887 = vadd.f32 %v1813, %v1886
      %v1888 = vpop.f32.mrb[0].mxu0
      %1889 = vmatprep.mubr.f32.mxu0 %v1765
      %1890 = vmatmul.mubr.f32.gmra.mrb[0].mxu0 %v1764
      %v1891 = vpop.f32.mrb[0].mxu0
      %v1892 = vadd.f32 %v1813, %v1891
      %v1893 = vpop.f32.mrb[0].mxu0
      %1894 = vmatprep.mubr.f32.mxu0 %v1767
      %1895 = vmatmul.mubr.f32.gmra.mrb[0].mxu0 %v1766
      %v1896 = vpop.f32.mrb[0].mxu0
      %v1897 = vadd.f32 %v1813, %v1896
      %v1898 = vpop.f32.mrb[0].mxu0
      %1899 = vmatprep.mubr.f32.mxu0 %v1769
      %1900 = vmatmul.mubr.f32.gmra.mrb[0].mxu0 %v1768
      %v1901 = vpop.f32.mrb[0].mxu0
      %v1902 = vadd.f32 %v1813, %v1901
      %v1903 = vpop.f32.mrb[0].mxu0
      %1904 = vmatprep.mubr.f32.mxu0 %v1771
      %1905 = vmatmul.mubr.f32.gmra.mrb[0].mxu0 %v1770
      %v1906 = vpop.f32.mrb[0].mxu0
      %v1907 = vadd.f32 %v1813, %v1906
      %v1908 = vpop.f32.mrb[0].mxu0
      %1909 = vmatprep.mubr.f32.mxu0 %v1773
      %1910 = vmatmul.mubr.f32.gmra.mrb[0].mxu0 %v1772
      %v1911 = vpop.f32.mrb[0].mxu0
      %v1912 = vadd.f32 %v1813, %v1911
      %v1913 = vpop.f32.mrb[0].mxu0
      %1914 = vmatprep.mubr.f32.mxu0 %v1775
      %1915 = vmatmul.mubr.f32.gmra.mrb[0].mxu0 %v1774
      %v1916 = vpop.f32.mrb[0].mxu0
      %v1917 = vadd.f32 %v1813, %v1916
      %v1918 = vpop.f32.mrb[0].mxu0
      %1919 = vdwg.mxu0
      %v1920 = vmax.f32 %v1882, 0.0
      %v1921 = vmax.f32 %v1887, 0.0
      %v1922 = vmax.f32 %v1892, 0.0
      %v1923 = vmax.f32 %v1897, 0.0
      %v1924 = vmax.f32 %v1902, 0.0
      %v1925 = vmax.f32 %v1907, 0.0
      %v1926 = vmax.f32 %v1912, 0.0
      %v1927 = vmax.f32 %v1917, 0.0
      %v1928 = vld [vmem:[%s7] sm:$0xff]
      %v1929 = vld [vmem:[%s7 + $0x8] sm:$0xff]
      %v1930 = vld [vmem:[%s7 + $0x10] sm:$0xff]
      %v1931 = vld [vmem:[%s7 + $0x18] sm:$0xff]
      %v1932 = vld [vmem:[%s7 + $0x20] sm:$0xff]
      %v1933 = vld [vmem:[%s7 + $0x28] sm:$0xff]
      %v1934 = vld [vmem:[%s7 + $0x30] sm:$0xff]
      %v1935 = vld [vmem:[%s7 + $0x38] sm:$0xff]
      %v1936 = vld [vmem:[%s7 + $0x40] sm:$0xff]
      %v1937 = vld [vmem:[%s7 + $0x48] sm:$0xff]
      %v1938 = vld [vmem:[%s7 + $0x50] sm:$0xff]
      %v1939 = vld [vmem:[%s7 + $0x58] sm:$0xff]
      %v1940 = vld [vmem:[%s7 + $0x60] sm:$0xff]
      %v1941 = vld [vmem:[%s7 + $0x68] sm:$0xff]
      %v1942 = vld [vmem:[%s7 + $0x70] sm:$0xff]
      %v1943 = vld [vmem:[%s7 + $0x78] sm:$0xff]
      %v1944 = vld [vmem:[%s8] sm:$0x1]
      %v1946 = vlaneseq
      %v1947 = vshrl.u32 %v1946, 7
      %v1948 = vsub.s32 0, %v1947
      %v1949 = vrot.slane %v1944, %v1948
      %1951 = vmatprep.subr.mxu0 0.0
      %1952 = vmatpush1.msra.mxu0 %v1928
      %1953 = vmatprep.subr.mxu0 0.0
      %1954 = vmatpush1.msra.mxu0 %v1929
      %1955 = vmatprep.subr.mxu0 0.0
      %1956 = vmatpush1.msra.mxu0 %v1930
      %1957 = vmatprep.subr.mxu0 0.0
      %1958 = vmatpush1.msra.mxu0 %v1931
      %1959 = vmatprep.subr.mxu0 0.0
      %1960 = vmatpush1.msra.mxu0 %v1932
      %1961 = vmatprep.subr.mxu0 0.0
      %1962 = vmatpush1.msra.mxu0 %v1933
      %1963 = vmatprep.subr.mxu0 0.0
      %1964 = vmatpush1.msra.mxu0 %v1934
      %1965 = vmatprep.subr.mxu0 0.0
      %1966 = vmatpush1.msra.mxu0 %v1935
      %1967 = vmatprep.subr.mxu0 0.0
      %1968 = vmatpush1.msra.mxu0 %v1936
      %1969 = vmatprep.subr.mxu0 0.0
      %1970 = vmatpush1.msra.mxu0 %v1937
      %1971 = vmatprep.subr.mxu0 0.0
      %1972 = vmatpush1.msra.mxu0 %v1938
      %1973 = vmatprep.subr.mxu0 0.0
      %1974 = vmatpush1.msra.mxu0 %v1939
      %1975 = vmatprep.subr.mxu0 0.0
      %1976 = vmatpush1.msra.mxu0 %v1940
      %1977 = vmatprep.subr.mxu0 0.0
      %1978 = vmatpush1.msra.mxu0 %v1941
      %1979 = vmatprep.subr.mxu0 0.0
      %1980 = vmatpush1.msra.mxu0 %v1942
      %1981 = vmatprep.subr.mxu0 0.0
      %1982 = vmatpush1.msra.mxu0 %v1943
      %1983 = vmatprep.subr.mxu0 0.0
      %1984 = vmatpush1.msra.mxu0 0.0
      %1985 = vmatprep.subr.mxu0 0.0
      %1986 = vmatpush1.msra.mxu0 0.0
      %1987 = vmatprep.subr.mxu0 0.0
      %1988 = vmatpush1.msra.mxu0 0.0
      %1989 = vmatprep.subr.mxu0 0.0
      %1990 = vmatpush1.msra.mxu0 0.0
      %1991 = vmatprep.subr.mxu0 0.0
      %1992 = vmatpush1.msra.mxu0 0.0
      %1993 = vmatprep.subr.mxu0 0.0
      %1994 = vmatpush1.msra.mxu0 0.0
      %1995 = vmatprep.subr.mxu0 0.0
      %1996 = vmatpush1.msra.mxu0 0.0
      %1997 = vmatprep.subr.mxu0 0.0
      %1998 = vmatpush1.msra.mxu0 0.0
      %1999 = vmatprep.subr.mxu0 0.0
      %2000 = vmatpush1.msra.mxu0 0.0
      %2001 = vmatprep.subr.mxu0 0.0
      %2002 = vmatpush1.msra.mxu0 0.0
      %2003 = vmatprep.subr.mxu0 0.0
      %2004 = vmatpush1.msra.mxu0 0.0
      %2005 = vmatprep.subr.mxu0 0.0
      %2006 = vmatpush1.msra.mxu0 0.0
      %2007 = vmatprep.subr.mxu0 0.0
      %2008 = vmatpush1.msra.mxu0 0.0
      %2009 = vmatprep.subr.mxu0 0.0
      %2010 = vmatpush1.msra.mxu0 0.0
      %2011 = vmatprep.subr.mxu0 0.0
      %2012 = vmatpush1.msra.mxu0 0.0
      %2013 = vmatprep.subr.mxu0 0.0
      %2014 = vmatpush1.msra.mxu0 0.0
      %2015 = vmatprep.mubr.f32.mxu0 0.0
      %2016 = vmatmul.mubr.f32.gmra.mrb[0].mxu0 %v1920
      %v2017 = vpop.f32.mrb[0].mxu0
      %v2018 = vadd.f32 %v1949, %v2017
      %v2019 = vpop.f32.mrb[0].mxu0
      %2020 = vmatprep.mubr.f32.mxu0 0.0
      %2021 = vmatmul.mubr.f32.gmra.mrb[0].mxu0 %v1921
      %v2022 = vpop.f32.mrb[0].mxu0
      %v2023 = vadd.f32 %v1949, %v2022
      %v2024 = vpop.f32.mrb[0].mxu0
      %2025 = vmatprep.mubr.f32.mxu0 0.0
      %2026 = vmatmul.mubr.f32.gmra.mrb[0].mxu0 %v1922
      %v2027 = vpop.f32.mrb[0].mxu0
      %v2028 = vadd.f32 %v1949, %v2027
      %v2029 = vpop.f32.mrb[0].mxu0
      %2030 = vmatprep.mubr.f32.mxu0 0.0
      %2031 = vmatmul.mubr.f32.gmra.mrb[0].mxu0 %v1923
      %v2032 = vpop.f32.mrb[0].mxu0
      %v2033 = vadd.f32 %v1949, %v2032
      %v2034 = vpop.f32.mrb[0].mxu0
      %2035 = vmatprep.mubr.f32.mxu0 0.0
      %2036 = vmatmul.mubr.f32.gmra.mrb[0].mxu0 %v1924
      %v2037 = vpop.f32.mrb[0].mxu0
      %v2038 = vadd.f32 %v1949, %v2037
      %v2039 = vpop.f32.mrb[0].mxu0
      %2040 = vmatprep.mubr.f32.mxu0 0.0
      %2041 = vmatmul.mubr.f32.gmra.mrb[0].mxu0 %v1925
      %v2042 = vpop.f32.mrb[0].mxu0
      %v2043 = vadd.f32 %v1949, %v2042
      %v2044 = vpop.f32.mrb[0].mxu0
      %2045 = vmatprep.mubr.f32.mxu0 0.0
      %2046 = vmatmul.mubr.f32.gmra.mrb[0].mxu0 %v1926
      %v2047 = vpop.f32.mrb[0].mxu0
      %v2048 = vadd.f32 %v1949, %v2047
      %v2049 = vpop.f32.mrb[0].mxu0
      %2050 = vmatprep.mubr.f32.mxu0 0.0
      %2051 = vmatmul.mubr.f32.gmra.mrb[0].mxu0 %v1927
      %v2052 = vpop.f32.mrb[0].mxu0
      %v2053 = vadd.f32 %v1949, %v2052
      %v2054 = vpop.f32.mrb[0].mxu0
      %2055 = vdwg.mxu0
      %vm2056 = vcmask 80896
      %v2057 = vsel %vm2056, %v2018, -inf
      %2058 = vmax.xlane.f32.xlu0 %v2057
      %v2059 = vpop.xlane.xlu0 %2058
      %v2060 = vsel %vm2056, %v2023, -inf
      %2061 = vmax.xlane.f32.xlu0 %v2060
      %v2062 = vpop.xlane.xlu0 %2061
      %v2063 = vsel %vm2056, %v2028, -inf
      %2064 = vmax.xlane.f32.xlu0 %v2063
      %v2065 = vpop.xlane.xlu0 %2064
      %v2066 = vsel %vm2056, %v2033, -inf
      %2067 = vmax.xlane.f32.xlu0 %v2066
      %v2068 = vpop.xlane.xlu0 %2067
      %v2069 = vsel %vm2056, %v2038, -inf
      %2070 = vmax.xlane.f32.xlu0 %v2069
      %v2071 = vpop.xlane.xlu0 %2070
      %v2072 = vsel %vm2056, %v2043, -inf
      %2073 = vmax.xlane.f32.xlu0 %v2072
      %v2074 = vpop.xlane.xlu0 %2073
      %v2075 = vsel %vm2056, %v2048, -inf
      %2076 = vmax.xlane.f32.xlu0 %v2075
      %v2077 = vpop.xlane.xlu0 %2076
      %v2078 = vsel %vm2056, %v2053, -inf
      %2079 = vmax.xlane.f32.xlu0 %v2078
      %v2080 = vpop.xlane.xlu0 %2079
      %v2081 = vsub.f32 %v2018, %v2059
      %v2082 = vsub.f32 %v2023, %v2062
      %v2083 = vsub.f32 %v2028, %v2065
      %v2084 = vsub.f32 %v2033, %v2068
      %v2085 = vsub.f32 %v2038, %v2071
      %v2086 = vsub.f32 %v2043, %v2074
      %v2087 = vsub.f32 %v2048, %v2077
      %v2088 = vsub.f32 %v2053, %v2080
      %v2089 = vmul.f32 %v2081, 1.442695
      %v2090 = vpow.pop %v2089
      %v2091 = vmul.f32 %v2082, 1.442695
      %v2092 = vpow.pop %v2091
      %v2093 = vmul.f32 %v2083, 1.442695
      %v2094 = vpow.pop %v2093
      %v2095 = vmul.f32 %v2084, 1.442695
      %v2096 = vpow.pop %v2095
      %v2097 = vmul.f32 %v2085, 1.442695
      %v2098 = vpow.pop %v2097
      %v2099 = vmul.f32 %v2086, 1.442695
      %v2100 = vpow.pop %v2099
      %v2101 = vmul.f32 %v2087, 1.442695
      %v2102 = vpow.pop %v2101
      %v2103 = vmul.f32 %v2088, 1.442695
      %v2104 = vpow.pop %v2103
      %v2105 = vsel %vm2056, %v2090, 0.0
      %2106 = vadd.xlane.f32.xlu0 %v2105
      %v2107 = vpop.xlane.xlu0 %2106
      %v2108 = vsel %vm2056, %v2092, 0.0
      %2109 = vadd.xlane.f32.xlu0 %v2108
      %v2110 = vpop.xlane.xlu0 %2109
      %v2111 = vsel %vm2056, %v2094, 0.0
      %2112 = vadd.xlane.f32.xlu0 %v2111
      %v2113 = vpop.xlane.xlu0 %2112
      %v2114 = vsel %vm2056, %v2096, 0.0
      %2115 = vadd.xlane.f32.xlu0 %v2114
      %v2116 = vpop.xlane.xlu0 %2115
      %v2117 = vsel %vm2056, %v2098, 0.0
      %2118 = vadd.xlane.f32.xlu0 %v2117
      %v2119 = vpop.xlane.xlu0 %2118
      %v2120 = vsel %vm2056, %v2100, 0.0
      %2121 = vadd.xlane.f32.xlu0 %v2120
      %v2122 = vpop.xlane.xlu0 %2121
      %v2123 = vsel %vm2056, %v2102, 0.0
      %2124 = vadd.xlane.f32.xlu0 %v2123
      %v2125 = vpop.xlane.xlu0 %2124
      %v2126 = vsel %vm2056, %v2104, 0.0
      %2127 = vadd.xlane.f32.xlu0 %v2126
      %v2128 = vpop.xlane.xlu0 %2127
      %v2129 = vlog2.pop %v2107
      %v2130 = vmul.f32 %v2129, 0.6931472
      %v2131 = vlog2.pop %v2110
      %v2132 = vmul.f32 %v2131, 0.6931472
      %v2133 = vlog2.pop %v2113
      %v2134 = vmul.f32 %v2133, 0.6931472
      %v2135 = vlog2.pop %v2116
      %v2136 = vmul.f32 %v2135, 0.6931472
      %v2137 = vlog2.pop %v2119
      %v2138 = vmul.f32 %v2137, 0.6931472
      %v2139 = vlog2.pop %v2122
      %v2140 = vmul.f32 %v2139, 0.6931472
      %v2141 = vlog2.pop %v2125
      %v2142 = vmul.f32 %v2141, 0.6931472
      %v2143 = vlog2.pop %v2128
      %v2144 = vmul.f32 %v2143, 0.6931472
      %v2145 = vsub.f32 %v2081, %v2130
      %v2146 = vsub.f32 %v2082, %v2132
      %v2147 = vsub.f32 %v2083, %v2134
      %v2148 = vsub.f32 %v2084, %v2136
      %v2149 = vsub.f32 %v2085, %v2138
      %v2150 = vsub.f32 %v2086, %v2140
      %v2151 = vsub.f32 %v2087, %v2142
      %v2152 = vsub.f32 %v2088, %v2144
      %2153 = vst.msk [vmem:[%s334] sm:$0xff] %vm2056, %v2145
      %2154 = vst.msk [vmem:[%s334 + $0x8] sm:$0xff] %vm2056, %v2146
      %2155 = vst.msk [vmem:[%s334 + $0x10] sm:$0xff] %vm2056, %v2147
      %2156 = vst.msk [vmem:[%s334 + $0x18] sm:$0xff] %vm2056, %v2148
      %2157 = vst.msk [vmem:[%s334 + $0x20] sm:$0xff] %vm2056, %v2149
      %2158 = vst.msk [vmem:[%s334 + $0x28] sm:$0xff] %vm2056, %v2150
      %2159 = vst.msk [vmem:[%s334 + $0x30] sm:$0xff] %vm2056, %v2151
      %2160 = vst.msk [vmem:[%s334 + $0x38] sm:$0xff] %vm2056, %v2152
      %s2161 = smul.u32 8, %s20
      %p2162 = scmp.lt.s32.totalorder %s2161, 15
      %s2163 = scalar_select %p2162, %s2161, 15
      %s2164 = smul.addr %s2163, 8
      %s2165 = scalar_lea.vmem %s9, %s2164
      // Predicated region
      $region57: #{forward.7} parent=55 // pred_check
        %p2166 = pneg %p232
      $region58: #{forward.7} parent=55 // pred_check_branch
        %2168 = sbr.rel (%p2166) target = $region60
      $region59: #{forward.7} parent=55 // pred_region
        %s2169 = smul.u32 8, %s20
      $region60: #{forward.7} parent=55 // pred_fallthru
        _
    $region56: #{forward.7} parent=5 // pred_fallthru
      _
    %p2170 = scmp.le.s32.totalorder 2, %s15
    // Predicated region
    $region61: #{forward.7} parent=5 // pred_check
      %p2171 = pneg %p2170
    $region62: #{forward.7} parent=5 // pred_check_branch
      %2173 = sbr.rel (%p2171) target = $region64
    $region63: #{forward.7} parent=5 // pred_region
      %s2174 = ssub.s32 %s15, 2
      // Predicated region
      $region65: #{forward.7} parent=63 // pred_check
        %p2175 = pneg %p238
      $region66: #{forward.7} parent=63 // pred_check_branch
        %2177 = sbr.rel (%p2175) target = $region68
      $region67: #{forward.7} parent=63 // pred_region
        %s2178 = smul.u32 8, %s21
        %p2179 = scmp.lt.s32.totalorder %s2178, 15
        %s2180 = scalar_select %p2179, %s2178, 15
        %s2181 = smul.addr %s2180, 8
        %s2182 = scalar_lea.vmem %s9, %s2181
      $region68: #{forward.7} parent=63 // pred_fallthru
        _
    $region64: #{forward.7} parent=5 // pred_fallthru
      _
  $region6: #{forward.7} parent=0 // loop_footer
    %s19 = sadd.s32 1, %s15
  $region7: #{forward.7} parent=0 // loop_footer_branch
    %14 = sbr.rel target = $region3
  $region8: #{forward.7} parent=0 // loop_exit
    _

</llo_original>
